<compile_context>
chip_gen: v7x
topology: tpu7x:2x2x1
jax: 0.10.0
libtpu: 0.0.40
codegen_flags: <defaults>
</compile_context>

<pallas_src>
import functools
import math

import jax
import jax.numpy as jnp
from jax.experimental import pallas as pl
from jax.experimental.pallas import tpu as pltpu


# ----------------------------------------------------------------------------
# Small synthetic config (stand-in for facebook/wav2vec2-base, num_labels=1)
# ----------------------------------------------------------------------------
class SmallConfig:
    conv_dim = (32, 32, 32)            # wav2vec2-base: (512,)*7
    conv_kernel = (10, 3, 3)           # wav2vec2-base: (10,3,3,3,3,2,2)
    conv_stride = (5, 2, 2)            # wav2vec2-base: (5,2,2,2,2,2,2)
    hidden_size = 64                   # 768
    num_heads = 4                      # 12
    num_layers = 2                     # 12
    intermediate_size = 128            # 3072
    num_conv_pos_embeddings = 8        # 128
    num_conv_pos_embedding_groups = 4  # 16
    classifier_proj_size = 32          # 256
    num_labels = 1
    eps = 1e-5


# ----------------------------------------------------------------------------
# In-kernel helpers
# ----------------------------------------------------------------------------
def _gelu(x):
    # TODO(synk): HF wav2vec2 uses erf-based GELU; tanh approximation kept for
    # Mosaic-safe lowering (tanh runs on the EUP slot).
    c = math.sqrt(2.0 / math.pi)
    return 0.5 * x * (1.0 + jnp.tanh(c * (x + 0.044715 * x * x * x)))


def _mxdot(a, b):
    # bf16 MXU operands (weights are already stored bf16), f32 accumulation.
    return jnp.dot(a.astype(jnp.bfloat16), b.astype(jnp.bfloat16),
                   preferred_element_type=jnp.float32)


def _layernorm(x, g, b, eps):
    mu = jnp.mean(x, axis=-1, keepdims=True)
    xc = x - mu
    var = jnp.mean(xc * xc, axis=-1, keepdims=True)
    return xc * jax.lax.rsqrt(var + eps) * g + b


# ----------------------------------------------------------------------------
# Pallas kernels
# ----------------------------------------------------------------------------
def _conv1_gn_kernel(p_ref, w_ref, g_ref, b_ref, o_ref, *, eps):
    """conv1 (as matmul) + per-channel GroupNorm over time + GELU.

    One batch per grid step: GroupNorm statistics are an in-kernel per-batch
    reduction over rows (two-pass variance)."""
    y = _mxdot(p_ref[...], w_ref[...])                       # (L1, C0) f32
    mu = jnp.mean(y, axis=0, keepdims=True)                  # (1, C0)
    xc = y - mu
    var = jnp.mean(xc * xc, axis=0, keepdims=True)
    o_ref[...] = _gelu(xc * jax.lax.rsqrt(var + eps) * g_ref[...] + b_ref[...])


def _conv_gelu_kernel(p_ref, w_ref, o_ref):
    """conv (as matmul) + GELU (conv_bias=False)."""
    o_ref[...] = _gelu(_mxdot(p_ref[...], w_ref[...]))


def _conv3_proj_kernel(p_ref, w_ref, lng_ref, lnb_ref, fpw_ref, fpb_ref, o_ref,
                       *, eps):
    """Last feature-extractor conv + GELU + feature-projection LN + Linear."""
    y = _gelu(_mxdot(p_ref[...], w_ref[...]))                # (T, C)
    z = _layernorm(y, lng_ref[...], lnb_ref[...], eps)
    o_ref[...] = _mxdot(z, fpw_ref[...]) + fpb_ref[...]      # (T, H)


def _posconv_ln_kernel(h_ref, hp_ref, w_ref, b_ref, g_ref, bt_ref, o_ref,
                       *, k, eps):
    """Grouped positional conv as k shifted-tap matmuls on the resident tile,
    fused with GELU + residual add + encoder LayerNorm (one batch / step).

    TODO(synk): the per-tap (H,H) weight is block-diagonal (1/groups dense);
    at real config a per-group batched matmul would avoid the wasted FLOPs."""
    T = h_ref.shape[0]
    acc = jnp.zeros(h_ref.shape, jnp.float32)
    for j in range(k):                                       # static unroll, k=8
        acc = acc + _mxdot(hp_ref[pl.ds(j, T), :], w_ref[j])
    pos = _gelu(acc + b_ref[...])
    o_ref[...] = _layernorm(h_ref[...] + pos, g_ref[...], bt_ref[...], eps)


def _encoder_layer_kernel(h_ref, qkvw_ref, qkvb_ref, ow_ref, ob_ref,
                          ln1g_ref, ln1b_ref, f1w_ref, f1b_ref,
                          f2w_ref, f2b_ref, ln2g_ref, ln2b_ref,
                          o_ref, *, batch, nh, dh, eps):
    """One whole transformer layer per grid step (grid = num_layers).

    The activation stays resident in the revisited output block across layers.
    QKV is a single fused matmul; attention is per-batch (batched einsum, no
    mask); per-head contexts are concatenated and projected with ONE
    (M,H)@(H,H) matmul."""
    layer = pl.program_id(0)

    @pl.when(layer == 0)
    def _init():
        o_ref[...] = h_ref[...]

    h = o_ref[...]                                           # (M, H) f32
    M, H = h.shape
    T = M // batch
    scale = 1.0 / math.sqrt(dh)

    qkv = _mxdot(h, qkvw_ref[...]) + qkvb_ref[...]           # (M, 3H)

    # TODO(synk): at real wav2vec2-base widths (dh=64, nh=12) repack heads onto
    # a leading axis so the per-head lane slices below are 128-aligned.
    ctx_parts = []
    for hh in range(nh):                                     # static unroll, nh=4
        c0 = hh * dh
        q = qkv[:, c0:c0 + dh].reshape(batch, T, dh)
        k = qkv[:, H + c0:H + c0 + dh].reshape(batch, T, dh)
        v = qkv[:, 2 * H + c0:2 * H + c0 + dh].reshape(batch, T, dh)
        s = jnp.einsum('bqd,bkd->bqk',
                       q.astype(jnp.bfloat16), k.astype(jnp.bfloat16),
                       preferred_element_type=jnp.float32) * scale   # (B, T, T)
        s = s - jnp.max(s, axis=-1, keepdims=True)
        p = jnp.exp(s)
        p = p * pl.reciprocal(jnp.sum(p, axis=-1, keepdims=True), approx=True)
        o_h = jnp.einsum('bqk,bkd->bqd',
                         p.astype(jnp.bfloat16), v.astype(jnp.bfloat16),
                         preferred_element_type=jnp.float32)          # (B, T, dh)
        ctx_parts.append(o_h.reshape(M, dh))
    ctx = jnp.concatenate(ctx_parts, axis=-1)                # (M, H)
    attn = _mxdot(ctx, ow_ref[...]) + ob_ref[...]            # single out-proj

    x = _layernorm(h + attn, ln1g_ref[...], ln1b_ref[...], eps)   # post-LN
    ff = _gelu(_mxdot(x, f1w_ref[...]) + f1b_ref[...])
    ff = _mxdot(ff, f2w_ref[...]) + f2b_ref[...]
    x = _layernorm(x + ff, ln2g_ref[...], ln2b_ref[...], eps)

    o_ref[...] = x                                           # stays resident


def _head_kernel(h_ref, pw_ref, pb_ref, cw_ref, cb_ref, o_ref, *, batch):
    """Projector -> per-batch mean pool (in-kernel reduction) -> classifier."""
    proj = _mxdot(h_ref[...], pw_ref[...]) + pb_ref[...]     # (M, P)
    M, P = proj.shape
    pooled = jnp.mean(proj.reshape(batch, M // batch, P), axis=1)   # (B, P)
    o_ref[...] = _mxdot(pooled, cw_ref[...]) + cb_ref[...]   # (B, num_labels)


# ----------------------------------------------------------------------------
# pallas_call wrappers
# ----------------------------------------------------------------------------
def _bspec_batched(shape):
    nd = len(shape)
    return pl.BlockSpec((None,) + tuple(shape[1:]),
                        lambda b: (b,) + (0,) * (nd - 1))


def _bspec_shared(shape):
    nd = len(shape)
    return pl.BlockSpec(tuple(shape), lambda b: (0,) * nd)


def _batch_grid_call(kernel, out_shape, batched, shared, **kw):
    """grid=(B,) over the leading batch axis (parallel -> both v7x TCs)."""
    fn = functools.partial(kernel, **kw) if kw else kernel
    B = out_shape[0]
    in_specs = ([_bspec_batched(a.shape) for a in batched]
                + [_bspec_shared(a.shape) for a in shared])
    return pl.pallas_call(
        fn,
        grid=(B,),
        out_shape=jax.ShapeDtypeStruct(out_shape, jnp.float32),
        in_specs=in_specs,
        out_specs=_bspec_batched(out_shape),
        compiler_params=pltpu.CompilerParams(
            dimension_semantics=("parallel",)),
    )(*batched, *shared)


def _single(kernel, out_shape, *args, **kw):
    """Single-invocation kernel: whole (small) arrays resident in VMEM."""
    fn = functools.partial(kernel, **kw) if kw else kernel
    return pl.pallas_call(
        fn, out_shape=jax.ShapeDtypeStruct(out_shape, jnp.float32))(*args)


def _lspec(shape):
    nd = len(shape)
    return pl.BlockSpec((None,) + tuple(shape[1:]),
                        lambda l: (l,) + (0,) * (nd - 1))


def _encoder_forward(h2d, params, cfg, batch):
    M, H = h2d.shape
    nl, nh = cfg.num_layers, cfg.num_heads
    dh = H // nh

    names = ("qkv_w", "qkv_b", "o_w", "o_b", "ln1_g", "ln1_b",
             "ff1_w", "ff1_b", "ff2_w", "ff2_b", "ln2_g", "ln2_b")
    weights = [params[n] for n in names]

    in_specs = ([pl.BlockSpec((M, H), lambda l: (0, 0))]
                + [_lspec(a.shape) for a in weights])

    return pl.pallas_call(
        functools.partial(_encoder_layer_kernel,
                          batch=batch, nh=nh, dh=dh, eps=cfg.eps),
        grid=(nl,),
        out_shape=jax.ShapeDtypeStruct((M, H), jnp.float32),
        in_specs=in_specs,
        out_specs=pl.BlockSpec((M, H), lambda l: (0, 0)),
        compiler_params=pltpu.CompilerParams(
            dimension_semantics=("arbitrary",),
            vmem_limit_bytes=32 * 1024 * 1024),
    )(h2d, *weights)


# ----------------------------------------------------------------------------
# JAX glue (tiny): im2col patch extraction between convs
# ----------------------------------------------------------------------------
def _im2col(x, k, stride):
    # x: (B, L_in, C) -> (B, L_out, C*k), column order ci*k + j (PyTorch flatten).
    # TODO(synk): at real audio lengths do conv1 as in-kernel tap accumulation
    # instead of materializing patches in HBM (here duplication is only k/stride).
    B, L_in, C = x.shape
    L = (L_in - k) // stride + 1
    idx = jnp.arange(L)[:, None] * stride + jnp.arange(k)[None, :]   # (L, k)
    patches = x[:, idx, :]                                           # (B, L, k, C)
    patches = patches.transpose(0, 1, 3, 2)                          # (B, L, C, k)
    return patches.reshape(B, L, C * k), L


# ----------------------------------------------------------------------------
# Parameters (deterministic synthetic init; matmul weights stored bf16)
# ----------------------------------------------------------------------------
def init_params(key, cfg):
    keys = iter(jax.random.split(key, 64))

    def w(shape, std=0.02, dtype=jnp.bfloat16):
        return (std * jax.random.normal(next(keys), shape, jnp.float32)).astype(dtype)

    H, I, P = cfg.hidden_size, cfg.intermediate_size, cfg.classifier_proj_size
    p = {}

    # --- feature extractor convs (conv_bias=False), stored as (Cin*k, Cout) ---
    cin = 1
    conv_ws = []
    for cout, kk in zip(cfg.conv_dim, cfg.conv_kernel):
        wc = w((cout, cin, kk), dtype=jnp.float32)
        conv_ws.append(wc.reshape(cout, cin * kk).T.astype(jnp.bfloat16))
        cin = cout
    p["conv_w"] = conv_ws

    C0 = cfg.conv_dim[0]
    p["gn_g"] = jnp.ones((1, C0), jnp.float32)
    p["gn_b"] = jnp.zeros((1, C0), jnp.float32)

    C = cfg.conv_dim[-1]
    p["fp_ln_g"] = jnp.ones((1, C), jnp.float32)
    p["fp_ln_b"] = jnp.zeros((1, C), jnp.float32)
    p["fp_w"] = w((C, H))
    p["fp_b"] = jnp.zeros((1, H), jnp.float32)

    # --- positional conv: per-tap block-diagonal (H,H) weights (k taps) ---
    # TODO(synk): HF applies weight_norm to this conv; skipped for synthetic weights.
    groups = cfg.num_conv_pos_embedding_groups
    Cg = H // groups
    k = cfg.num_conv_pos_embeddings
    pos_w = w((H, Cg, k), dtype=jnp.float32)                 # (Cout, Cin/groups, k)
    wt = jnp.zeros((k, H, H), jnp.float32)
    for g in range(groups):
        blk = pos_w[g * Cg:(g + 1) * Cg]                     # (Cg_out, Cg_in, k)
        # Wt_j[ci_local, co_local] = blk[co_local, ci_local, j]
        wt = wt.at[:, g * Cg:(g + 1) * Cg, g * Cg:(g + 1) * Cg].set(
            jnp.transpose(blk, (2, 1, 0)))
    p["pos_w_taps"] = wt.astype(jnp.bfloat16)                # (k, H, H)
    p["pos_b"] = jnp.zeros((1, H), jnp.float32)

    p["enc_ln_g"] = jnp.ones((1, H), jnp.float32)
    p["enc_ln_b"] = jnp.zeros((1, H), jnp.float32)

    # --- transformer layers, stacked with a leading layer axis (bf16 weights) ---
    nl = cfg.num_layers
    p["qkv_w"] = w((nl, H, 3 * H))
    p["qkv_b"] = jnp.zeros((nl, 1, 3 * H), jnp.float32)
    p["o_w"] = w((nl, H, H))
    p["o_b"] = jnp.zeros((nl, 1, H), jnp.float32)
    p["ln1_g"] = jnp.ones((nl, 1, H), jnp.float32)
    p["ln1_b"] = jnp.zeros((nl, 1, H), jnp.float32)
    p["ff1_w"] = w((nl, H, I))
    p["ff1_b"] = jnp.zeros((nl, 1, I), jnp.float32)
    p["ff2_w"] = w((nl, I, H))
    p["ff2_b"] = jnp.zeros((nl, 1, H), jnp.float32)
    p["ln2_g"] = jnp.ones((nl, 1, H), jnp.float32)
    p["ln2_b"] = jnp.zeros((nl, 1, H), jnp.float32)

    # --- classification head ---
    p["proj_w"] = w((H, P))
    p["proj_b"] = jnp.zeros((1, P), jnp.float32)
    p["cls_w"] = w((P, cfg.num_labels))
    p["cls_b"] = jnp.zeros((1, cfg.num_labels), jnp.float32)
    return p


# ----------------------------------------------------------------------------
# Full forward pass (Wav2Vec2ForSequenceClassification .logits)
# ----------------------------------------------------------------------------
def forward(params, cfg, x):
    B, _ = x.shape
    H = cfg.hidden_size

    # --- conv1 + GroupNorm + GELU (grid over batch, per-batch stats) ---
    p1, L1 = _im2col(x[:, :, None], cfg.conv_kernel[0], cfg.conv_stride[0])
    h = _batch_grid_call(_conv1_gn_kernel, (B, L1, cfg.conv_dim[0]),
                         [p1],
                         [params["conv_w"][0], params["gn_g"], params["gn_b"]],
                         eps=cfg.eps)

    # --- conv2 + GELU ---
    p2, L2 = _im2col(h, cfg.conv_kernel[1], cfg.conv_stride[1])
    h = _batch_grid_call(_conv_gelu_kernel, (B, L2, cfg.conv_dim[1]),
                         [p2], [params["conv_w"][1]])

    # --- conv3 + GELU + feature-projection LN + Linear ---
    p3, T = _im2col(h, cfg.conv_kernel[2], cfg.conv_stride[2])
    h3 = _batch_grid_call(_conv3_proj_kernel, (B, T, H),
                          [p3],
                          [params["conv_w"][2], params["fp_ln_g"],
                           params["fp_ln_b"], params["fp_w"], params["fp_b"]],
                          eps=cfg.eps)

    # --- positional conv embedding + residual + encoder LayerNorm ---
    k = cfg.num_conv_pos_embeddings
    pad = k // 2
    hp = jnp.pad(h3, ((0, 0), (pad, pad), (0, 0)))           # (B, T+2*pad, H)
    h2 = _batch_grid_call(_posconv_ln_kernel, (B, T, H),
                          [h3, hp],
                          [params["pos_w_taps"], params["pos_b"],
                           params["enc_ln_g"], params["enc_ln_b"]],
                          k=k, eps=cfg.eps)

    # --- transformer encoder: one pallas_call, grid over layers ---
    h2d = h2.reshape(B * T, H)
    h2d = _encoder_forward(h2d, params, cfg, B)

    # --- classification head: projector -> per-batch mean pool -> classifier ---
    logits = _single(_head_kernel, (B, cfg.num_labels),
                     h2d, params["proj_w"], params["proj_b"],
                     params["cls_w"], params["cls_b"], batch=B)
    return logits


# ----------------------------------------------------------------------------
if __name__ == "__main__":
    cfg = SmallConfig()
    key = jax.random.PRNGKey(0)
    pkey, xkey = jax.random.split(key)
    params = init_params(pkey, cfg)

    # raw mono audio: (batch=2, samples=660) -> 32 frames after the conv stack
    input_data = jax.random.normal(xkey, (2, 660), jnp.float32)

    fwd = jax.jit(lambda p, xx: forward(p, cfg, xx))
    logits = jax.block_until_ready(fwd(params, input_data))
    assert logits.shape == (2, cfg.num_labels), logits.shape
    assert bool(jnp.all(jnp.isfinite(logits)))
    print("KERNEL_OK")
</pallas_src>

<mosaic_0001>
module attributes {stable_mosaic.version = 11 : i64} {
  func.func @_conv1_gn_kernel(%arg0: i32, %arg1: memref<1x131x10xf32, #tpu.memory_space<vmem>>, %arg2: memref<10x32xbf16, #tpu.memory_space<vmem>>, %arg3: memref<1x32xf32, #tpu.memory_space<vmem>>, %arg4: memref<1x32xf32, #tpu.memory_space<vmem>>, %arg5: memref<1x131x32xf32, #tpu.memory_space<vmem>>) attributes {dimension_semantics = [#tpu.dimension_semantics<parallel>], iteration_bounds = array<i64: 2>, scalar_prefetch = 0 : i64, scratch_operands = 0 : i64, tpu.core_type = #tpu.core_type<tc>, window_params = [{transform_indices = @transform_0, window_bounds = array<i64: 1, 131, 10>}, {pipeline_mode = #tpu.pipeline_mode<synchronous>, transform_indices = @transform_1, window_bounds = array<i64: 10, 32>}, {pipeline_mode = #tpu.pipeline_mode<synchronous>, transform_indices = @transform_2, window_bounds = array<i64: 1, 32>}, {pipeline_mode = #tpu.pipeline_mode<synchronous>, transform_indices = @transform_3, window_bounds = array<i64: 1, 32>}, {transform_indices = @transform_4, window_bounds = array<i64: 1, 131, 32>}]} {
    %c0 = arith.constant 0 : index
    %c0_0 = arith.constant 0 : index
    %c0_1 = arith.constant 0 : index
    %0 = vector.load %arg1[%c0, %c0_0, %c0_1] : memref<1x131x10xf32, #tpu.memory_space<vmem>>, vector<1x131x10xf32>
    %1 = vector.shape_cast %0 : vector<1x131x10xf32> to vector<131x10xf32>
    %c0_2 = arith.constant 0 : index
    %c0_3 = arith.constant 0 : index
    %2 = vector.load %arg2[%c0_2, %c0_3] : memref<10x32xbf16, #tpu.memory_space<vmem>>, vector<10x32xbf16>
    %3 = arith.truncf %1 : vector<131x10xf32> to vector<131x10xbf16>
    %cst = arith.constant dense<0.000000e+00> : vector<131x32xf32>
    %4 = tpu.matmul %3, %2, %cst {dimension_numbers = #tpu.dot_dimension_numbers<[1], [0], [0], [1], [0, 0, 1, 1], [], []>} : vector<131x10xbf16>, vector<10x32xbf16>, vector<131x32xf32> -> vector<131x32xf32>
    %cst_4 = arith.constant dense<0.000000e+00> : vector<32xf32>
    %5 = vector.multi_reduction <add>, %4, %cst_4 [0] : vector<131x32xf32> to vector<32xf32>
    %6 = vector.shape_cast %5 : vector<32xf32> to vector<1x32xf32>
    %cst_5 = arith.constant 1.310000e+02 : f32
    %7 = vector.broadcast %cst_5 : f32 to vector<1x32xf32>
    %8 = arith.divf %6, %7 : vector<1x32xf32>
    %9 = vector.broadcast %8 : vector<1x32xf32> to vector<131x32xf32>
    %10 = arith.subf %4, %9 : vector<131x32xf32>
    %11 = arith.mulf %10, %10 : vector<131x32xf32>
    %cst_6 = arith.constant dense<0.000000e+00> : vector<32xf32>
    %12 = vector.multi_reduction <add>, %11, %cst_6 [0] : vector<131x32xf32> to vector<32xf32>
    %13 = vector.shape_cast %12 : vector<32xf32> to vector<1x32xf32>
    %cst_7 = arith.constant 1.310000e+02 : f32
    %14 = vector.broadcast %cst_7 : f32 to vector<1x32xf32>
    %15 = arith.divf %13, %14 : vector<1x32xf32>
    %cst_8 = arith.constant 9.99999974E-6 : f32
    %16 = vector.broadcast %cst_8 : f32 to vector<1x32xf32>
    %17 = arith.addf %15, %16 : vector<1x32xf32>
    %18 = math.rsqrt %17 : vector<1x32xf32>
    %19 = vector.broadcast %18 : vector<1x32xf32> to vector<131x32xf32>
    %20 = arith.mulf %10, %19 : vector<131x32xf32>
    %c0_9 = arith.constant 0 : index
    %c0_10 = arith.constant 0 : index
    %21 = vector.load %arg3[%c0_9, %c0_10] : memref<1x32xf32, #tpu.memory_space<vmem>>, vector<1x32xf32>
    %22 = vector.broadcast %21 : vector<1x32xf32> to vector<131x32xf32>
    %23 = arith.mulf %20, %22 : vector<131x32xf32>
    %c0_11 = arith.constant 0 : index
    %c0_12 = arith.constant 0 : index
    %24 = vector.load %arg4[%c0_11, %c0_12] : memref<1x32xf32, #tpu.memory_space<vmem>>, vector<1x32xf32>
    %25 = vector.broadcast %24 : vector<1x32xf32> to vector<131x32xf32>
    %26 = arith.addf %23, %25 : vector<131x32xf32>
    %cst_13 = arith.constant 5.000000e-01 : f32
    %27 = vector.broadcast %cst_13 : f32 to vector<131x32xf32>
    %28 = arith.mulf %27, %26 : vector<131x32xf32>
    %cst_14 = arith.constant 4.471500e-02 : f32
    %29 = vector.broadcast %cst_14 : f32 to vector<131x32xf32>
    %30 = arith.mulf %29, %26 : vector<131x32xf32>
    %31 = arith.mulf %30, %26 : vector<131x32xf32>
    %32 = arith.mulf %31, %26 : vector<131x32xf32>
    %33 = arith.addf %26, %32 : vector<131x32xf32>
    %cst_15 = arith.constant 0.797884583 : f32
    %34 = vector.broadcast %cst_15 : f32 to vector<131x32xf32>
    %35 = arith.mulf %34, %33 : vector<131x32xf32>
    %36 = math.tanh %35 : vector<131x32xf32>
    %cst_16 = arith.constant 1.000000e+00 : f32
    %37 = vector.broadcast %cst_16 : f32 to vector<131x32xf32>
    %38 = arith.addf %37, %36 : vector<131x32xf32>
    %39 = arith.mulf %28, %38 : vector<131x32xf32>
    %c0_17 = arith.constant 0 : index
    %c0_18 = arith.constant 0 : index
    %c0_19 = arith.constant 0 : index
    %40 = vector.load %arg5[%c0_17, %c0_18, %c0_19] : memref<1x131x32xf32, #tpu.memory_space<vmem>>, vector<1x131x32xf32>
    %41 = vector.shape_cast %40 : vector<1x131x32xf32> to vector<131x32xf32>
    %42 = vector.shape_cast %39 : vector<131x32xf32> to vector<1x131x32xf32>
    tpu.vector_store %arg5[%c0_17, %c0_18, %c0_19], %42 {strides = array<i32>} : memref<1x131x32xf32, #tpu.memory_space<vmem>>, vector<1x131x32xf32>,
    return
  }
  func.func @transform_0(%arg0: i32) -> (i32, i32, i32) {
    %c0_i32 = arith.constant 0 : i32
    %c0_i32_0 = arith.constant 0 : i32
    %c0_i32_1 = arith.constant 0 : i32
    return %arg0, %c0_i32, %c0_i32_0 : i32, i32, i32
  }
  func.func @transform_1(%arg0: i32) -> (i32, i32) {
    %c0_i32 = arith.constant 0 : i32
    %c0_i32_0 = arith.constant 0 : i32
    %c0_i32_1 = arith.constant 0 : i32
    return %c0_i32, %c0_i32_0 : i32, i32
  }
  func.func @transform_2(%arg0: i32) -> (i32, i32) {
    %c0_i32 = arith.constant 0 : i32
    %c0_i32_0 = arith.constant 0 : i32
    %c0_i32_1 = arith.constant 0 : i32
    return %c0_i32, %c0_i32_0 : i32, i32
  }
  func.func @transform_3(%arg0: i32) -> (i32, i32) {
    %c0_i32 = arith.constant 0 : i32
    %c0_i32_0 = arith.constant 0 : i32
    %c0_i32_1 = arith.constant 0 : i32
    return %c0_i32, %c0_i32_0 : i32, i32
  }
  func.func @transform_4(%arg0: i32) -> (i32, i32, i32) {
    %c0_i32 = arith.constant 0 : i32
    %c0_i32_0 = arith.constant 0 : i32
    %c0_i32_1 = arith.constant 0 : i32
    return %arg0, %c0_i32, %c0_i32_0 : i32, i32, i32
  }
}

module attributes {stable_mosaic.version = 11 : i64} {
  func.func @_conv_gelu_kernel(%arg0: i32, %arg1: memref<1x65x96xf32, #tpu.memory_space<vmem>>, %arg2: memref<96x32xbf16, #tpu.memory_space<vmem>>, %arg3: memref<1x65x32xf32, #tpu.memory_space<vmem>>) attributes {dimension_semantics = [#tpu.dimension_semantics<parallel>], iteration_bounds = array<i64: 2>, scalar_prefetch = 0 : i64, scratch_operands = 0 : i64, tpu.core_type = #tpu.core_type<tc>, window_params = [{transform_indices = @transform_0, window_bounds = array<i64: 1, 65, 96>}, {pipeline_mode = #tpu.pipeline_mode<synchronous>, transform_indices = @transform_1, window_bounds = array<i64: 96, 32>}, {transform_indices = @transform_2, window_bounds = array<i64: 1, 65, 32>}]} {
    %c0 = arith.constant 0 : index
    %c0_0 = arith.constant 0 : index
    %c0_1 = arith.constant 0 : index
    %0 = vector.load %arg1[%c0, %c0_0, %c0_1] : memref<1x65x96xf32, #tpu.memory_space<vmem>>, vector<1x65x96xf32>
    %1 = vector.shape_cast %0 : vector<1x65x96xf32> to vector<65x96xf32>
    %c0_2 = arith.constant 0 : index
    %c0_3 = arith.constant 0 : index
    %2 = vector.load %arg2[%c0_2, %c0_3] : memref<96x32xbf16, #tpu.memory_space<vmem>>, vector<96x32xbf16>
    %3 = arith.truncf %1 : vector<65x96xf32> to vector<65x96xbf16>
    %cst = arith.constant dense<0.000000e+00> : vector<65x32xf32>
    %4 = tpu.matmul %3, %2, %cst {dimension_numbers = #tpu.dot_dimension_numbers<[1], [0], [0], [1], [0, 0, 1, 1], [], []>} : vector<65x96xbf16>, vector<96x32xbf16>, vector<65x32xf32> -> vector<65x32xf32>
    %cst_4 = arith.constant 5.000000e-01 : f32
    %5 = vector.broadcast %cst_4 : f32 to vector<65x32xf32>
    %6 = arith.mulf %5, %4 : vector<65x32xf32>
    %cst_5 = arith.constant 4.471500e-02 : f32
    %7 = vector.broadcast %cst_5 : f32 to vector<65x32xf32>
    %8 = arith.mulf %7, %4 : vector<65x32xf32>
    %9 = arith.mulf %8, %4 : vector<65x32xf32>
    %10 = arith.mulf %9, %4 : vector<65x32xf32>
    %11 = arith.addf %4, %10 : vector<65x32xf32>
    %cst_6 = arith.constant 0.797884583 : f32
    %12 = vector.broadcast %cst_6 : f32 to vector<65x32xf32>
    %13 = arith.mulf %12, %11 : vector<65x32xf32>
    %14 = math.tanh %13 : vector<65x32xf32>
    %cst_7 = arith.constant 1.000000e+00 : f32
    %15 = vector.broadcast %cst_7 : f32 to vector<65x32xf32>
    %16 = arith.addf %15, %14 : vector<65x32xf32>
    %17 = arith.mulf %6, %16 : vector<65x32xf32>
    %c0_8 = arith.constant 0 : index
    %c0_9 = arith.constant 0 : index
    %c0_10 = arith.constant 0 : index
    %18 = vector.load %arg3[%c0_8, %c0_9, %c0_10] : memref<1x65x32xf32, #tpu.memory_space<vmem>>, vector<1x65x32xf32>
    %19 = vector.shape_cast %18 : vector<1x65x32xf32> to vector<65x32xf32>
    %20 = vector.shape_cast %17 : vector<65x32xf32> to vector<1x65x32xf32>
    tpu.vector_store %arg3[%c0_8, %c0_9, %c0_10], %20 {strides = array<i32>} : memref<1x65x32xf32, #tpu.memory_space<vmem>>, vector<1x65x32xf32>,
    return
  }
  func.func @transform_0(%arg0: i32) -> (i32, i32, i32) {
    %c0_i32 = arith.constant 0 : i32
    %c0_i32_0 = arith.constant 0 : i32
    %c0_i32_1 = arith.constant 0 : i32
    return %arg0, %c0_i32, %c0_i32_0 : i32, i32, i32
  }
  func.func @transform_1(%arg0: i32) -> (i32, i32) {
    %c0_i32 = arith.constant 0 : i32
    %c0_i32_0 = arith.constant 0 : i32
    %c0_i32_1 = arith.constant 0 : i32
    return %c0_i32, %c0_i32_0 : i32, i32
  }
  func.func @transform_2(%arg0: i32) -> (i32, i32, i32) {
    %c0_i32 = arith.constant 0 : i32
    %c0_i32_0 = arith.constant 0 : i32
    %c0_i32_1 = arith.constant 0 : i32
    return %arg0, %c0_i32, %c0_i32_0 : i32, i32, i32
  }
}

module attributes {stable_mosaic.version = 11 : i64} {
  func.func @_conv3_proj_kernel(%arg0: i32, %arg1: memref<1x32x96xf32, #tpu.memory_space<vmem>>, %arg2: memref<96x32xbf16, #tpu.memory_space<vmem>>, %arg3: memref<1x32xf32, #tpu.memory_space<vmem>>, %arg4: memref<1x32xf32, #tpu.memory_space<vmem>>, %arg5: memref<32x64xbf16, #tpu.memory_space<vmem>>, %arg6: memref<1x64xf32, #tpu.memory_space<vmem>>, %arg7: memref<1x32x64xf32, #tpu.memory_space<vmem>>) attributes {dimension_semantics = [#tpu.dimension_semantics<parallel>], iteration_bounds = array<i64: 2>, scalar_prefetch = 0 : i64, scratch_operands = 0 : i64, tpu.core_type = #tpu.core_type<tc>, window_params = [{transform_indices = @transform_0, window_bounds = array<i64: 1, 32, 96>}, {pipeline_mode = #tpu.pipeline_mode<synchronous>, transform_indices = @transform_1, window_bounds = array<i64: 96, 32>}, {pipeline_mode = #tpu.pipeline_mode<synchronous>, transform_indices = @transform_2, window_bounds = array<i64: 1, 32>}, {pipeline_mode = #tpu.pipeline_mode<synchronous>, transform_indices = @transform_3, window_bounds = array<i64: 1, 32>}, {pipeline_mode = #tpu.pipeline_mode<synchronous>, transform_indices = @transform_4, window_bounds = array<i64: 32, 64>}, {pipeline_mode = #tpu.pipeline_mode<synchronous>, transform_indices = @transform_5, window_bounds = array<i64: 1, 64>}, {transform_indices = @transform_6, window_bounds = array<i64: 1, 32, 64>}]} {
    %c0 = arith.constant 0 : index
    %c0_0 = arith.constant 0 : index
    %c0_1 = arith.constant 0 : index
    %0 = vector.load %arg1[%c0, %c0_0, %c0_1] : memref<1x32x96xf32, #tpu.memory_space<vmem>>, vector<1x32x96xf32>
    %1 = vector.shape_cast %0 : vector<1x32x96xf32> to vector<32x96xf32>
    %c0_2 = arith.constant 0 : index
    %c0_3 = arith.constant 0 : index
    %2 = vector.load %arg2[%c0_2, %c0_3] : memref<96x32xbf16, #tpu.memory_space<vmem>>, vector<96x32xbf16>
    %3 = arith.truncf %1 : vector<32x96xf32> to vector<32x96xbf16>
    %cst = arith.constant dense<0.000000e+00> : vector<32x32xf32>
    %4 = tpu.matmul %3, %2, %cst {dimension_numbers = #tpu.dot_dimension_numbers<[1], [0], [0], [1], [0, 0, 1, 1], [], []>} : vector<32x96xbf16>, vector<96x32xbf16>, vector<32x32xf32> -> vector<32x32xf32>
    %cst_4 = arith.constant 5.000000e-01 : f32
    %5 = vector.broadcast %cst_4 : f32 to vector<32x32xf32>
    %6 = arith.mulf %5, %4 : vector<32x32xf32>
    %cst_5 = arith.constant 4.471500e-02 : f32
    %7 = vector.broadcast %cst_5 : f32 to vector<32x32xf32>
    %8 = arith.mulf %7, %4 : vector<32x32xf32>
    %9 = arith.mulf %8, %4 : vector<32x32xf32>
    %10 = arith.mulf %9, %4 : vector<32x32xf32>
    %11 = arith.addf %4, %10 : vector<32x32xf32>
    %cst_6 = arith.constant 0.797884583 : f32
    %12 = vector.broadcast %cst_6 : f32 to vector<32x32xf32>
    %13 = arith.mulf %12, %11 : vector<32x32xf32>
    %14 = math.tanh %13 : vector<32x32xf32>
    %cst_7 = arith.constant 1.000000e+00 : f32
    %15 = vector.broadcast %cst_7 : f32 to vector<32x32xf32>
    %16 = arith.addf %15, %14 : vector<32x32xf32>
    %17 = arith.mulf %6, %16 : vector<32x32xf32>
    %c0_8 = arith.constant 0 : index
    %c0_9 = arith.constant 0 : index
    %18 = vector.load %arg3[%c0_8, %c0_9] : memref<1x32xf32, #tpu.memory_space<vmem>>, vector<1x32xf32>
    %c0_10 = arith.constant 0 : index
    %c0_11 = arith.constant 0 : index
    %19 = vector.load %arg4[%c0_10, %c0_11] : memref<1x32xf32, #tpu.memory_space<vmem>>, vector<1x32xf32>
    %cst_12 = arith.constant dense<0.000000e+00> : vector<32xf32>
    %20 = vector.multi_reduction <add>, %17, %cst_12 [1] : vector<32x32xf32> to vector<32xf32>
    %21 = vector.shape_cast %20 : vector<32xf32> to vector<32x1xf32>
    %cst_13 = arith.constant 3.200000e+01 : f32
    %22 = vector.broadcast %cst_13 : f32 to vector<32x1xf32>
    %23 = arith.divf %21, %22 : vector<32x1xf32>
    %24 = vector.broadcast %23 : vector<32x1xf32> to vector<32x32xf32>
    %25 = arith.subf %17, %24 : vector<32x32xf32>
    %26 = arith.mulf %25, %25 : vector<32x32xf32>
    %cst_14 = arith.constant dense<0.000000e+00> : vector<32xf32>
    %27 = vector.multi_reduction <add>, %26, %cst_14 [1] : vector<32x32xf32> to vector<32xf32>
    %28 = vector.shape_cast %27 : vector<32xf32> to vector<32x1xf32>
    %cst_15 = arith.constant 3.200000e+01 : f32
    %29 = vector.broadcast %cst_15 : f32 to vector<32x1xf32>
    %30 = arith.divf %28, %29 : vector<32x1xf32>
    %cst_16 = arith.constant 9.99999974E-6 : f32
    %31 = vector.broadcast %cst_16 : f32 to vector<32x1xf32>
    %32 = arith.addf %30, %31 : vector<32x1xf32>
    %33 = math.rsqrt %32 : vector<32x1xf32>
    %34 = vector.broadcast %33 : vector<32x1xf32> to vector<32x32xf32>
    %35 = arith.mulf %25, %34 : vector<32x32xf32>
    %36 = vector.broadcast %18 : vector<1x32xf32> to vector<32x32xf32>
    %37 = arith.mulf %35, %36 : vector<32x32xf32>
    %38 = vector.broadcast %19 : vector<1x32xf32> to vector<32x32xf32>
    %39 = arith.addf %37, %38 : vector<32x32xf32>
    %c0_17 = arith.constant 0 : index
    %c0_18 = arith.constant 0 : index
    %40 = vector.load %arg5[%c0_17, %c0_18] : memref<32x64xbf16, #tpu.memory_space<vmem>>, vector<32x64xbf16>
    %41 = arith.truncf %39 : vector<32x32xf32> to vector<32x32xbf16>
    %cst_19 = arith.constant dense<0.000000e+00> : vector<32x64xf32>
    %42 = tpu.matmul %41, %40, %cst_19 {dimension_numbers = #tpu.dot_dimension_numbers<[1], [0], [0], [1], [0, 0, 1, 1], [], []>} : vector<32x32xbf16>, vector<32x64xbf16>, vector<32x64xf32> -> vector<32x64xf32>
    %c0_20 = arith.constant 0 : index
    %c0_21 = arith.constant 0 : index
    %43 = vector.load %arg6[%c0_20, %c0_21] : memref<1x64xf32, #tpu.memory_space<vmem>>, vector<1x64xf32>
    %44 = vector.broadcast %43 : vector<1x64xf32> to vector<32x64xf32>
    %45 = arith.addf %42, %44 : vector<32x64xf32>
    %c0_22 = arith.constant 0 : index
    %c0_23 = arith.constant 0 : index
    %c0_24 = arith.constant 0 : index
    %46 = vector.load %arg7[%c0_22, %c0_23, %c0_24] : memref<1x32x64xf32, #tpu.memory_space<vmem>>, vector<1x32x64xf32>
    %47 = vector.shape_cast %46 : vector<1x32x64xf32> to vector<32x64xf32>
    %48 = vector.shape_cast %45 : vector<32x64xf32> to vector<1x32x64xf32>
    tpu.vector_store %arg7[%c0_22, %c0_23, %c0_24], %48 {strides = array<i32>} : memref<1x32x64xf32, #tpu.memory_space<vmem>>, vector<1x32x64xf32>,
    return
  }
  func.func @transform_0(%arg0: i32) -> (i32, i32, i32) {
    %c0_i32 = arith.constant 0 : i32
    %c0_i32_0 = arith.constant 0 : i32
    %c0_i32_1 = arith.constant 0 : i32
    return %arg0, %c0_i32, %c0_i32_0 : i32, i32, i32
  }
  func.func @transform_1(%arg0: i32) -> (i32, i32) {
    %c0_i32 = arith.constant 0 : i32
    %c0_i32_0 = arith.constant 0 : i32
    %c0_i32_1 = arith.constant 0 : i32
    return %c0_i32, %c0_i32_0 : i32, i32
  }
  func.func @transform_2(%arg0: i32) -> (i32, i32) {
    %c0_i32 = arith.constant 0 : i32
    %c0_i32_0 = arith.constant 0 : i32
    %c0_i32_1 = arith.constant 0 : i32
    return %c0_i32, %c0_i32_0 : i32, i32
  }
  func.func @transform_3(%arg0: i32) -> (i32, i32) {
    %c0_i32 = arith.constant 0 : i32
    %c0_i32_0 = arith.constant 0 : i32
    %c0_i32_1 = arith.constant 0 : i32
    return %c0_i32, %c0_i32_0 : i32, i32
  }
  func.func @transform_4(%arg0: i32) -> (i32, i32) {
    %c0_i32 = arith.constant 0 : i32
    %c0_i32_0 = arith.constant 0 : i32
    %c0_i32_1 = arith.constant 0 : i32
    return %c0_i32, %c0_i32_0 : i32, i32
  }
  func.func @transform_5(%arg0: i32) -> (i32, i32) {
    %c0_i32 = arith.constant 0 : i32
    %c0_i32_0 = arith.constant 0 : i32
    %c0_i32_1 = arith.constant 0 : i32
    return %c0_i32, %c0_i32_0 : i32, i32
  }
  func.func @transform_6(%arg0: i32) -> (i32, i32, i32) {
    %c0_i32 = arith.constant 0 : i32
    %c0_i32_0 = arith.constant 0 : i32
    %c0_i32_1 = arith.constant 0 : i32
    return %arg0, %c0_i32, %c0_i32_0 : i32, i32, i32
  }
}

module attributes {stable_mosaic.version = 11 : i64} {
  func.func @_posconv_ln_kernel(%arg0: i32, %arg1: memref<1x32x64xf32, #tpu.memory_space<vmem>>, %arg2: memref<1x40x64xf32, #tpu.memory_space<vmem>>, %arg3: memref<8x64x64xbf16, #tpu.memory_space<vmem>>, %arg4: memref<1x64xf32, #tpu.memory_space<vmem>>, %arg5: memref<1x64xf32, #tpu.memory_space<vmem>>, %arg6: memref<1x64xf32, #tpu.memory_space<vmem>>, %arg7: memref<1x32x64xf32, #tpu.memory_space<vmem>>) attributes {dimension_semantics = [#tpu.dimension_semantics<parallel>], iteration_bounds = array<i64: 2>, scalar_prefetch = 0 : i64, scratch_operands = 0 : i64, tpu.core_type = #tpu.core_type<tc>, window_params = [{transform_indices = @transform_0, window_bounds = array<i64: 1, 32, 64>}, {transform_indices = @transform_1, window_bounds = array<i64: 1, 40, 64>}, {pipeline_mode = #tpu.pipeline_mode<synchronous>, transform_indices = @transform_2, window_bounds = array<i64: 8, 64, 64>}, {pipeline_mode = #tpu.pipeline_mode<synchronous>, transform_indices = @transform_3, window_bounds = array<i64: 1, 64>}, {pipeline_mode = #tpu.pipeline_mode<synchronous>, transform_indices = @transform_4, window_bounds = array<i64: 1, 64>}, {pipeline_mode = #tpu.pipeline_mode<synchronous>, transform_indices = @transform_5, window_bounds = array<i64: 1, 64>}, {transform_indices = @transform_6, window_bounds = array<i64: 1, 32, 64>}]} {
    %cst = arith.constant 0.000000e+00 : f32
    %0 = vector.broadcast %cst : f32 to vector<32x64xf32>
    %c0 = arith.constant 0 : index
    %c0_0 = arith.constant 0 : index
    %c0_1 = arith.constant 0 : index
    %1 = vector.load %arg2[%c0, %c0_0, %c0_1] : memref<1x40x64xf32, #tpu.memory_space<vmem>>, vector<1x32x64xf32>
    %2 = vector.shape_cast %1 : vector<1x32x64xf32> to vector<32x64xf32>
    %c0_2 = arith.constant 0 : index
    %c0_3 = arith.constant 0 : index
    %c0_4 = arith.constant 0 : index
    %3 = vector.load %arg3[%c0_2, %c0_3, %c0_4] : memref<8x64x64xbf16, #tpu.memory_space<vmem>>, vector<1x64x64xbf16>
    %4 = vector.shape_cast %3 : vector<1x64x64xbf16> to vector<64x64xbf16>
    %5 = arith.truncf %2 : vector<32x64xf32> to vector<32x64xbf16>
    %cst_5 = arith.constant dense<0.000000e+00> : vector<32x64xf32>
    %6 = tpu.matmul %5, %4, %cst_5 {dimension_numbers = #tpu.dot_dimension_numbers<[1], [0], [0], [1], [0, 0, 1, 1], [], []>} : vector<32x64xbf16>, vector<64x64xbf16>, vector<32x64xf32> -> vector<32x64xf32>
    %7 = arith.addf %0, %6 : vector<32x64xf32>
    %c0_6 = arith.constant 0 : index
    %c1 = arith.constant 1 : index
    %c0_7 = arith.constant 0 : index
    %8 = vector.load %arg2[%c0_6, %c1, %c0_7] : memref<1x40x64xf32, #tpu.memory_space<vmem>>, vector<1x32x64xf32>
    %9 = vector.shape_cast %8 : vector<1x32x64xf32> to vector<32x64xf32>
    %c1_8 = arith.constant 1 : index
    %c0_9 = arith.constant 0 : index
    %c0_10 = arith.constant 0 : index
    %10 = vector.load %arg3[%c1_8, %c0_9, %c0_10] : memref<8x64x64xbf16, #tpu.memory_space<vmem>>, vector<1x64x64xbf16>
    %11 = vector.shape_cast %10 : vector<1x64x64xbf16> to vector<64x64xbf16>
    %12 = arith.truncf %9 : vector<32x64xf32> to vector<32x64xbf16>
    %cst_11 = arith.constant dense<0.000000e+00> : vector<32x64xf32>
    %13 = tpu.matmul %12, %11, %cst_11 {dimension_numbers = #tpu.dot_dimension_numbers<[1], [0], [0], [1], [0, 0, 1, 1], [], []>} : vector<32x64xbf16>, vector<64x64xbf16>, vector<32x64xf32> -> vector<32x64xf32>
    %14 = arith.addf %7, %13 : vector<32x64xf32>
    %c0_12 = arith.constant 0 : index
    %c2 = arith.constant 2 : index
    %c0_13 = arith.constant 0 : index
    %15 = vector.load %arg2[%c0_12, %c2, %c0_13] : memref<1x40x64xf32, #tpu.memory_space<vmem>>, vector<1x32x64xf32>
    %16 = vector.shape_cast %15 : vector<1x32x64xf32> to vector<32x64xf32>
    %c2_14 = arith.constant 2 : index
    %c0_15 = arith.constant 0 : index
    %c0_16 = arith.constant 0 : index
    %17 = vector.load %arg3[%c2_14, %c0_15, %c0_16] : memref<8x64x64xbf16, #tpu.memory_space<vmem>>, vector<1x64x64xbf16>
    %18 = vector.shape_cast %17 : vector<1x64x64xbf16> to vector<64x64xbf16>
    %19 = arith.truncf %16 : vector<32x64xf32> to vector<32x64xbf16>
    %cst_17 = arith.constant dense<0.000000e+00> : vector<32x64xf32>
    %20 = tpu.matmul %19, %18, %cst_17 {dimension_numbers = #tpu.dot_dimension_numbers<[1], [0], [0], [1], [0, 0, 1, 1], [], []>} : vector<32x64xbf16>, vector<64x64xbf16>, vector<32x64xf32> -> vector<32x64xf32>
    %21 = arith.addf %14, %20 : vector<32x64xf32>
    %c0_18 = arith.constant 0 : index
    %c3 = arith.constant 3 : index
    %c0_19 = arith.constant 0 : index
    %22 = vector.load %arg2[%c0_18, %c3, %c0_19] : memref<1x40x64xf32, #tpu.memory_space<vmem>>, vector<1x32x64xf32>
    %23 = vector.shape_cast %22 : vector<1x32x64xf32> to vector<32x64xf32>
    %c3_20 = arith.constant 3 : index
    %c0_21 = arith.constant 0 : index
    %c0_22 = arith.constant 0 : index
    %24 = vector.load %arg3[%c3_20, %c0_21, %c0_22] : memref<8x64x64xbf16, #tpu.memory_space<vmem>>, vector<1x64x64xbf16>
    %25 = vector.shape_cast %24 : vector<1x64x64xbf16> to vector<64x64xbf16>
    %26 = arith.truncf %23 : vector<32x64xf32> to vector<32x64xbf16>
    %cst_23 = arith.constant dense<0.000000e+00> : vector<32x64xf32>
    %27 = tpu.matmul %26, %25, %cst_23 {dimension_numbers = #tpu.dot_dimension_numbers<[1], [0], [0], [1], [0, 0, 1, 1], [], []>} : vector<32x64xbf16>, vector<64x64xbf16>, vector<32x64xf32> -> vector<32x64xf32>
    %28 = arith.addf %21, %27 : vector<32x64xf32>
    %c0_24 = arith.constant 0 : index
    %c4 = arith.constant 4 : index
    %c0_25 = arith.constant 0 : index
    %29 = vector.load %arg2[%c0_24, %c4, %c0_25] : memref<1x40x64xf32, #tpu.memory_space<vmem>>, vector<1x32x64xf32>
    %30 = vector.shape_cast %29 : vector<1x32x64xf32> to vector<32x64xf32>
    %c4_26 = arith.constant 4 : index
    %c0_27 = arith.constant 0 : index
    %c0_28 = arith.constant 0 : index
    %31 = vector.load %arg3[%c4_26, %c0_27, %c0_28] : memref<8x64x64xbf16, #tpu.memory_space<vmem>>, vector<1x64x64xbf16>
    %32 = vector.shape_cast %31 : vector<1x64x64xbf16> to vector<64x64xbf16>
    %33 = arith.truncf %30 : vector<32x64xf32> to vector<32x64xbf16>
    %cst_29 = arith.constant dense<0.000000e+00> : vector<32x64xf32>
    %34 = tpu.matmul %33, %32, %cst_29 {dimension_numbers = #tpu.dot_dimension_numbers<[1], [0], [0], [1], [0, 0, 1, 1], [], []>} : vector<32x64xbf16>, vector<64x64xbf16>, vector<32x64xf32> -> vector<32x64xf32>
    %35 = arith.addf %28, %34 : vector<32x64xf32>
    %c0_30 = arith.constant 0 : index
    %c5 = arith.constant 5 : index
    %c0_31 = arith.constant 0 : index
    %36 = vector.load %arg2[%c0_30, %c5, %c0_31] : memref<1x40x64xf32, #tpu.memory_space<vmem>>, vector<1x32x64xf32>
    %37 = vector.shape_cast %36 : vector<1x32x64xf32> to vector<32x64xf32>
    %c5_32 = arith.constant 5 : index
    %c0_33 = arith.constant 0 : index
    %c0_34 = arith.constant 0 : index
    %38 = vector.load %arg3[%c5_32, %c0_33, %c0_34] : memref<8x64x64xbf16, #tpu.memory_space<vmem>>, vector<1x64x64xbf16>
    %39 = vector.shape_cast %38 : vector<1x64x64xbf16> to vector<64x64xbf16>
    %40 = arith.truncf %37 : vector<32x64xf32> to vector<32x64xbf16>
    %cst_35 = arith.constant dense<0.000000e+00> : vector<32x64xf32>
    %41 = tpu.matmul %40, %39, %cst_35 {dimension_numbers = #tpu.dot_dimension_numbers<[1], [0], [0], [1], [0, 0, 1, 1], [], []>} : vector<32x64xbf16>, vector<64x64xbf16>, vector<32x64xf32> -> vector<32x64xf32>
    %42 = arith.addf %35, %41 : vector<32x64xf32>
    %c0_36 = arith.constant 0 : index
    %c6 = arith.constant 6 : index
    %c0_37 = arith.constant 0 : index
    %43 = vector.load %arg2[%c0_36, %c6, %c0_37] : memref<1x40x64xf32, #tpu.memory_space<vmem>>, vector<1x32x64xf32>
    %44 = vector.shape_cast %43 : vector<1x32x64xf32> to vector<32x64xf32>
    %c6_38 = arith.constant 6 : index
    %c0_39 = arith.constant 0 : index
    %c0_40 = arith.constant 0 : index
    %45 = vector.load %arg3[%c6_38, %c0_39, %c0_40] : memref<8x64x64xbf16, #tpu.memory_space<vmem>>, vector<1x64x64xbf16>
    %46 = vector.shape_cast %45 : vector<1x64x64xbf16> to vector<64x64xbf16>
    %47 = arith.truncf %44 : vector<32x64xf32> to vector<32x64xbf16>
    %cst_41 = arith.constant dense<0.000000e+00> : vector<32x64xf32>
    %48 = tpu.matmul %47, %46, %cst_41 {dimension_numbers = #tpu.dot_dimension_numbers<[1], [0], [0], [1], [0, 0, 1, 1], [], []>} : vector<32x64xbf16>, vector<64x64xbf16>, vector<32x64xf32> -> vector<32x64xf32>
    %49 = arith.addf %42, %48 : vector<32x64xf32>
    %c0_42 = arith.constant 0 : index
    %c7 = arith.constant 7 : index
    %c0_43 = arith.constant 0 : index
    %50 = vector.load %arg2[%c0_42, %c7, %c0_43] : memref<1x40x64xf32, #tpu.memory_space<vmem>>, vector<1x32x64xf32>
    %51 = vector.shape_cast %50 : vector<1x32x64xf32> to vector<32x64xf32>
    %c7_44 = arith.constant 7 : index
    %c0_45 = arith.constant 0 : index
    %c0_46 = arith.constant 0 : index
    %52 = vector.load %arg3[%c7_44, %c0_45, %c0_46] : memref<8x64x64xbf16, #tpu.memory_space<vmem>>, vector<1x64x64xbf16>
    %53 = vector.shape_cast %52 : vector<1x64x64xbf16> to vector<64x64xbf16>
    %54 = arith.truncf %51 : vector<32x64xf32> to vector<32x64xbf16>
    %cst_47 = arith.constant dense<0.000000e+00> : vector<32x64xf32>
    %55 = tpu.matmul %54, %53, %cst_47 {dimension_numbers = #tpu.dot_dimension_numbers<[1], [0], [0], [1], [0, 0, 1, 1], [], []>} : vector<32x64xbf16>, vector<64x64xbf16>, vector<32x64xf32> -> vector<32x64xf32>
    %56 = arith.addf %49, %55 : vector<32x64xf32>
    %c0_48 = arith.constant 0 : index
    %c0_49 = arith.constant 0 : index
    %57 = vector.load %arg4[%c0_48, %c0_49] : memref<1x64xf32, #tpu.memory_space<vmem>>, vector<1x64xf32>
    %58 = vector.broadcast %57 : vector<1x64xf32> to vector<32x64xf32>
    %59 = arith.addf %56, %58 : vector<32x64xf32>
    %cst_50 = arith.constant 5.000000e-01 : f32
    %60 = vector.broadcast %cst_50 : f32 to vector<32x64xf32>
    %61 = arith.mulf %60, %59 : vector<32x64xf32>
    %cst_51 = arith.constant 4.471500e-02 : f32
    %62 = vector.broadcast %cst_51 : f32 to vector<32x64xf32>
    %63 = arith.mulf %62, %59 : vector<32x64xf32>
    %64 = arith.mulf %63, %59 : vector<32x64xf32>
    %65 = arith.mulf %64, %59 : vector<32x64xf32>
    %66 = arith.addf %59, %65 : vector<32x64xf32>
    %cst_52 = arith.constant 0.797884583 : f32
    %67 = vector.broadcast %cst_52 : f32 to vector<32x64xf32>
    %68 = arith.mulf %67, %66 : vector<32x64xf32>
    %69 = math.tanh %68 : vector<32x64xf32>
    %cst_53 = arith.constant 1.000000e+00 : f32
    %70 = vector.broadcast %cst_53 : f32 to vector<32x64xf32>
    %71 = arith.addf %70, %69 : vector<32x64xf32>
    %72 = arith.mulf %61, %71 : vector<32x64xf32>
    %c0_54 = arith.constant 0 : index
    %c0_55 = arith.constant 0 : index
    %c0_56 = arith.constant 0 : index
    %73 = vector.load %arg1[%c0_54, %c0_55, %c0_56] : memref<1x32x64xf32, #tpu.memory_space<vmem>>, vector<1x32x64xf32>
    %74 = vector.shape_cast %73 : vector<1x32x64xf32> to vector<32x64xf32>
    %75 = arith.addf %74, %72 : vector<32x64xf32>
    %c0_57 = arith.constant 0 : index
    %c0_58 = arith.constant 0 : index
    %76 = vector.load %arg5[%c0_57, %c0_58] : memref<1x64xf32, #tpu.memory_space<vmem>>, vector<1x64xf32>
    %c0_59 = arith.constant 0 : index
    %c0_60 = arith.constant 0 : index
    %77 = vector.load %arg6[%c0_59, %c0_60] : memref<1x64xf32, #tpu.memory_space<vmem>>, vector<1x64xf32>
    %cst_61 = arith.constant dense<0.000000e+00> : vector<32xf32>
    %78 = vector.multi_reduction <add>, %75, %cst_61 [1] : vector<32x64xf32> to vector<32xf32>
    %79 = vector.shape_cast %78 : vector<32xf32> to vector<32x1xf32>
    %cst_62 = arith.constant 6.400000e+01 : f32
    %80 = vector.broadcast %cst_62 : f32 to vector<32x1xf32>
    %81 = arith.divf %79, %80 : vector<32x1xf32>
    %82 = vector.broadcast %81 : vector<32x1xf32> to vector<32x64xf32>
    %83 = arith.subf %75, %82 : vector<32x64xf32>
    %84 = arith.mulf %83, %83 : vector<32x64xf32>
    %cst_63 = arith.constant dense<0.000000e+00> : vector<32xf32>
    %85 = vector.multi_reduction <add>, %84, %cst_63 [1] : vector<32x64xf32> to vector<32xf32>
    %86 = vector.shape_cast %85 : vector<32xf32> to vector<32x1xf32>
    %cst_64 = arith.constant 6.400000e+01 : f32
    %87 = vector.broadcast %cst_64 : f32 to vector<32x1xf32>
    %88 = arith.divf %86, %87 : vector<32x1xf32>
    %cst_65 = arith.constant 9.99999974E-6 : f32
    %89 = vector.broadcast %cst_65 : f32 to vector<32x1xf32>
    %90 = arith.addf %88, %89 : vector<32x1xf32>
    %91 = math.rsqrt %90 : vector<32x1xf32>
    %92 = vector.broadcast %91 : vector<32x1xf32> to vector<32x64xf32>
    %93 = arith.mulf %83, %92 : vector<32x64xf32>
    %94 = vector.broadcast %76 : vector<1x64xf32> to vector<32x64xf32>
    %95 = arith.mulf %93, %94 : vector<32x64xf32>
    %96 = vector.broadcast %77 : vector<1x64xf32> to vector<32x64xf32>
    %97 = arith.addf %95, %96 : vector<32x64xf32>
    %c0_66 = arith.constant 0 : index
    %c0_67 = arith.constant 0 : index
    %c0_68 = arith.constant 0 : index
    %98 = vector.load %arg7[%c0_66, %c0_67, %c0_68] : memref<1x32x64xf32, #tpu.memory_space<vmem>>, vector<1x32x64xf32>
    %99 = vector.shape_cast %98 : vector<1x32x64xf32> to vector<32x64xf32>
    %100 = vector.shape_cast %97 : vector<32x64xf32> to vector<1x32x64xf32>
    tpu.vector_store %arg7[%c0_66, %c0_67, %c0_68], %100 {strides = array<i32>} : memref<1x32x64xf32, #tpu.memory_space<vmem>>, vector<1x32x64xf32>,
    return
  }
  func.func @transform_0(%arg0: i32) -> (i32, i32, i32) {
    %c0_i32 = arith.constant 0 : i32
    %c0_i32_0 = arith.constant 0 : i32
    %c0_i32_1 = arith.constant 0 : i32
    return %arg0, %c0_i32, %c0_i32_0 : i32, i32, i32
  }
  func.func @transform_1(%arg0: i32) -> (i32, i32, i32) {
    %c0_i32 = arith.constant 0 : i32
    %c0_i32_0 = arith.constant 0 : i32
    %c0_i32_1 = arith.constant 0 : i32
    return %arg0, %c0_i32, %c0_i32_0 : i32, i32, i32
  }
  func.func @transform_2(%arg0: i32) -> (i32, i32, i32) {
    %c0_i32 = arith.constant 0 : i32
    %c0_i32_0 = arith.constant 0 : i32
    %c0_i32_1 = arith.constant 0 : i32
    %c0_i32_2 = arith.constant 0 : i32
    return %c0_i32, %c0_i32_0, %c0_i32_1 : i32, i32, i32
  }
  func.func @transform_3(%arg0: i32) -> (i32, i32) {
    %c0_i32 = arith.constant 0 : i32
    %c0_i32_0 = arith.constant 0 : i32
    %c0_i32_1 = arith.constant 0 : i32
    return %c0_i32, %c0_i32_0 : i32, i32
  }
  func.func @transform_4(%arg0: i32) -> (i32, i32) {
    %c0_i32 = arith.constant 0 : i32
    %c0_i32_0 = arith.constant 0 : i32
    %c0_i32_1 = arith.constant 0 : i32
    return %c0_i32, %c0_i32_0 : i32, i32
  }
  func.func @transform_5(%arg0: i32) -> (i32, i32) {
    %c0_i32 = arith.constant 0 : i32
    %c0_i32_0 = arith.constant 0 : i32
    %c0_i32_1 = arith.constant 0 : i32
    return %c0_i32, %c0_i32_0 : i32, i32
  }
  func.func @transform_6(%arg0: i32) -> (i32, i32, i32) {
    %c0_i32 = arith.constant 0 : i32
    %c0_i32_0 = arith.constant 0 : i32
    %c0_i32_1 = arith.constant 0 : i32
    return %arg0, %c0_i32, %c0_i32_0 : i32, i32, i32
  }
}

module attributes {stable_mosaic.version = 11 : i64} {
  func.func @_head_kernel(%arg0: memref<64x64xf32, #tpu.memory_space<vmem>>, %arg1: memref<64x32xbf16, #tpu.memory_space<vmem>>, %arg2: memref<1x32xf32, #tpu.memory_space<vmem>>, %arg3: memref<32x1xbf16, #tpu.memory_space<vmem>>, %arg4: memref<1x1xf32, #tpu.memory_space<vmem>>, %arg5: memref<2x1xf32, #tpu.memory_space<vmem>>) attributes {dimension_semantics = [], scalar_prefetch = 0 : i64, scratch_operands = 0 : i64, tpu.core_type = #tpu.core_type<tc>} {
    %c0 = arith.constant 0 : index
    %c0_0 = arith.constant 0 : index
    %0 = vector.load %arg0[%c0, %c0_0] : memref<64x64xf32, #tpu.memory_space<vmem>>, vector<64x64xf32>
    %c0_1 = arith.constant 0 : index
    %c0_2 = arith.constant 0 : index
    %1 = vector.load %arg1[%c0_1, %c0_2] : memref<64x32xbf16, #tpu.memory_space<vmem>>, vector<64x32xbf16>
    %2 = arith.truncf %0 : vector<64x64xf32> to vector<64x64xbf16>
    %cst = arith.constant dense<0.000000e+00> : vector<64x32xf32>
    %3 = tpu.matmul %2, %1, %cst {dimension_numbers = #tpu.dot_dimension_numbers<[1], [0], [0], [1], [0, 0, 1, 1], [], []>} : vector<64x64xbf16>, vector<64x32xbf16>, vector<64x32xf32> -> vector<64x32xf32>
    %c0_3 = arith.constant 0 : index
    %c0_4 = arith.constant 0 : index
    %4 = vector.load %arg2[%c0_3, %c0_4] : memref<1x32xf32, #tpu.memory_space<vmem>>, vector<1x32xf32>
    %5 = vector.broadcast %4 : vector<1x32xf32> to vector<64x32xf32>
    %6 = arith.addf %3, %5 : vector<64x32xf32>
    %7 = vector.shape_cast %6 : vector<64x32xf32> to vector<2x32x32xf32>
    %cst_5 = arith.constant dense<0.000000e+00> : vector<2x32xf32>
    %8 = vector.multi_reduction <add>, %7, %cst_5 [1] : vector<2x32x32xf32> to vector<2x32xf32>
    %cst_6 = arith.constant 3.200000e+01 : f32
    %9 = vector.broadcast %cst_6 : f32 to vector<2x32xf32>
    %10 = arith.divf %8, %9 : vector<2x32xf32>
    %c0_7 = arith.constant 0 : index
    %c0_8 = arith.constant 0 : index
    %11 = vector.load %arg3[%c0_7, %c0_8] : memref<32x1xbf16, #tpu.memory_space<vmem>>, vector<32x1xbf16>
    %12 = arith.truncf %10 : vector<2x32xf32> to vector<2x32xbf16>
    %cst_9 = arith.constant dense<0.000000e+00> : vector<2x1xf32>
    %13 = tpu.matmul %12, %11, %cst_9 {dimension_numbers = #tpu.dot_dimension_numbers<[1], [0], [0], [1], [0, 0, 1, 1], [], []>} : vector<2x32xbf16>, vector<32x1xbf16>, vector<2x1xf32> -> vector<2x1xf32>
    %c0_10 = arith.constant 0 : index
    %c0_11 = arith.constant 0 : index
    %14 = vector.load %arg4[%c0_10, %c0_11] : memref<1x1xf32, #tpu.memory_space<vmem>>, vector<1x1xf32>
    %15 = vector.broadcast %14 : vector<1x1xf32> to vector<2x1xf32>
    %16 = arith.addf %13, %15 : vector<2x1xf32>
    %c0_12 = arith.constant 0 : index
    %c0_13 = arith.constant 0 : index
    %17 = vector.load %arg5[%c0_12, %c0_13] : memref<2x1xf32, #tpu.memory_space<vmem>>, vector<2x1xf32>
    tpu.vector_store %arg5[%c0_12, %c0_13], %16 {strides = array<i32>} : memref<2x1xf32, #tpu.memory_space<vmem>>, vector<2x1xf32>,
    return
  }
}

module attributes {stable_mosaic.version = 11 : i64} {
  func.func @_encoder_layer_kernel(%arg0: i32, %arg1: memref<64x64xf32, #tpu.memory_space<vmem>>, %arg2: memref<1x64x192xbf16, #tpu.memory_space<vmem>>, %arg3: memref<1x1x192xf32, #tpu.memory_space<vmem>>, %arg4: memref<1x64x64xbf16, #tpu.memory_space<vmem>>, %arg5: memref<1x1x64xf32, #tpu.memory_space<vmem>>, %arg6: memref<1x1x64xf32, #tpu.memory_space<vmem>>, %arg7: memref<1x1x64xf32, #tpu.memory_space<vmem>>, %arg8: memref<1x64x128xbf16, #tpu.memory_space<vmem>>, %arg9: memref<1x1x128xf32, #tpu.memory_space<vmem>>, %arg10: memref<1x128x64xbf16, #tpu.memory_space<vmem>>, %arg11: memref<1x1x64xf32, #tpu.memory_space<vmem>>, %arg12: memref<1x1x64xf32, #tpu.memory_space<vmem>>, %arg13: memref<1x1x64xf32, #tpu.memory_space<vmem>>, %arg14: memref<64x64xf32, #tpu.memory_space<vmem>>) attributes {dimension_semantics = [#tpu.dimension_semantics<arbitrary>], iteration_bounds = array<i64: 2>, scalar_prefetch = 0 : i64, scratch_operands = 0 : i64, tpu.core_type = #tpu.core_type<tc>, window_params = [{pipeline_mode = #tpu.pipeline_mode<synchronous>, transform_indices = @transform_0, window_bounds = array<i64: 64, 64>}, {transform_indices = @transform_1, window_bounds = array<i64: 1, 64, 192>}, {transform_indices = @transform_2, window_bounds = array<i64: 1, 1, 192>}, {transform_indices = @transform_3, window_bounds = array<i64: 1, 64, 64>}, {transform_indices = @transform_4, window_bounds = array<i64: 1, 1, 64>}, {transform_indices = @transform_5, window_bounds = array<i64: 1, 1, 64>}, {transform_indices = @transform_6, window_bounds = array<i64: 1, 1, 64>}, {transform_indices = @transform_7, window_bounds = array<i64: 1, 64, 128>}, {transform_indices = @transform_8, window_bounds = array<i64: 1, 1, 128>}, {transform_indices = @transform_9, window_bounds = array<i64: 1, 128, 64>}, {transform_indices = @transform_10, window_bounds = array<i64: 1, 1, 64>}, {transform_indices = @transform_11, window_bounds = array<i64: 1, 1, 64>}, {transform_indices = @transform_12, window_bounds = array<i64: 1, 1, 64>}, {pipeline_mode = #tpu.pipeline_mode<synchronous>, transform_indices = @transform_13, window_bounds = array<i64: 64, 64>}]} {
    %c0_i32 = arith.constant 0 : i32
    %0 = arith.cmpi eq, %arg0, %c0_i32 : i32
    %1 = arith.extui %0 : i1 to i32
    %c0_i32_0 = arith.constant 0 : i32
    %2 = arith.cmpi ne, %1, %c0_i32_0 : i32
    scf.if %2 {
      %c0_77 = arith.constant 0 : index
      %c0_78 = arith.constant 0 : index
      %201 = vector.load %arg1[%c0_77, %c0_78] : memref<64x64xf32, #tpu.memory_space<vmem>>, vector<64x64xf32>
      %c0_79 = arith.constant 0 : index
      %c0_80 = arith.constant 0 : index
      %202 = vector.load %arg14[%c0_79, %c0_80] : memref<64x64xf32, #tpu.memory_space<vmem>>, vector<64x64xf32>
      tpu.vector_store %arg14[%c0_79, %c0_80], %201 {strides = array<i32>} : memref<64x64xf32, #tpu.memory_space<vmem>>, vector<64x64xf32>,
    } else {
    }
    %c0 = arith.constant 0 : index
    %c0_1 = arith.constant 0 : index
    %3 = vector.load %arg14[%c0, %c0_1] : memref<64x64xf32, #tpu.memory_space<vmem>>, vector<64x64xf32>
    %c0_2 = arith.constant 0 : index
    %c0_3 = arith.constant 0 : index
    %c0_4 = arith.constant 0 : index
    %4 = vector.load %arg2[%c0_2, %c0_3, %c0_4] : memref<1x64x192xbf16, #tpu.memory_space<vmem>>, vector<1x64x192xbf16>
    %5 = vector.shape_cast %4 : vector<1x64x192xbf16> to vector<64x192xbf16>
    %6 = arith.truncf %3 : vector<64x64xf32> to vector<64x64xbf16>
    %cst = arith.constant dense<0.000000e+00> : vector<64x192xf32>
    %7 = tpu.matmul %6, %5, %cst {dimension_numbers = #tpu.dot_dimension_numbers<[1], [0], [0], [1], [0, 0, 1, 1], [], []>} : vector<64x64xbf16>, vector<64x192xbf16>, vector<64x192xf32> -> vector<64x192xf32>
    %c0_5 = arith.constant 0 : index
    %c0_6 = arith.constant 0 : index
    %c0_7 = arith.constant 0 : index
    %8 = vector.load %arg3[%c0_5, %c0_6, %c0_7] : memref<1x1x192xf32, #tpu.memory_space<vmem>>, vector<1x1x192xf32>
    %9 = vector.shape_cast %8 : vector<1x1x192xf32> to vector<1x192xf32>
    %10 = vector.broadcast %9 : vector<1x192xf32> to vector<64x192xf32>
    %11 = arith.addf %7, %10 : vector<64x192xf32>
    %12 = vector.extract_strided_slice %11 {offsets = [0, 0], sizes = [64, 16], strides = [1, 1]} : vector<64x192xf32> to vector<64x16xf32>
    %13 = vector.shape_cast %12 : vector<64x16xf32> to vector<2x32x16xf32>
    %14 = vector.extract_strided_slice %11 {offsets = [0, 64], sizes = [64, 16], strides = [1, 1]} : vector<64x192xf32> to vector<64x16xf32>
    %15 = vector.shape_cast %14 : vector<64x16xf32> to vector<2x32x16xf32>
    %16 = vector.extract_strided_slice %11 {offsets = [0, 128], sizes = [64, 16], strides = [1, 1]} : vector<64x192xf32> to vector<64x16xf32>
    %17 = vector.shape_cast %16 : vector<64x16xf32> to vector<2x32x16xf32>
    %18 = arith.truncf %13 : vector<2x32x16xf32> to vector<2x32x16xbf16>
    %19 = arith.truncf %15 : vector<2x32x16xf32> to vector<2x32x16xbf16>
    "tpu.trace_start"() <{level = 10 : i32, message = "bqd,bkd->bqk"}> : () -> ()
    %cst_8 = arith.constant dense<0.000000e+00> : vector<2x32x32xf32>
    %20 = tpu.matmul %18, %19, %cst_8 {dimension_numbers = #tpu.dot_dimension_numbers<[2], [2], [1], [1], [0, 0, 0, 1, 1, 1], [0], [0]>} : vector<2x32x16xbf16>, vector<2x32x16xbf16>, vector<2x32x32xf32> -> vector<2x32x32xf32>
    "tpu.trace_stop"() : () -> ()
    %cst_9 = arith.constant 2.500000e-01 : f32
    %21 = vector.broadcast %cst_9 : f32 to vector<2x32x32xf32>
    %22 = arith.mulf %20, %21 : vector<2x32x32xf32>
    %cst_10 = arith.constant dense<0xFF800000> : vector<2x32xf32>
    %23 = vector.multi_reduction <maximumf>, %22, %cst_10 [2] : vector<2x32x32xf32> to vector<2x32xf32>
    %24 = vector.shape_cast %23 : vector<2x32xf32> to vector<2x32x1xf32>
    %25 = vector.broadcast %24 : vector<2x32x1xf32> to vector<2x32x32xf32>
    %26 = arith.subf %22, %25 : vector<2x32x32xf32>
    %27 = math.exp %26 : vector<2x32x32xf32>
    %cst_11 = arith.constant dense<0.000000e+00> : vector<2x32xf32>
    %28 = vector.multi_reduction <add>, %27, %cst_11 [2] : vector<2x32x32xf32> to vector<2x32xf32>
    %29 = vector.shape_cast %28 : vector<2x32xf32> to vector<2x32x1xf32>
    %30 = tpu.reciprocal %29 {approx = true} : vector<2x32x1xf32> -> vector<2x32x1xf32>
    %31 = vector.broadcast %30 : vector<2x32x1xf32> to vector<2x32x32xf32>
    %32 = arith.mulf %27, %31 : vector<2x32x32xf32>
    %33 = arith.truncf %32 : vector<2x32x32xf32> to vector<2x32x32xbf16>
    %34 = arith.truncf %17 : vector<2x32x16xf32> to vector<2x32x16xbf16>
    "tpu.trace_start"() <{level = 10 : i32, message = "bqk,bkd->bqd"}> : () -> ()
    %cst_12 = arith.constant dense<0.000000e+00> : vector<2x32x16xf32>
    %35 = tpu.matmul %33, %34, %cst_12 {dimension_numbers = #tpu.dot_dimension_numbers<[2], [1], [1], [2], [0, 0, 0, 1, 1, 2], [0], [0]>} : vector<2x32x32xbf16>, vector<2x32x16xbf16>, vector<2x32x16xf32> -> vector<2x32x16xf32>
    "tpu.trace_stop"() : () -> ()
    %36 = vector.shape_cast %35 : vector<2x32x16xf32> to vector<64x16xf32>
    %37 = vector.extract_strided_slice %11 {offsets = [0, 16], sizes = [64, 16], strides = [1, 1]} : vector<64x192xf32> to vector<64x16xf32>
    %38 = vector.shape_cast %37 : vector<64x16xf32> to vector<2x32x16xf32>
    %39 = vector.extract_strided_slice %11 {offsets = [0, 80], sizes = [64, 16], strides = [1, 1]} : vector<64x192xf32> to vector<64x16xf32>
    %40 = vector.shape_cast %39 : vector<64x16xf32> to vector<2x32x16xf32>
    %41 = vector.extract_strided_slice %11 {offsets = [0, 144], sizes = [64, 16], strides = [1, 1]} : vector<64x192xf32> to vector<64x16xf32>
    %42 = vector.shape_cast %41 : vector<64x16xf32> to vector<2x32x16xf32>
    %43 = arith.truncf %38 : vector<2x32x16xf32> to vector<2x32x16xbf16>
    %44 = arith.truncf %40 : vector<2x32x16xf32> to vector<2x32x16xbf16>
    "tpu.trace_start"() <{level = 10 : i32, message = "bqd,bkd->bqk"}> : () -> ()
    %cst_13 = arith.constant dense<0.000000e+00> : vector<2x32x32xf32>
    %45 = tpu.matmul %43, %44, %cst_13 {dimension_numbers = #tpu.dot_dimension_numbers<[2], [2], [1], [1], [0, 0, 0, 1, 1, 1], [0], [0]>} : vector<2x32x16xbf16>, vector<2x32x16xbf16>, vector<2x32x32xf32> -> vector<2x32x32xf32>
    "tpu.trace_stop"() : () -> ()
    %cst_14 = arith.constant 2.500000e-01 : f32
    %46 = vector.broadcast %cst_14 : f32 to vector<2x32x32xf32>
    %47 = arith.mulf %45, %46 : vector<2x32x32xf32>
    %cst_15 = arith.constant dense<0xFF800000> : vector<2x32xf32>
    %48 = vector.multi_reduction <maximumf>, %47, %cst_15 [2] : vector<2x32x32xf32> to vector<2x32xf32>
    %49 = vector.shape_cast %48 : vector<2x32xf32> to vector<2x32x1xf32>
    %50 = vector.broadcast %49 : vector<2x32x1xf32> to vector<2x32x32xf32>
    %51 = arith.subf %47, %50 : vector<2x32x32xf32>
    %52 = math.exp %51 : vector<2x32x32xf32>
    %cst_16 = arith.constant dense<0.000000e+00> : vector<2x32xf32>
    %53 = vector.multi_reduction <add>, %52, %cst_16 [2] : vector<2x32x32xf32> to vector<2x32xf32>
    %54 = vector.shape_cast %53 : vector<2x32xf32> to vector<2x32x1xf32>
    %55 = tpu.reciprocal %54 {approx = true} : vector<2x32x1xf32> -> vector<2x32x1xf32>
    %56 = vector.broadcast %55 : vector<2x32x1xf32> to vector<2x32x32xf32>
    %57 = arith.mulf %52, %56 : vector<2x32x32xf32>
    %58 = arith.truncf %57 : vector<2x32x32xf32> to vector<2x32x32xbf16>
    %59 = arith.truncf %42 : vector<2x32x16xf32> to vector<2x32x16xbf16>
    "tpu.trace_start"() <{level = 10 : i32, message = "bqk,bkd->bqd"}> : () -> ()
    %cst_17 = arith.constant dense<0.000000e+00> : vector<2x32x16xf32>
    %60 = tpu.matmul %58, %59, %cst_17 {dimension_numbers = #tpu.dot_dimension_numbers<[2], [1], [1], [2], [0, 0, 0, 1, 1, 2], [0], [0]>} : vector<2x32x32xbf16>, vector<2x32x16xbf16>, vector<2x32x16xf32> -> vector<2x32x16xf32>
    "tpu.trace_stop"() : () -> ()
    %61 = vector.shape_cast %60 : vector<2x32x16xf32> to vector<64x16xf32>
    %62 = vector.extract_strided_slice %11 {offsets = [0, 32], sizes = [64, 16], strides = [1, 1]} : vector<64x192xf32> to vector<64x16xf32>
    %63 = vector.shape_cast %62 : vector<64x16xf32> to vector<2x32x16xf32>
    %64 = vector.extract_strided_slice %11 {offsets = [0, 96], sizes = [64, 16], strides = [1, 1]} : vector<64x192xf32> to vector<64x16xf32>
    %65 = vector.shape_cast %64 : vector<64x16xf32> to vector<2x32x16xf32>
    %66 = vector.extract_strided_slice %11 {offsets = [0, 160], sizes = [64, 16], strides = [1, 1]} : vector<64x192xf32> to vector<64x16xf32>
    %67 = vector.shape_cast %66 : vector<64x16xf32> to vector<2x32x16xf32>
    %68 = arith.truncf %63 : vector<2x32x16xf32> to vector<2x32x16xbf16>
    %69 = arith.truncf %65 : vector<2x32x16xf32> to vector<2x32x16xbf16>
    "tpu.trace_start"() <{level = 10 : i32, message = "bqd,bkd->bqk"}> : () -> ()
    %cst_18 = arith.constant dense<0.000000e+00> : vector<2x32x32xf32>
    %70 = tpu.matmul %68, %69, %cst_18 {dimension_numbers = #tpu.dot_dimension_numbers<[2], [2], [1], [1], [0, 0, 0, 1, 1, 1], [0], [0]>} : vector<2x32x16xbf16>, vector<2x32x16xbf16>, vector<2x32x32xf32> -> vector<2x32x32xf32>
    "tpu.trace_stop"() : () -> ()
    %cst_19 = arith.constant 2.500000e-01 : f32
    %71 = vector.broadcast %cst_19 : f32 to vector<2x32x32xf32>
    %72 = arith.mulf %70, %71 : vector<2x32x32xf32>
    %cst_20 = arith.constant dense<0xFF800000> : vector<2x32xf32>
    %73 = vector.multi_reduction <maximumf>, %72, %cst_20 [2] : vector<2x32x32xf32> to vector<2x32xf32>
    %74 = vector.shape_cast %73 : vector<2x32xf32> to vector<2x32x1xf32>
    %75 = vector.broadcast %74 : vector<2x32x1xf32> to vector<2x32x32xf32>
    %76 = arith.subf %72, %75 : vector<2x32x32xf32>
    %77 = math.exp %76 : vector<2x32x32xf32>
    %cst_21 = arith.constant dense<0.000000e+00> : vector<2x32xf32>
    %78 = vector.multi_reduction <add>, %77, %cst_21 [2] : vector<2x32x32xf32> to vector<2x32xf32>
    %79 = vector.shape_cast %78 : vector<2x32xf32> to vector<2x32x1xf32>
    %80 = tpu.reciprocal %79 {approx = true} : vector<2x32x1xf32> -> vector<2x32x1xf32>
    %81 = vector.broadcast %80 : vector<2x32x1xf32> to vector<2x32x32xf32>
    %82 = arith.mulf %77, %81 : vector<2x32x32xf32>
    %83 = arith.truncf %82 : vector<2x32x32xf32> to vector<2x32x32xbf16>
    %84 = arith.truncf %67 : vector<2x32x16xf32> to vector<2x32x16xbf16>
    "tpu.trace_start"() <{level = 10 : i32, message = "bqk,bkd->bqd"}> : () -> ()
    %cst_22 = arith.constant dense<0.000000e+00> : vector<2x32x16xf32>
    %85 = tpu.matmul %83, %84, %cst_22 {dimension_numbers = #tpu.dot_dimension_numbers<[2], [1], [1], [2], [0, 0, 0, 1, 1, 2], [0], [0]>} : vector<2x32x32xbf16>, vector<2x32x16xbf16>, vector<2x32x16xf32> -> vector<2x32x16xf32>
    "tpu.trace_stop"() : () -> ()
    %86 = vector.shape_cast %85 : vector<2x32x16xf32> to vector<64x16xf32>
    %87 = vector.extract_strided_slice %11 {offsets = [0, 48], sizes = [64, 16], strides = [1, 1]} : vector<64x192xf32> to vector<64x16xf32>
    %88 = vector.shape_cast %87 : vector<64x16xf32> to vector<2x32x16xf32>
    %89 = vector.extract_strided_slice %11 {offsets = [0, 112], sizes = [64, 16], strides = [1, 1]} : vector<64x192xf32> to vector<64x16xf32>
    %90 = vector.shape_cast %89 : vector<64x16xf32> to vector<2x32x16xf32>
    %91 = vector.extract_strided_slice %11 {offsets = [0, 176], sizes = [64, 16], strides = [1, 1]} : vector<64x192xf32> to vector<64x16xf32>
    %92 = vector.shape_cast %91 : vector<64x16xf32> to vector<2x32x16xf32>
    %93 = arith.truncf %88 : vector<2x32x16xf32> to vector<2x32x16xbf16>
    %94 = arith.truncf %90 : vector<2x32x16xf32> to vector<2x32x16xbf16>
    "tpu.trace_start"() <{level = 10 : i32, message = "bqd,bkd->bqk"}> : () -> ()
    %cst_23 = arith.constant dense<0.000000e+00> : vector<2x32x32xf32>
    %95 = tpu.matmul %93, %94, %cst_23 {dimension_numbers = #tpu.dot_dimension_numbers<[2], [2], [1], [1], [0, 0, 0, 1, 1, 1], [0], [0]>} : vector<2x32x16xbf16>, vector<2x32x16xbf16>, vector<2x32x32xf32> -> vector<2x32x32xf32>
    "tpu.trace_stop"() : () -> ()
    %cst_24 = arith.constant 2.500000e-01 : f32
    %96 = vector.broadcast %cst_24 : f32 to vector<2x32x32xf32>
    %97 = arith.mulf %95, %96 : vector<2x32x32xf32>
    %cst_25 = arith.constant dense<0xFF800000> : vector<2x32xf32>
    %98 = vector.multi_reduction <maximumf>, %97, %cst_25 [2] : vector<2x32x32xf32> to vector<2x32xf32>
    %99 = vector.shape_cast %98 : vector<2x32xf32> to vector<2x32x1xf32>
    %100 = vector.broadcast %99 : vector<2x32x1xf32> to vector<2x32x32xf32>
    %101 = arith.subf %97, %100 : vector<2x32x32xf32>
    %102 = math.exp %101 : vector<2x32x32xf32>
    %cst_26 = arith.constant dense<0.000000e+00> : vector<2x32xf32>
    %103 = vector.multi_reduction <add>, %102, %cst_26 [2] : vector<2x32x32xf32> to vector<2x32xf32>
    %104 = vector.shape_cast %103 : vector<2x32xf32> to vector<2x32x1xf32>
    %105 = tpu.reciprocal %104 {approx = true} : vector<2x32x1xf32> -> vector<2x32x1xf32>
    %106 = vector.broadcast %105 : vector<2x32x1xf32> to vector<2x32x32xf32>
    %107 = arith.mulf %102, %106 : vector<2x32x32xf32>
    %108 = arith.truncf %107 : vector<2x32x32xf32> to vector<2x32x32xbf16>
    %109 = arith.truncf %92 : vector<2x32x16xf32> to vector<2x32x16xbf16>
    "tpu.trace_start"() <{level = 10 : i32, message = "bqk,bkd->bqd"}> : () -> ()
    %cst_27 = arith.constant dense<0.000000e+00> : vector<2x32x16xf32>
    %110 = tpu.matmul %108, %109, %cst_27 {dimension_numbers = #tpu.dot_dimension_numbers<[2], [1], [1], [2], [0, 0, 0, 1, 1, 2], [0], [0]>} : vector<2x32x32xbf16>, vector<2x32x16xbf16>, vector<2x32x16xf32> -> vector<2x32x16xf32>
    "tpu.trace_stop"() : () -> ()
    %111 = vector.shape_cast %110 : vector<2x32x16xf32> to vector<64x16xf32>
    %112 = tpu.concatenate %36, %61, %86, %111 in 1 : vector<64x16xf32>, vector<64x16xf32>, vector<64x16xf32>, vector<64x16xf32> -> vector<64x64xf32>
    %c0_28 = arith.constant 0 : index
    %c0_29 = arith.constant 0 : index
    %c0_30 = arith.constant 0 : index
    %113 = vector.load %arg4[%c0_28, %c0_29, %c0_30] : memref<1x64x64xbf16, #tpu.memory_space<vmem>>, vector<1x64x64xbf16>
    %114 = vector.shape_cast %113 : vector<1x64x64xbf16> to vector<64x64xbf16>
    %115 = arith.truncf %112 : vector<64x64xf32> to vector<64x64xbf16>
    %cst_31 = arith.constant dense<0.000000e+00> : vector<64x64xf32>
    %116 = tpu.matmul %115, %114, %cst_31 {dimension_numbers = #tpu.dot_dimension_numbers<[1], [0], [0], [1], [0, 0, 1, 1], [], []>} : vector<64x64xbf16>, vector<64x64xbf16>, vector<64x64xf32> -> vector<64x64xf32>
    %c0_32 = arith.constant 0 : index
    %c0_33 = arith.constant 0 : index
    %c0_34 = arith.constant 0 : index
    %117 = vector.load %arg5[%c0_32, %c0_33, %c0_34] : memref<1x1x64xf32, #tpu.memory_space<vmem>>, vector<1x1x64xf32>
    %118 = vector.shape_cast %117 : vector<1x1x64xf32> to vector<1x64xf32>
    %119 = vector.broadcast %118 : vector<1x64xf32> to vector<64x64xf32>
    %120 = arith.addf %116, %119 : vector<64x64xf32>
    %121 = arith.addf %3, %120 : vector<64x64xf32>
    %c0_35 = arith.constant 0 : index
    %c0_36 = arith.constant 0 : index
    %c0_37 = arith.constant 0 : index
    %122 = vector.load %arg6[%c0_35, %c0_36, %c0_37] : memref<1x1x64xf32, #tpu.memory_space<vmem>>, vector<1x1x64xf32>
    %123 = vector.shape_cast %122 : vector<1x1x64xf32> to vector<1x64xf32>
    %c0_38 = arith.constant 0 : index
    %c0_39 = arith.constant 0 : index
    %c0_40 = arith.constant 0 : index
    %124 = vector.load %arg7[%c0_38, %c0_39, %c0_40] : memref<1x1x64xf32, #tpu.memory_space<vmem>>, vector<1x1x64xf32>
    %125 = vector.shape_cast %124 : vector<1x1x64xf32> to vector<1x64xf32>
    %cst_41 = arith.constant dense<0.000000e+00> : vector<64xf32>
    %126 = vector.multi_reduction <add>, %121, %cst_41 [1] : vector<64x64xf32> to vector<64xf32>
    %127 = vector.shape_cast %126 : vector<64xf32> to vector<64x1xf32>
    %cst_42 = arith.constant 6.400000e+01 : f32
    %128 = vector.broadcast %cst_42 : f32 to vector<64x1xf32>
    %129 = arith.divf %127, %128 : vector<64x1xf32>
    %130 = vector.broadcast %129 : vector<64x1xf32> to vector<64x64xf32>
    %131 = arith.subf %121, %130 : vector<64x64xf32>
    %132 = arith.mulf %131, %131 : vector<64x64xf32>
    %cst_43 = arith.constant dense<0.000000e+00> : vector<64xf32>
    %133 = vector.multi_reduction <add>, %132, %cst_43 [1] : vector<64x64xf32> to vector<64xf32>
    %134 = vector.shape_cast %133 : vector<64xf32> to vector<64x1xf32>
    %cst_44 = arith.constant 6.400000e+01 : f32
    %135 = vector.broadcast %cst_44 : f32 to vector<64x1xf32>
    %136 = arith.divf %134, %135 : vector<64x1xf32>
    %cst_45 = arith.constant 9.99999974E-6 : f32
    %137 = vector.broadcast %cst_45 : f32 to vector<64x1xf32>
    %138 = arith.addf %136, %137 : vector<64x1xf32>
    %139 = math.rsqrt %138 : vector<64x1xf32>
    %140 = vector.broadcast %139 : vector<64x1xf32> to vector<64x64xf32>
    %141 = arith.mulf %131, %140 : vector<64x64xf32>
    %142 = vector.broadcast %123 : vector<1x64xf32> to vector<64x64xf32>
    %143 = arith.mulf %141, %142 : vector<64x64xf32>
    %144 = vector.broadcast %125 : vector<1x64xf32> to vector<64x64xf32>
    %145 = arith.addf %143, %144 : vector<64x64xf32>
    %c0_46 = arith.constant 0 : index
    %c0_47 = arith.constant 0 : index
    %c0_48 = arith.constant 0 : index
    %146 = vector.load %arg8[%c0_46, %c0_47, %c0_48] : memref<1x64x128xbf16, #tpu.memory_space<vmem>>, vector<1x64x128xbf16>
    %147 = vector.shape_cast %146 : vector<1x64x128xbf16> to vector<64x128xbf16>
    %148 = arith.truncf %145 : vector<64x64xf32> to vector<64x64xbf16>
    %cst_49 = arith.constant dense<0.000000e+00> : vector<64x128xf32>
    %149 = tpu.matmul %148, %147, %cst_49 {dimension_numbers = #tpu.dot_dimension_numbers<[1], [0], [0], [1], [0, 0, 1, 1], [], []>} : vector<64x64xbf16>, vector<64x128xbf16>, vector<64x128xf32> -> vector<64x128xf32>
    %c0_50 = arith.constant 0 : index
    %c0_51 = arith.constant 0 : index
    %c0_52 = arith.constant 0 : index
    %150 = vector.load %arg9[%c0_50, %c0_51, %c0_52] : memref<1x1x128xf32, #tpu.memory_space<vmem>>, vector<1x1x128xf32>
    %151 = vector.shape_cast %150 : vector<1x1x128xf32> to vector<1x128xf32>
    %152 = vector.broadcast %151 : vector<1x128xf32> to vector<64x128xf32>
    %153 = arith.addf %149, %152 : vector<64x128xf32>
    %cst_53 = arith.constant 5.000000e-01 : f32
    %154 = vector.broadcast %cst_53 : f32 to vector<64x128xf32>
    %155 = arith.mulf %154, %153 : vector<64x128xf32>
    %cst_54 = arith.constant 4.471500e-02 : f32
    %156 = vector.broadcast %cst_54 : f32 to vector<64x128xf32>
    %157 = arith.mulf %156, %153 : vector<64x128xf32>
    %158 = arith.mulf %157, %153 : vector<64x128xf32>
    %159 = arith.mulf %158, %153 : vector<64x128xf32>
    %160 = arith.addf %153, %159 : vector<64x128xf32>
    %cst_55 = arith.constant 0.797884583 : f32
    %161 = vector.broadcast %cst_55 : f32 to vector<64x128xf32>
    %162 = arith.mulf %161, %160 : vector<64x128xf32>
    %163 = math.tanh %162 : vector<64x128xf32>
    %cst_56 = arith.constant 1.000000e+00 : f32
    %164 = vector.broadcast %cst_56 : f32 to vector<64x128xf32>
    %165 = arith.addf %164, %163 : vector<64x128xf32>
    %166 = arith.mulf %155, %165 : vector<64x128xf32>
    %c0_57 = arith.constant 0 : index
    %c0_58 = arith.constant 0 : index
    %c0_59 = arith.constant 0 : index
    %167 = vector.load %arg10[%c0_57, %c0_58, %c0_59] : memref<1x128x64xbf16, #tpu.memory_space<vmem>>, vector<1x128x64xbf16>
    %168 = vector.shape_cast %167 : vector<1x128x64xbf16> to vector<128x64xbf16>
    %169 = arith.truncf %166 : vector<64x128xf32> to vector<64x128xbf16>
    %cst_60 = arith.constant dense<0.000000e+00> : vector<64x64xf32>
    %170 = tpu.matmul %169, %168, %cst_60 {dimension_numbers = #tpu.dot_dimension_numbers<[1], [0], [0], [1], [0, 0, 1, 1], [], []>} : vector<64x128xbf16>, vector<128x64xbf16>, vector<64x64xf32> -> vector<64x64xf32>
    %c0_61 = arith.constant 0 : index
    %c0_62 = arith.constant 0 : index
    %c0_63 = arith.constant 0 : index
    %171 = vector.load %arg11[%c0_61, %c0_62, %c0_63] : memref<1x1x64xf32, #tpu.memory_space<vmem>>, vector<1x1x64xf32>
    %172 = vector.shape_cast %171 : vector<1x1x64xf32> to vector<1x64xf32>
    %173 = vector.broadcast %172 : vector<1x64xf32> to vector<64x64xf32>
    %174 = arith.addf %170, %173 : vector<64x64xf32>
    %175 = arith.addf %145, %174 : vector<64x64xf32>
    %c0_64 = arith.constant 0 : index
    %c0_65 = arith.constant 0 : index
    %c0_66 = arith.constant 0 : index
    %176 = vector.load %arg12[%c0_64, %c0_65, %c0_66] : memref<1x1x64xf32, #tpu.memory_space<vmem>>, vector<1x1x64xf32>
    %177 = vector.shape_cast %176 : vector<1x1x64xf32> to vector<1x64xf32>
    %c0_67 = arith.constant 0 : index
    %c0_68 = arith.constant 0 : index
    %c0_69 = arith.constant 0 : index
    %178 = vector.load %arg13[%c0_67, %c0_68, %c0_69] : memref<1x1x64xf32, #tpu.memory_space<vmem>>, vector<1x1x64xf32>
    %179 = vector.shape_cast %178 : vector<1x1x64xf32> to vector<1x64xf32>
    %cst_70 = arith.constant dense<0.000000e+00> : vector<64xf32>
    %180 = vector.multi_reduction <add>, %175, %cst_70 [1] : vector<64x64xf32> to vector<64xf32>
    %181 = vector.shape_cast %180 : vector<64xf32> to vector<64x1xf32>
    %cst_71 = arith.constant 6.400000e+01 : f32
    %182 = vector.broadcast %cst_71 : f32 to vector<64x1xf32>
    %183 = arith.divf %181, %182 : vector<64x1xf32>
    %184 = vector.broadcast %183 : vector<64x1xf32> to vector<64x64xf32>
    %185 = arith.subf %175, %184 : vector<64x64xf32>
    %186 = arith.mulf %185, %185 : vector<64x64xf32>
    %cst_72 = arith.constant dense<0.000000e+00> : vector<64xf32>
    %187 = vector.multi_reduction <add>, %186, %cst_72 [1] : vector<64x64xf32> to vector<64xf32>
    %188 = vector.shape_cast %187 : vector<64xf32> to vector<64x1xf32>
    %cst_73 = arith.constant 6.400000e+01 : f32
    %189 = vector.broadcast %cst_73 : f32 to vector<64x1xf32>
    %190 = arith.divf %188, %189 : vector<64x1xf32>
    %cst_74 = arith.constant 9.99999974E-6 : f32
    %191 = vector.broadcast %cst_74 : f32 to vector<64x1xf32>
    %192 = arith.addf %190, %191 : vector<64x1xf32>
    %193 = math.rsqrt %192 : vector<64x1xf32>
    %194 = vector.broadcast %193 : vector<64x1xf32> to vector<64x64xf32>
    %195 = arith.mulf %185, %194 : vector<64x64xf32>
    %196 = vector.broadcast %177 : vector<1x64xf32> to vector<64x64xf32>
    %197 = arith.mulf %195, %196 : vector<64x64xf32>
    %198 = vector.broadcast %179 : vector<1x64xf32> to vector<64x64xf32>
    %199 = arith.addf %197, %198 : vector<64x64xf32>
    %c0_75 = arith.constant 0 : index
    %c0_76 = arith.constant 0 : index
    %200 = vector.load %arg14[%c0_75, %c0_76] : memref<64x64xf32, #tpu.memory_space<vmem>>, vector<64x64xf32>
    tpu.vector_store %arg14[%c0_75, %c0_76], %199 {strides = array<i32>} : memref<64x64xf32, #tpu.memory_space<vmem>>, vector<64x64xf32>,
    return
  }
  func.func @transform_0(%arg0: i32) -> (i32, i32) {
    %c0_i32 = arith.constant 0 : i32
    %c0_i32_0 = arith.constant 0 : i32
    %c0_i32_1 = arith.constant 0 : i32
    return %c0_i32, %c0_i32_0 : i32, i32
  }
  func.func @transform_1(%arg0: i32) -> (i32, i32, i32) {
    %c0_i32 = arith.constant 0 : i32
    %c0_i32_0 = arith.constant 0 : i32
    %c0_i32_1 = arith.constant 0 : i32
    return %arg0, %c0_i32, %c0_i32_0 : i32, i32, i32
  }
  func.func @transform_2(%arg0: i32) -> (i32, i32, i32) {
    %c0_i32 = arith.constant 0 : i32
    %c0_i32_0 = arith.constant 0 : i32
    %c0_i32_1 = arith.constant 0 : i32
    return %arg0, %c0_i32, %c0_i32_0 : i32, i32, i32
  }
  func.func @transform_3(%arg0: i32) -> (i32, i32, i32) {
    %c0_i32 = arith.constant 0 : i32
    %c0_i32_0 = arith.constant 0 : i32
    %c0_i32_1 = arith.constant 0 : i32
    return %arg0, %c0_i32, %c0_i32_0 : i32, i32, i32
  }
  func.func @transform_4(%arg0: i32) -> (i32, i32, i32) {
    %c0_i32 = arith.constant 0 : i32
    %c0_i32_0 = arith.constant 0 : i32
    %c0_i32_1 = arith.constant 0 : i32
    return %arg0, %c0_i32, %c0_i32_0 : i32, i32, i32
  }
  func.func @transform_5(%arg0: i32) -> (i32, i32, i32) {
    %c0_i32 = arith.constant 0 : i32
    %c0_i32_0 = arith.constant 0 : i32
    %c0_i32_1 = arith.constant 0 : i32
    return %arg0, %c0_i32, %c0_i32_0 : i32, i32, i32
  }
  func.func @transform_6(%arg0: i32) -> (i32, i32, i32) {
    %c0_i32 = arith.constant 0 : i32
    %c0_i32_0 = arith.constant 0 : i32
    %c0_i32_1 = arith.constant 0 : i32
    return %arg0, %c0_i32, %c0_i32_0 : i32, i32, i32
  }
  func.func @transform_7(%arg0: i32) -> (i32, i32, i32) {
    %c0_i32 = arith.constant 0 : i32
    %c0_i32_0 = arith.constant 0 : i32
    %c0_i32_1 = arith.constant 0 : i32
    return %arg0, %c0_i32, %c0_i32_0 : i32, i32, i32
  }
  func.func @transform_8(%arg0: i32) -> (i32, i32, i32) {
    %c0_i32 = arith.constant 0 : i32
    %c0_i32_0 = arith.constant 0 : i32
    %c0_i32_1 = arith.constant 0 : i32
    return %arg0, %c0_i32, %c0_i32_0 : i32, i32, i32
  }
  func.func @transform_9(%arg0: i32) -> (i32, i32, i32) {
    %c0_i32 = arith.constant 0 : i32
    %c0_i32_0 = arith.constant 0 : i32
    %c0_i32_1 = arith.constant 0 : i32
    return %arg0, %c0_i32, %c0_i32_0 : i32, i32, i32
  }
  func.func @transform_10(%arg0: i32) -> (i32, i32, i32) {
    %c0_i32 = arith.constant 0 : i32
    %c0_i32_0 = arith.constant 0 : i32
    %c0_i32_1 = arith.constant 0 : i32
    return %arg0, %c0_i32, %c0_i32_0 : i32, i32, i32
  }
  func.func @transform_11(%arg0: i32) -> (i32, i32, i32) {
    %c0_i32 = arith.constant 0 : i32
    %c0_i32_0 = arith.constant 0 : i32
    %c0_i32_1 = arith.constant 0 : i32
    return %arg0, %c0_i32, %c0_i32_0 : i32, i32, i32
  }
  func.func @transform_12(%arg0: i32) -> (i32, i32, i32) {
    %c0_i32 = arith.constant 0 : i32
    %c0_i32_0 = arith.constant 0 : i32
    %c0_i32_1 = arith.constant 0 : i32
    return %arg0, %c0_i32, %c0_i32_0 : i32, i32, i32
  }
  func.func @transform_13(%arg0: i32) -> (i32, i32) {
    %c0_i32 = arith.constant 0 : i32
    %c0_i32_0 = arith.constant 0 : i32
    %c0_i32_1 = arith.constant 0 : i32
    return %c0_i32, %c0_i32_0 : i32, i32
  }
}

</mosaic_0001>

<llo_original>
// kernel: _lambda_.6
$region0: #{_lambda_.6}
  #allocation0 [shape = 'u32[]', space=smem, size = 0x4, offset = 0x4, fixed_abs, tag = 'smem constant byte address 0x4 - core index']
  #allocation1 [shape = 'u32[144,128]{1,0:T(1,128)}', space=vmem, size = 0x12000, scoped, tag = 'internal scratch']
  %s0 = inlined_call_operand.vmem [shape: f32[2,131,10], index: 0, kind: input, shape index: {}]
  %s1 = inlined_call_operand.vmem [shape: bf16[10,32], index: 1, kind: input, shape index: {}]
  %s2 = inlined_call_operand.vmem [shape: f32[1,32], index: 2, kind: input, shape index: {}]
  %s3 = inlined_call_operand.vmem [shape: f32[1,32], index: 3, kind: input, shape index: {}]
  %s4 = inlined_call_operand.vmem [shape: f32[2,131,32], index: 4, kind: output, shape index: {}]
  %s5 = sld [smem:[#allocation0]]
  $region49: #{_lambda_.6} parent=0
    _
  %s7 = ssub.s32 1, %s5
  %s8 = scalar_select 0, %s7, %s5
  loop: start=0, step=1, limit=4
  $region2: #{_lambda_.6} parent=0 // loop_pre_header
    _
  $region3: #{_lambda_.6} parent=0 // loop_header
    %s10 = sphi 0, %s14
    %p11 = scmp.ge.s32.totalorder %s10, 4
    %s20 = sphi 0, %s22
    %s23 = sphi 0, %s20
    %s24 = sphi 0, %s23
    %s40 = sphi 0, %s24
    %s44 = sphi 0, %s44
    %s46 = sphi 0, %s44
    %s47 = sphi 0, %s46
    %s61 = sphi 0, %s47
    %s65 = sphi 0, %s65
    %s67 = sphi 0, %s65
    %s68 = sphi 0, %s67
    %s82 = sphi 0, %s68
    %s86 = sphi 0, %s86
    %s88 = sphi 0, %s86
    %s89 = sphi 0, %s88
    %s103 = sphi 0, %s89
    %s109 = sphi 0, %s111
    %s112 = sphi 0, %s109
    %s113 = sphi 0, %s112
    %s129 = sphi 0, %s113
  $region4: #{_lambda_.6} parent=0 // loop_header_branch
    %13 = sbr.rel (%p11) target = $region8
  $region5: #{_lambda_.6} parent=0 // loop_body
    %s15 = ssub.s32 %s10, 1
    %s16 = ssub.s32 %s10, 2
    %s17 = sadd.s32 %s10, 1
    %s18 = ssub.s32 %s10, %s17
    %p19 = scmp.eq.s32.totalorder %s18, 0
    %s21 = sadd.s32 %s20, 1
    %s22 = scalar_select %p19, %s20, %s21
    %p25 = pneg %p19
    %p26 = scmp.eq.s32.totalorder %s10, 1
    %p27 = por %p25, %p26
    %p28 = scmp.ne.s32.totalorder %s20, %s23
    %p29 = scmp.eq.s32.totalorder %s10, 0
    %p30 = por %p28, %p29
    %p31 = scmp.ne.s32.totalorder %s20, %s23
    %p32 = scmp.eq.s32.totalorder %s15, 1
    %p33 = por %p31, %p32
    %p34 = scmp.ne.s32.totalorder %s23, %s24
    %p35 = scmp.eq.s32.totalorder %s15, 0
    %p36 = por %p34, %p35
    %p37 = scmp.ne.s32.totalorder %s23, %s24
    %p38 = scmp.eq.s32.totalorder %s16, 1
    %p39 = por %p37, %p38
    %p41 = scmp.ne.s32.totalorder %s24, %s40
    %p42 = scmp.eq.s32.totalorder %s16, 0
    %p43 = por %p41, %p42
    %s45 = sadd.s32 %s44, 1
    %p48 = scmp.eq.s32.totalorder %s10, 1
    %p49 = scmp.ne.s32.totalorder %s44, %s46
    %p50 = scmp.eq.s32.totalorder %s10, 0
    %p51 = por %p49, %p50
    %p52 = scmp.ne.s32.totalorder %s44, %s46
    %p53 = scmp.eq.s32.totalorder %s15, 1
    %p54 = por %p52, %p53
    %p55 = scmp.ne.s32.totalorder %s46, %s47
    %p56 = scmp.eq.s32.totalorder %s15, 0
    %p57 = por %p55, %p56
    %p58 = scmp.ne.s32.totalorder %s46, %s47
    %p59 = scmp.eq.s32.totalorder %s16, 1
    %p60 = por %p58, %p59
    %p62 = scmp.ne.s32.totalorder %s47, %s61
    %p63 = scmp.eq.s32.totalorder %s16, 0
    %p64 = por %p62, %p63
    %s66 = sadd.s32 %s65, 1
    %p69 = scmp.eq.s32.totalorder %s10, 1
    %p70 = scmp.ne.s32.totalorder %s65, %s67
    %p71 = scmp.eq.s32.totalorder %s10, 0
    %p72 = por %p70, %p71
    %p73 = scmp.ne.s32.totalorder %s65, %s67
    %p74 = scmp.eq.s32.totalorder %s15, 1
    %p75 = por %p73, %p74
    %p76 = scmp.ne.s32.totalorder %s67, %s68
    %p77 = scmp.eq.s32.totalorder %s15, 0
    %p78 = por %p76, %p77
    %p79 = scmp.ne.s32.totalorder %s67, %s68
    %p80 = scmp.eq.s32.totalorder %s16, 1
    %p81 = por %p79, %p80
    %p83 = scmp.ne.s32.totalorder %s68, %s82
    %p84 = scmp.eq.s32.totalorder %s16, 0
    %p85 = por %p83, %p84
    %s87 = sadd.s32 %s86, 1
    %p90 = scmp.eq.s32.totalorder %s10, 1
    %p91 = scmp.ne.s32.totalorder %s86, %s88
    %p92 = scmp.eq.s32.totalorder %s10, 0
    %p93 = por %p91, %p92
    %p94 = scmp.ne.s32.totalorder %s86, %s88
    %p95 = scmp.eq.s32.totalorder %s15, 1
    %p96 = por %p94, %p95
    %p97 = scmp.ne.s32.totalorder %s88, %s89
    %p98 = scmp.eq.s32.totalorder %s15, 0
    %p99 = por %p97, %p98
    %p100 = scmp.ne.s32.totalorder %s88, %s89
    %p101 = scmp.eq.s32.totalorder %s16, 1
    %p102 = por %p100, %p101
    %p104 = scmp.ne.s32.totalorder %s89, %s103
    %p105 = scmp.eq.s32.totalorder %s16, 0
    %p106 = por %p104, %p105
    %s107 = ssub.s32 %s10, %s17
    %p108 = scmp.eq.s32.totalorder %s107, 0
    %s110 = sadd.s32 %s109, 1
    %s111 = scalar_select %p108, %s109, %s110
    %p114 = pneg %p108
    %p115 = scmp.eq.s32.totalorder %s10, 1
    %p116 = por %p114, %p115
    %p117 = scmp.ne.s32.totalorder %s109, %s112
    %p118 = scmp.eq.s32.totalorder %s10, 0
    %p119 = por %p117, %p118
    %p120 = scmp.ne.s32.totalorder %s109, %s112
    %p121 = scmp.eq.s32.totalorder %s15, 1
    %p122 = por %p120, %p121
    %p123 = scmp.ne.s32.totalorder %s112, %s113
    %p124 = scmp.eq.s32.totalorder %s15, 0
    %p125 = por %p123, %p124
    %p126 = scmp.ne.s32.totalorder %s112, %s113
    %p127 = scmp.eq.s32.totalorder %s16, 1
    %p128 = por %p126, %p127
    %p130 = scmp.ne.s32.totalorder %s113, %s129
    %p131 = scmp.eq.s32.totalorder %s16, 0
    %p132 = por %p130, %p131
    %p133 = scmp.le.s32.totalorder 1, %s10
    %p134 = scmp.lt.s32.totalorder %s10, 3
    %p135 = pnand %p133, %p134
    %p136 = pneg %p135
    // Predicated region
    $region9: #{_lambda_.6} parent=5 // pred_check
      _
    $region10: #{_lambda_.6} parent=5 // pred_check_branch
      %138 = sbr.rel (%p135) target = $region12
    $region11: #{_lambda_.6} parent=5 // pred_region
      %s139 = ssub.s32 %s10, 1
      // Predicated region
      $region13: #{_lambda_.6} parent=11 // pred_check
        %p140 = pneg %p57
      $region14: #{_lambda_.6} parent=11 // pred_check_branch
        %142 = sbr.rel (%p140) target = $region16
      $region15: #{_lambda_.6} parent=11 // pred_region
        _
      $region16: #{_lambda_.6} parent=11 // pred_fallthru
        _
      // Predicated region
      $region17: #{_lambda_.6} parent=11 // pred_check
        %p143 = pneg %p78
      $region18: #{_lambda_.6} parent=11 // pred_check_branch
        %145 = sbr.rel (%p143) target = $region20
      $region19: #{_lambda_.6} parent=11 // pred_region
        _
      $region20: #{_lambda_.6} parent=11 // pred_fallthru
        _
      // Predicated region
      $region21: #{_lambda_.6} parent=11 // pred_check
        %p146 = pneg %p99
      $region22: #{_lambda_.6} parent=11 // pred_check_branch
        %148 = sbr.rel (%p146) target = $region24
      $region23: #{_lambda_.6} parent=11 // pred_region
        _
      $region24: #{_lambda_.6} parent=11 // pred_fallthru
        _
    $region12: #{_lambda_.6} parent=5 // pred_fallthru
      _
    %p149 = scmp.lt.s32.totalorder %s10, 2
    // Predicated region
    $region25: #{_lambda_.6} parent=5 // pred_check
      %p150 = pneg %p149
    $region26: #{_lambda_.6} parent=5 // pred_check_branch
      %152 = sbr.rel (%p150) target = $region28
    $region27: #{_lambda_.6} parent=5 // pred_region
      // Predicated region
      $region29: #{_lambda_.6} parent=27 // pred_check
        %p153 = pneg %p30
      $region30: #{_lambda_.6} parent=27 // pred_check_branch
        %155 = sbr.rel (%p153) target = $region32
      $region31: #{_lambda_.6} parent=27 // pred_region
        %p156 = scmp.lt.s32.totalorder %s10, 1
        %s157 = scalar_select %p156, %s10, 1
        %s158 = smul.addr %s157, 17
        %s159 = smul.addr %s158, 8
        %s160 = scalar_lea.vmem %s0, %s159
      $region32: #{_lambda_.6} parent=27 // pred_fallthru
        _
    $region28: #{_lambda_.6} parent=5 // pred_fallthru
      _
    %p161 = scmp.le.s32.totalorder 1, %s10
    %p162 = scmp.lt.s32.totalorder %s10, 3
    %p163 = pnand %p161, %p162
    %p164 = pneg %p163
    // Predicated region
    $region33: #{_lambda_.6} parent=5 // pred_check
      _
    $region34: #{_lambda_.6} parent=5 // pred_check_branch
      %166 = sbr.rel (%p163) target = $region36
    $region35: #{_lambda_.6} parent=5 // pred_region
      %s167 = ssub.s32 %s10, 1
      %p168 = scmp.lt.s32.totalorder %s15, 1
      %s169 = scalar_select %p168, %s15, 1
      %s170 = smul.addr %s169, 17
      %s171 = smul.addr %s170, 8
      %s172 = scalar_lea.vmem %s0, %s171
      %p173 = pneg %p36
      %p174 = pneg %p33
      %p175 = pneg %p57
      %p176 = pneg %p54
      %p177 = pneg %p78
      %p178 = pneg %p75
      %p179 = pneg %p99
      %p180 = pneg %p96
      %p181 = pneg %p125
      %p182 = pneg %p122
      %p183 = scmp.lt.s32.totalorder %s15, 1
      %s184 = scalar_select %p183, %s15, 1
      %s185 = smul.addr %s184, 17
      %s186 = smul.addr %s185, 8
      %s187 = scalar_lea.vmem %s4, %s186
      %p188 = scmp.lt.s32.totalorder %s15, 1
      %s189 = scalar_select %p188, %s15, 1
      %s190 = smul.addr %s189, 17
      %s191 = smul.addr %s190, 8
      %s192 = scalar_lea.vmem %s0, %s191
      %p193 = scmp.lt.s32.totalorder %s15, 1
      %s194 = scalar_select %p193, %s15, 1
      %s195 = smul.addr %s194, 17
      %s196 = smul.addr %s195, 8
      %s197 = scalar_lea.vmem %s4, %s196
      %v199 = vld [vmem:[%s192] sm:$0xff]
      %v200 = vld [vmem:[%s192 + $0x8] sm:$0xff]
      %v201 = vld [vmem:[%s192 + $0x10] sm:$0xff]
      %v202 = vld [vmem:[%s192 + $0x18] sm:$0xff]
      %v203 = vld [vmem:[%s192 + $0x20] sm:$0xff]
      %v204 = vld [vmem:[%s192 + $0x28] sm:$0xff]
      %v205 = vld [vmem:[%s192 + $0x30] sm:$0xff]
      %v206 = vld [vmem:[%s192 + $0x38] sm:$0xff]
      %v207 = vld [vmem:[%s192 + $0x40] sm:$0xff]
      %v208 = vld [vmem:[%s192 + $0x48] sm:$0xff]
      %v209 = vld [vmem:[%s192 + $0x50] sm:$0xff]
      %v210 = vld [vmem:[%s192 + $0x58] sm:$0xff]
      %v211 = vld [vmem:[%s192 + $0x60] sm:$0xff]
      %v212 = vld [vmem:[%s192 + $0x68] sm:$0xff]
      %v213 = vld [vmem:[%s192 + $0x70] sm:$0xff]
      %v214 = vld [vmem:[%s192 + $0x78] sm:$0xff]
      %v215 = vld [vmem:[%s192 + $0x80] sm:$0x7]
      %v216 = vld [vmem:[%s1] sm:$0xf]
      %v217 = vld [vmem:[%s1 + $0x4] sm:$0x1]
      %v218 = vpack.c.bf16 %v200, %v199
      %v219 = vpack.c.bf16 %v202, %v201
      %v220 = vpack.c.bf16 %v204, %v203
      %v221 = vpack.c.bf16 %v206, %v205
      %v222 = vpack.c.bf16 %v208, %v207
      %v223 = vpack.c.bf16 %v210, %v209
      %v224 = vpack.c.bf16 %v212, %v211
      %v225 = vpack.c.bf16 %v214, %v213
      %v226 = vpack.c.bf16 %v215, %v215
      %v229 = vunpack.c.l.b16 %v216
      %v230 = vunpack.c.l.b16 %v217
      %v231 = vpack.c.b16 %v230, %v229
      %vm232 = vcmask 80896
      %v234 = vsel %vm232, %v218, 0
      %v237 = vsel %vm232, %v219, 0
      %v240 = vsel %vm232, %v220, 0
      %v243 = vsel %vm232, %v221, 0
      %v246 = vsel %vm232, %v222, 0
      %v249 = vsel %vm232, %v223, 0
      %v252 = vsel %vm232, %v224, 0
      %v255 = vsel %vm232, %v225, 0
      %v258 = vsel %vm232, %v226, 0
      %vm260 = vcmask 1044480
      %v262 = vsel %vm260, %v231, 0
      %264 = vmatprep.subr.bf16.mxu0 0
      %265 = vmatpush1.bf16.msra.mxu0 %v262
      %266 = vmatprep.subr.bf16.mxu0 0
      %267 = vmatpush1.bf16.msra.mxu0 0
      %268 = vmatprep.subr.bf16.mxu0 0
      %269 = vmatpush1.bf16.msra.mxu0 0
      %270 = vmatprep.subr.bf16.mxu0 0
      %271 = vmatpush1.bf16.msra.mxu0 0
      %272 = vmatprep.subr.bf16.mxu0 0
      %273 = vmatpush1.bf16.msra.mxu0 0
      %274 = vmatprep.subr.bf16.mxu0 0
      %275 = vmatpush1.bf16.msra.mxu0 0
      %276 = vmatprep.subr.bf16.mxu0 0
      %277 = vmatpush1.bf16.msra.mxu0 0
      %278 = vmatprep.subr.bf16.mxu0 0
      %279 = vmatpush1.bf16.msra.mxu0 0
      %280 = vmatprep.subr.bf16.mxu0 0
      %281 = vmatpush1.bf16.msra.mxu0 0
      %282 = vmatprep.subr.bf16.mxu0 0
      %283 = vmatpush1.bf16.msra.mxu0 0
      %284 = vmatprep.subr.bf16.mxu0 0
      %285 = vmatpush1.bf16.msra.mxu0 0
      %286 = vmatprep.subr.bf16.mxu0 0
      %287 = vmatpush1.bf16.msra.mxu0 0
      %288 = vmatprep.subr.bf16.mxu0 0
      %289 = vmatpush1.bf16.msra.mxu0 0
      %290 = vmatprep.subr.bf16.mxu0 0
      %291 = vmatpush1.bf16.msra.mxu0 0
      %292 = vmatprep.subr.bf16.mxu0 0
      %293 = vmatpush1.bf16.msra.mxu0 0
      %294 = vmatprep.subr.bf16.mxu0 0
      %295 = vmatpush1.bf16.msra.mxu0 0
      %296 = vmatprep.mubr.bf16.mxu0 0
      %297 = vmatmul.mubr.bf16.gmra.mrb[0].mxu0 %v234
      %v298 = vpop.f32.mrb[0].mxu0
      %v299 = vadd.f32 0.0, %v298
      %v300 = vpop.f32.mrb[0].mxu0
      %v301 = vpop.f32.mrb[0].mxu0
      %v302 = vadd.f32 0.0, %v301
      %v303 = vpop.f32.mrb[0].mxu0
      %304 = vmatprep.mubr.bf16.mxu0 0
      %305 = vmatmul.mubr.bf16.gmra.mrb[0].mxu0 %v237
      %v306 = vpop.f32.mrb[0].mxu0
      %v307 = vadd.f32 0.0, %v306
      %v308 = vpop.f32.mrb[0].mxu0
      %v309 = vpop.f32.mrb[0].mxu0
      %v310 = vadd.f32 0.0, %v309
      %v311 = vpop.f32.mrb[0].mxu0
      %312 = vmatprep.mubr.bf16.mxu0 0
      %313 = vmatmul.mubr.bf16.gmra.mrb[0].mxu0 %v240
      %v314 = vpop.f32.mrb[0].mxu0
      %v315 = vadd.f32 0.0, %v314
      %v316 = vpop.f32.mrb[0].mxu0
      %v317 = vpop.f32.mrb[0].mxu0
      %v318 = vadd.f32 0.0, %v317
      %v319 = vpop.f32.mrb[0].mxu0
      %320 = vmatprep.mubr.bf16.mxu0 0
      %321 = vmatmul.mubr.bf16.gmra.mrb[0].mxu0 %v243
      %v322 = vpop.f32.mrb[0].mxu0
      %v323 = vadd.f32 0.0, %v322
      %v324 = vpop.f32.mrb[0].mxu0
      %v325 = vpop.f32.mrb[0].mxu0
      %v326 = vadd.f32 0.0, %v325
      %v327 = vpop.f32.mrb[0].mxu0
      %328 = vmatprep.mubr.bf16.mxu0 0
      %329 = vmatmul.mubr.bf16.gmra.mrb[0].mxu0 %v246
      %v330 = vpop.f32.mrb[0].mxu0
      %v331 = vadd.f32 0.0, %v330
      %v332 = vpop.f32.mrb[0].mxu0
      %v333 = vpop.f32.mrb[0].mxu0
      %v334 = vadd.f32 0.0, %v333
      %v335 = vpop.f32.mrb[0].mxu0
      %336 = vmatprep.mubr.bf16.mxu0 0
      %337 = vmatmul.mubr.bf16.gmra.mrb[0].mxu0 %v249
      %v338 = vpop.f32.mrb[0].mxu0
      %v339 = vadd.f32 0.0, %v338
      %v340 = vpop.f32.mrb[0].mxu0
      %v341 = vpop.f32.mrb[0].mxu0
      %v342 = vadd.f32 0.0, %v341
      %v343 = vpop.f32.mrb[0].mxu0
      %344 = vmatprep.mubr.bf16.mxu0 0
      %345 = vmatmul.mubr.bf16.gmra.mrb[0].mxu0 %v252
      %v346 = vpop.f32.mrb[0].mxu0
      %v347 = vadd.f32 0.0, %v346
      %v348 = vpop.f32.mrb[0].mxu0
      %v349 = vpop.f32.mrb[0].mxu0
      %v350 = vadd.f32 0.0, %v349
      %v351 = vpop.f32.mrb[0].mxu0
      %352 = vmatprep.mubr.bf16.mxu0 0
      %353 = vmatmul.mubr.bf16.gmra.mrb[0].mxu0 %v255
      %v354 = vpop.f32.mrb[0].mxu0
      %v355 = vadd.f32 0.0, %v354
      %v356 = vpop.f32.mrb[0].mxu0
      %v357 = vpop.f32.mrb[0].mxu0
      %v358 = vadd.f32 0.0, %v357
      %v359 = vpop.f32.mrb[0].mxu0
      %360 = vmatprep.mubr.bf16.mxu0 0
      %361 = vmatmul.mubr.bf16.gmra.mrb[0].mxu0 %v258
      %v362 = vpop.f32.mrb[0].mxu0
      %v363 = vadd.f32 0.0, %v362
      %v364 = vpop.f32.mrb[0].mxu0
      %v365 = vpop.f32.mrb[0].mxu0
      %v366 = vpop.f32.mrb[0].mxu0
      %367 = vdwg.mxu0
      %vm368 = vcmask 261120
      %v369 = vsel %vm368, %v299, 0.0
      %v370 = vsel %vm368, %v302, 0.0
      %v371 = vadd.f32 %v369, %v370
      %v372 = vsel %vm368, %v307, 0.0
      %v373 = vadd.f32 %v371, %v372
      %v374 = vsel %vm368, %v310, 0.0
      %v375 = vadd.f32 %v373, %v374
      %v376 = vsel %vm368, %v315, 0.0
      %v377 = vadd.f32 %v375, %v376
      %v378 = vsel %vm368, %v318, 0.0
      %v379 = vadd.f32 %v377, %v378
      %v380 = vsel %vm368, %v323, 0.0
      %v381 = vadd.f32 %v379, %v380
      %v382 = vsel %vm368, %v326, 0.0
      %v383 = vadd.f32 %v381, %v382
      %v384 = vsel %vm368, %v331, 0.0
      %v385 = vadd.f32 %v383, %v384
      %v386 = vsel %vm368, %v334, 0.0
      %v387 = vadd.f32 %v385, %v386
      %v388 = vsel %vm368, %v339, 0.0
      %v389 = vadd.f32 %v387, %v388
      %v390 = vsel %vm368, %v342, 0.0
      %v391 = vadd.f32 %v389, %v390
      %v392 = vsel %vm368, %v347, 0.0
      %v393 = vadd.f32 %v391, %v392
      %v394 = vsel %vm368, %v350, 0.0
      %v395 = vadd.f32 %v393, %v394
      %v396 = vsel %vm368, %v355, 0.0
      %v397 = vadd.f32 %v395, %v396
      %v398 = vsel %vm368, %v358, 0.0
      %v399 = vadd.f32 %v397, %v398
      %vm400 = vcmask 256000
      %v401 = vsel %vm400, %v363, 0.0
      %v402 = vadd.f32 %v399, %v401
      %v403 = vrot.slane %v402, 4
      %v404 = vadd.f32 %v402, %v403
      %v405 = vrot.slane %v404, 2
      %v406 = vadd.f32 %v404, %v405
      %v407 = vrot.slane %v406, 1
      %v408 = vadd.f32 %v406, %v407
      %v409 = vrcp.pop 131.0
      %v410 = vmul.f32 %v408, %v409
      %v411 = vsub.f32 %v299, %v410
      %v412 = vsub.f32 %v302, %v410
      %v413 = vsub.f32 %v307, %v410
      %v414 = vsub.f32 %v310, %v410
      %v415 = vsub.f32 %v315, %v410
      %v416 = vsub.f32 %v318, %v410
      %v417 = vsub.f32 %v323, %v410
      %v418 = vsub.f32 %v326, %v410
      %v419 = vsub.f32 %v331, %v410
      %v420 = vsub.f32 %v334, %v410
      %v421 = vsub.f32 %v339, %v410
      %v422 = vsub.f32 %v342, %v410
      %v423 = vsub.f32 %v347, %v410
      %v424 = vsub.f32 %v350, %v410
      %v425 = vsub.f32 %v355, %v410
      %v426 = vsub.f32 %v358, %v410
      %v427 = vsub.f32 %v363, %v410
      %v428 = vmul.f32 %v411, %v411
      %v429 = vmul.f32 %v412, %v412
      %v430 = vmul.f32 %v413, %v413
      %v431 = vmul.f32 %v414, %v414
      %v432 = vmul.f32 %v415, %v415
      %v433 = vmul.f32 %v416, %v416
      %v434 = vmul.f32 %v417, %v417
      %v435 = vmul.f32 %v418, %v418
      %v436 = vmul.f32 %v419, %v419
      %v437 = vmul.f32 %v420, %v420
      %v438 = vmul.f32 %v421, %v421
      %v439 = vmul.f32 %v422, %v422
      %v440 = vmul.f32 %v423, %v423
      %v441 = vmul.f32 %v424, %v424
      %v442 = vmul.f32 %v425, %v425
      %v443 = vmul.f32 %v426, %v426
      %v444 = vmul.f32 %v427, %v427
      %v445 = vsel %vm368, %v428, 0.0
      %v446 = vsel %vm368, %v429, 0.0
      %v447 = vadd.f32 %v445, %v446
      %v448 = vsel %vm368, %v430, 0.0
      %v449 = vadd.f32 %v447, %v448
      %v450 = vsel %vm368, %v431, 0.0
      %v451 = vadd.f32 %v449, %v450
      %v452 = vsel %vm368, %v432, 0.0
      %v453 = vadd.f32 %v451, %v452
      %v454 = vsel %vm368, %v433, 0.0
      %v455 = vadd.f32 %v453, %v454
      %v456 = vsel %vm368, %v434, 0.0
      %v457 = vadd.f32 %v455, %v456
      %v458 = vsel %vm368, %v435, 0.0
      %v459 = vadd.f32 %v457, %v458
      %v460 = vsel %vm368, %v436, 0.0
      %v461 = vadd.f32 %v459, %v460
      %v462 = vsel %vm368, %v437, 0.0
      %v463 = vadd.f32 %v461, %v462
      %v464 = vsel %vm368, %v438, 0.0
      %v465 = vadd.f32 %v463, %v464
      %v466 = vsel %vm368, %v439, 0.0
      %v467 = vadd.f32 %v465, %v466
      %v468 = vsel %vm368, %v440, 0.0
      %v469 = vadd.f32 %v467, %v468
      %v470 = vsel %vm368, %v441, 0.0
      %v471 = vadd.f32 %v469, %v470
      %v472 = vsel %vm368, %v442, 0.0
      %v473 = vadd.f32 %v471, %v472
      %v474 = vsel %vm368, %v443, 0.0
      %v475 = vadd.f32 %v473, %v474
      %v476 = vsel %vm400, %v444, 0.0
      %v477 = vadd.f32 %v475, %v476
      %v478 = vrot.slane %v477, 4
      %v479 = vadd.f32 %v477, %v478
      %v480 = vrot.slane %v479, 2
      %v481 = vadd.f32 %v479, %v480
      %v482 = vrot.slane %v481, 1
      %v483 = vadd.f32 %v481, %v482
      %v484 = vmul.f32 %v483, %v409
      %v485 = vadd.f32 %v484, 1e-05
      %v486 = vrsqrt.pop %v485
      %v487 = vmul.f32 %v411, %v486
      %v488 = vmul.f32 %v412, %v486
      %v489 = vmul.f32 %v413, %v486
      %v490 = vmul.f32 %v414, %v486
      %v491 = vmul.f32 %v415, %v486
      %v492 = vmul.f32 %v416, %v486
      %v493 = vmul.f32 %v417, %v486
      %v494 = vmul.f32 %v418, %v486
      %v495 = vmul.f32 %v419, %v486
      %v496 = vmul.f32 %v420, %v486
      %v497 = vmul.f32 %v421, %v486
      %v498 = vmul.f32 %v422, %v486
      %v499 = vmul.f32 %v423, %v486
      %v500 = vmul.f32 %v424, %v486
      %v501 = vmul.f32 %v425, %v486
      %v502 = vmul.f32 %v426, %v486
      %v503 = vmul.f32 %v427, %v486
      %v504 = vld [vmem:[%s2] sm:$0x1]
      %v506 = vlaneseq
      %v507 = vshrl.u32 %v506, 7
      %v508 = vsub.s32 0, %v507
      %v509 = vrot.slane %v504, %v508
      %v511 = vmul.f32 %v487, %v509
      %v512 = vmul.f32 %v488, %v509
      %v513 = vmul.f32 %v489, %v509
      %v514 = vmul.f32 %v490, %v509
      %v515 = vmul.f32 %v491, %v509
      %v516 = vmul.f32 %v492, %v509
      %v517 = vmul.f32 %v493, %v509
      %v518 = vmul.f32 %v494, %v509
      %v519 = vmul.f32 %v495, %v509
      %v520 = vmul.f32 %v496, %v509
      %v521 = vmul.f32 %v497, %v509
      %v522 = vmul.f32 %v498, %v509
      %v523 = vmul.f32 %v499, %v509
      %v524 = vmul.f32 %v500, %v509
      %v525 = vmul.f32 %v501, %v509
      %v526 = vmul.f32 %v502, %v509
      %v527 = vmul.f32 %v503, %v509
      %v528 = vld [vmem:[%s3] sm:$0x1]
      %v530 = vlaneseq
      %v531 = vshrl.u32 %v530, 7
      %v532 = vsub.s32 0, %v531
      %v533 = vrot.slane %v528, %v532
      %v535 = vadd.f32 %v511, %v533
      %v536 = vadd.f32 %v512, %v533
      %v537 = vadd.f32 %v513, %v533
      %v538 = vadd.f32 %v514, %v533
      %v539 = vadd.f32 %v515, %v533
      %v540 = vadd.f32 %v516, %v533
      %v541 = vadd.f32 %v517, %v533
      %v542 = vadd.f32 %v518, %v533
      %v543 = vadd.f32 %v519, %v533
      %v544 = vadd.f32 %v520, %v533
      %v545 = vadd.f32 %v521, %v533
      %v546 = vadd.f32 %v522, %v533
      %v547 = vadd.f32 %v523, %v533
      %v548 = vadd.f32 %v524, %v533
      %v549 = vadd.f32 %v525, %v533
      %v550 = vadd.f32 %v526, %v533
      %v551 = vadd.f32 %v527, %v533
      %v552 = vmul.f32 %v535, 0.5
      %v553 = vmul.f32 %v536, 0.5
      %v554 = vmul.f32 %v537, 0.5
      %v555 = vmul.f32 %v538, 0.5
      %v556 = vmul.f32 %v539, 0.5
      %v557 = vmul.f32 %v540, 0.5
      %v558 = vmul.f32 %v541, 0.5
      %v559 = vmul.f32 %v542, 0.5
      %v560 = vmul.f32 %v543, 0.5
      %v561 = vmul.f32 %v544, 0.5
      %v562 = vmul.f32 %v545, 0.5
      %v563 = vmul.f32 %v546, 0.5
      %v564 = vmul.f32 %v547, 0.5
      %v565 = vmul.f32 %v548, 0.5
      %v566 = vmul.f32 %v549, 0.5
      %v567 = vmul.f32 %v550, 0.5
      %v568 = vmul.f32 %v551, 0.5
      %v569 = vmul.f32 %v535, 0.044715
      %v570 = vmul.f32 %v536, 0.044715
      %v571 = vmul.f32 %v537, 0.044715
      %v572 = vmul.f32 %v538, 0.044715
      %v573 = vmul.f32 %v539, 0.044715
      %v574 = vmul.f32 %v540, 0.044715
      %v575 = vmul.f32 %v541, 0.044715
      %v576 = vmul.f32 %v542, 0.044715
      %v577 = vmul.f32 %v543, 0.044715
      %v578 = vmul.f32 %v544, 0.044715
      %v579 = vmul.f32 %v545, 0.044715
      %v580 = vmul.f32 %v546, 0.044715
      %v581 = vmul.f32 %v547, 0.044715
      %v582 = vmul.f32 %v548, 0.044715
      %v583 = vmul.f32 %v549, 0.044715
      %v584 = vmul.f32 %v550, 0.044715
      %v585 = vmul.f32 %v551, 0.044715
      %v586 = vmul.f32 %v569, %v535
      %v587 = vmul.f32 %v570, %v536
      %v588 = vmul.f32 %v571, %v537
      %v589 = vmul.f32 %v572, %v538
      %v590 = vmul.f32 %v573, %v539
      %v591 = vmul.f32 %v574, %v540
      %v592 = vmul.f32 %v575, %v541
      %v593 = vmul.f32 %v576, %v542
      %v594 = vmul.f32 %v577, %v543
      %v595 = vmul.f32 %v578, %v544
      %v596 = vmul.f32 %v579, %v545
      %v597 = vmul.f32 %v580, %v546
      %v598 = vmul.f32 %v581, %v547
      %v599 = vmul.f32 %v582, %v548
      %v600 = vmul.f32 %v583, %v549
      %v601 = vmul.f32 %v584, %v550
      %v602 = vmul.f32 %v585, %v551
      %v603 = vmul.f32 %v586, %v535
      %v604 = vmul.f32 %v587, %v536
      %v605 = vmul.f32 %v588, %v537
      %v606 = vmul.f32 %v589, %v538
      %v607 = vmul.f32 %v590, %v539
      %v608 = vmul.f32 %v591, %v540
      %v609 = vmul.f32 %v592, %v541
      %v610 = vmul.f32 %v593, %v542
      %v611 = vmul.f32 %v594, %v543
      %v612 = vmul.f32 %v595, %v544
      %v613 = vmul.f32 %v596, %v545
      %v614 = vmul.f32 %v597, %v546
      %v615 = vmul.f32 %v598, %v547
      %v616 = vmul.f32 %v599, %v548
      %v617 = vmul.f32 %v600, %v549
      %v618 = vmul.f32 %v601, %v550
      %v619 = vmul.f32 %v602, %v551
      %v620 = vadd.f32 %v535, %v603
      %v621 = vadd.f32 %v536, %v604
      %v622 = vadd.f32 %v537, %v605
      %v623 = vadd.f32 %v538, %v606
      %v624 = vadd.f32 %v539, %v607
      %v625 = vadd.f32 %v540, %v608
      %v626 = vadd.f32 %v541, %v609
      %v627 = vadd.f32 %v542, %v610
      %v628 = vadd.f32 %v543, %v611
      %v629 = vadd.f32 %v544, %v612
      %v630 = vadd.f32 %v545, %v613
      %v631 = vadd.f32 %v546, %v614
      %v632 = vadd.f32 %v547, %v615
      %v633 = vadd.f32 %v548, %v616
      %v634 = vadd.f32 %v549, %v617
      %v635 = vadd.f32 %v550, %v618
      %v636 = vadd.f32 %v551, %v619
      %v637 = vmul.f32 %v620, 0.7978846
      %v638 = vmul.f32 %v621, 0.7978846
      %v639 = vmul.f32 %v622, 0.7978846
      %v640 = vmul.f32 %v623, 0.7978846
      %v641 = vmul.f32 %v624, 0.7978846
      %v642 = vmul.f32 %v625, 0.7978846
      %v643 = vmul.f32 %v626, 0.7978846
      %v644 = vmul.f32 %v627, 0.7978846
      %v645 = vmul.f32 %v628, 0.7978846
      %v646 = vmul.f32 %v629, 0.7978846
      %v647 = vmul.f32 %v630, 0.7978846
      %v648 = vmul.f32 %v631, 0.7978846
      %v649 = vmul.f32 %v632, 0.7978846
      %v650 = vmul.f32 %v633, 0.7978846
      %v651 = vmul.f32 %v634, 0.7978846
      %v652 = vmul.f32 %v635, 0.7978846
      %v653 = vmul.f32 %v636, 0.7978846
      %v654 = vtanh.pop %v637
      %v655 = vtanh.pop %v638
      %v656 = vtanh.pop %v639
      %v657 = vtanh.pop %v640
      %v658 = vtanh.pop %v641
      %v659 = vtanh.pop %v642
      %v660 = vtanh.pop %v643
      %v661 = vtanh.pop %v644
      %v662 = vtanh.pop %v645
      %v663 = vtanh.pop %v646
      %v664 = vtanh.pop %v647
      %v665 = vtanh.pop %v648
      %v666 = vtanh.pop %v649
      %v667 = vtanh.pop %v650
      %v668 = vtanh.pop %v651
      %v669 = vtanh.pop %v652
      %v670 = vtanh.pop %v653
      %v671 = vadd.f32 %v654, 1.0
      %v672 = vadd.f32 %v655, 1.0
      %v673 = vadd.f32 %v656, 1.0
      %v674 = vadd.f32 %v657, 1.0
      %v675 = vadd.f32 %v658, 1.0
      %v676 = vadd.f32 %v659, 1.0
      %v677 = vadd.f32 %v660, 1.0
      %v678 = vadd.f32 %v661, 1.0
      %v679 = vadd.f32 %v662, 1.0
      %v680 = vadd.f32 %v663, 1.0
      %v681 = vadd.f32 %v664, 1.0
      %v682 = vadd.f32 %v665, 1.0
      %v683 = vadd.f32 %v666, 1.0
      %v684 = vadd.f32 %v667, 1.0
      %v685 = vadd.f32 %v668, 1.0
      %v686 = vadd.f32 %v669, 1.0
      %v687 = vadd.f32 %v670, 1.0
      %v688 = vmul.f32 %v552, %v671
      %v689 = vmul.f32 %v553, %v672
      %v690 = vmul.f32 %v554, %v673
      %v691 = vmul.f32 %v555, %v674
      %v692 = vmul.f32 %v556, %v675
      %v693 = vmul.f32 %v557, %v676
      %v694 = vmul.f32 %v558, %v677
      %v695 = vmul.f32 %v559, %v678
      %v696 = vmul.f32 %v560, %v679
      %v697 = vmul.f32 %v561, %v680
      %v698 = vmul.f32 %v562, %v681
      %v699 = vmul.f32 %v563, %v682
      %v700 = vmul.f32 %v564, %v683
      %v701 = vmul.f32 %v565, %v684
      %v702 = vmul.f32 %v566, %v685
      %v703 = vmul.f32 %v567, %v686
      %v704 = vmul.f32 %v568, %v687
      %705 = vst.msk [vmem:[%s197] sm:$0xff] %vm368, %v688
      %706 = vst.msk [vmem:[%s197 + $0x8] sm:$0xff] %vm368, %v689
      %707 = vst.msk [vmem:[%s197 + $0x10] sm:$0xff] %vm368, %v690
      %708 = vst.msk [vmem:[%s197 + $0x18] sm:$0xff] %vm368, %v691
      %709 = vst.msk [vmem:[%s197 + $0x20] sm:$0xff] %vm368, %v692
      %710 = vst.msk [vmem:[%s197 + $0x28] sm:$0xff] %vm368, %v693
      %711 = vst.msk [vmem:[%s197 + $0x30] sm:$0xff] %vm368, %v694
      %712 = vst.msk [vmem:[%s197 + $0x38] sm:$0xff] %vm368, %v695
      %713 = vst.msk [vmem:[%s197 + $0x40] sm:$0xff] %vm368, %v696
      %714 = vst.msk [vmem:[%s197 + $0x48] sm:$0xff] %vm368, %v697
      %715 = vst.msk [vmem:[%s197 + $0x50] sm:$0xff] %vm368, %v698
      %716 = vst.msk [vmem:[%s197 + $0x58] sm:$0xff] %vm368, %v699
      %717 = vst.msk [vmem:[%s197 + $0x60] sm:$0xff] %vm368, %v700
      %718 = vst.msk [vmem:[%s197 + $0x68] sm:$0xff] %vm368, %v701
      %719 = vst.msk [vmem:[%s197 + $0x70] sm:$0xff] %vm368, %v702
      %720 = vst.msk [vmem:[%s197 + $0x78] sm:$0xff] %vm368, %v703
      %721 = vst.msk [vmem:[%s197 + $0x80] sm:$0x7] %vm400, %v704
      %p722 = scmp.lt.s32.totalorder %s15, 1
      %s723 = scalar_select %p722, %s15, 1
      %s724 = smul.addr %s723, 17
      %s725 = smul.addr %s724, 8
      %s726 = scalar_lea.vmem %s4, %s725
      // Predicated region
      $region37: #{_lambda_.6} parent=35 // pred_check
        %p727 = pneg %p122
      $region38: #{_lambda_.6} parent=35 // pred_check_branch
        %729 = sbr.rel (%p727) target = $region40
      $region39: #{_lambda_.6} parent=35 // pred_region
        _
      $region40: #{_lambda_.6} parent=35 // pred_fallthru
        _
    $region36: #{_lambda_.6} parent=5 // pred_fallthru
      _
    %p730 = scmp.le.s32.totalorder 2, %s10
    // Predicated region
    $region41: #{_lambda_.6} parent=5 // pred_check
      %p731 = pneg %p730
    $region42: #{_lambda_.6} parent=5 // pred_check_branch
      %733 = sbr.rel (%p731) target = $region44
    $region43: #{_lambda_.6} parent=5 // pred_region
      %s734 = ssub.s32 %s10, 2
      // Predicated region
      $region45: #{_lambda_.6} parent=43 // pred_check
        %p735 = pneg %p128
      $region46: #{_lambda_.6} parent=43 // pred_check_branch
        %737 = sbr.rel (%p735) target = $region48
      $region47: #{_lambda_.6} parent=43 // pred_region
        %p738 = scmp.lt.s32.totalorder %s16, 1
        %s739 = scalar_select %p738, %s16, 1
        %s740 = smul.addr %s739, 17
        %s741 = smul.addr %s740, 8
        %s742 = scalar_lea.vmem %s4, %s741
      $region48: #{_lambda_.6} parent=43 // pred_fallthru
        _
    $region44: #{_lambda_.6} parent=5 // pred_fallthru
      _
  $region6: #{_lambda_.6} parent=0 // loop_footer
    %s14 = sadd.s32 1, %s10
  $region7: #{_lambda_.6} parent=0 // loop_footer_branch
    %9 = sbr.rel target = $region3
  $region8: #{_lambda_.6} parent=0 // loop_exit
    _

// kernel: _lambda_.7
$region0: #{_lambda_.7}
  #allocation0 [shape = 'u32[]', space=smem, size = 0x4, offset = 0x4, fixed_abs, tag = 'smem constant byte address 0x4 - core index']
  #allocation1 [shape = 'u32[144,128]{1,0:T(1,128)}', space=vmem, size = 0x12000, scoped, tag = 'internal scratch']
  %s0 = inlined_call_operand.vmem [shape: f32[2,65,96], index: 0, kind: input, shape index: {}]
  %s1 = inlined_call_operand.vmem [shape: bf16[96,32], index: 1, kind: input, shape index: {}]
  %s2 = inlined_call_operand.vmem [shape: f32[2,65,32], index: 2, kind: output, shape index: {}]
  %s3 = sld [smem:[#allocation0]]
  $region41: #{_lambda_.7} parent=0
    _
  %s5 = ssub.s32 1, %s3
  %s6 = scalar_select 0, %s5, %s3
  loop: start=0, step=1, limit=4
  $region2: #{_lambda_.7} parent=0 // loop_pre_header
    _
  $region3: #{_lambda_.7} parent=0 // loop_header
    %s8 = sphi 0, %s12
    %p9 = scmp.ge.s32.totalorder %s8, 4
    %s18 = sphi 0, %s20
    %s21 = sphi 0, %s18
    %s22 = sphi 0, %s21
    %s38 = sphi 0, %s22
    %s42 = sphi 0, %s42
    %s44 = sphi 0, %s42
    %s45 = sphi 0, %s44
    %s59 = sphi 0, %s45
    %s65 = sphi 0, %s67
    %s68 = sphi 0, %s65
    %s69 = sphi 0, %s68
    %s85 = sphi 0, %s69
  $region4: #{_lambda_.7} parent=0 // loop_header_branch
    %11 = sbr.rel (%p9) target = $region8
  $region5: #{_lambda_.7} parent=0 // loop_body
    %s13 = ssub.s32 %s8, 1
    %s14 = ssub.s32 %s8, 2
    %s15 = sadd.s32 %s8, 1
    %s16 = ssub.s32 %s8, %s15
    %p17 = scmp.eq.s32.totalorder %s16, 0
    %s19 = sadd.s32 %s18, 1
    %s20 = scalar_select %p17, %s18, %s19
    %p23 = pneg %p17
    %p24 = scmp.eq.s32.totalorder %s8, 1
    %p25 = por %p23, %p24
    %p26 = scmp.ne.s32.totalorder %s18, %s21
    %p27 = scmp.eq.s32.totalorder %s8, 0
    %p28 = por %p26, %p27
    %p29 = scmp.ne.s32.totalorder %s18, %s21
    %p30 = scmp.eq.s32.totalorder %s13, 1
    %p31 = por %p29, %p30
    %p32 = scmp.ne.s32.totalorder %s21, %s22
    %p33 = scmp.eq.s32.totalorder %s13, 0
    %p34 = por %p32, %p33
    %p35 = scmp.ne.s32.totalorder %s21, %s22
    %p36 = scmp.eq.s32.totalorder %s14, 1
    %p37 = por %p35, %p36
    %p39 = scmp.ne.s32.totalorder %s22, %s38
    %p40 = scmp.eq.s32.totalorder %s14, 0
    %p41 = por %p39, %p40
    %s43 = sadd.s32 %s42, 1
    %p46 = scmp.eq.s32.totalorder %s8, 1
    %p47 = scmp.ne.s32.totalorder %s42, %s44
    %p48 = scmp.eq.s32.totalorder %s8, 0
    %p49 = por %p47, %p48
    %p50 = scmp.ne.s32.totalorder %s42, %s44
    %p51 = scmp.eq.s32.totalorder %s13, 1
    %p52 = por %p50, %p51
    %p53 = scmp.ne.s32.totalorder %s44, %s45
    %p54 = scmp.eq.s32.totalorder %s13, 0
    %p55 = por %p53, %p54
    %p56 = scmp.ne.s32.totalorder %s44, %s45
    %p57 = scmp.eq.s32.totalorder %s14, 1
    %p58 = por %p56, %p57
    %p60 = scmp.ne.s32.totalorder %s45, %s59
    %p61 = scmp.eq.s32.totalorder %s14, 0
    %p62 = por %p60, %p61
    %s63 = ssub.s32 %s8, %s15
    %p64 = scmp.eq.s32.totalorder %s63, 0
    %s66 = sadd.s32 %s65, 1
    %s67 = scalar_select %p64, %s65, %s66
    %p70 = pneg %p64
    %p71 = scmp.eq.s32.totalorder %s8, 1
    %p72 = por %p70, %p71
    %p73 = scmp.ne.s32.totalorder %s65, %s68
    %p74 = scmp.eq.s32.totalorder %s8, 0
    %p75 = por %p73, %p74
    %p76 = scmp.ne.s32.totalorder %s65, %s68
    %p77 = scmp.eq.s32.totalorder %s13, 1
    %p78 = por %p76, %p77
    %p79 = scmp.ne.s32.totalorder %s68, %s69
    %p80 = scmp.eq.s32.totalorder %s13, 0
    %p81 = por %p79, %p80
    %p82 = scmp.ne.s32.totalorder %s68, %s69
    %p83 = scmp.eq.s32.totalorder %s14, 1
    %p84 = por %p82, %p83
    %p86 = scmp.ne.s32.totalorder %s69, %s85
    %p87 = scmp.eq.s32.totalorder %s14, 0
    %p88 = por %p86, %p87
    %p89 = scmp.le.s32.totalorder 1, %s8
    %p90 = scmp.lt.s32.totalorder %s8, 3
    %p91 = pnand %p89, %p90
    %p92 = pneg %p91
    // Predicated region
    $region9: #{_lambda_.7} parent=5 // pred_check
      _
    $region10: #{_lambda_.7} parent=5 // pred_check_branch
      %94 = sbr.rel (%p91) target = $region12
    $region11: #{_lambda_.7} parent=5 // pred_region
      %s95 = ssub.s32 %s8, 1
      // Predicated region
      $region13: #{_lambda_.7} parent=11 // pred_check
        %p96 = pneg %p55
      $region14: #{_lambda_.7} parent=11 // pred_check_branch
        %98 = sbr.rel (%p96) target = $region16
      $region15: #{_lambda_.7} parent=11 // pred_region
        _
      $region16: #{_lambda_.7} parent=11 // pred_fallthru
        _
    $region12: #{_lambda_.7} parent=5 // pred_fallthru
      _
    %p99 = scmp.lt.s32.totalorder %s8, 2
    // Predicated region
    $region17: #{_lambda_.7} parent=5 // pred_check
      %p100 = pneg %p99
    $region18: #{_lambda_.7} parent=5 // pred_check_branch
      %102 = sbr.rel (%p100) target = $region20
    $region19: #{_lambda_.7} parent=5 // pred_region
      // Predicated region
      $region21: #{_lambda_.7} parent=19 // pred_check
        %p103 = pneg %p28
      $region22: #{_lambda_.7} parent=19 // pred_check_branch
        %105 = sbr.rel (%p103) target = $region24
      $region23: #{_lambda_.7} parent=19 // pred_region
        %p106 = scmp.lt.s32.totalorder %s8, 1
        %s107 = scalar_select %p106, %s8, 1
        %s108 = smul.addr %s107, 9
        %s109 = smul.addr %s108, 8
        %s110 = scalar_lea.vmem %s0, %s109
      $region24: #{_lambda_.7} parent=19 // pred_fallthru
        _
    $region20: #{_lambda_.7} parent=5 // pred_fallthru
      _
    %p111 = scmp.le.s32.totalorder 1, %s8
    %p112 = scmp.lt.s32.totalorder %s8, 3
    %p113 = pnand %p111, %p112
    %p114 = pneg %p113
    // Predicated region
    $region25: #{_lambda_.7} parent=5 // pred_check
      _
    $region26: #{_lambda_.7} parent=5 // pred_check_branch
      %116 = sbr.rel (%p113) target = $region28
    $region27: #{_lambda_.7} parent=5 // pred_region
      %s117 = ssub.s32 %s8, 1
      %p118 = scmp.lt.s32.totalorder %s13, 1
      %s119 = scalar_select %p118, %s13, 1
      %s120 = smul.addr %s119, 9
      %s121 = smul.addr %s120, 8
      %s122 = scalar_lea.vmem %s0, %s121
      %p123 = pneg %p34
      %p124 = pneg %p31
      %p125 = pneg %p55
      %p126 = pneg %p52
      %p127 = pneg %p81
      %p128 = pneg %p78
      %p129 = scmp.lt.s32.totalorder %s13, 1
      %s130 = scalar_select %p129, %s13, 1
      %s131 = smul.addr %s130, 9
      %s132 = smul.addr %s131, 8
      %s133 = scalar_lea.vmem %s2, %s132
      %p134 = scmp.lt.s32.totalorder %s13, 1
      %s135 = scalar_select %p134, %s13, 1
      %s136 = smul.addr %s135, 9
      %s137 = smul.addr %s136, 8
      %s138 = scalar_lea.vmem %s0, %s137
      %p139 = scmp.lt.s32.totalorder %s13, 1
      %s140 = scalar_select %p139, %s13, 1
      %s141 = smul.addr %s140, 9
      %s142 = smul.addr %s141, 8
      %s143 = scalar_lea.vmem %s2, %s142
      %v145 = vld [vmem:[%s138] sm:$0xff]
      %v146 = vld [vmem:[%s138 + $0x8] sm:$0xff]
      %v147 = vld [vmem:[%s138 + $0x10] sm:$0xff]
      %v148 = vld [vmem:[%s138 + $0x18] sm:$0xff]
      %v149 = vld [vmem:[%s138 + $0x20] sm:$0xff]
      %v150 = vld [vmem:[%s138 + $0x28] sm:$0xff]
      %v151 = vld [vmem:[%s138 + $0x30] sm:$0xff]
      %v152 = vld [vmem:[%s138 + $0x38] sm:$0xff]
      %v153 = vld [vmem:[%s138 + $0x40] sm:$0x1]
      %v154 = vld [vmem:[%s1] sm:$0xf]
      %v155 = vld [vmem:[%s1 + $0x4] sm:$0xf]
      %v156 = vld [vmem:[%s1 + $0x8] sm:$0xf]
      %v157 = vld [vmem:[%s1 + $0xc] sm:$0xf]
      %v158 = vld [vmem:[%s1 + $0x10] sm:$0xf]
      %v159 = vld [vmem:[%s1 + $0x14] sm:$0xf]
      %v160 = vld [vmem:[%s1 + $0x18] sm:$0xf]
      %v161 = vld [vmem:[%s1 + $0x1c] sm:$0xf]
      %v162 = vld [vmem:[%s1 + $0x20] sm:$0xf]
      %v163 = vld [vmem:[%s1 + $0x24] sm:$0xf]
      %v164 = vld [vmem:[%s1 + $0x28] sm:$0xf]
      %v165 = vld [vmem:[%s1 + $0x2c] sm:$0xf]
      %v166 = vpack.c.bf16 %v146, %v145
      %v167 = vpack.c.bf16 %v148, %v147
      %v168 = vpack.c.bf16 %v150, %v149
      %v169 = vpack.c.bf16 %v152, %v151
      %v170 = vpack.c.bf16 %v153, %v153
      %v183 = vunpack.c.l.b16 %v154
      %v184 = vunpack.c.l.b16 %v155
      %v185 = vunpack.c.l.b16 %v156
      %v186 = vunpack.c.l.b16 %v157
      %v187 = vunpack.c.l.b16 %v158
      %v188 = vunpack.c.l.b16 %v159
      %v189 = vunpack.c.l.b16 %v160
      %v190 = vunpack.c.l.b16 %v161
      %v191 = vunpack.c.l.b16 %v162
      %v192 = vunpack.c.l.b16 %v163
      %v193 = vunpack.c.l.b16 %v164
      %v194 = vunpack.c.l.b16 %v165
      %v195 = vpack.c.b16 %v184, %v183
      %v196 = vpack.c.b16 %v186, %v185
      %v197 = vpack.c.b16 %v188, %v187
      %v198 = vpack.c.b16 %v190, %v189
      %v199 = vpack.c.b16 %v192, %v191
      %v200 = vpack.c.b16 %v194, %v193
      %vm207 = vcmask 785408
      %v209 = vsel %vm207, %v166, 0
      %v212 = vsel %vm207, %v167, 0
      %v215 = vsel %vm207, %v168, 0
      %v218 = vsel %vm207, %v169, 0
      %v221 = vsel %vm207, %v170, 0
      %223 = vmatprep.subr.bf16.mxu0 0
      %224 = vmatpush1.bf16.msra.mxu0 %v195
      %225 = vmatprep.subr.bf16.mxu0 0
      %226 = vmatpush1.bf16.msra.mxu0 %v196
      %227 = vmatprep.subr.bf16.mxu0 0
      %228 = vmatpush1.bf16.msra.mxu0 %v197
      %229 = vmatprep.subr.bf16.mxu0 0
      %230 = vmatpush1.bf16.msra.mxu0 %v198
      %231 = vmatprep.subr.bf16.mxu0 0
      %232 = vmatpush1.bf16.msra.mxu0 %v199
      %233 = vmatprep.subr.bf16.mxu0 0
      %234 = vmatpush1.bf16.msra.mxu0 %v200
      %235 = vmatprep.subr.bf16.mxu0 0
      %236 = vmatpush1.bf16.msra.mxu0 0
      %237 = vmatprep.subr.bf16.mxu0 0
      %238 = vmatpush1.bf16.msra.mxu0 0
      %239 = vmatprep.subr.bf16.mxu0 0
      %240 = vmatpush1.bf16.msra.mxu0 0
      %241 = vmatprep.subr.bf16.mxu0 0
      %242 = vmatpush1.bf16.msra.mxu0 0
      %243 = vmatprep.subr.bf16.mxu0 0
      %244 = vmatpush1.bf16.msra.mxu0 0
      %245 = vmatprep.subr.bf16.mxu0 0
      %246 = vmatpush1.bf16.msra.mxu0 0
      %247 = vmatprep.subr.bf16.mxu0 0
      %248 = vmatpush1.bf16.msra.mxu0 0
      %249 = vmatprep.subr.bf16.mxu0 0
      %250 = vmatpush1.bf16.msra.mxu0 0
      %251 = vmatprep.subr.bf16.mxu0 0
      %252 = vmatpush1.bf16.msra.mxu0 0
      %253 = vmatprep.subr.bf16.mxu0 0
      %254 = vmatpush1.bf16.msra.mxu0 0
      %255 = vmatprep.mubr.bf16.mxu0 0
      %256 = vmatmul.mubr.bf16.gmra.mrb[0].mxu0 %v209
      %v257 = vpop.f32.mrb[0].mxu0
      %v258 = vadd.f32 0.0, %v257
      %v259 = vpop.f32.mrb[0].mxu0
      %v260 = vpop.f32.mrb[0].mxu0
      %v261 = vadd.f32 0.0, %v260
      %v262 = vpop.f32.mrb[0].mxu0
      %263 = vmatprep.mubr.bf16.mxu0 0
      %264 = vmatmul.mubr.bf16.gmra.mrb[0].mxu0 %v212
      %v265 = vpop.f32.mrb[0].mxu0
      %v266 = vadd.f32 0.0, %v265
      %v267 = vpop.f32.mrb[0].mxu0
      %v268 = vpop.f32.mrb[0].mxu0
      %v269 = vadd.f32 0.0, %v268
      %v270 = vpop.f32.mrb[0].mxu0
      %271 = vmatprep.mubr.bf16.mxu0 0
      %272 = vmatmul.mubr.bf16.gmra.mrb[0].mxu0 %v215
      %v273 = vpop.f32.mrb[0].mxu0
      %v274 = vadd.f32 0.0, %v273
      %v275 = vpop.f32.mrb[0].mxu0
      %v276 = vpop.f32.mrb[0].mxu0
      %v277 = vadd.f32 0.0, %v276
      %v278 = vpop.f32.mrb[0].mxu0
      %279 = vmatprep.mubr.bf16.mxu0 0
      %280 = vmatmul.mubr.bf16.gmra.mrb[0].mxu0 %v218
      %v281 = vpop.f32.mrb[0].mxu0
      %v282 = vadd.f32 0.0, %v281
      %v283 = vpop.f32.mrb[0].mxu0
      %v284 = vpop.f32.mrb[0].mxu0
      %v285 = vadd.f32 0.0, %v284
      %v286 = vpop.f32.mrb[0].mxu0
      %287 = vmatprep.mubr.bf16.mxu0 0
      %288 = vmatmul.mubr.bf16.gmra.mrb[0].mxu0 %v221
      %v289 = vpop.f32.mrb[0].mxu0
      %v290 = vadd.f32 0.0, %v289
      %v291 = vpop.f32.mrb[0].mxu0
      %v292 = vpop.f32.mrb[0].mxu0
      %v293 = vpop.f32.mrb[0].mxu0
      %294 = vdwg.mxu0
      %v295 = vmul.f32 %v258, 0.5
      %v296 = vmul.f32 %v261, 0.5
      %v297 = vmul.f32 %v266, 0.5
      %v298 = vmul.f32 %v269, 0.5
      %v299 = vmul.f32 %v274, 0.5
      %v300 = vmul.f32 %v277, 0.5
      %v301 = vmul.f32 %v282, 0.5
      %v302 = vmul.f32 %v285, 0.5
      %v303 = vmul.f32 %v290, 0.5
      %v304 = vmul.f32 %v258, 0.044715
      %v305 = vmul.f32 %v261, 0.044715
      %v306 = vmul.f32 %v266, 0.044715
      %v307 = vmul.f32 %v269, 0.044715
      %v308 = vmul.f32 %v274, 0.044715
      %v309 = vmul.f32 %v277, 0.044715
      %v310 = vmul.f32 %v282, 0.044715
      %v311 = vmul.f32 %v285, 0.044715
      %v312 = vmul.f32 %v290, 0.044715
      %v313 = vmul.f32 %v304, %v258
      %v314 = vmul.f32 %v305, %v261
      %v315 = vmul.f32 %v306, %v266
      %v316 = vmul.f32 %v307, %v269
      %v317 = vmul.f32 %v308, %v274
      %v318 = vmul.f32 %v309, %v277
      %v319 = vmul.f32 %v310, %v282
      %v320 = vmul.f32 %v311, %v285
      %v321 = vmul.f32 %v312, %v290
      %v322 = vmul.f32 %v313, %v258
      %v323 = vmul.f32 %v314, %v261
      %v324 = vmul.f32 %v315, %v266
      %v325 = vmul.f32 %v316, %v269
      %v326 = vmul.f32 %v317, %v274
      %v327 = vmul.f32 %v318, %v277
      %v328 = vmul.f32 %v319, %v282
      %v329 = vmul.f32 %v320, %v285
      %v330 = vmul.f32 %v321, %v290
      %v331 = vadd.f32 %v258, %v322
      %v332 = vadd.f32 %v261, %v323
      %v333 = vadd.f32 %v266, %v324
      %v334 = vadd.f32 %v269, %v325
      %v335 = vadd.f32 %v274, %v326
      %v336 = vadd.f32 %v277, %v327
      %v337 = vadd.f32 %v282, %v328
      %v338 = vadd.f32 %v285, %v329
      %v339 = vadd.f32 %v290, %v330
      %v340 = vmul.f32 %v331, 0.7978846
      %v341 = vmul.f32 %v332, 0.7978846
      %v342 = vmul.f32 %v333, 0.7978846
      %v343 = vmul.f32 %v334, 0.7978846
      %v344 = vmul.f32 %v335, 0.7978846
      %v345 = vmul.f32 %v336, 0.7978846
      %v346 = vmul.f32 %v337, 0.7978846
      %v347 = vmul.f32 %v338, 0.7978846
      %v348 = vmul.f32 %v339, 0.7978846
      %v349 = vtanh.pop %v340
      %v350 = vtanh.pop %v341
      %v351 = vtanh.pop %v342
      %v352 = vtanh.pop %v343
      %v353 = vtanh.pop %v344
      %v354 = vtanh.pop %v345
      %v355 = vtanh.pop %v346
      %v356 = vtanh.pop %v347
      %v357 = vtanh.pop %v348
      %v358 = vadd.f32 %v349, 1.0
      %v359 = vadd.f32 %v350, 1.0
      %v360 = vadd.f32 %v351, 1.0
      %v361 = vadd.f32 %v352, 1.0
      %v362 = vadd.f32 %v353, 1.0
      %v363 = vadd.f32 %v354, 1.0
      %v364 = vadd.f32 %v355, 1.0
      %v365 = vadd.f32 %v356, 1.0
      %v366 = vadd.f32 %v357, 1.0
      %v367 = vmul.f32 %v295, %v358
      %v368 = vmul.f32 %v296, %v359
      %v369 = vmul.f32 %v297, %v360
      %v370 = vmul.f32 %v298, %v361
      %v371 = vmul.f32 %v299, %v362
      %v372 = vmul.f32 %v300, %v363
      %v373 = vmul.f32 %v301, %v364
      %v374 = vmul.f32 %v302, %v365
      %v375 = vmul.f32 %v303, %v366
      %vm376 = vcmask 261120
      %377 = vst.msk [vmem:[%s143] sm:$0xff] %vm376, %v367
      %378 = vst.msk [vmem:[%s143 + $0x8] sm:$0xff] %vm376, %v368
      %379 = vst.msk [vmem:[%s143 + $0x10] sm:$0xff] %vm376, %v369
      %380 = vst.msk [vmem:[%s143 + $0x18] sm:$0xff] %vm376, %v370
      %381 = vst.msk [vmem:[%s143 + $0x20] sm:$0xff] %vm376, %v371
      %382 = vst.msk [vmem:[%s143 + $0x28] sm:$0xff] %vm376, %v372
      %383 = vst.msk [vmem:[%s143 + $0x30] sm:$0xff] %vm376, %v373
      %384 = vst.msk [vmem:[%s143 + $0x38] sm:$0xff] %vm376, %v374
      %vm385 = vcmask 253952
      %386 = vst.msk [vmem:[%s143 + $0x40] sm:$0x1] %vm385, %v375
      %p387 = scmp.lt.s32.totalorder %s13, 1
      %s388 = scalar_select %p387, %s13, 1
      %s389 = smul.addr %s388, 9
      %s390 = smul.addr %s389, 8
      %s391 = scalar_lea.vmem %s2, %s390
      // Predicated region
      $region29: #{_lambda_.7} parent=27 // pred_check
        %p392 = pneg %p78
      $region30: #{_lambda_.7} parent=27 // pred_check_branch
        %394 = sbr.rel (%p392) target = $region32
      $region31: #{_lambda_.7} parent=27 // pred_region
        _
      $region32: #{_lambda_.7} parent=27 // pred_fallthru
        _
    $region28: #{_lambda_.7} parent=5 // pred_fallthru
      _
    %p395 = scmp.le.s32.totalorder 2, %s8
    // Predicated region
    $region33: #{_lambda_.7} parent=5 // pred_check
      %p396 = pneg %p395
    $region34: #{_lambda_.7} parent=5 // pred_check_branch
      %398 = sbr.rel (%p396) target = $region36
    $region35: #{_lambda_.7} parent=5 // pred_region
      %s399 = ssub.s32 %s8, 2
      // Predicated region
      $region37: #{_lambda_.7} parent=35 // pred_check
        %p400 = pneg %p84
      $region38: #{_lambda_.7} parent=35 // pred_check_branch
        %402 = sbr.rel (%p400) target = $region40
      $region39: #{_lambda_.7} parent=35 // pred_region
        %p403 = scmp.lt.s32.totalorder %s14, 1
        %s404 = scalar_select %p403, %s14, 1
        %s405 = smul.addr %s404, 9
        %s406 = smul.addr %s405, 8
        %s407 = scalar_lea.vmem %s2, %s406
      $region40: #{_lambda_.7} parent=35 // pred_fallthru
        _
    $region36: #{_lambda_.7} parent=5 // pred_fallthru
      _
  $region6: #{_lambda_.7} parent=0 // loop_footer
    %s12 = sadd.s32 1, %s8
  $region7: #{_lambda_.7} parent=0 // loop_footer_branch
    %7 = sbr.rel target = $region3
  $region8: #{_lambda_.7} parent=0 // loop_exit
    _

// kernel: _lambda_.8
$region0: #{_lambda_.8}
  #allocation0 [shape = 'u32[]', space=smem, size = 0x4, offset = 0x4, fixed_abs, tag = 'smem constant byte address 0x4 - core index']
  #allocation1 [shape = 'u32[144,128]{1,0:T(1,128)}', space=vmem, size = 0x12000, scoped, tag = 'internal scratch']
  %s0 = inlined_call_operand.vmem [shape: f32[2,32,96], index: 0, kind: input, shape index: {}]
  %s1 = inlined_call_operand.vmem [shape: bf16[96,32], index: 1, kind: input, shape index: {}]
  %s2 = inlined_call_operand.vmem [shape: f32[1,32], index: 2, kind: input, shape index: {}]
  %s3 = inlined_call_operand.vmem [shape: f32[1,32], index: 3, kind: input, shape index: {}]
  %s4 = inlined_call_operand.vmem [shape: bf16[32,64], index: 4, kind: input, shape index: {}]
  %s5 = inlined_call_operand.vmem [shape: f32[1,64], index: 5, kind: input, shape index: {}]
  %s6 = inlined_call_operand.vmem [shape: f32[2,32,64], index: 6, kind: output, shape index: {}]
  %s7 = sld [smem:[#allocation0]]
  $region57: #{_lambda_.8} parent=0
    _
  %s9 = ssub.s32 1, %s7
  %s10 = scalar_select 0, %s9, %s7
  loop: start=0, step=1, limit=4
  $region2: #{_lambda_.8} parent=0 // loop_pre_header
    _
  $region3: #{_lambda_.8} parent=0 // loop_header
    %s12 = sphi 0, %s16
    %p13 = scmp.ge.s32.totalorder %s12, 4
    %s22 = sphi 0, %s24
    %s25 = sphi 0, %s22
    %s26 = sphi 0, %s25
    %s42 = sphi 0, %s26
    %s46 = sphi 0, %s46
    %s48 = sphi 0, %s46
    %s49 = sphi 0, %s48
    %s63 = sphi 0, %s49
    %s67 = sphi 0, %s67
    %s69 = sphi 0, %s67
    %s70 = sphi 0, %s69
    %s84 = sphi 0, %s70
    %s88 = sphi 0, %s88
    %s90 = sphi 0, %s88
    %s91 = sphi 0, %s90
    %s105 = sphi 0, %s91
    %s109 = sphi 0, %s109
    %s111 = sphi 0, %s109
    %s112 = sphi 0, %s111
    %s126 = sphi 0, %s112
    %s130 = sphi 0, %s130
    %s132 = sphi 0, %s130
    %s133 = sphi 0, %s132
    %s147 = sphi 0, %s133
    %s153 = sphi 0, %s155
    %s156 = sphi 0, %s153
    %s157 = sphi 0, %s156
    %s173 = sphi 0, %s157
  $region4: #{_lambda_.8} parent=0 // loop_header_branch
    %15 = sbr.rel (%p13) target = $region8
  $region5: #{_lambda_.8} parent=0 // loop_body
    %s17 = ssub.s32 %s12, 1
    %s18 = ssub.s32 %s12, 2
    %s19 = sadd.s32 %s12, 1
    %s20 = ssub.s32 %s12, %s19
    %p21 = scmp.eq.s32.totalorder %s20, 0
    %s23 = sadd.s32 %s22, 1
    %s24 = scalar_select %p21, %s22, %s23
    %p27 = pneg %p21
    %p28 = scmp.eq.s32.totalorder %s12, 1
    %p29 = por %p27, %p28
    %p30 = scmp.ne.s32.totalorder %s22, %s25
    %p31 = scmp.eq.s32.totalorder %s12, 0
    %p32 = por %p30, %p31
    %p33 = scmp.ne.s32.totalorder %s22, %s25
    %p34 = scmp.eq.s32.totalorder %s17, 1
    %p35 = por %p33, %p34
    %p36 = scmp.ne.s32.totalorder %s25, %s26
    %p37 = scmp.eq.s32.totalorder %s17, 0
    %p38 = por %p36, %p37
    %p39 = scmp.ne.s32.totalorder %s25, %s26
    %p40 = scmp.eq.s32.totalorder %s18, 1
    %p41 = por %p39, %p40
    %p43 = scmp.ne.s32.totalorder %s26, %s42
    %p44 = scmp.eq.s32.totalorder %s18, 0
    %p45 = por %p43, %p44
    %s47 = sadd.s32 %s46, 1
    %p50 = scmp.eq.s32.totalorder %s12, 1
    %p51 = scmp.ne.s32.totalorder %s46, %s48
    %p52 = scmp.eq.s32.totalorder %s12, 0
    %p53 = por %p51, %p52
    %p54 = scmp.ne.s32.totalorder %s46, %s48
    %p55 = scmp.eq.s32.totalorder %s17, 1
    %p56 = por %p54, %p55
    %p57 = scmp.ne.s32.totalorder %s48, %s49
    %p58 = scmp.eq.s32.totalorder %s17, 0
    %p59 = por %p57, %p58
    %p60 = scmp.ne.s32.totalorder %s48, %s49
    %p61 = scmp.eq.s32.totalorder %s18, 1
    %p62 = por %p60, %p61
    %p64 = scmp.ne.s32.totalorder %s49, %s63
    %p65 = scmp.eq.s32.totalorder %s18, 0
    %p66 = por %p64, %p65
    %s68 = sadd.s32 %s67, 1
    %p71 = scmp.eq.s32.totalorder %s12, 1
    %p72 = scmp.ne.s32.totalorder %s67, %s69
    %p73 = scmp.eq.s32.totalorder %s12, 0
    %p74 = por %p72, %p73
    %p75 = scmp.ne.s32.totalorder %s67, %s69
    %p76 = scmp.eq.s32.totalorder %s17, 1
    %p77 = por %p75, %p76
    %p78 = scmp.ne.s32.totalorder %s69, %s70
    %p79 = scmp.eq.s32.totalorder %s17, 0
    %p80 = por %p78, %p79
    %p81 = scmp.ne.s32.totalorder %s69, %s70
    %p82 = scmp.eq.s32.totalorder %s18, 1
    %p83 = por %p81, %p82
    %p85 = scmp.ne.s32.totalorder %s70, %s84
    %p86 = scmp.eq.s32.totalorder %s18, 0
    %p87 = por %p85, %p86
    %s89 = sadd.s32 %s88, 1
    %p92 = scmp.eq.s32.totalorder %s12, 1
    %p93 = scmp.ne.s32.totalorder %s88, %s90
    %p94 = scmp.eq.s32.totalorder %s12, 0
    %p95 = por %p93, %p94
    %p96 = scmp.ne.s32.totalorder %s88, %s90
    %p97 = scmp.eq.s32.totalorder %s17, 1
    %p98 = por %p96, %p97
    %p99 = scmp.ne.s32.totalorder %s90, %s91
    %p100 = scmp.eq.s32.totalorder %s17, 0
    %p101 = por %p99, %p100
    %p102 = scmp.ne.s32.totalorder %s90, %s91
    %p103 = scmp.eq.s32.totalorder %s18, 1
    %p104 = por %p102, %p103
    %p106 = scmp.ne.s32.totalorder %s91, %s105
    %p107 = scmp.eq.s32.totalorder %s18, 0
    %p108 = por %p106, %p107
    %s110 = sadd.s32 %s109, 1
    %p113 = scmp.eq.s32.totalorder %s12, 1
    %p114 = scmp.ne.s32.totalorder %s109, %s111
    %p115 = scmp.eq.s32.totalorder %s12, 0
    %p116 = por %p114, %p115
    %p117 = scmp.ne.s32.totalorder %s109, %s111
    %p118 = scmp.eq.s32.totalorder %s17, 1
    %p119 = por %p117, %p118
    %p120 = scmp.ne.s32.totalorder %s111, %s112
    %p121 = scmp.eq.s32.totalorder %s17, 0
    %p122 = por %p120, %p121
    %p123 = scmp.ne.s32.totalorder %s111, %s112
    %p124 = scmp.eq.s32.totalorder %s18, 1
    %p125 = por %p123, %p124
    %p127 = scmp.ne.s32.totalorder %s112, %s126
    %p128 = scmp.eq.s32.totalorder %s18, 0
    %p129 = por %p127, %p128
    %s131 = sadd.s32 %s130, 1
    %p134 = scmp.eq.s32.totalorder %s12, 1
    %p135 = scmp.ne.s32.totalorder %s130, %s132
    %p136 = scmp.eq.s32.totalorder %s12, 0
    %p137 = por %p135, %p136
    %p138 = scmp.ne.s32.totalorder %s130, %s132
    %p139 = scmp.eq.s32.totalorder %s17, 1
    %p140 = por %p138, %p139
    %p141 = scmp.ne.s32.totalorder %s132, %s133
    %p142 = scmp.eq.s32.totalorder %s17, 0
    %p143 = por %p141, %p142
    %p144 = scmp.ne.s32.totalorder %s132, %s133
    %p145 = scmp.eq.s32.totalorder %s18, 1
    %p146 = por %p144, %p145
    %p148 = scmp.ne.s32.totalorder %s133, %s147
    %p149 = scmp.eq.s32.totalorder %s18, 0
    %p150 = por %p148, %p149
    %s151 = ssub.s32 %s12, %s19
    %p152 = scmp.eq.s32.totalorder %s151, 0
    %s154 = sadd.s32 %s153, 1
    %s155 = scalar_select %p152, %s153, %s154
    %p158 = pneg %p152
    %p159 = scmp.eq.s32.totalorder %s12, 1
    %p160 = por %p158, %p159
    %p161 = scmp.ne.s32.totalorder %s153, %s156
    %p162 = scmp.eq.s32.totalorder %s12, 0
    %p163 = por %p161, %p162
    %p164 = scmp.ne.s32.totalorder %s153, %s156
    %p165 = scmp.eq.s32.totalorder %s17, 1
    %p166 = por %p164, %p165
    %p167 = scmp.ne.s32.totalorder %s156, %s157
    %p168 = scmp.eq.s32.totalorder %s17, 0
    %p169 = por %p167, %p168
    %p170 = scmp.ne.s32.totalorder %s156, %s157
    %p171 = scmp.eq.s32.totalorder %s18, 1
    %p172 = por %p170, %p171
    %p174 = scmp.ne.s32.totalorder %s157, %s173
    %p175 = scmp.eq.s32.totalorder %s18, 0
    %p176 = por %p174, %p175
    %p177 = scmp.le.s32.totalorder 1, %s12
    %p178 = scmp.lt.s32.totalorder %s12, 3
    %p179 = pnand %p177, %p178
    %p180 = pneg %p179
    // Predicated region
    $region9: #{_lambda_.8} parent=5 // pred_check
      _
    $region10: #{_lambda_.8} parent=5 // pred_check_branch
      %182 = sbr.rel (%p179) target = $region12
    $region11: #{_lambda_.8} parent=5 // pred_region
      %s183 = ssub.s32 %s12, 1
      // Predicated region
      $region13: #{_lambda_.8} parent=11 // pred_check
        %p184 = pneg %p59
      $region14: #{_lambda_.8} parent=11 // pred_check_branch
        %186 = sbr.rel (%p184) target = $region16
      $region15: #{_lambda_.8} parent=11 // pred_region
        _
      $region16: #{_lambda_.8} parent=11 // pred_fallthru
        _
      // Predicated region
      $region17: #{_lambda_.8} parent=11 // pred_check
        %p187 = pneg %p80
      $region18: #{_lambda_.8} parent=11 // pred_check_branch
        %189 = sbr.rel (%p187) target = $region20
      $region19: #{_lambda_.8} parent=11 // pred_region
        _
      $region20: #{_lambda_.8} parent=11 // pred_fallthru
        _
      // Predicated region
      $region21: #{_lambda_.8} parent=11 // pred_check
        %p190 = pneg %p101
      $region22: #{_lambda_.8} parent=11 // pred_check_branch
        %192 = sbr.rel (%p190) target = $region24
      $region23: #{_lambda_.8} parent=11 // pred_region
        _
      $region24: #{_lambda_.8} parent=11 // pred_fallthru
        _
      // Predicated region
      $region25: #{_lambda_.8} parent=11 // pred_check
        %p193 = pneg %p122
      $region26: #{_lambda_.8} parent=11 // pred_check_branch
        %195 = sbr.rel (%p193) target = $region28
      $region27: #{_lambda_.8} parent=11 // pred_region
        _
      $region28: #{_lambda_.8} parent=11 // pred_fallthru
        _
      // Predicated region
      $region29: #{_lambda_.8} parent=11 // pred_check
        %p196 = pneg %p143
      $region30: #{_lambda_.8} parent=11 // pred_check_branch
        %198 = sbr.rel (%p196) target = $region32
      $region31: #{_lambda_.8} parent=11 // pred_region
        _
      $region32: #{_lambda_.8} parent=11 // pred_fallthru
        _
    $region12: #{_lambda_.8} parent=5 // pred_fallthru
      _
    %p199 = scmp.lt.s32.totalorder %s12, 2
    // Predicated region
    $region33: #{_lambda_.8} parent=5 // pred_check
      %p200 = pneg %p199
    $region34: #{_lambda_.8} parent=5 // pred_check_branch
      %202 = sbr.rel (%p200) target = $region36
    $region35: #{_lambda_.8} parent=5 // pred_region
      // Predicated region
      $region37: #{_lambda_.8} parent=35 // pred_check
        %p203 = pneg %p32
      $region38: #{_lambda_.8} parent=35 // pred_check_branch
        %205 = sbr.rel (%p203) target = $region40
      $region39: #{_lambda_.8} parent=35 // pred_region
        %p206 = scmp.lt.s32.totalorder %s12, 1
        %s207 = scalar_select %p206, %s12, 1
        %s208 = smul.addr %s207, 4
        %s209 = smul.addr %s208, 8
        %s210 = scalar_lea.vmem %s0, %s209
      $region40: #{_lambda_.8} parent=35 // pred_fallthru
        _
    $region36: #{_lambda_.8} parent=5 // pred_fallthru
      _
    %p211 = scmp.le.s32.totalorder 1, %s12
    %p212 = scmp.lt.s32.totalorder %s12, 3
    %p213 = pnand %p211, %p212
    %p214 = pneg %p213
    // Predicated region
    $region41: #{_lambda_.8} parent=5 // pred_check
      _
    $region42: #{_lambda_.8} parent=5 // pred_check_branch
      %216 = sbr.rel (%p213) target = $region44
    $region43: #{_lambda_.8} parent=5 // pred_region
      %s217 = ssub.s32 %s12, 1
      %p218 = scmp.lt.s32.totalorder %s17, 1
      %s219 = scalar_select %p218, %s17, 1
      %s220 = smul.addr %s219, 4
      %s221 = smul.addr %s220, 8
      %s222 = scalar_lea.vmem %s0, %s221
      %p223 = pneg %p38
      %p224 = pneg %p35
      %p225 = pneg %p59
      %p226 = pneg %p56
      %p227 = pneg %p80
      %p228 = pneg %p77
      %p229 = pneg %p101
      %p230 = pneg %p98
      %p231 = pneg %p122
      %p232 = pneg %p119
      %p233 = pneg %p143
      %p234 = pneg %p140
      %p235 = pneg %p169
      %p236 = pneg %p166
      %p237 = scmp.lt.s32.totalorder %s17, 1
      %s238 = scalar_select %p237, %s17, 1
      %s239 = smul.addr %s238, 4
      %s240 = smul.addr %s239, 8
      %s241 = scalar_lea.vmem %s6, %s240
      %p242 = scmp.lt.s32.totalorder %s17, 1
      %s243 = scalar_select %p242, %s17, 1
      %s244 = smul.addr %s243, 4
      %s245 = smul.addr %s244, 8
      %s246 = scalar_lea.vmem %s0, %s245
      %p247 = scmp.lt.s32.totalorder %s17, 1
      %s248 = scalar_select %p247, %s17, 1
      %s249 = smul.addr %s248, 4
      %s250 = smul.addr %s249, 8
      %s251 = scalar_lea.vmem %s6, %s250
      %v253 = vld [vmem:[%s246] sm:$0xff]
      %v254 = vld [vmem:[%s246 + $0x8] sm:$0xff]
      %v255 = vld [vmem:[%s246 + $0x10] sm:$0xff]
      %v256 = vld [vmem:[%s246 + $0x18] sm:$0xff]
      %v257 = vld [vmem:[%s1] sm:$0xf]
      %v258 = vld [vmem:[%s1 + $0x4] sm:$0xf]
      %v259 = vld [vmem:[%s1 + $0x8] sm:$0xf]
      %v260 = vld [vmem:[%s1 + $0xc] sm:$0xf]
      %v261 = vld [vmem:[%s1 + $0x10] sm:$0xf]
      %v262 = vld [vmem:[%s1 + $0x14] sm:$0xf]
      %v263 = vld [vmem:[%s1 + $0x18] sm:$0xf]
      %v264 = vld [vmem:[%s1 + $0x1c] sm:$0xf]
      %v265 = vld [vmem:[%s1 + $0x20] sm:$0xf]
      %v266 = vld [vmem:[%s1 + $0x24] sm:$0xf]
      %v267 = vld [vmem:[%s1 + $0x28] sm:$0xf]
      %v268 = vld [vmem:[%s1 + $0x2c] sm:$0xf]
      %v269 = vpack.c.bf16 %v254, %v253
      %v270 = vpack.c.bf16 %v256, %v255
      %v283 = vunpack.c.l.b16 %v257
      %v284 = vunpack.c.l.b16 %v258
      %v285 = vunpack.c.l.b16 %v259
      %v286 = vunpack.c.l.b16 %v260
      %v287 = vunpack.c.l.b16 %v261
      %v288 = vunpack.c.l.b16 %v262
      %v289 = vunpack.c.l.b16 %v263
      %v290 = vunpack.c.l.b16 %v264
      %v291 = vunpack.c.l.b16 %v265
      %v292 = vunpack.c.l.b16 %v266
      %v293 = vunpack.c.l.b16 %v267
      %v294 = vunpack.c.l.b16 %v268
      %v295 = vpack.c.b16 %v284, %v283
      %v296 = vpack.c.b16 %v286, %v285
      %v297 = vpack.c.b16 %v288, %v287
      %v298 = vpack.c.b16 %v290, %v289
      %v299 = vpack.c.b16 %v292, %v291
      %v300 = vpack.c.b16 %v294, %v293
      %vm307 = vcmask 785408
      %v309 = vsel %vm307, %v269, 0
      %v312 = vsel %vm307, %v270, 0
      %314 = vmatprep.subr.bf16.mxu0 0
      %315 = vmatpush1.bf16.msra.mxu0 %v295
      %316 = vmatprep.subr.bf16.mxu0 0
      %317 = vmatpush1.bf16.msra.mxu0 %v296
      %318 = vmatprep.subr.bf16.mxu0 0
      %319 = vmatpush1.bf16.msra.mxu0 %v297
      %320 = vmatprep.subr.bf16.mxu0 0
      %321 = vmatpush1.bf16.msra.mxu0 %v298
      %322 = vmatprep.subr.bf16.mxu0 0
      %323 = vmatpush1.bf16.msra.mxu0 %v299
      %324 = vmatprep.subr.bf16.mxu0 0
      %325 = vmatpush1.bf16.msra.mxu0 %v300
      %326 = vmatprep.subr.bf16.mxu0 0
      %327 = vmatpush1.bf16.msra.mxu0 0
      %328 = vmatprep.subr.bf16.mxu0 0
      %329 = vmatpush1.bf16.msra.mxu0 0
      %330 = vmatprep.subr.bf16.mxu0 0
      %331 = vmatpush1.bf16.msra.mxu0 0
      %332 = vmatprep.subr.bf16.mxu0 0
      %333 = vmatpush1.bf16.msra.mxu0 0
      %334 = vmatprep.subr.bf16.mxu0 0
      %335 = vmatpush1.bf16.msra.mxu0 0
      %336 = vmatprep.subr.bf16.mxu0 0
      %337 = vmatpush1.bf16.msra.mxu0 0
      %338 = vmatprep.subr.bf16.mxu0 0
      %339 = vmatpush1.bf16.msra.mxu0 0
      %340 = vmatprep.subr.bf16.mxu0 0
      %341 = vmatpush1.bf16.msra.mxu0 0
      %342 = vmatprep.subr.bf16.mxu0 0
      %343 = vmatpush1.bf16.msra.mxu0 0
      %344 = vmatprep.subr.bf16.mxu0 0
      %345 = vmatpush1.bf16.msra.mxu0 0
      %346 = vmatprep.mubr.bf16.mxu0 0
      %347 = vmatmul.mubr.bf16.gmra.mrb[0].mxu0 %v309
      %v348 = vpop.f32.mrb[0].mxu0
      %v349 = vadd.f32 0.0, %v348
      %v350 = vpop.f32.mrb[0].mxu0
      %v351 = vpop.f32.mrb[0].mxu0
      %v352 = vadd.f32 0.0, %v351
      %v353 = vpop.f32.mrb[0].mxu0
      %354 = vmatprep.mubr.bf16.mxu0 0
      %355 = vmatmul.mubr.bf16.gmra.mrb[0].mxu0 %v312
      %v356 = vpop.f32.mrb[0].mxu0
      %v357 = vadd.f32 0.0, %v356
      %v358 = vpop.f32.mrb[0].mxu0
      %v359 = vpop.f32.mrb[0].mxu0
      %v360 = vadd.f32 0.0, %v359
      %v361 = vpop.f32.mrb[0].mxu0
      %362 = vdwg.mxu0
      %v363 = vmul.f32 %v349, 0.5
      %v364 = vmul.f32 %v352, 0.5
      %v365 = vmul.f32 %v357, 0.5
      %v366 = vmul.f32 %v360, 0.5
      %v367 = vmul.f32 %v349, 0.044715
      %v368 = vmul.f32 %v352, 0.044715
      %v369 = vmul.f32 %v357, 0.044715
      %v370 = vmul.f32 %v360, 0.044715
      %v371 = vmul.f32 %v367, %v349
      %v372 = vmul.f32 %v368, %v352
      %v373 = vmul.f32 %v369, %v357
      %v374 = vmul.f32 %v370, %v360
      %v375 = vmul.f32 %v371, %v349
      %v376 = vmul.f32 %v372, %v352
      %v377 = vmul.f32 %v373, %v357
      %v378 = vmul.f32 %v374, %v360
      %v379 = vadd.f32 %v349, %v375
      %v380 = vadd.f32 %v352, %v376
      %v381 = vadd.f32 %v357, %v377
      %v382 = vadd.f32 %v360, %v378
      %v383 = vmul.f32 %v379, 0.7978846
      %v384 = vmul.f32 %v380, 0.7978846
      %v385 = vmul.f32 %v381, 0.7978846
      %v386 = vmul.f32 %v382, 0.7978846
      %v387 = vtanh.pop %v383
      %v388 = vtanh.pop %v384
      %v389 = vtanh.pop %v385
      %v390 = vtanh.pop %v386
      %v391 = vadd.f32 %v387, 1.0
      %v392 = vadd.f32 %v388, 1.0
      %v393 = vadd.f32 %v389, 1.0
      %v394 = vadd.f32 %v390, 1.0
      %v395 = vmul.f32 %v363, %v391
      %v396 = vmul.f32 %v364, %v392
      %v397 = vmul.f32 %v365, %v393
      %v398 = vmul.f32 %v366, %v394
      %v399 = vld [vmem:[%s2] sm:$0x1]
      %v400 = vld [vmem:[%s3] sm:$0x1]
      %vm401 = vcmask 261120
      %v402 = vsel %vm401, %v395, 0.0
      %403 = vadd.xlane.f32.xlu0 %v402
      %v404 = vpop.xlane.xlu0 %403
      %v405 = vsel %vm401, %v396, 0.0
      %406 = vadd.xlane.f32.xlu0 %v405
      %v407 = vpop.xlane.xlu0 %406
      %v408 = vsel %vm401, %v397, 0.0
      %409 = vadd.xlane.f32.xlu0 %v408
      %v410 = vpop.xlane.xlu0 %409
      %v411 = vsel %vm401, %v398, 0.0
      %412 = vadd.xlane.f32.xlu0 %v411
      %v413 = vpop.xlane.xlu0 %412
      %v414 = vrcp.pop 32.0
      %v415 = vmul.f32 %v404, %v414
      %v416 = vmul.f32 %v407, %v414
      %v417 = vmul.f32 %v410, %v414
      %v418 = vmul.f32 %v413, %v414
      %v419 = vsub.f32 %v395, %v415
      %v420 = vsub.f32 %v396, %v416
      %v421 = vsub.f32 %v397, %v417
      %v422 = vsub.f32 %v398, %v418
      %v423 = vmul.f32 %v419, %v419
      %v424 = vmul.f32 %v420, %v420
      %v425 = vmul.f32 %v421, %v421
      %v426 = vmul.f32 %v422, %v422
      %v427 = vsel %vm401, %v423, 0.0
      %428 = vadd.xlane.f32.xlu0 %v427
      %v429 = vpop.xlane.xlu0 %428
      %v430 = vsel %vm401, %v424, 0.0
      %431 = vadd.xlane.f32.xlu0 %v430
      %v432 = vpop.xlane.xlu0 %431
      %v433 = vsel %vm401, %v425, 0.0
      %434 = vadd.xlane.f32.xlu0 %v433
      %v435 = vpop.xlane.xlu0 %434
      %v436 = vsel %vm401, %v426, 0.0
      %437 = vadd.xlane.f32.xlu0 %v436
      %v438 = vpop.xlane.xlu0 %437
      %v439 = vmul.f32 %v429, %v414
      %v440 = vmul.f32 %v432, %v414
      %v441 = vmul.f32 %v435, %v414
      %v442 = vmul.f32 %v438, %v414
      %v443 = vadd.f32 %v439, 1e-05
      %v444 = vadd.f32 %v440, 1e-05
      %v445 = vadd.f32 %v441, 1e-05
      %v446 = vadd.f32 %v442, 1e-05
      %v447 = vrsqrt.pop %v443
      %v448 = vrsqrt.pop %v444
      %v449 = vrsqrt.pop %v445
      %v450 = vrsqrt.pop %v446
      %v451 = vmul.f32 %v419, %v447
      %v452 = vmul.f32 %v420, %v448
      %v453 = vmul.f32 %v421, %v449
      %v454 = vmul.f32 %v422, %v450
      %v456 = vlaneseq
      %v457 = vshrl.u32 %v456, 7
      %v458 = vsub.s32 0, %v457
      %v459 = vrot.slane %v399, %v458
      %v461 = vmul.f32 %v451, %v459
      %v462 = vmul.f32 %v452, %v459
      %v463 = vmul.f32 %v453, %v459
      %v464 = vmul.f32 %v454, %v459
      %v466 = vlaneseq
      %v467 = vshrl.u32 %v466, 7
      %v468 = vsub.s32 0, %v467
      %v469 = vrot.slane %v400, %v468
      %v471 = vadd.f32 %v461, %v469
      %v472 = vadd.f32 %v462, %v469
      %v473 = vadd.f32 %v463, %v469
      %v474 = vadd.f32 %v464, %v469
      %v475 = vld [vmem:[%s4] sm:$0xf]
      %v476 = vld [vmem:[%s4 + $0x4] sm:$0xf]
      %v477 = vld [vmem:[%s4 + $0x8] sm:$0xf]
      %v478 = vld [vmem:[%s4 + $0xc] sm:$0xf]
      %v479 = vpack.c.bf16 %v472, %v471
      %v480 = vpack.c.bf16 %v474, %v473
      %v481 = vld [vmem:[%s5] sm:$0x1]
      %v483 = vlaneseq
      %v484 = vshrl.u32 %v483, 7
      %v485 = vsub.s32 0, %v484
      %v486 = vrot.slane %v481, %v485
      %v492 = vunpack.c.l.b16 %v475
      %v493 = vunpack.c.l.b16 %v476
      %v494 = vunpack.c.l.b16 %v477
      %v495 = vunpack.c.l.b16 %v478
      %v496 = vpack.c.b16 %v493, %v492
      %v497 = vpack.c.b16 %v495, %v494
      %v501 = vsel %vm401, %v479, 0
      %v504 = vsel %vm401, %v480, 0
      %506 = vmatprep.subr.bf16.mxu0 0
      %507 = vmatpush1.bf16.msra.mxu0 %v496
      %508 = vmatprep.subr.bf16.mxu0 0
      %509 = vmatpush1.bf16.msra.mxu0 %v497
      %510 = vmatprep.subr.bf16.mxu0 0
      %511 = vmatpush1.bf16.msra.mxu0 0
      %512 = vmatprep.subr.bf16.mxu0 0
      %513 = vmatpush1.bf16.msra.mxu0 0
      %514 = vmatprep.subr.bf16.mxu0 0
      %515 = vmatpush1.bf16.msra.mxu0 0
      %516 = vmatprep.subr.bf16.mxu0 0
      %517 = vmatpush1.bf16.msra.mxu0 0
      %518 = vmatprep.subr.bf16.mxu0 0
      %519 = vmatpush1.bf16.msra.mxu0 0
      %520 = vmatprep.subr.bf16.mxu0 0
      %521 = vmatpush1.bf16.msra.mxu0 0
      %522 = vmatprep.subr.bf16.mxu0 0
      %523 = vmatpush1.bf16.msra.mxu0 0
      %524 = vmatprep.subr.bf16.mxu0 0
      %525 = vmatpush1.bf16.msra.mxu0 0
      %526 = vmatprep.subr.bf16.mxu0 0
      %527 = vmatpush1.bf16.msra.mxu0 0
      %528 = vmatprep.subr.bf16.mxu0 0
      %529 = vmatpush1.bf16.msra.mxu0 0
      %530 = vmatprep.subr.bf16.mxu0 0
      %531 = vmatpush1.bf16.msra.mxu0 0
      %532 = vmatprep.subr.bf16.mxu0 0
      %533 = vmatpush1.bf16.msra.mxu0 0
      %534 = vmatprep.subr.bf16.mxu0 0
      %535 = vmatpush1.bf16.msra.mxu0 0
      %536 = vmatprep.subr.bf16.mxu0 0
      %537 = vmatpush1.bf16.msra.mxu0 0
      %538 = vmatprep.mubr.bf16.mxu0 0
      %539 = vmatmul.mubr.bf16.gmra.mrb[0].mxu0 %v501
      %v540 = vpop.f32.mrb[0].mxu0
      %v541 = vadd.f32 %v486, %v540
      %v542 = vpop.f32.mrb[0].mxu0
      %v543 = vpop.f32.mrb[0].mxu0
      %v544 = vadd.f32 %v486, %v543
      %v545 = vpop.f32.mrb[0].mxu0
      %546 = vmatprep.mubr.bf16.mxu0 0
      %547 = vmatmul.mubr.bf16.gmra.mrb[0].mxu0 %v504
      %v548 = vpop.f32.mrb[0].mxu0
      %v549 = vadd.f32 %v486, %v548
      %v550 = vpop.f32.mrb[0].mxu0
      %v551 = vpop.f32.mrb[0].mxu0
      %v552 = vadd.f32 %v486, %v551
      %v553 = vpop.f32.mrb[0].mxu0
      %554 = vdwg.mxu0
      %vm555 = vcmask 523264
      %556 = vst.msk [vmem:[%s251] sm:$0xff] %vm555, %v541
      %557 = vst.msk [vmem:[%s251 + $0x8] sm:$0xff] %vm555, %v544
      %558 = vst.msk [vmem:[%s251 + $0x10] sm:$0xff] %vm555, %v549
      %559 = vst.msk [vmem:[%s251 + $0x18] sm:$0xff] %vm555, %v552
      %p560 = scmp.lt.s32.totalorder %s17, 1
      %s561 = scalar_select %p560, %s17, 1
      %s562 = smul.addr %s561, 4
      %s563 = smul.addr %s562, 8
      %s564 = scalar_lea.vmem %s6, %s563
      // Predicated region
      $region45: #{_lambda_.8} parent=43 // pred_check
        %p565 = pneg %p166
      $region46: #{_lambda_.8} parent=43 // pred_check_branch
        %567 = sbr.rel (%p565) target = $region48
      $region47: #{_lambda_.8} parent=43 // pred_region
        _
      $region48: #{_lambda_.8} parent=43 // pred_fallthru
        _
    $region44: #{_lambda_.8} parent=5 // pred_fallthru
      _
    %p568 = scmp.le.s32.totalorder 2, %s12
    // Predicated region
    $region49: #{_lambda_.8} parent=5 // pred_check
      %p569 = pneg %p568
    $region50: #{_lambda_.8} parent=5 // pred_check_branch
      %571 = sbr.rel (%p569) target = $region52
    $region51: #{_lambda_.8} parent=5 // pred_region
      %s572 = ssub.s32 %s12, 2
      // Predicated region
      $region53: #{_lambda_.8} parent=51 // pred_check
        %p573 = pneg %p172
      $region54: #{_lambda_.8} parent=51 // pred_check_branch
        %575 = sbr.rel (%p573) target = $region56
      $region55: #{_lambda_.8} parent=51 // pred_region
        %p576 = scmp.lt.s32.totalorder %s18, 1
        %s577 = scalar_select %p576, %s18, 1
        %s578 = smul.addr %s577, 4
        %s579 = smul.addr %s578, 8
        %s580 = scalar_lea.vmem %s6, %s579
      $region56: #{_lambda_.8} parent=51 // pred_fallthru
        _
    $region52: #{_lambda_.8} parent=5 // pred_fallthru
      _
  $region6: #{_lambda_.8} parent=0 // loop_footer
    %s16 = sadd.s32 1, %s12
  $region7: #{_lambda_.8} parent=0 // loop_footer_branch
    %11 = sbr.rel target = $region3
  $region8: #{_lambda_.8} parent=0 // loop_exit
    _

// kernel: _lambda_.9
$region0: #{_lambda_.9}
  #allocation0 [shape = 'u32[]', space=smem, size = 0x4, offset = 0x4, fixed_abs, tag = 'smem constant byte address 0x4 - core index']
  #allocation1 [shape = 'u32[144,128]{1,0:T(1,128)}', space=vmem, size = 0x12000, scoped, tag = 'internal scratch']
  %s0 = inlined_call_operand.vmem [shape: f32[2,32,64], index: 0, kind: input, shape index: {}]
  %s1 = inlined_call_operand.vmem [shape: f32[2,40,64], index: 1, kind: input, shape index: {}]
  %s2 = inlined_call_operand.vmem [shape: bf16[8,64,64], index: 2, kind: input, shape index: {}]
  %s3 = inlined_call_operand.vmem [shape: f32[1,64], index: 3, kind: input, shape index: {}]
  %s4 = inlined_call_operand.vmem [shape: f32[1,64], index: 4, kind: input, shape index: {}]
  %s5 = inlined_call_operand.vmem [shape: f32[1,64], index: 5, kind: input, shape index: {}]
  %s6 = inlined_call_operand.vmem [shape: f32[2,32,64], index: 6, kind: output, shape index: {}]
  %s7 = sld [smem:[#allocation0]]
  $region57: #{_lambda_.9} parent=0
    _
  %s9 = ssub.s32 1, %s7
  %s10 = scalar_select 0, %s9, %s7
  loop: start=0, step=1, limit=4
  $region2: #{_lambda_.9} parent=0 // loop_pre_header
    _
  $region3: #{_lambda_.9} parent=0 // loop_header
    %s12 = sphi 0, %s16
    %p13 = scmp.ge.s32.totalorder %s12, 4
    %s22 = sphi 0, %s24
    %s25 = sphi 0, %s22
    %s26 = sphi 0, %s25
    %s42 = sphi 0, %s26
    %s48 = sphi 0, %s50
    %s51 = sphi 0, %s48
    %s52 = sphi 0, %s51
    %s68 = sphi 0, %s52
    %s72 = sphi 0, %s72
    %s74 = sphi 0, %s72
    %s75 = sphi 0, %s74
    %s89 = sphi 0, %s75
    %s93 = sphi 0, %s93
    %s95 = sphi 0, %s93
    %s96 = sphi 0, %s95
    %s110 = sphi 0, %s96
    %s114 = sphi 0, %s114
    %s116 = sphi 0, %s114
    %s117 = sphi 0, %s116
    %s131 = sphi 0, %s117
    %s135 = sphi 0, %s135
    %s137 = sphi 0, %s135
    %s138 = sphi 0, %s137
    %s152 = sphi 0, %s138
    %s158 = sphi 0, %s160
    %s161 = sphi 0, %s158
    %s162 = sphi 0, %s161
    %s178 = sphi 0, %s162
  $region4: #{_lambda_.9} parent=0 // loop_header_branch
    %15 = sbr.rel (%p13) target = $region8
  $region5: #{_lambda_.9} parent=0 // loop_body
    %s17 = ssub.s32 %s12, 1
    %s18 = ssub.s32 %s12, 2
    %s19 = sadd.s32 %s12, 1
    %s20 = ssub.s32 %s12, %s19
    %p21 = scmp.eq.s32.totalorder %s20, 0
    %s23 = sadd.s32 %s22, 1
    %s24 = scalar_select %p21, %s22, %s23
    %p27 = pneg %p21
    %p28 = scmp.eq.s32.totalorder %s12, 1
    %p29 = por %p27, %p28
    %p30 = scmp.ne.s32.totalorder %s22, %s25
    %p31 = scmp.eq.s32.totalorder %s12, 0
    %p32 = por %p30, %p31
    %p33 = scmp.ne.s32.totalorder %s22, %s25
    %p34 = scmp.eq.s32.totalorder %s17, 1
    %p35 = por %p33, %p34
    %p36 = scmp.ne.s32.totalorder %s25, %s26
    %p37 = scmp.eq.s32.totalorder %s17, 0
    %p38 = por %p36, %p37
    %p39 = scmp.ne.s32.totalorder %s25, %s26
    %p40 = scmp.eq.s32.totalorder %s18, 1
    %p41 = por %p39, %p40
    %p43 = scmp.ne.s32.totalorder %s26, %s42
    %p44 = scmp.eq.s32.totalorder %s18, 0
    %p45 = por %p43, %p44
    %s46 = ssub.s32 %s12, %s19
    %p47 = scmp.eq.s32.totalorder %s46, 0
    %s49 = sadd.s32 %s48, 1
    %s50 = scalar_select %p47, %s48, %s49
    %p53 = pneg %p47
    %p54 = scmp.eq.s32.totalorder %s12, 1
    %p55 = por %p53, %p54
    %p56 = scmp.ne.s32.totalorder %s48, %s51
    %p57 = scmp.eq.s32.totalorder %s12, 0
    %p58 = por %p56, %p57
    %p59 = scmp.ne.s32.totalorder %s48, %s51
    %p60 = scmp.eq.s32.totalorder %s17, 1
    %p61 = por %p59, %p60
    %p62 = scmp.ne.s32.totalorder %s51, %s52
    %p63 = scmp.eq.s32.totalorder %s17, 0
    %p64 = por %p62, %p63
    %p65 = scmp.ne.s32.totalorder %s51, %s52
    %p66 = scmp.eq.s32.totalorder %s18, 1
    %p67 = por %p65, %p66
    %p69 = scmp.ne.s32.totalorder %s52, %s68
    %p70 = scmp.eq.s32.totalorder %s18, 0
    %p71 = por %p69, %p70
    %s73 = sadd.s32 %s72, 1
    %p76 = scmp.eq.s32.totalorder %s12, 1
    %p77 = scmp.ne.s32.totalorder %s72, %s74
    %p78 = scmp.eq.s32.totalorder %s12, 0
    %p79 = por %p77, %p78
    %p80 = scmp.ne.s32.totalorder %s72, %s74
    %p81 = scmp.eq.s32.totalorder %s17, 1
    %p82 = por %p80, %p81
    %p83 = scmp.ne.s32.totalorder %s74, %s75
    %p84 = scmp.eq.s32.totalorder %s17, 0
    %p85 = por %p83, %p84
    %p86 = scmp.ne.s32.totalorder %s74, %s75
    %p87 = scmp.eq.s32.totalorder %s18, 1
    %p88 = por %p86, %p87
    %p90 = scmp.ne.s32.totalorder %s75, %s89
    %p91 = scmp.eq.s32.totalorder %s18, 0
    %p92 = por %p90, %p91
    %s94 = sadd.s32 %s93, 1
    %p97 = scmp.eq.s32.totalorder %s12, 1
    %p98 = scmp.ne.s32.totalorder %s93, %s95
    %p99 = scmp.eq.s32.totalorder %s12, 0
    %p100 = por %p98, %p99
    %p101 = scmp.ne.s32.totalorder %s93, %s95
    %p102 = scmp.eq.s32.totalorder %s17, 1
    %p103 = por %p101, %p102
    %p104 = scmp.ne.s32.totalorder %s95, %s96
    %p105 = scmp.eq.s32.totalorder %s17, 0
    %p106 = por %p104, %p105
    %p107 = scmp.ne.s32.totalorder %s95, %s96
    %p108 = scmp.eq.s32.totalorder %s18, 1
    %p109 = por %p107, %p108
    %p111 = scmp.ne.s32.totalorder %s96, %s110
    %p112 = scmp.eq.s32.totalorder %s18, 0
    %p113 = por %p111, %p112
    %s115 = sadd.s32 %s114, 1
    %p118 = scmp.eq.s32.totalorder %s12, 1
    %p119 = scmp.ne.s32.totalorder %s114, %s116
    %p120 = scmp.eq.s32.totalorder %s12, 0
    %p121 = por %p119, %p120
    %p122 = scmp.ne.s32.totalorder %s114, %s116
    %p123 = scmp.eq.s32.totalorder %s17, 1
    %p124 = por %p122, %p123
    %p125 = scmp.ne.s32.totalorder %s116, %s117
    %p126 = scmp.eq.s32.totalorder %s17, 0
    %p127 = por %p125, %p126
    %p128 = scmp.ne.s32.totalorder %s116, %s117
    %p129 = scmp.eq.s32.totalorder %s18, 1
    %p130 = por %p128, %p129
    %p132 = scmp.ne.s32.totalorder %s117, %s131
    %p133 = scmp.eq.s32.totalorder %s18, 0
    %p134 = por %p132, %p133
    %s136 = sadd.s32 %s135, 1
    %p139 = scmp.eq.s32.totalorder %s12, 1
    %p140 = scmp.ne.s32.totalorder %s135, %s137
    %p141 = scmp.eq.s32.totalorder %s12, 0
    %p142 = por %p140, %p141
    %p143 = scmp.ne.s32.totalorder %s135, %s137
    %p144 = scmp.eq.s32.totalorder %s17, 1
    %p145 = por %p143, %p144
    %p146 = scmp.ne.s32.totalorder %s137, %s138
    %p147 = scmp.eq.s32.totalorder %s17, 0
    %p148 = por %p146, %p147
    %p149 = scmp.ne.s32.totalorder %s137, %s138
    %p150 = scmp.eq.s32.totalorder %s18, 1
    %p151 = por %p149, %p150
    %p153 = scmp.ne.s32.totalorder %s138, %s152
    %p154 = scmp.eq.s32.totalorder %s18, 0
    %p155 = por %p153, %p154
    %s156 = ssub.s32 %s12, %s19
    %p157 = scmp.eq.s32.totalorder %s156, 0
    %s159 = sadd.s32 %s158, 1
    %s160 = scalar_select %p157, %s158, %s159
    %p163 = pneg %p157
    %p164 = scmp.eq.s32.totalorder %s12, 1
    %p165 = por %p163, %p164
    %p166 = scmp.ne.s32.totalorder %s158, %s161
    %p167 = scmp.eq.s32.totalorder %s12, 0
    %p168 = por %p166, %p167
    %p169 = scmp.ne.s32.totalorder %s158, %s161
    %p170 = scmp.eq.s32.totalorder %s17, 1
    %p171 = por %p169, %p170
    %p172 = scmp.ne.s32.totalorder %s161, %s162
    %p173 = scmp.eq.s32.totalorder %s17, 0
    %p174 = por %p172, %p173
    %p175 = scmp.ne.s32.totalorder %s161, %s162
    %p176 = scmp.eq.s32.totalorder %s18, 1
    %p177 = por %p175, %p176
    %p179 = scmp.ne.s32.totalorder %s162, %s178
    %p180 = scmp.eq.s32.totalorder %s18, 0
    %p181 = por %p179, %p180
    %p182 = scmp.le.s32.totalorder 1, %s12
    %p183 = scmp.lt.s32.totalorder %s12, 3
    %p184 = pnand %p182, %p183
    %p185 = pneg %p184
    // Predicated region
    $region9: #{_lambda_.9} parent=5 // pred_check
      _
    $region10: #{_lambda_.9} parent=5 // pred_check_branch
      %187 = sbr.rel (%p184) target = $region12
    $region11: #{_lambda_.9} parent=5 // pred_region
      %s188 = ssub.s32 %s12, 1
      // Predicated region
      $region13: #{_lambda_.9} parent=11 // pred_check
        %p189 = pneg %p85
      $region14: #{_lambda_.9} parent=11 // pred_check_branch
        %191 = sbr.rel (%p189) target = $region16
      $region15: #{_lambda_.9} parent=11 // pred_region
        _
      $region16: #{_lambda_.9} parent=11 // pred_fallthru
        _
      // Predicated region
      $region17: #{_lambda_.9} parent=11 // pred_check
        %p192 = pneg %p106
      $region18: #{_lambda_.9} parent=11 // pred_check_branch
        %194 = sbr.rel (%p192) target = $region20
      $region19: #{_lambda_.9} parent=11 // pred_region
        _
      $region20: #{_lambda_.9} parent=11 // pred_fallthru
        _
      // Predicated region
      $region21: #{_lambda_.9} parent=11 // pred_check
        %p195 = pneg %p127
      $region22: #{_lambda_.9} parent=11 // pred_check_branch
        %197 = sbr.rel (%p195) target = $region24
      $region23: #{_lambda_.9} parent=11 // pred_region
        _
      $region24: #{_lambda_.9} parent=11 // pred_fallthru
        _
      // Predicated region
      $region25: #{_lambda_.9} parent=11 // pred_check
        %p198 = pneg %p148
      $region26: #{_lambda_.9} parent=11 // pred_check_branch
        %200 = sbr.rel (%p198) target = $region28
      $region27: #{_lambda_.9} parent=11 // pred_region
        _
      $region28: #{_lambda_.9} parent=11 // pred_fallthru
        _
    $region12: #{_lambda_.9} parent=5 // pred_fallthru
      _
    %p201 = scmp.lt.s32.totalorder %s12, 2
    // Predicated region
    $region29: #{_lambda_.9} parent=5 // pred_check
      %p202 = pneg %p201
    $region30: #{_lambda_.9} parent=5 // pred_check_branch
      %204 = sbr.rel (%p202) target = $region32
    $region31: #{_lambda_.9} parent=5 // pred_region
      // Predicated region
      $region33: #{_lambda_.9} parent=31 // pred_check
        %p205 = pneg %p32
      $region34: #{_lambda_.9} parent=31 // pred_check_branch
        %207 = sbr.rel (%p205) target = $region36
      $region35: #{_lambda_.9} parent=31 // pred_region
        %p208 = scmp.lt.s32.totalorder %s12, 1
        %s209 = scalar_select %p208, %s12, 1
        %s210 = smul.addr %s209, 4
        %s211 = smul.addr %s210, 8
        %s212 = scalar_lea.vmem %s0, %s211
      $region36: #{_lambda_.9} parent=31 // pred_fallthru
        _
      // Predicated region
      $region37: #{_lambda_.9} parent=31 // pred_check
        %p213 = pneg %p58
      $region38: #{_lambda_.9} parent=31 // pred_check_branch
        %215 = sbr.rel (%p213) target = $region40
      $region39: #{_lambda_.9} parent=31 // pred_region
        %p216 = scmp.lt.s32.totalorder %s12, 1
        %s217 = scalar_select %p216, %s12, 1
        %s218 = smul.addr %s217, 5
        %s219 = smul.addr %s218, 8
        %s220 = scalar_lea.vmem %s1, %s219
      $region40: #{_lambda_.9} parent=31 // pred_fallthru
        _
    $region32: #{_lambda_.9} parent=5 // pred_fallthru
      _
    %p221 = scmp.le.s32.totalorder 1, %s12
    %p222 = scmp.lt.s32.totalorder %s12, 3
    %p223 = pnand %p221, %p222
    %p224 = pneg %p223
    // Predicated region
    $region41: #{_lambda_.9} parent=5 // pred_check
      _
    $region42: #{_lambda_.9} parent=5 // pred_check_branch
      %226 = sbr.rel (%p223) target = $region44
    $region43: #{_lambda_.9} parent=5 // pred_region
      %s227 = ssub.s32 %s12, 1
      %p228 = scmp.lt.s32.totalorder %s17, 1
      %s229 = scalar_select %p228, %s17, 1
      %s230 = smul.addr %s229, 4
      %s231 = smul.addr %s230, 8
      %s232 = scalar_lea.vmem %s0, %s231
      %p233 = pneg %p38
      %p234 = pneg %p35
      %p235 = scmp.lt.s32.totalorder %s17, 1
      %s236 = scalar_select %p235, %s17, 1
      %s237 = smul.addr %s236, 5
      %s238 = smul.addr %s237, 8
      %s239 = scalar_lea.vmem %s1, %s238
      %p240 = pneg %p64
      %p241 = pneg %p61
      %p242 = pneg %p85
      %p243 = pneg %p82
      %p244 = pneg %p106
      %p245 = pneg %p103
      %p246 = pneg %p127
      %p247 = pneg %p124
      %p248 = pneg %p148
      %p249 = pneg %p145
      %p250 = pneg %p174
      %p251 = pneg %p171
      %p252 = scmp.lt.s32.totalorder %s17, 1
      %s253 = scalar_select %p252, %s17, 1
      %s254 = smul.addr %s253, 4
      %s255 = smul.addr %s254, 8
      %s256 = scalar_lea.vmem %s6, %s255
      %p257 = scmp.lt.s32.totalorder %s17, 1
      %s258 = scalar_select %p257, %s17, 1
      %s259 = smul.addr %s258, 4
      %s260 = smul.addr %s259, 8
      %s261 = scalar_lea.vmem %s0, %s260
      %p262 = scmp.lt.s32.totalorder %s17, 1
      %s263 = scalar_select %p262, %s17, 1
      %s264 = smul.addr %s263, 5
      %s265 = smul.addr %s264, 8
      %s266 = scalar_lea.vmem %s1, %s265
      %p267 = scmp.lt.s32.totalorder %s17, 1
      %s268 = scalar_select %p267, %s17, 1
      %s269 = smul.addr %s268, 4
      %s270 = smul.addr %s269, 8
      %s271 = scalar_lea.vmem %s6, %s270
      %v273 = vld [vmem:[%s266] sm:$0xff]
      %v274 = vld [vmem:[%s266 + $0x8] sm:$0xff]
      %v275 = vld [vmem:[%s266 + $0x10] sm:$0xff]
      %v276 = vld [vmem:[%s266 + $0x18] sm:$0xff]
      %v277 = vld [vmem:[%s2] sm:$0xf]
      %v278 = vld [vmem:[%s2 + $0x4] sm:$0xf]
      %v279 = vld [vmem:[%s2 + $0x8] sm:$0xf]
      %v280 = vld [vmem:[%s2 + $0xc] sm:$0xf]
      %v281 = vld [vmem:[%s2 + $0x10] sm:$0xf]
      %v282 = vld [vmem:[%s2 + $0x14] sm:$0xf]
      %v283 = vld [vmem:[%s2 + $0x18] sm:$0xf]
      %v284 = vld [vmem:[%s2 + $0x1c] sm:$0xf]
      %v285 = vpack.c.bf16 %v274, %v273
      %v286 = vpack.c.bf16 %v276, %v275
      %v287 = vld [vmem:[%s266 + $0x1] sm:$0xff]
      %v288 = vld [vmem:[%s266 + $0x9] sm:$0xff]
      %v289 = vld [vmem:[%s266 + $0x11] sm:$0xff]
      %v290 = vld [vmem:[%s266 + $0x19] sm:$0xff]
      %s291 = scalar_lea.vmem %s2, 32
      %v292 = vld [vmem:[%s291] sm:$0xf]
      %v293 = vld [vmem:[%s291 + $0x4] sm:$0xf]
      %v294 = vld [vmem:[%s291 + $0x8] sm:$0xf]
      %v295 = vld [vmem:[%s291 + $0xc] sm:$0xf]
      %v296 = vld [vmem:[%s291 + $0x10] sm:$0xf]
      %v297 = vld [vmem:[%s291 + $0x14] sm:$0xf]
      %v298 = vld [vmem:[%s291 + $0x18] sm:$0xf]
      %v299 = vld [vmem:[%s291 + $0x1c] sm:$0xf]
      %v300 = vpack.c.bf16 %v288, %v287
      %v301 = vpack.c.bf16 %v290, %v289
      %v310 = vunpack.c.l.b16 %v292
      %v311 = vunpack.c.l.b16 %v293
      %v312 = vunpack.c.l.b16 %v294
      %v313 = vunpack.c.l.b16 %v295
      %v314 = vunpack.c.l.b16 %v296
      %v315 = vunpack.c.l.b16 %v297
      %v316 = vunpack.c.l.b16 %v298
      %v317 = vunpack.c.l.b16 %v299
      %v318 = vpack.c.b16 %v311, %v310
      %v319 = vpack.c.b16 %v313, %v312
      %v320 = vpack.c.b16 %v315, %v314
      %v321 = vpack.c.b16 %v317, %v316
      %vm326 = vcmask 523264
      %v328 = vsel %vm326, %v300, 0
      %v331 = vsel %vm326, %v301, 0
      %333 = vmatprep.subr.bf16.mxu0 0
      %334 = vmatpush1.bf16.msra.mxu0 %v318
      %335 = vmatprep.subr.bf16.mxu0 0
      %336 = vmatpush1.bf16.msra.mxu0 %v319
      %337 = vmatprep.subr.bf16.mxu0 0
      %338 = vmatpush1.bf16.msra.mxu0 %v320
      %339 = vmatprep.subr.bf16.mxu0 0
      %340 = vmatpush1.bf16.msra.mxu0 %v321
      %341 = vmatprep.subr.bf16.mxu0 0
      %342 = vmatpush1.bf16.msra.mxu0 0
      %343 = vmatprep.subr.bf16.mxu0 0
      %344 = vmatpush1.bf16.msra.mxu0 0
      %345 = vmatprep.subr.bf16.mxu0 0
      %346 = vmatpush1.bf16.msra.mxu0 0
      %347 = vmatprep.subr.bf16.mxu0 0
      %348 = vmatpush1.bf16.msra.mxu0 0
      %349 = vmatprep.subr.bf16.mxu0 0
      %350 = vmatpush1.bf16.msra.mxu0 0
      %351 = vmatprep.subr.bf16.mxu0 0
      %352 = vmatpush1.bf16.msra.mxu0 0
      %353 = vmatprep.subr.bf16.mxu0 0
      %354 = vmatpush1.bf16.msra.mxu0 0
      %355 = vmatprep.subr.bf16.mxu0 0
      %356 = vmatpush1.bf16.msra.mxu0 0
      %357 = vmatprep.subr.bf16.mxu0 0
      %358 = vmatpush1.bf16.msra.mxu0 0
      %359 = vmatprep.subr.bf16.mxu0 0
      %360 = vmatpush1.bf16.msra.mxu0 0
      %361 = vmatprep.subr.bf16.mxu0 0
      %362 = vmatpush1.bf16.msra.mxu0 0
      %363 = vmatprep.subr.bf16.mxu0 0
      %364 = vmatpush1.bf16.msra.mxu0 0
      %365 = vmatprep.mubr.bf16.mxu0 0
      %366 = vmatmul.mubr.bf16.gmra.mrb[0].mxu0 %v328
      %v367 = vpop.f32.mrb[0].mxu0
      %v368 = vadd.f32 0.0, %v367
      %v369 = vpop.f32.mrb[0].mxu0
      %v370 = vpop.f32.mrb[0].mxu0
      %v371 = vadd.f32 0.0, %v370
      %v372 = vpop.f32.mrb[0].mxu0
      %373 = vmatprep.mubr.bf16.mxu0 0
      %374 = vmatmul.mubr.bf16.gmra.mrb[0].mxu0 %v331
      %v375 = vpop.f32.mrb[0].mxu0
      %v376 = vadd.f32 0.0, %v375
      %v377 = vpop.f32.mrb[0].mxu0
      %v378 = vpop.f32.mrb[0].mxu0
      %v379 = vadd.f32 0.0, %v378
      %v380 = vpop.f32.mrb[0].mxu0
      %381 = vdwg.mxu0
      %v390 = vunpack.c.l.b16 %v277
      %v391 = vunpack.c.l.b16 %v278
      %v392 = vunpack.c.l.b16 %v279
      %v393 = vunpack.c.l.b16 %v280
      %v394 = vunpack.c.l.b16 %v281
      %v395 = vunpack.c.l.b16 %v282
      %v396 = vunpack.c.l.b16 %v283
      %v397 = vunpack.c.l.b16 %v284
      %v398 = vpack.c.b16 %v391, %v390
      %v399 = vpack.c.b16 %v393, %v392
      %v400 = vpack.c.b16 %v395, %v394
      %v401 = vpack.c.b16 %v397, %v396
      %v407 = vsel %vm326, %v285, 0
      %v410 = vsel %vm326, %v286, 0
      %412 = vmatprep.subr.bf16.mxu0 0
      %413 = vmatpush1.bf16.msra.mxu0 %v398
      %414 = vmatprep.subr.bf16.mxu0 0
      %415 = vmatpush1.bf16.msra.mxu0 %v399
      %416 = vmatprep.subr.bf16.mxu0 0
      %417 = vmatpush1.bf16.msra.mxu0 %v400
      %418 = vmatprep.subr.bf16.mxu0 0
      %419 = vmatpush1.bf16.msra.mxu0 %v401
      %420 = vmatprep.subr.bf16.mxu0 0
      %421 = vmatpush1.bf16.msra.mxu0 0
      %422 = vmatprep.subr.bf16.mxu0 0
      %423 = vmatpush1.bf16.msra.mxu0 0
      %424 = vmatprep.subr.bf16.mxu0 0
      %425 = vmatpush1.bf16.msra.mxu0 0
      %426 = vmatprep.subr.bf16.mxu0 0
      %427 = vmatpush1.bf16.msra.mxu0 0
      %428 = vmatprep.subr.bf16.mxu0 0
      %429 = vmatpush1.bf16.msra.mxu0 0
      %430 = vmatprep.subr.bf16.mxu0 0
      %431 = vmatpush1.bf16.msra.mxu0 0
      %432 = vmatprep.subr.bf16.mxu0 0
      %433 = vmatpush1.bf16.msra.mxu0 0
      %434 = vmatprep.subr.bf16.mxu0 0
      %435 = vmatpush1.bf16.msra.mxu0 0
      %436 = vmatprep.subr.bf16.mxu0 0
      %437 = vmatpush1.bf16.msra.mxu0 0
      %438 = vmatprep.subr.bf16.mxu0 0
      %439 = vmatpush1.bf16.msra.mxu0 0
      %440 = vmatprep.subr.bf16.mxu0 0
      %441 = vmatpush1.bf16.msra.mxu0 0
      %442 = vmatprep.subr.bf16.mxu0 0
      %443 = vmatpush1.bf16.msra.mxu0 0
      %444 = vmatprep.mubr.bf16.mxu0 0
      %445 = vmatmul.mubr.bf16.gmra.mrb[0].mxu0 %v407
      %v446 = vpop.f32.mrb[0].mxu0
      %v447 = vadd.f32 %v368, %v446
      %v448 = vpop.f32.mrb[0].mxu0
      %v449 = vpop.f32.mrb[0].mxu0
      %v450 = vadd.f32 %v371, %v449
      %v451 = vpop.f32.mrb[0].mxu0
      %452 = vmatprep.mubr.bf16.mxu0 0
      %453 = vmatmul.mubr.bf16.gmra.mrb[0].mxu0 %v410
      %v454 = vpop.f32.mrb[0].mxu0
      %v455 = vadd.f32 %v376, %v454
      %v456 = vpop.f32.mrb[0].mxu0
      %v457 = vpop.f32.mrb[0].mxu0
      %v458 = vadd.f32 %v379, %v457
      %v459 = vpop.f32.mrb[0].mxu0
      %460 = vdwg.mxu0
      %v461 = vld [vmem:[%s266 + $0x2] sm:$0xff]
      %v462 = vld [vmem:[%s266 + $0xa] sm:$0xff]
      %v463 = vld [vmem:[%s266 + $0x12] sm:$0xff]
      %v464 = vld [vmem:[%s266 + $0x1a] sm:$0xff]
      %s465 = scalar_lea.vmem %s2, 64
      %v466 = vld [vmem:[%s465] sm:$0xf]
      %v467 = vld [vmem:[%s465 + $0x4] sm:$0xf]
      %v468 = vld [vmem:[%s465 + $0x8] sm:$0xf]
      %v469 = vld [vmem:[%s465 + $0xc] sm:$0xf]
      %v470 = vld [vmem:[%s465 + $0x10] sm:$0xf]
      %v471 = vld [vmem:[%s465 + $0x14] sm:$0xf]
      %v472 = vld [vmem:[%s465 + $0x18] sm:$0xf]
      %v473 = vld [vmem:[%s465 + $0x1c] sm:$0xf]
      %v474 = vpack.c.bf16 %v462, %v461
      %v475 = vpack.c.bf16 %v464, %v463
      %v484 = vunpack.c.l.b16 %v466
      %v485 = vunpack.c.l.b16 %v467
      %v486 = vunpack.c.l.b16 %v468
      %v487 = vunpack.c.l.b16 %v469
      %v488 = vunpack.c.l.b16 %v470
      %v489 = vunpack.c.l.b16 %v471
      %v490 = vunpack.c.l.b16 %v472
      %v491 = vunpack.c.l.b16 %v473
      %v492 = vpack.c.b16 %v485, %v484
      %v493 = vpack.c.b16 %v487, %v486
      %v494 = vpack.c.b16 %v489, %v488
      %v495 = vpack.c.b16 %v491, %v490
      %v501 = vsel %vm326, %v474, 0
      %v504 = vsel %vm326, %v475, 0
      %506 = vmatprep.subr.bf16.mxu0 0
      %507 = vmatpush1.bf16.msra.mxu0 %v492
      %508 = vmatprep.subr.bf16.mxu0 0
      %509 = vmatpush1.bf16.msra.mxu0 %v493
      %510 = vmatprep.subr.bf16.mxu0 0
      %511 = vmatpush1.bf16.msra.mxu0 %v494
      %512 = vmatprep.subr.bf16.mxu0 0
      %513 = vmatpush1.bf16.msra.mxu0 %v495
      %514 = vmatprep.subr.bf16.mxu0 0
      %515 = vmatpush1.bf16.msra.mxu0 0
      %516 = vmatprep.subr.bf16.mxu0 0
      %517 = vmatpush1.bf16.msra.mxu0 0
      %518 = vmatprep.subr.bf16.mxu0 0
      %519 = vmatpush1.bf16.msra.mxu0 0
      %520 = vmatprep.subr.bf16.mxu0 0
      %521 = vmatpush1.bf16.msra.mxu0 0
      %522 = vmatprep.subr.bf16.mxu0 0
      %523 = vmatpush1.bf16.msra.mxu0 0
      %524 = vmatprep.subr.bf16.mxu0 0
      %525 = vmatpush1.bf16.msra.mxu0 0
      %526 = vmatprep.subr.bf16.mxu0 0
      %527 = vmatpush1.bf16.msra.mxu0 0
      %528 = vmatprep.subr.bf16.mxu0 0
      %529 = vmatpush1.bf16.msra.mxu0 0
      %530 = vmatprep.subr.bf16.mxu0 0
      %531 = vmatpush1.bf16.msra.mxu0 0
      %532 = vmatprep.subr.bf16.mxu0 0
      %533 = vmatpush1.bf16.msra.mxu0 0
      %534 = vmatprep.subr.bf16.mxu0 0
      %535 = vmatpush1.bf16.msra.mxu0 0
      %536 = vmatprep.subr.bf16.mxu0 0
      %537 = vmatpush1.bf16.msra.mxu0 0
      %538 = vmatprep.mubr.bf16.mxu0 0
      %539 = vmatmul.mubr.bf16.gmra.mrb[0].mxu0 %v501
      %v540 = vpop.f32.mrb[0].mxu0
      %v541 = vadd.f32 0.0, %v540
      %v542 = vpop.f32.mrb[0].mxu0
      %v543 = vpop.f32.mrb[0].mxu0
      %v544 = vadd.f32 0.0, %v543
      %v545 = vpop.f32.mrb[0].mxu0
      %546 = vmatprep.mubr.bf16.mxu0 0
      %547 = vmatmul.mubr.bf16.gmra.mrb[0].mxu0 %v504
      %v548 = vpop.f32.mrb[0].mxu0
      %v549 = vadd.f32 0.0, %v548
      %v550 = vpop.f32.mrb[0].mxu0
      %v551 = vpop.f32.mrb[0].mxu0
      %v552 = vadd.f32 0.0, %v551
      %v553 = vpop.f32.mrb[0].mxu0
      %554 = vdwg.mxu0
      %v555 = vadd.f32 %v447, %v541
      %v556 = vadd.f32 %v450, %v544
      %v557 = vadd.f32 %v455, %v549
      %v558 = vadd.f32 %v458, %v552
      %v559 = vld [vmem:[%s266 + $0x3] sm:$0xff]
      %v560 = vld [vmem:[%s266 + $0xb] sm:$0xff]
      %v561 = vld [vmem:[%s266 + $0x13] sm:$0xff]
      %v562 = vld [vmem:[%s266 + $0x1b] sm:$0xff]
      %s563 = scalar_lea.vmem %s2, 96
      %v564 = vld [vmem:[%s563] sm:$0xf]
      %v565 = vld [vmem:[%s563 + $0x4] sm:$0xf]
      %v566 = vld [vmem:[%s563 + $0x8] sm:$0xf]
      %v567 = vld [vmem:[%s563 + $0xc] sm:$0xf]
      %v568 = vld [vmem:[%s563 + $0x10] sm:$0xf]
      %v569 = vld [vmem:[%s563 + $0x14] sm:$0xf]
      %v570 = vld [vmem:[%s563 + $0x18] sm:$0xf]
      %v571 = vld [vmem:[%s563 + $0x1c] sm:$0xf]
      %v572 = vpack.c.bf16 %v560, %v559
      %v573 = vpack.c.bf16 %v562, %v561
      %v582 = vunpack.c.l.b16 %v564
      %v583 = vunpack.c.l.b16 %v565
      %v584 = vunpack.c.l.b16 %v566
      %v585 = vunpack.c.l.b16 %v567
      %v586 = vunpack.c.l.b16 %v568
      %v587 = vunpack.c.l.b16 %v569
      %v588 = vunpack.c.l.b16 %v570
      %v589 = vunpack.c.l.b16 %v571
      %v590 = vpack.c.b16 %v583, %v582
      %v591 = vpack.c.b16 %v585, %v584
      %v592 = vpack.c.b16 %v587, %v586
      %v593 = vpack.c.b16 %v589, %v588
      %v599 = vsel %vm326, %v572, 0
      %v602 = vsel %vm326, %v573, 0
      %604 = vmatprep.subr.bf16.mxu0 0
      %605 = vmatpush1.bf16.msra.mxu0 %v590
      %606 = vmatprep.subr.bf16.mxu0 0
      %607 = vmatpush1.bf16.msra.mxu0 %v591
      %608 = vmatprep.subr.bf16.mxu0 0
      %609 = vmatpush1.bf16.msra.mxu0 %v592
      %610 = vmatprep.subr.bf16.mxu0 0
      %611 = vmatpush1.bf16.msra.mxu0 %v593
      %612 = vmatprep.subr.bf16.mxu0 0
      %613 = vmatpush1.bf16.msra.mxu0 0
      %614 = vmatprep.subr.bf16.mxu0 0
      %615 = vmatpush1.bf16.msra.mxu0 0
      %616 = vmatprep.subr.bf16.mxu0 0
      %617 = vmatpush1.bf16.msra.mxu0 0
      %618 = vmatprep.subr.bf16.mxu0 0
      %619 = vmatpush1.bf16.msra.mxu0 0
      %620 = vmatprep.subr.bf16.mxu0 0
      %621 = vmatpush1.bf16.msra.mxu0 0
      %622 = vmatprep.subr.bf16.mxu0 0
      %623 = vmatpush1.bf16.msra.mxu0 0
      %624 = vmatprep.subr.bf16.mxu0 0
      %625 = vmatpush1.bf16.msra.mxu0 0
      %626 = vmatprep.subr.bf16.mxu0 0
      %627 = vmatpush1.bf16.msra.mxu0 0
      %628 = vmatprep.subr.bf16.mxu0 0
      %629 = vmatpush1.bf16.msra.mxu0 0
      %630 = vmatprep.subr.bf16.mxu0 0
      %631 = vmatpush1.bf16.msra.mxu0 0
      %632 = vmatprep.subr.bf16.mxu0 0
      %633 = vmatpush1.bf16.msra.mxu0 0
      %634 = vmatprep.subr.bf16.mxu0 0
      %635 = vmatpush1.bf16.msra.mxu0 0
      %636 = vmatprep.mubr.bf16.mxu0 0
      %637 = vmatmul.mubr.bf16.gmra.mrb[0].mxu0 %v599
      %v638 = vpop.f32.mrb[0].mxu0
      %v639 = vadd.f32 0.0, %v638
      %v640 = vpop.f32.mrb[0].mxu0
      %v641 = vpop.f32.mrb[0].mxu0
      %v642 = vadd.f32 0.0, %v641
      %v643 = vpop.f32.mrb[0].mxu0
      %644 = vmatprep.mubr.bf16.mxu0 0
      %645 = vmatmul.mubr.bf16.gmra.mrb[0].mxu0 %v602
      %v646 = vpop.f32.mrb[0].mxu0
      %v647 = vadd.f32 0.0, %v646
      %v648 = vpop.f32.mrb[0].mxu0
      %v649 = vpop.f32.mrb[0].mxu0
      %v650 = vadd.f32 0.0, %v649
      %v651 = vpop.f32.mrb[0].mxu0
      %652 = vdwg.mxu0
      %v653 = vadd.f32 %v555, %v639
      %v654 = vadd.f32 %v556, %v642
      %v655 = vadd.f32 %v557, %v647
      %v656 = vadd.f32 %v558, %v650
      %v657 = vld [vmem:[%s266 + $0x4] sm:$0xff]
      %v658 = vld [vmem:[%s266 + $0xc] sm:$0xff]
      %v659 = vld [vmem:[%s266 + $0x14] sm:$0xff]
      %v660 = vld [vmem:[%s266 + $0x1c] sm:$0xff]
      %s661 = scalar_lea.vmem %s2, 128
      %v662 = vld [vmem:[%s661] sm:$0xf]
      %v663 = vld [vmem:[%s661 + $0x4] sm:$0xf]
      %v664 = vld [vmem:[%s661 + $0x8] sm:$0xf]
      %v665 = vld [vmem:[%s661 + $0xc] sm:$0xf]
      %v666 = vld [vmem:[%s661 + $0x10] sm:$0xf]
      %v667 = vld [vmem:[%s661 + $0x14] sm:$0xf]
      %v668 = vld [vmem:[%s661 + $0x18] sm:$0xf]
      %v669 = vld [vmem:[%s661 + $0x1c] sm:$0xf]
      %v670 = vpack.c.bf16 %v658, %v657
      %v671 = vpack.c.bf16 %v660, %v659
      %v680 = vunpack.c.l.b16 %v662
      %v681 = vunpack.c.l.b16 %v663
      %v682 = vunpack.c.l.b16 %v664
      %v683 = vunpack.c.l.b16 %v665
      %v684 = vunpack.c.l.b16 %v666
      %v685 = vunpack.c.l.b16 %v667
      %v686 = vunpack.c.l.b16 %v668
      %v687 = vunpack.c.l.b16 %v669
      %v688 = vpack.c.b16 %v681, %v680
      %v689 = vpack.c.b16 %v683, %v682
      %v690 = vpack.c.b16 %v685, %v684
      %v691 = vpack.c.b16 %v687, %v686
      %v697 = vsel %vm326, %v670, 0
      %v700 = vsel %vm326, %v671, 0
      %702 = vmatprep.subr.bf16.mxu0 0
      %703 = vmatpush1.bf16.msra.mxu0 %v688
      %704 = vmatprep.subr.bf16.mxu0 0
      %705 = vmatpush1.bf16.msra.mxu0 %v689
      %706 = vmatprep.subr.bf16.mxu0 0
      %707 = vmatpush1.bf16.msra.mxu0 %v690
      %708 = vmatprep.subr.bf16.mxu0 0
      %709 = vmatpush1.bf16.msra.mxu0 %v691
      %710 = vmatprep.subr.bf16.mxu0 0
      %711 = vmatpush1.bf16.msra.mxu0 0
      %712 = vmatprep.subr.bf16.mxu0 0
      %713 = vmatpush1.bf16.msra.mxu0 0
      %714 = vmatprep.subr.bf16.mxu0 0
      %715 = vmatpush1.bf16.msra.mxu0 0
      %716 = vmatprep.subr.bf16.mxu0 0
      %717 = vmatpush1.bf16.msra.mxu0 0
      %718 = vmatprep.subr.bf16.mxu0 0
      %719 = vmatpush1.bf16.msra.mxu0 0
      %720 = vmatprep.subr.bf16.mxu0 0
      %721 = vmatpush1.bf16.msra.mxu0 0
      %722 = vmatprep.subr.bf16.mxu0 0
      %723 = vmatpush1.bf16.msra.mxu0 0
      %724 = vmatprep.subr.bf16.mxu0 0
      %725 = vmatpush1.bf16.msra.mxu0 0
      %726 = vmatprep.subr.bf16.mxu0 0
      %727 = vmatpush1.bf16.msra.mxu0 0
      %728 = vmatprep.subr.bf16.mxu0 0
      %729 = vmatpush1.bf16.msra.mxu0 0
      %730 = vmatprep.subr.bf16.mxu0 0
      %731 = vmatpush1.bf16.msra.mxu0 0
      %732 = vmatprep.subr.bf16.mxu0 0
      %733 = vmatpush1.bf16.msra.mxu0 0
      %734 = vmatprep.mubr.bf16.mxu0 0
      %735 = vmatmul.mubr.bf16.gmra.mrb[0].mxu0 %v697
      %v736 = vpop.f32.mrb[0].mxu0
      %v737 = vadd.f32 0.0, %v736
      %v738 = vpop.f32.mrb[0].mxu0
      %v739 = vpop.f32.mrb[0].mxu0
      %v740 = vadd.f32 0.0, %v739
      %v741 = vpop.f32.mrb[0].mxu0
      %742 = vmatprep.mubr.bf16.mxu0 0
      %743 = vmatmul.mubr.bf16.gmra.mrb[0].mxu0 %v700
      %v744 = vpop.f32.mrb[0].mxu0
      %v745 = vadd.f32 0.0, %v744
      %v746 = vpop.f32.mrb[0].mxu0
      %v747 = vpop.f32.mrb[0].mxu0
      %v748 = vadd.f32 0.0, %v747
      %v749 = vpop.f32.mrb[0].mxu0
      %750 = vdwg.mxu0
      %v751 = vadd.f32 %v653, %v737
      %v752 = vadd.f32 %v654, %v740
      %v753 = vadd.f32 %v655, %v745
      %v754 = vadd.f32 %v656, %v748
      %v755 = vld [vmem:[%s266 + $0x5] sm:$0xff]
      %v756 = vld [vmem:[%s266 + $0xd] sm:$0xff]
      %v757 = vld [vmem:[%s266 + $0x15] sm:$0xff]
      %v758 = vld [vmem:[%s266 + $0x1d] sm:$0xff]
      %s759 = scalar_lea.vmem %s2, 160
      %v760 = vld [vmem:[%s759] sm:$0xf]
      %v761 = vld [vmem:[%s759 + $0x4] sm:$0xf]
      %v762 = vld [vmem:[%s759 + $0x8] sm:$0xf]
      %v763 = vld [vmem:[%s759 + $0xc] sm:$0xf]
      %v764 = vld [vmem:[%s759 + $0x10] sm:$0xf]
      %v765 = vld [vmem:[%s759 + $0x14] sm:$0xf]
      %v766 = vld [vmem:[%s759 + $0x18] sm:$0xf]
      %v767 = vld [vmem:[%s759 + $0x1c] sm:$0xf]
      %v768 = vpack.c.bf16 %v756, %v755
      %v769 = vpack.c.bf16 %v758, %v757
      %v778 = vunpack.c.l.b16 %v760
      %v779 = vunpack.c.l.b16 %v761
      %v780 = vunpack.c.l.b16 %v762
      %v781 = vunpack.c.l.b16 %v763
      %v782 = vunpack.c.l.b16 %v764
      %v783 = vunpack.c.l.b16 %v765
      %v784 = vunpack.c.l.b16 %v766
      %v785 = vunpack.c.l.b16 %v767
      %v786 = vpack.c.b16 %v779, %v778
      %v787 = vpack.c.b16 %v781, %v780
      %v788 = vpack.c.b16 %v783, %v782
      %v789 = vpack.c.b16 %v785, %v784
      %v795 = vsel %vm326, %v768, 0
      %v798 = vsel %vm326, %v769, 0
      %800 = vmatprep.subr.bf16.mxu0 0
      %801 = vmatpush1.bf16.msra.mxu0 %v786
      %802 = vmatprep.subr.bf16.mxu0 0
      %803 = vmatpush1.bf16.msra.mxu0 %v787
      %804 = vmatprep.subr.bf16.mxu0 0
      %805 = vmatpush1.bf16.msra.mxu0 %v788
      %806 = vmatprep.subr.bf16.mxu0 0
      %807 = vmatpush1.bf16.msra.mxu0 %v789
      %808 = vmatprep.subr.bf16.mxu0 0
      %809 = vmatpush1.bf16.msra.mxu0 0
      %810 = vmatprep.subr.bf16.mxu0 0
      %811 = vmatpush1.bf16.msra.mxu0 0
      %812 = vmatprep.subr.bf16.mxu0 0
      %813 = vmatpush1.bf16.msra.mxu0 0
      %814 = vmatprep.subr.bf16.mxu0 0
      %815 = vmatpush1.bf16.msra.mxu0 0
      %816 = vmatprep.subr.bf16.mxu0 0
      %817 = vmatpush1.bf16.msra.mxu0 0
      %818 = vmatprep.subr.bf16.mxu0 0
      %819 = vmatpush1.bf16.msra.mxu0 0
      %820 = vmatprep.subr.bf16.mxu0 0
      %821 = vmatpush1.bf16.msra.mxu0 0
      %822 = vmatprep.subr.bf16.mxu0 0
      %823 = vmatpush1.bf16.msra.mxu0 0
      %824 = vmatprep.subr.bf16.mxu0 0
      %825 = vmatpush1.bf16.msra.mxu0 0
      %826 = vmatprep.subr.bf16.mxu0 0
      %827 = vmatpush1.bf16.msra.mxu0 0
      %828 = vmatprep.subr.bf16.mxu0 0
      %829 = vmatpush1.bf16.msra.mxu0 0
      %830 = vmatprep.subr.bf16.mxu0 0
      %831 = vmatpush1.bf16.msra.mxu0 0
      %832 = vmatprep.mubr.bf16.mxu0 0
      %833 = vmatmul.mubr.bf16.gmra.mrb[0].mxu0 %v795
      %v834 = vpop.f32.mrb[0].mxu0
      %v835 = vadd.f32 0.0, %v834
      %v836 = vpop.f32.mrb[0].mxu0
      %v837 = vpop.f32.mrb[0].mxu0
      %v838 = vadd.f32 0.0, %v837
      %v839 = vpop.f32.mrb[0].mxu0
      %840 = vmatprep.mubr.bf16.mxu0 0
      %841 = vmatmul.mubr.bf16.gmra.mrb[0].mxu0 %v798
      %v842 = vpop.f32.mrb[0].mxu0
      %v843 = vadd.f32 0.0, %v842
      %v844 = vpop.f32.mrb[0].mxu0
      %v845 = vpop.f32.mrb[0].mxu0
      %v846 = vadd.f32 0.0, %v845
      %v847 = vpop.f32.mrb[0].mxu0
      %848 = vdwg.mxu0
      %v849 = vadd.f32 %v751, %v835
      %v850 = vadd.f32 %v752, %v838
      %v851 = vadd.f32 %v753, %v843
      %v852 = vadd.f32 %v754, %v846
      %v853 = vld [vmem:[%s266 + $0x6] sm:$0xff]
      %v854 = vld [vmem:[%s266 + $0xe] sm:$0xff]
      %v855 = vld [vmem:[%s266 + $0x16] sm:$0xff]
      %v856 = vld [vmem:[%s266 + $0x1e] sm:$0xff]
      %s857 = scalar_lea.vmem %s2, 192
      %v858 = vld [vmem:[%s857] sm:$0xf]
      %v859 = vld [vmem:[%s857 + $0x4] sm:$0xf]
      %v860 = vld [vmem:[%s857 + $0x8] sm:$0xf]
      %v861 = vld [vmem:[%s857 + $0xc] sm:$0xf]
      %v862 = vld [vmem:[%s857 + $0x10] sm:$0xf]
      %v863 = vld [vmem:[%s857 + $0x14] sm:$0xf]
      %v864 = vld [vmem:[%s857 + $0x18] sm:$0xf]
      %v865 = vld [vmem:[%s857 + $0x1c] sm:$0xf]
      %v866 = vpack.c.bf16 %v854, %v853
      %v867 = vpack.c.bf16 %v856, %v855
      %v876 = vunpack.c.l.b16 %v858
      %v877 = vunpack.c.l.b16 %v859
      %v878 = vunpack.c.l.b16 %v860
      %v879 = vunpack.c.l.b16 %v861
      %v880 = vunpack.c.l.b16 %v862
      %v881 = vunpack.c.l.b16 %v863
      %v882 = vunpack.c.l.b16 %v864
      %v883 = vunpack.c.l.b16 %v865
      %v884 = vpack.c.b16 %v877, %v876
      %v885 = vpack.c.b16 %v879, %v878
      %v886 = vpack.c.b16 %v881, %v880
      %v887 = vpack.c.b16 %v883, %v882
      %v893 = vsel %vm326, %v866, 0
      %v896 = vsel %vm326, %v867, 0
      %898 = vmatprep.subr.bf16.mxu0 0
      %899 = vmatpush1.bf16.msra.mxu0 %v884
      %900 = vmatprep.subr.bf16.mxu0 0
      %901 = vmatpush1.bf16.msra.mxu0 %v885
      %902 = vmatprep.subr.bf16.mxu0 0
      %903 = vmatpush1.bf16.msra.mxu0 %v886
      %904 = vmatprep.subr.bf16.mxu0 0
      %905 = vmatpush1.bf16.msra.mxu0 %v887
      %906 = vmatprep.subr.bf16.mxu0 0
      %907 = vmatpush1.bf16.msra.mxu0 0
      %908 = vmatprep.subr.bf16.mxu0 0
      %909 = vmatpush1.bf16.msra.mxu0 0
      %910 = vmatprep.subr.bf16.mxu0 0
      %911 = vmatpush1.bf16.msra.mxu0 0
      %912 = vmatprep.subr.bf16.mxu0 0
      %913 = vmatpush1.bf16.msra.mxu0 0
      %914 = vmatprep.subr.bf16.mxu0 0
      %915 = vmatpush1.bf16.msra.mxu0 0
      %916 = vmatprep.subr.bf16.mxu0 0
      %917 = vmatpush1.bf16.msra.mxu0 0
      %918 = vmatprep.subr.bf16.mxu0 0
      %919 = vmatpush1.bf16.msra.mxu0 0
      %920 = vmatprep.subr.bf16.mxu0 0
      %921 = vmatpush1.bf16.msra.mxu0 0
      %922 = vmatprep.subr.bf16.mxu0 0
      %923 = vmatpush1.bf16.msra.mxu0 0
      %924 = vmatprep.subr.bf16.mxu0 0
      %925 = vmatpush1.bf16.msra.mxu0 0
      %926 = vmatprep.subr.bf16.mxu0 0
      %927 = vmatpush1.bf16.msra.mxu0 0
      %928 = vmatprep.subr.bf16.mxu0 0
      %929 = vmatpush1.bf16.msra.mxu0 0
      %930 = vmatprep.mubr.bf16.mxu0 0
      %931 = vmatmul.mubr.bf16.gmra.mrb[0].mxu0 %v893
      %v932 = vpop.f32.mrb[0].mxu0
      %v933 = vadd.f32 0.0, %v932
      %v934 = vpop.f32.mrb[0].mxu0
      %v935 = vpop.f32.mrb[0].mxu0
      %v936 = vadd.f32 0.0, %v935
      %v937 = vpop.f32.mrb[0].mxu0
      %938 = vmatprep.mubr.bf16.mxu0 0
      %939 = vmatmul.mubr.bf16.gmra.mrb[0].mxu0 %v896
      %v940 = vpop.f32.mrb[0].mxu0
      %v941 = vadd.f32 0.0, %v940
      %v942 = vpop.f32.mrb[0].mxu0
      %v943 = vpop.f32.mrb[0].mxu0
      %v944 = vadd.f32 0.0, %v943
      %v945 = vpop.f32.mrb[0].mxu0
      %946 = vdwg.mxu0
      %v947 = vadd.f32 %v849, %v933
      %v948 = vadd.f32 %v850, %v936
      %v949 = vadd.f32 %v851, %v941
      %v950 = vadd.f32 %v852, %v944
      %v951 = vld [vmem:[%s266 + $0x7] sm:$0xff]
      %v952 = vld [vmem:[%s266 + $0xf] sm:$0xff]
      %v953 = vld [vmem:[%s266 + $0x17] sm:$0xff]
      %v954 = vld [vmem:[%s266 + $0x1f] sm:$0xff]
      %s955 = scalar_lea.vmem %s2, 224
      %v956 = vld [vmem:[%s955] sm:$0xf]
      %v957 = vld [vmem:[%s955 + $0x4] sm:$0xf]
      %v958 = vld [vmem:[%s955 + $0x8] sm:$0xf]
      %v959 = vld [vmem:[%s955 + $0xc] sm:$0xf]
      %v960 = vld [vmem:[%s955 + $0x10] sm:$0xf]
      %v961 = vld [vmem:[%s955 + $0x14] sm:$0xf]
      %v962 = vld [vmem:[%s955 + $0x18] sm:$0xf]
      %v963 = vld [vmem:[%s955 + $0x1c] sm:$0xf]
      %v964 = vpack.c.bf16 %v952, %v951
      %v965 = vpack.c.bf16 %v954, %v953
      %v974 = vunpack.c.l.b16 %v956
      %v975 = vunpack.c.l.b16 %v957
      %v976 = vunpack.c.l.b16 %v958
      %v977 = vunpack.c.l.b16 %v959
      %v978 = vunpack.c.l.b16 %v960
      %v979 = vunpack.c.l.b16 %v961
      %v980 = vunpack.c.l.b16 %v962
      %v981 = vunpack.c.l.b16 %v963
      %v982 = vpack.c.b16 %v975, %v974
      %v983 = vpack.c.b16 %v977, %v976
      %v984 = vpack.c.b16 %v979, %v978
      %v985 = vpack.c.b16 %v981, %v980
      %v991 = vsel %vm326, %v964, 0
      %v994 = vsel %vm326, %v965, 0
      %996 = vmatprep.subr.bf16.mxu0 0
      %997 = vmatpush1.bf16.msra.mxu0 %v982
      %998 = vmatprep.subr.bf16.mxu0 0
      %999 = vmatpush1.bf16.msra.mxu0 %v983
      %1000 = vmatprep.subr.bf16.mxu0 0
      %1001 = vmatpush1.bf16.msra.mxu0 %v984
      %1002 = vmatprep.subr.bf16.mxu0 0
      %1003 = vmatpush1.bf16.msra.mxu0 %v985
      %1004 = vmatprep.subr.bf16.mxu0 0
      %1005 = vmatpush1.bf16.msra.mxu0 0
      %1006 = vmatprep.subr.bf16.mxu0 0
      %1007 = vmatpush1.bf16.msra.mxu0 0
      %1008 = vmatprep.subr.bf16.mxu0 0
      %1009 = vmatpush1.bf16.msra.mxu0 0
      %1010 = vmatprep.subr.bf16.mxu0 0
      %1011 = vmatpush1.bf16.msra.mxu0 0
      %1012 = vmatprep.subr.bf16.mxu0 0
      %1013 = vmatpush1.bf16.msra.mxu0 0
      %1014 = vmatprep.subr.bf16.mxu0 0
      %1015 = vmatpush1.bf16.msra.mxu0 0
      %1016 = vmatprep.subr.bf16.mxu0 0
      %1017 = vmatpush1.bf16.msra.mxu0 0
      %1018 = vmatprep.subr.bf16.mxu0 0
      %1019 = vmatpush1.bf16.msra.mxu0 0
      %1020 = vmatprep.subr.bf16.mxu0 0
      %1021 = vmatpush1.bf16.msra.mxu0 0
      %1022 = vmatprep.subr.bf16.mxu0 0
      %1023 = vmatpush1.bf16.msra.mxu0 0
      %1024 = vmatprep.subr.bf16.mxu0 0
      %1025 = vmatpush1.bf16.msra.mxu0 0
      %1026 = vmatprep.subr.bf16.mxu0 0
      %1027 = vmatpush1.bf16.msra.mxu0 0
      %1028 = vmatprep.mubr.bf16.mxu0 0
      %1029 = vmatmul.mubr.bf16.gmra.mrb[0].mxu0 %v991
      %v1030 = vpop.f32.mrb[0].mxu0
      %v1031 = vadd.f32 0.0, %v1030
      %v1032 = vpop.f32.mrb[0].mxu0
      %v1033 = vpop.f32.mrb[0].mxu0
      %v1034 = vadd.f32 0.0, %v1033
      %v1035 = vpop.f32.mrb[0].mxu0
      %1036 = vmatprep.mubr.bf16.mxu0 0
      %1037 = vmatmul.mubr.bf16.gmra.mrb[0].mxu0 %v994
      %v1038 = vpop.f32.mrb[0].mxu0
      %v1039 = vadd.f32 0.0, %v1038
      %v1040 = vpop.f32.mrb[0].mxu0
      %v1041 = vpop.f32.mrb[0].mxu0
      %v1042 = vadd.f32 0.0, %v1041
      %v1043 = vpop.f32.mrb[0].mxu0
      %1044 = vdwg.mxu0
      %v1045 = vadd.f32 %v947, %v1031
      %v1046 = vadd.f32 %v948, %v1034
      %v1047 = vadd.f32 %v949, %v1039
      %v1048 = vadd.f32 %v950, %v1042
      %v1049 = vld [vmem:[%s3] sm:$0x1]
      %v1051 = vlaneseq
      %v1052 = vshrl.u32 %v1051, 7
      %v1053 = vsub.s32 0, %v1052
      %v1054 = vrot.slane %v1049, %v1053
      %v1056 = vadd.f32 %v1045, %v1054
      %v1057 = vadd.f32 %v1046, %v1054
      %v1058 = vadd.f32 %v1047, %v1054
      %v1059 = vadd.f32 %v1048, %v1054
      %v1060 = vmul.f32 %v1056, 0.5
      %v1061 = vmul.f32 %v1057, 0.5
      %v1062 = vmul.f32 %v1058, 0.5
      %v1063 = vmul.f32 %v1059, 0.5
      %v1064 = vmul.f32 %v1056, 0.044715
      %v1065 = vmul.f32 %v1057, 0.044715
      %v1066 = vmul.f32 %v1058, 0.044715
      %v1067 = vmul.f32 %v1059, 0.044715
      %v1068 = vmul.f32 %v1064, %v1056
      %v1069 = vmul.f32 %v1065, %v1057
      %v1070 = vmul.f32 %v1066, %v1058
      %v1071 = vmul.f32 %v1067, %v1059
      %v1072 = vmul.f32 %v1068, %v1056
      %v1073 = vmul.f32 %v1069, %v1057
      %v1074 = vmul.f32 %v1070, %v1058
      %v1075 = vmul.f32 %v1071, %v1059
      %v1076 = vadd.f32 %v1056, %v1072
      %v1077 = vadd.f32 %v1057, %v1073
      %v1078 = vadd.f32 %v1058, %v1074
      %v1079 = vadd.f32 %v1059, %v1075
      %v1080 = vmul.f32 %v1076, 0.7978846
      %v1081 = vmul.f32 %v1077, 0.7978846
      %v1082 = vmul.f32 %v1078, 0.7978846
      %v1083 = vmul.f32 %v1079, 0.7978846
      %v1084 = vtanh.pop %v1080
      %v1085 = vtanh.pop %v1081
      %v1086 = vtanh.pop %v1082
      %v1087 = vtanh.pop %v1083
      %v1088 = vadd.f32 %v1084, 1.0
      %v1089 = vadd.f32 %v1085, 1.0
      %v1090 = vadd.f32 %v1086, 1.0
      %v1091 = vadd.f32 %v1087, 1.0
      %v1092 = vmul.f32 %v1060, %v1088
      %v1093 = vmul.f32 %v1061, %v1089
      %v1094 = vmul.f32 %v1062, %v1090
      %v1095 = vmul.f32 %v1063, %v1091
      %v1096 = vld [vmem:[%s261] sm:$0xff]
      %v1097 = vld [vmem:[%s261 + $0x8] sm:$0xff]
      %v1098 = vld [vmem:[%s261 + $0x10] sm:$0xff]
      %v1099 = vld [vmem:[%s261 + $0x18] sm:$0xff]
      %v1100 = vadd.f32 %v1096, %v1092
      %v1101 = vadd.f32 %v1097, %v1093
      %v1102 = vadd.f32 %v1098, %v1094
      %v1103 = vadd.f32 %v1099, %v1095
      %v1104 = vld [vmem:[%s4] sm:$0x1]
      %v1105 = vld [vmem:[%s5] sm:$0x1]
      %v1106 = vsel %vm326, %v1100, 0.0
      %1107 = vadd.xlane.f32.xlu0 %v1106
      %v1108 = vpop.xlane.xlu0 %1107
      %v1109 = vsel %vm326, %v1101, 0.0
      %1110 = vadd.xlane.f32.xlu0 %v1109
      %v1111 = vpop.xlane.xlu0 %1110
      %v1112 = vsel %vm326, %v1102, 0.0
      %1113 = vadd.xlane.f32.xlu0 %v1112
      %v1114 = vpop.xlane.xlu0 %1113
      %v1115 = vsel %vm326, %v1103, 0.0
      %1116 = vadd.xlane.f32.xlu0 %v1115
      %v1117 = vpop.xlane.xlu0 %1116
      %v1118 = vrcp.pop 64.0
      %v1119 = vmul.f32 %v1108, %v1118
      %v1120 = vmul.f32 %v1111, %v1118
      %v1121 = vmul.f32 %v1114, %v1118
      %v1122 = vmul.f32 %v1117, %v1118
      %v1123 = vsub.f32 %v1100, %v1119
      %v1124 = vsub.f32 %v1101, %v1120
      %v1125 = vsub.f32 %v1102, %v1121
      %v1126 = vsub.f32 %v1103, %v1122
      %v1127 = vmul.f32 %v1123, %v1123
      %v1128 = vmul.f32 %v1124, %v1124
      %v1129 = vmul.f32 %v1125, %v1125
      %v1130 = vmul.f32 %v1126, %v1126
      %v1131 = vsel %vm326, %v1127, 0.0
      %1132 = vadd.xlane.f32.xlu0 %v1131
      %v1133 = vpop.xlane.xlu0 %1132
      %v1134 = vsel %vm326, %v1128, 0.0
      %1135 = vadd.xlane.f32.xlu0 %v1134
      %v1136 = vpop.xlane.xlu0 %1135
      %v1137 = vsel %vm326, %v1129, 0.0
      %1138 = vadd.xlane.f32.xlu0 %v1137
      %v1139 = vpop.xlane.xlu0 %1138
      %v1140 = vsel %vm326, %v1130, 0.0
      %1141 = vadd.xlane.f32.xlu0 %v1140
      %v1142 = vpop.xlane.xlu0 %1141
      %v1143 = vmul.f32 %v1133, %v1118
      %v1144 = vmul.f32 %v1136, %v1118
      %v1145 = vmul.f32 %v1139, %v1118
      %v1146 = vmul.f32 %v1142, %v1118
      %v1147 = vadd.f32 %v1143, 1e-05
      %v1148 = vadd.f32 %v1144, 1e-05
      %v1149 = vadd.f32 %v1145, 1e-05
      %v1150 = vadd.f32 %v1146, 1e-05
      %v1151 = vrsqrt.pop %v1147
      %v1152 = vrsqrt.pop %v1148
      %v1153 = vrsqrt.pop %v1149
      %v1154 = vrsqrt.pop %v1150
      %v1155 = vmul.f32 %v1123, %v1151
      %v1156 = vmul.f32 %v1124, %v1152
      %v1157 = vmul.f32 %v1125, %v1153
      %v1158 = vmul.f32 %v1126, %v1154
      %v1160 = vlaneseq
      %v1161 = vshrl.u32 %v1160, 7
      %v1162 = vsub.s32 0, %v1161
      %v1163 = vrot.slane %v1104, %v1162
      %v1165 = vmul.f32 %v1155, %v1163
      %v1166 = vmul.f32 %v1156, %v1163
      %v1167 = vmul.f32 %v1157, %v1163
      %v1168 = vmul.f32 %v1158, %v1163
      %v1170 = vlaneseq
      %v1171 = vshrl.u32 %v1170, 7
      %v1172 = vsub.s32 0, %v1171
      %v1173 = vrot.slane %v1105, %v1172
      %v1175 = vadd.f32 %v1165, %v1173
      %v1176 = vadd.f32 %v1166, %v1173
      %v1177 = vadd.f32 %v1167, %v1173
      %v1178 = vadd.f32 %v1168, %v1173
      %1179 = vst.msk [vmem:[%s271] sm:$0xff] %vm326, %v1175
      %1180 = vst.msk [vmem:[%s271 + $0x8] sm:$0xff] %vm326, %v1176
      %1181 = vst.msk [vmem:[%s271 + $0x10] sm:$0xff] %vm326, %v1177
      %1182 = vst.msk [vmem:[%s271 + $0x18] sm:$0xff] %vm326, %v1178
      %p1183 = scmp.lt.s32.totalorder %s17, 1
      %s1184 = scalar_select %p1183, %s17, 1
      %s1185 = smul.addr %s1184, 4
      %s1186 = smul.addr %s1185, 8
      %s1187 = scalar_lea.vmem %s6, %s1186
      // Predicated region
      $region45: #{_lambda_.9} parent=43 // pred_check
        %p1188 = pneg %p171
      $region46: #{_lambda_.9} parent=43 // pred_check_branch
        %1190 = sbr.rel (%p1188) target = $region48
      $region47: #{_lambda_.9} parent=43 // pred_region
        _
      $region48: #{_lambda_.9} parent=43 // pred_fallthru
        _
    $region44: #{_lambda_.9} parent=5 // pred_fallthru
      _
    %p1191 = scmp.le.s32.totalorder 2, %s12
    // Predicated region
    $region49: #{_lambda_.9} parent=5 // pred_check
      %p1192 = pneg %p1191
    $region50: #{_lambda_.9} parent=5 // pred_check_branch
      %1194 = sbr.rel (%p1192) target = $region52
    $region51: #{_lambda_.9} parent=5 // pred_region
      %s1195 = ssub.s32 %s12, 2
      // Predicated region
      $region53: #{_lambda_.9} parent=51 // pred_check
        %p1196 = pneg %p177
      $region54: #{_lambda_.9} parent=51 // pred_check_branch
        %1198 = sbr.rel (%p1196) target = $region56
      $region55: #{_lambda_.9} parent=51 // pred_region
        %p1199 = scmp.lt.s32.totalorder %s18, 1
        %s1200 = scalar_select %p1199, %s18, 1
        %s1201 = smul.addr %s1200, 4
        %s1202 = smul.addr %s1201, 8
        %s1203 = scalar_lea.vmem %s6, %s1202
      $region56: #{_lambda_.9} parent=51 // pred_fallthru
        _
    $region52: #{_lambda_.9} parent=5 // pred_fallthru
      _
  $region6: #{_lambda_.9} parent=0 // loop_footer
    %s16 = sadd.s32 1, %s12
  $region7: #{_lambda_.9} parent=0 // loop_footer_branch
    %11 = sbr.rel target = $region3
  $region8: #{_lambda_.9} parent=0 // loop_exit
    _

// kernel: _lambda_.11
$region0: #{_lambda_.11}
  #allocation0 [shape = 'u32[]', space=smem, size = 0x4, offset = 0x4, fixed_abs, tag = 'smem constant byte address 0x4 - core index']
  #allocation1 [shape = 'u32[144,128]{1,0:T(1,128)}', space=vmem, size = 0x12000, scoped, tag = 'internal scratch']
  #allocation2 [shape = 'f32[1,1]{1,0:T(1,128)S(1)}', space=vmem, size = 0x200, scoped, tag = 'scoped memory for _lambda_.11']
  %s0 = inlined_call_operand.vmem [shape: f32[64,64], index: 0, kind: input, shape index: {}]
  %s1 = inlined_call_operand.vmem [shape: bf16[64,32], index: 1, kind: input, shape index: {}]
  %s2 = inlined_call_operand.vmem [shape: f32[1,32], index: 2, kind: input, shape index: {}]
  %s3 = inlined_call_operand.vmem [shape: bf16[32,1], index: 3, kind: input, shape index: {}]
  %s4 = inlined_call_operand.<no memory space> [shape: f32[1,1], index: 4, kind: input, shape index: {}]
  %s5 = inlined_call_operand.vmem [shape: f32[2,1], index: 5, kind: output, shape index: {}]
  %s6 = sld [smem:[#allocation0]]
  $region30: #{_lambda_.11} parent=0
    _
  %s8 = ssub.s32 1, %s6
  %s9 = scalar_select 0, %s8, %s6
  %v10 = vstv %s4
  %11 = vst [vmem:[#allocation2] sm:$0x1] %v10
  // Predicated region
  $region2: #{_lambda_.11} parent=0 // pred_check
    _
  $region3: #{_lambda_.11} parent=0 // pred_check_branch
    %13 = sbr.rel (0) target = $region5
  $region4: #{_lambda_.11} parent=0 // pred_region
    _
  $region5: #{_lambda_.11} parent=0 // pred_fallthru
    _
  // Predicated region
  $region6: #{_lambda_.11} parent=0 // pred_check
    _
  $region7: #{_lambda_.11} parent=0 // pred_check_branch
    %15 = sbr.rel (0) target = $region9
  $region8: #{_lambda_.11} parent=0 // pred_region
    _
  $region9: #{_lambda_.11} parent=0 // pred_fallthru
    _
  // Predicated region
  $region10: #{_lambda_.11} parent=0 // pred_check
    _
  $region11: #{_lambda_.11} parent=0 // pred_check_branch
    %17 = sbr.rel (0) target = $region13
  $region12: #{_lambda_.11} parent=0 // pred_region
    _
  $region13: #{_lambda_.11} parent=0 // pred_fallthru
    _
  // Predicated region
  $region14: #{_lambda_.11} parent=0 // pred_check
    _
  $region15: #{_lambda_.11} parent=0 // pred_check_branch
    %19 = sbr.rel (0) target = $region17
  $region16: #{_lambda_.11} parent=0 // pred_region
    _
  $region17: #{_lambda_.11} parent=0 // pred_fallthru
    _
  // Predicated region
  $region18: #{_lambda_.11} parent=0 // pred_check
    _
  $region19: #{_lambda_.11} parent=0 // pred_check_branch
    %21 = sbr.rel (0) target = $region21
  $region20: #{_lambda_.11} parent=0 // pred_region
    _
  $region21: #{_lambda_.11} parent=0 // pred_fallthru
    _
  %v23 = vld [vmem:[%s0] sm:$0xff]
  %v24 = vld [vmem:[%s0 + $0x8] sm:$0xff]
  %v25 = vld [vmem:[%s0 + $0x10] sm:$0xff]
  %v26 = vld [vmem:[%s0 + $0x18] sm:$0xff]
  %v27 = vld [vmem:[%s0 + $0x20] sm:$0xff]
  %v28 = vld [vmem:[%s0 + $0x28] sm:$0xff]
  %v29 = vld [vmem:[%s0 + $0x30] sm:$0xff]
  %v30 = vld [vmem:[%s0 + $0x38] sm:$0xff]
  %v31 = vld [vmem:[%s1] sm:$0xf]
  %v32 = vld [vmem:[%s1 + $0x4] sm:$0xf]
  %v33 = vld [vmem:[%s1 + $0x8] sm:$0xf]
  %v34 = vld [vmem:[%s1 + $0xc] sm:$0xf]
  %v35 = vld [vmem:[%s1 + $0x10] sm:$0xf]
  %v36 = vld [vmem:[%s1 + $0x14] sm:$0xf]
  %v37 = vld [vmem:[%s1 + $0x18] sm:$0xf]
  %v38 = vld [vmem:[%s1 + $0x1c] sm:$0xf]
  %v39 = vpack.c.bf16 %v24, %v23
  %v40 = vpack.c.bf16 %v26, %v25
  %v41 = vpack.c.bf16 %v28, %v27
  %v42 = vpack.c.bf16 %v30, %v29
  %v43 = vld [vmem:[%s2] sm:$0x1]
  %v45 = vlaneseq
  %v46 = vshrl.u32 %v45, 7
  %v47 = vsub.s32 0, %v46
  %v48 = vrot.slane %v43, %v47
  %v58 = vunpack.c.l.b16 %v31
  %v59 = vunpack.c.l.b16 %v32
  %v60 = vunpack.c.l.b16 %v33
  %v61 = vunpack.c.l.b16 %v34
  %v62 = vunpack.c.l.b16 %v35
  %v63 = vunpack.c.l.b16 %v36
  %v64 = vunpack.c.l.b16 %v37
  %v65 = vunpack.c.l.b16 %v38
  %v66 = vpack.c.b16 %v59, %v58
  %v67 = vpack.c.b16 %v61, %v60
  %v68 = vpack.c.b16 %v63, %v62
  %v69 = vpack.c.b16 %v65, %v64
  %vm74 = vcmask 523264
  %v76 = vsel %vm74, %v39, 0
  %v79 = vsel %vm74, %v40, 0
  %v82 = vsel %vm74, %v41, 0
  %v85 = vsel %vm74, %v42, 0
  %87 = vmatprep.subr.bf16.mxu0 0
  %88 = vmatpush1.bf16.msra.mxu0 %v66
  %89 = vmatprep.subr.bf16.mxu0 0
  %90 = vmatpush1.bf16.msra.mxu0 %v67
  %91 = vmatprep.subr.bf16.mxu0 0
  %92 = vmatpush1.bf16.msra.mxu0 %v68
  %93 = vmatprep.subr.bf16.mxu0 0
  %94 = vmatpush1.bf16.msra.mxu0 %v69
  %95 = vmatprep.subr.bf16.mxu0 0
  %96 = vmatpush1.bf16.msra.mxu0 0
  %97 = vmatprep.subr.bf16.mxu0 0
  %98 = vmatpush1.bf16.msra.mxu0 0
  %99 = vmatprep.subr.bf16.mxu0 0
  %100 = vmatpush1.bf16.msra.mxu0 0
  %101 = vmatprep.subr.bf16.mxu0 0
  %102 = vmatpush1.bf16.msra.mxu0 0
  %103 = vmatprep.subr.bf16.mxu0 0
  %104 = vmatpush1.bf16.msra.mxu0 0
  %105 = vmatprep.subr.bf16.mxu0 0
  %106 = vmatpush1.bf16.msra.mxu0 0
  %107 = vmatprep.subr.bf16.mxu0 0
  %108 = vmatpush1.bf16.msra.mxu0 0
  %109 = vmatprep.subr.bf16.mxu0 0
  %110 = vmatpush1.bf16.msra.mxu0 0
  %111 = vmatprep.subr.bf16.mxu0 0
  %112 = vmatpush1.bf16.msra.mxu0 0
  %113 = vmatprep.subr.bf16.mxu0 0
  %114 = vmatpush1.bf16.msra.mxu0 0
  %115 = vmatprep.subr.bf16.mxu0 0
  %116 = vmatpush1.bf16.msra.mxu0 0
  %117 = vmatprep.subr.bf16.mxu0 0
  %118 = vmatpush1.bf16.msra.mxu0 0
  %119 = vmatprep.mubr.bf16.mxu0 0
  %120 = vmatmul.mubr.bf16.gmra.mrb[0].mxu0 %v76
  %v121 = vpop.f32.mrb[0].mxu0
  %v122 = vadd.f32 %v48, %v121
  %v123 = vpop.f32.mrb[0].mxu0
  %v124 = vpop.f32.mrb[0].mxu0
  %v125 = vadd.f32 %v48, %v124
  %v126 = vpop.f32.mrb[0].mxu0
  %127 = vmatprep.mubr.bf16.mxu0 0
  %128 = vmatmul.mubr.bf16.gmra.mrb[0].mxu0 %v79
  %v129 = vpop.f32.mrb[0].mxu0
  %v130 = vadd.f32 %v48, %v129
  %v131 = vpop.f32.mrb[0].mxu0
  %v132 = vpop.f32.mrb[0].mxu0
  %v133 = vadd.f32 %v48, %v132
  %v134 = vpop.f32.mrb[0].mxu0
  %135 = vmatprep.mubr.bf16.mxu0 0
  %136 = vmatmul.mubr.bf16.gmra.mrb[0].mxu0 %v82
  %v137 = vpop.f32.mrb[0].mxu0
  %v138 = vadd.f32 %v48, %v137
  %v139 = vpop.f32.mrb[0].mxu0
  %v140 = vpop.f32.mrb[0].mxu0
  %v141 = vadd.f32 %v48, %v140
  %v142 = vpop.f32.mrb[0].mxu0
  %143 = vmatprep.mubr.bf16.mxu0 0
  %144 = vmatmul.mubr.bf16.gmra.mrb[0].mxu0 %v85
  %v145 = vpop.f32.mrb[0].mxu0
  %v146 = vadd.f32 %v48, %v145
  %v147 = vpop.f32.mrb[0].mxu0
  %v148 = vpop.f32.mrb[0].mxu0
  %v149 = vadd.f32 %v48, %v148
  %v150 = vpop.f32.mrb[0].mxu0
  %151 = vdwg.mxu0
  %vm152 = vcmask 261120
  %v153 = vsel %vm152, %v122, 0.0
  %v154 = vsel %vm152, %v125, 0.0
  %v155 = vadd.f32 %v153, %v154
  %v156 = vsel %vm152, %v130, 0.0
  %v157 = vadd.f32 %v155, %v156
  %v158 = vsel %vm152, %v133, 0.0
  %v159 = vadd.f32 %v157, %v158
  %v160 = vrot.slane %v159, 4
  %v161 = vadd.f32 %v159, %v160
  %v162 = vrot.slane %v161, 2
  %v163 = vadd.f32 %v161, %v162
  %v164 = vrot.slane %v163, 1
  %v165 = vadd.f32 %v163, %v164
  %v166 = vsel %vm152, %v138, 0.0
  %v167 = vsel %vm152, %v141, 0.0
  %v168 = vadd.f32 %v166, %v167
  %v169 = vsel %vm152, %v146, 0.0
  %v170 = vadd.f32 %v168, %v169
  %v171 = vsel %vm152, %v149, 0.0
  %v172 = vadd.f32 %v170, %v171
  %v173 = vrot.slane %v172, 4
  %v174 = vadd.f32 %v172, %v173
  %v175 = vrot.slane %v174, 2
  %v176 = vadd.f32 %v174, %v175
  %v177 = vrot.slane %v176, 1
  %v178 = vadd.f32 %v176, %v177
  %v179 = vrcp.pop 32.0
  %v180 = vmul.f32 %v165, %v179
  %v181 = vmul.f32 %v178, %v179
  %v182 = vld [vmem:[%s3] sm:$0xf]
  %v183 = vld [vmem:[%s3 + $0x4] sm:$0xf]
  %v184 = vld [vmem:[%s3 + $0x8] sm:$0xf]
  %v185 = vld [vmem:[%s3 + $0xc] sm:$0xf]
  %v186 = vpack.c.bf16 %v180, %v180
  %v187 = vpack.c.bf16 %v181, %v181
  %v188 = vld [vmem:[#allocation2] sm:$0x1]
  %v190 = vlaneseq
  %v191 = vshrl.u32 %v190, 7
  %v192 = vsub.s32 0, %v191
  %v193 = vrot.slane %v188, %v192
  %v197 = vunpack.c.l.b16 %v186
  %v198 = vunpack.c.l.b16 %v187
  %vm199 = vcmask 1041409
  %v200 = vsel %vm199, %v198, %v197
  %v201 = vpack.c.b16 %v200, %v200
  %v206 = vunpack.c.l.b16 %v182
  %v207 = vunpack.c.l.b16 %v183
  %v208 = vunpack.c.l.b16 %v184
  %v209 = vunpack.c.l.b16 %v185
  %v210 = vpack.c.b16 %v207, %v206
  %v211 = vpack.c.b16 %v209, %v208
  %v215 = vsel %vm152, %v201, 0
  %217 = vmatprep.subr.bf16.mxu0 0
  %218 = vmatpush1.bf16.msra.mxu0 %v210
  %219 = vmatprep.subr.bf16.mxu0 0
  %220 = vmatpush1.bf16.msra.mxu0 %v211
  %221 = vmatprep.subr.bf16.mxu0 0
  %222 = vmatpush1.bf16.msra.mxu0 0
  %223 = vmatprep.subr.bf16.mxu0 0
  %224 = vmatpush1.bf16.msra.mxu0 0
  %225 = vmatprep.subr.bf16.mxu0 0
  %226 = vmatpush1.bf16.msra.mxu0 0
  %227 = vmatprep.subr.bf16.mxu0 0
  %228 = vmatpush1.bf16.msra.mxu0 0
  %229 = vmatprep.subr.bf16.mxu0 0
  %230 = vmatpush1.bf16.msra.mxu0 0
  %231 = vmatprep.subr.bf16.mxu0 0
  %232 = vmatpush1.bf16.msra.mxu0 0
  %233 = vmatprep.subr.bf16.mxu0 0
  %234 = vmatpush1.bf16.msra.mxu0 0
  %235 = vmatprep.subr.bf16.mxu0 0
  %236 = vmatpush1.bf16.msra.mxu0 0
  %237 = vmatprep.subr.bf16.mxu0 0
  %238 = vmatpush1.bf16.msra.mxu0 0
  %239 = vmatprep.subr.bf16.mxu0 0
  %240 = vmatpush1.bf16.msra.mxu0 0
  %241 = vmatprep.subr.bf16.mxu0 0
  %242 = vmatpush1.bf16.msra.mxu0 0
  %243 = vmatprep.subr.bf16.mxu0 0
  %244 = vmatpush1.bf16.msra.mxu0 0
  %245 = vmatprep.subr.bf16.mxu0 0
  %246 = vmatpush1.bf16.msra.mxu0 0
  %247 = vmatprep.subr.bf16.mxu0 0
  %248 = vmatpush1.bf16.msra.mxu0 0
  %249 = vmatprep.mubr.bf16.mxu0 0
  %250 = vmatmul.mubr.bf16.gmra.mrb[0].mxu0 %v215
  %v251 = vpop.f32.mrb[0].mxu0
  %v252 = vadd.f32 %v193, %v251
  %v253 = vpop.f32.mrb[0].mxu0
  %v254 = vpop.f32.mrb[0].mxu0
  %v255 = vpop.f32.mrb[0].mxu0
  %256 = vdwg.mxu0
  %vm257 = vcmask 1024
  %258 = vst.msk [vmem:[%s5] sm:$0x3] %vm257, %v252
  // Predicated region
  $region22: #{_lambda_.11} parent=0 // pred_check
    _
  $region23: #{_lambda_.11} parent=0 // pred_check_branch
    %260 = sbr.rel (0) target = $region25
  $region24: #{_lambda_.11} parent=0 // pred_region
    _
  $region25: #{_lambda_.11} parent=0 // pred_fallthru
    _
  // Predicated region
  $region26: #{_lambda_.11} parent=0 // pred_check
    _
  $region27: #{_lambda_.11} parent=0 // pred_check_branch
    %262 = sbr.rel (0) target = $region29
  $region28: #{_lambda_.11} parent=0 // pred_region
    _
  $region29: #{_lambda_.11} parent=0 // pred_fallthru
    _

// kernel: _lambda_.10
$region0: #{_lambda_.10}
  #allocation0 [shape = 'u32[]', space=smem, size = 0x4, offset = 0x4, fixed_abs, tag = 'smem constant byte address 0x4 - core index']
  #allocation1 [shape = 'u32[144,128]{1,0:T(1,128)}', space=vmem, size = 0x12000, scoped, tag = 'internal scratch']
  %s0 = inlined_call_operand.vmem [shape: f32[64,64], index: 0, kind: input, shape index: {}]
  %s1 = inlined_call_operand.vmem [shape: bf16[2,64,192], index: 1, kind: input, shape index: {}]
  %s2 = inlined_call_operand.vmem [shape: f32[2,1,192], index: 2, kind: input, shape index: {}]
  %s3 = inlined_call_operand.vmem [shape: bf16[2,64,64], index: 3, kind: input, shape index: {}]
  %s4 = inlined_call_operand.vmem [shape: f32[2,1,64], index: 4, kind: input, shape index: {}]
  %s5 = inlined_call_operand.vmem [shape: f32[2,1,64], index: 5, kind: input, shape index: {}]
  %s6 = inlined_call_operand.vmem [shape: f32[2,1,64], index: 6, kind: input, shape index: {}]
  %s7 = inlined_call_operand.vmem [shape: bf16[2,64,128], index: 7, kind: input, shape index: {}]
  %s8 = inlined_call_operand.vmem [shape: f32[2,1,128], index: 8, kind: input, shape index: {}]
  %s9 = inlined_call_operand.vmem [shape: bf16[2,128,64], index: 9, kind: input, shape index: {}]
  %s10 = inlined_call_operand.vmem [shape: f32[2,1,64], index: 10, kind: input, shape index: {}]
  %s11 = inlined_call_operand.vmem [shape: f32[2,1,64], index: 11, kind: input, shape index: {}]
  %s12 = inlined_call_operand.vmem [shape: f32[2,1,64], index: 12, kind: input, shape index: {}]
  %s13 = inlined_call_operand.vmem [shape: f32[64,64], index: 13, kind: output, shape index: {}]
  %s14 = sld [smem:[#allocation0]]
  $region89: #{_lambda_.10} parent=0
    _
  %s16 = ssub.s32 1, %s14
  %s17 = scalar_select 0, %s16, %s14
  loop: start=0, step=1, limit=4
  $region2: #{_lambda_.10} parent=0 // loop_pre_header
    _
  $region3: #{_lambda_.10} parent=0 // loop_header
    %s19 = sphi 0, %s23
    %p20 = scmp.ge.s32.totalorder %s19, 4
    %s27 = sphi 0, %s27
    %s29 = sphi 0, %s27
    %s30 = sphi 0, %s29
    %s44 = sphi 0, %s30
    %s50 = sphi 0, %s52
    %s53 = sphi 0, %s50
    %s54 = sphi 0, %s53
    %s70 = sphi 0, %s54
    %s76 = sphi 0, %s78
    %s79 = sphi 0, %s76
    %s80 = sphi 0, %s79
    %s96 = sphi 0, %s80
    %s102 = sphi 0, %s104
    %s105 = sphi 0, %s102
    %s106 = sphi 0, %s105
    %s122 = sphi 0, %s106
    %s128 = sphi 0, %s130
    %s131 = sphi 0, %s128
    %s132 = sphi 0, %s131
    %s148 = sphi 0, %s132
    %s154 = sphi 0, %s156
    %s157 = sphi 0, %s154
    %s158 = sphi 0, %s157
    %s174 = sphi 0, %s158
    %s180 = sphi 0, %s182
    %s183 = sphi 0, %s180
    %s184 = sphi 0, %s183
    %s200 = sphi 0, %s184
    %s206 = sphi 0, %s208
    %s209 = sphi 0, %s206
    %s210 = sphi 0, %s209
    %s226 = sphi 0, %s210
    %s232 = sphi 0, %s234
    %s235 = sphi 0, %s232
    %s236 = sphi 0, %s235
    %s252 = sphi 0, %s236
    %s258 = sphi 0, %s260
    %s261 = sphi 0, %s258
    %s262 = sphi 0, %s261
    %s278 = sphi 0, %s262
    %s284 = sphi 0, %s286
    %s287 = sphi 0, %s284
    %s288 = sphi 0, %s287
    %s304 = sphi 0, %s288
    %s310 = sphi 0, %s312
    %s313 = sphi 0, %s310
    %s314 = sphi 0, %s313
    %s330 = sphi 0, %s314
    %s336 = sphi 0, %s338
    %s339 = sphi 0, %s336
    %s340 = sphi 0, %s339
    %s356 = sphi 0, %s340
    %s360 = sphi 0, %s360
    %s362 = sphi 0, %s360
    %s363 = sphi 0, %s362
    %s377 = sphi 0, %s363
  $region4: #{_lambda_.10} parent=0 // loop_header_branch
    %22 = sbr.rel (%p20) target = $region8
  $region5: #{_lambda_.10} parent=0 // loop_body
    %s24 = ssub.s32 %s19, 1
    %s25 = ssub.s32 %s19, 2
    %s26 = sadd.s32 %s19, 1
    %s28 = sadd.s32 %s27, 1
    %p31 = scmp.eq.s32.totalorder %s19, 1
    %p32 = scmp.ne.s32.totalorder %s27, %s29
    %p33 = scmp.eq.s32.totalorder %s19, 0
    %p34 = por %p32, %p33
    %p35 = scmp.ne.s32.totalorder %s27, %s29
    %p36 = scmp.eq.s32.totalorder %s24, 1
    %p37 = por %p35, %p36
    %p38 = scmp.ne.s32.totalorder %s29, %s30
    %p39 = scmp.eq.s32.totalorder %s24, 0
    %p40 = por %p38, %p39
    %p41 = scmp.ne.s32.totalorder %s29, %s30
    %p42 = scmp.eq.s32.totalorder %s25, 1
    %p43 = por %p41, %p42
    %p45 = scmp.ne.s32.totalorder %s30, %s44
    %p46 = scmp.eq.s32.totalorder %s25, 0
    %p47 = por %p45, %p46
    %s48 = ssub.s32 %s19, %s26
    %p49 = scmp.eq.s32.totalorder %s48, 0
    %s51 = sadd.s32 %s50, 1
    %s52 = scalar_select %p49, %s50, %s51
    %p55 = pneg %p49
    %p56 = scmp.eq.s32.totalorder %s19, 1
    %p57 = por %p55, %p56
    %p58 = scmp.ne.s32.totalorder %s50, %s53
    %p59 = scmp.eq.s32.totalorder %s19, 0
    %p60 = por %p58, %p59
    %p61 = scmp.ne.s32.totalorder %s50, %s53
    %p62 = scmp.eq.s32.totalorder %s24, 1
    %p63 = por %p61, %p62
    %p64 = scmp.ne.s32.totalorder %s53, %s54
    %p65 = scmp.eq.s32.totalorder %s24, 0
    %p66 = por %p64, %p65
    %p67 = scmp.ne.s32.totalorder %s53, %s54
    %p68 = scmp.eq.s32.totalorder %s25, 1
    %p69 = por %p67, %p68
    %p71 = scmp.ne.s32.totalorder %s54, %s70
    %p72 = scmp.eq.s32.totalorder %s25, 0
    %p73 = por %p71, %p72
    %s74 = ssub.s32 %s19, %s26
    %p75 = scmp.eq.s32.totalorder %s74, 0
    %s77 = sadd.s32 %s76, 1
    %s78 = scalar_select %p75, %s76, %s77
    %p81 = pneg %p75
    %p82 = scmp.eq.s32.totalorder %s19, 1
    %p83 = por %p81, %p82
    %p84 = scmp.ne.s32.totalorder %s76, %s79
    %p85 = scmp.eq.s32.totalorder %s19, 0
    %p86 = por %p84, %p85
    %p87 = scmp.ne.s32.totalorder %s76, %s79
    %p88 = scmp.eq.s32.totalorder %s24, 1
    %p89 = por %p87, %p88
    %p90 = scmp.ne.s32.totalorder %s79, %s80
    %p91 = scmp.eq.s32.totalorder %s24, 0
    %p92 = por %p90, %p91
    %p93 = scmp.ne.s32.totalorder %s79, %s80
    %p94 = scmp.eq.s32.totalorder %s25, 1
    %p95 = por %p93, %p94
    %p97 = scmp.ne.s32.totalorder %s80, %s96
    %p98 = scmp.eq.s32.totalorder %s25, 0
    %p99 = por %p97, %p98
    %s100 = ssub.s32 %s19, %s26
    %p101 = scmp.eq.s32.totalorder %s100, 0
    %s103 = sadd.s32 %s102, 1
    %s104 = scalar_select %p101, %s102, %s103
    %p107 = pneg %p101
    %p108 = scmp.eq.s32.totalorder %s19, 1
    %p109 = por %p107, %p108
    %p110 = scmp.ne.s32.totalorder %s102, %s105
    %p111 = scmp.eq.s32.totalorder %s19, 0
    %p112 = por %p110, %p111
    %p113 = scmp.ne.s32.totalorder %s102, %s105
    %p114 = scmp.eq.s32.totalorder %s24, 1
    %p115 = por %p113, %p114
    %p116 = scmp.ne.s32.totalorder %s105, %s106
    %p117 = scmp.eq.s32.totalorder %s24, 0
    %p118 = por %p116, %p117
    %p119 = scmp.ne.s32.totalorder %s105, %s106
    %p120 = scmp.eq.s32.totalorder %s25, 1
    %p121 = por %p119, %p120
    %p123 = scmp.ne.s32.totalorder %s106, %s122
    %p124 = scmp.eq.s32.totalorder %s25, 0
    %p125 = por %p123, %p124
    %s126 = ssub.s32 %s19, %s26
    %p127 = scmp.eq.s32.totalorder %s126, 0
    %s129 = sadd.s32 %s128, 1
    %s130 = scalar_select %p127, %s128, %s129
    %p133 = pneg %p127
    %p134 = scmp.eq.s32.totalorder %s19, 1
    %p135 = por %p133, %p134
    %p136 = scmp.ne.s32.totalorder %s128, %s131
    %p137 = scmp.eq.s32.totalorder %s19, 0
    %p138 = por %p136, %p137
    %p139 = scmp.ne.s32.totalorder %s128, %s131
    %p140 = scmp.eq.s32.totalorder %s24, 1
    %p141 = por %p139, %p140
    %p142 = scmp.ne.s32.totalorder %s131, %s132
    %p143 = scmp.eq.s32.totalorder %s24, 0
    %p144 = por %p142, %p143
    %p145 = scmp.ne.s32.totalorder %s131, %s132
    %p146 = scmp.eq.s32.totalorder %s25, 1
    %p147 = por %p145, %p146
    %p149 = scmp.ne.s32.totalorder %s132, %s148
    %p150 = scmp.eq.s32.totalorder %s25, 0
    %p151 = por %p149, %p150
    %s152 = ssub.s32 %s19, %s26
    %p153 = scmp.eq.s32.totalorder %s152, 0
    %s155 = sadd.s32 %s154, 1
    %s156 = scalar_select %p153, %s154, %s155
    %p159 = pneg %p153
    %p160 = scmp.eq.s32.totalorder %s19, 1
    %p161 = por %p159, %p160
    %p162 = scmp.ne.s32.totalorder %s154, %s157
    %p163 = scmp.eq.s32.totalorder %s19, 0
    %p164 = por %p162, %p163
    %p165 = scmp.ne.s32.totalorder %s154, %s157
    %p166 = scmp.eq.s32.totalorder %s24, 1
    %p167 = por %p165, %p166
    %p168 = scmp.ne.s32.totalorder %s157, %s158
    %p169 = scmp.eq.s32.totalorder %s24, 0
    %p170 = por %p168, %p169
    %p171 = scmp.ne.s32.totalorder %s157, %s158
    %p172 = scmp.eq.s32.totalorder %s25, 1
    %p173 = por %p171, %p172
    %p175 = scmp.ne.s32.totalorder %s158, %s174
    %p176 = scmp.eq.s32.totalorder %s25, 0
    %p177 = por %p175, %p176
    %s178 = ssub.s32 %s19, %s26
    %p179 = scmp.eq.s32.totalorder %s178, 0
    %s181 = sadd.s32 %s180, 1
    %s182 = scalar_select %p179, %s180, %s181
    %p185 = pneg %p179
    %p186 = scmp.eq.s32.totalorder %s19, 1
    %p187 = por %p185, %p186
    %p188 = scmp.ne.s32.totalorder %s180, %s183
    %p189 = scmp.eq.s32.totalorder %s19, 0
    %p190 = por %p188, %p189
    %p191 = scmp.ne.s32.totalorder %s180, %s183
    %p192 = scmp.eq.s32.totalorder %s24, 1
    %p193 = por %p191, %p192
    %p194 = scmp.ne.s32.totalorder %s183, %s184
    %p195 = scmp.eq.s32.totalorder %s24, 0
    %p196 = por %p194, %p195
    %p197 = scmp.ne.s32.totalorder %s183, %s184
    %p198 = scmp.eq.s32.totalorder %s25, 1
    %p199 = por %p197, %p198
    %p201 = scmp.ne.s32.totalorder %s184, %s200
    %p202 = scmp.eq.s32.totalorder %s25, 0
    %p203 = por %p201, %p202
    %s204 = ssub.s32 %s19, %s26
    %p205 = scmp.eq.s32.totalorder %s204, 0
    %s207 = sadd.s32 %s206, 1
    %s208 = scalar_select %p205, %s206, %s207
    %p211 = pneg %p205
    %p212 = scmp.eq.s32.totalorder %s19, 1
    %p213 = por %p211, %p212
    %p214 = scmp.ne.s32.totalorder %s206, %s209
    %p215 = scmp.eq.s32.totalorder %s19, 0
    %p216 = por %p214, %p215
    %p217 = scmp.ne.s32.totalorder %s206, %s209
    %p218 = scmp.eq.s32.totalorder %s24, 1
    %p219 = por %p217, %p218
    %p220 = scmp.ne.s32.totalorder %s209, %s210
    %p221 = scmp.eq.s32.totalorder %s24, 0
    %p222 = por %p220, %p221
    %p223 = scmp.ne.s32.totalorder %s209, %s210
    %p224 = scmp.eq.s32.totalorder %s25, 1
    %p225 = por %p223, %p224
    %p227 = scmp.ne.s32.totalorder %s210, %s226
    %p228 = scmp.eq.s32.totalorder %s25, 0
    %p229 = por %p227, %p228
    %s230 = ssub.s32 %s19, %s26
    %p231 = scmp.eq.s32.totalorder %s230, 0
    %s233 = sadd.s32 %s232, 1
    %s234 = scalar_select %p231, %s232, %s233
    %p237 = pneg %p231
    %p238 = scmp.eq.s32.totalorder %s19, 1
    %p239 = por %p237, %p238
    %p240 = scmp.ne.s32.totalorder %s232, %s235
    %p241 = scmp.eq.s32.totalorder %s19, 0
    %p242 = por %p240, %p241
    %p243 = scmp.ne.s32.totalorder %s232, %s235
    %p244 = scmp.eq.s32.totalorder %s24, 1
    %p245 = por %p243, %p244
    %p246 = scmp.ne.s32.totalorder %s235, %s236
    %p247 = scmp.eq.s32.totalorder %s24, 0
    %p248 = por %p246, %p247
    %p249 = scmp.ne.s32.totalorder %s235, %s236
    %p250 = scmp.eq.s32.totalorder %s25, 1
    %p251 = por %p249, %p250
    %p253 = scmp.ne.s32.totalorder %s236, %s252
    %p254 = scmp.eq.s32.totalorder %s25, 0
    %p255 = por %p253, %p254
    %s256 = ssub.s32 %s19, %s26
    %p257 = scmp.eq.s32.totalorder %s256, 0
    %s259 = sadd.s32 %s258, 1
    %s260 = scalar_select %p257, %s258, %s259
    %p263 = pneg %p257
    %p264 = scmp.eq.s32.totalorder %s19, 1
    %p265 = por %p263, %p264
    %p266 = scmp.ne.s32.totalorder %s258, %s261
    %p267 = scmp.eq.s32.totalorder %s19, 0
    %p268 = por %p266, %p267
    %p269 = scmp.ne.s32.totalorder %s258, %s261
    %p270 = scmp.eq.s32.totalorder %s24, 1
    %p271 = por %p269, %p270
    %p272 = scmp.ne.s32.totalorder %s261, %s262
    %p273 = scmp.eq.s32.totalorder %s24, 0
    %p274 = por %p272, %p273
    %p275 = scmp.ne.s32.totalorder %s261, %s262
    %p276 = scmp.eq.s32.totalorder %s25, 1
    %p277 = por %p275, %p276
    %p279 = scmp.ne.s32.totalorder %s262, %s278
    %p280 = scmp.eq.s32.totalorder %s25, 0
    %p281 = por %p279, %p280
    %s282 = ssub.s32 %s19, %s26
    %p283 = scmp.eq.s32.totalorder %s282, 0
    %s285 = sadd.s32 %s284, 1
    %s286 = scalar_select %p283, %s284, %s285
    %p289 = pneg %p283
    %p290 = scmp.eq.s32.totalorder %s19, 1
    %p291 = por %p289, %p290
    %p292 = scmp.ne.s32.totalorder %s284, %s287
    %p293 = scmp.eq.s32.totalorder %s19, 0
    %p294 = por %p292, %p293
    %p295 = scmp.ne.s32.totalorder %s284, %s287
    %p296 = scmp.eq.s32.totalorder %s24, 1
    %p297 = por %p295, %p296
    %p298 = scmp.ne.s32.totalorder %s287, %s288
    %p299 = scmp.eq.s32.totalorder %s24, 0
    %p300 = por %p298, %p299
    %p301 = scmp.ne.s32.totalorder %s287, %s288
    %p302 = scmp.eq.s32.totalorder %s25, 1
    %p303 = por %p301, %p302
    %p305 = scmp.ne.s32.totalorder %s288, %s304
    %p306 = scmp.eq.s32.totalorder %s25, 0
    %p307 = por %p305, %p306
    %s308 = ssub.s32 %s19, %s26
    %p309 = scmp.eq.s32.totalorder %s308, 0
    %s311 = sadd.s32 %s310, 1
    %s312 = scalar_select %p309, %s310, %s311
    %p315 = pneg %p309
    %p316 = scmp.eq.s32.totalorder %s19, 1
    %p317 = por %p315, %p316
    %p318 = scmp.ne.s32.totalorder %s310, %s313
    %p319 = scmp.eq.s32.totalorder %s19, 0
    %p320 = por %p318, %p319
    %p321 = scmp.ne.s32.totalorder %s310, %s313
    %p322 = scmp.eq.s32.totalorder %s24, 1
    %p323 = por %p321, %p322
    %p324 = scmp.ne.s32.totalorder %s313, %s314
    %p325 = scmp.eq.s32.totalorder %s24, 0
    %p326 = por %p324, %p325
    %p327 = scmp.ne.s32.totalorder %s313, %s314
    %p328 = scmp.eq.s32.totalorder %s25, 1
    %p329 = por %p327, %p328
    %p331 = scmp.ne.s32.totalorder %s314, %s330
    %p332 = scmp.eq.s32.totalorder %s25, 0
    %p333 = por %p331, %p332
    %s334 = ssub.s32 %s19, %s26
    %p335 = scmp.eq.s32.totalorder %s334, 0
    %s337 = sadd.s32 %s336, 1
    %s338 = scalar_select %p335, %s336, %s337
    %p341 = pneg %p335
    %p342 = scmp.eq.s32.totalorder %s19, 1
    %p343 = por %p341, %p342
    %p344 = scmp.ne.s32.totalorder %s336, %s339
    %p345 = scmp.eq.s32.totalorder %s19, 0
    %p346 = por %p344, %p345
    %p347 = scmp.ne.s32.totalorder %s336, %s339
    %p348 = scmp.eq.s32.totalorder %s24, 1
    %p349 = por %p347, %p348
    %p350 = scmp.ne.s32.totalorder %s339, %s340
    %p351 = scmp.eq.s32.totalorder %s24, 0
    %p352 = por %p350, %p351
    %p353 = scmp.ne.s32.totalorder %s339, %s340
    %p354 = scmp.eq.s32.totalorder %s25, 1
    %p355 = por %p353, %p354
    %p357 = scmp.ne.s32.totalorder %s340, %s356
    %p358 = scmp.eq.s32.totalorder %s25, 0
    %p359 = por %p357, %p358
    %s361 = sadd.s32 %s360, 1
    %p364 = scmp.eq.s32.totalorder %s19, 1
    %p365 = scmp.ne.s32.totalorder %s360, %s362
    %p366 = scmp.eq.s32.totalorder %s19, 0
    %p367 = por %p365, %p366
    %p368 = scmp.ne.s32.totalorder %s360, %s362
    %p369 = scmp.eq.s32.totalorder %s24, 1
    %p370 = por %p368, %p369
    %p371 = scmp.ne.s32.totalorder %s362, %s363
    %p372 = scmp.eq.s32.totalorder %s24, 0
    %p373 = por %p371, %p372
    %p374 = scmp.ne.s32.totalorder %s362, %s363
    %p375 = scmp.eq.s32.totalorder %s25, 1
    %p376 = por %p374, %p375
    %p378 = scmp.ne.s32.totalorder %s363, %s377
    %p379 = scmp.eq.s32.totalorder %s25, 0
    %p380 = por %p378, %p379
    %p381 = scmp.le.s32.totalorder 1, %s19
    %p382 = scmp.lt.s32.totalorder %s19, 3
    %p383 = pnand %p381, %p382
    %p384 = pneg %p383
    // Predicated region
    $region9: #{_lambda_.10} parent=5 // pred_check
      _
    $region10: #{_lambda_.10} parent=5 // pred_check_branch
      %386 = sbr.rel (%p383) target = $region12
    $region11: #{_lambda_.10} parent=5 // pred_region
      %s387 = ssub.s32 %s19, 1
      // Predicated region
      $region13: #{_lambda_.10} parent=11 // pred_check
        %p388 = pneg %p40
      $region14: #{_lambda_.10} parent=11 // pred_check_branch
        %390 = sbr.rel (%p388) target = $region16
      $region15: #{_lambda_.10} parent=11 // pred_region
        _
      $region16: #{_lambda_.10} parent=11 // pred_fallthru
        _
    $region12: #{_lambda_.10} parent=5 // pred_fallthru
      _
    %p391 = scmp.lt.s32.totalorder %s19, 2
    // Predicated region
    $region17: #{_lambda_.10} parent=5 // pred_check
      %p392 = pneg %p391
    $region18: #{_lambda_.10} parent=5 // pred_check_branch
      %394 = sbr.rel (%p392) target = $region20
    $region19: #{_lambda_.10} parent=5 // pred_region
      // Predicated region
      $region21: #{_lambda_.10} parent=19 // pred_check
        %p395 = pneg %p60
      $region22: #{_lambda_.10} parent=19 // pred_check_branch
        %397 = sbr.rel (%p395) target = $region24
      $region23: #{_lambda_.10} parent=19 // pred_region
        %p398 = scmp.lt.s32.totalorder %s19, 1
        %s399 = scalar_select %p398, %s19, 1
        %s400 = smul.addr %s399, 16
        %s401 = smul.addr %s400, 4
        %s402 = scalar_lea.vmem %s1, %s401
      $region24: #{_lambda_.10} parent=19 // pred_fallthru
        _
      // Predicated region
      $region25: #{_lambda_.10} parent=19 // pred_check
        %p403 = pneg %p86
      $region26: #{_lambda_.10} parent=19 // pred_check_branch
        %405 = sbr.rel (%p403) target = $region28
      $region27: #{_lambda_.10} parent=19 // pred_region
        %p406 = scmp.lt.s32.totalorder %s19, 1
        %s407 = scalar_select %p406, %s19, 1
        %s408 = smul.addr %s407, 2
        %s409 = scalar_lea.vmem %s2, %s408
      $region28: #{_lambda_.10} parent=19 // pred_fallthru
        _
      // Predicated region
      $region29: #{_lambda_.10} parent=19 // pred_check
        %p410 = pneg %p112
      $region30: #{_lambda_.10} parent=19 // pred_check_branch
        %412 = sbr.rel (%p410) target = $region32
      $region31: #{_lambda_.10} parent=19 // pred_region
        %p413 = scmp.lt.s32.totalorder %s19, 1
        %s414 = scalar_select %p413, %s19, 1
        %s415 = smul.addr %s414, 8
        %s416 = smul.addr %s415, 4
        %s417 = scalar_lea.vmem %s3, %s416
      $region32: #{_lambda_.10} parent=19 // pred_fallthru
        _
      // Predicated region
      $region33: #{_lambda_.10} parent=19 // pred_check
        %p418 = pneg %p138
      $region34: #{_lambda_.10} parent=19 // pred_check_branch
        %420 = sbr.rel (%p418) target = $region36
      $region35: #{_lambda_.10} parent=19 // pred_region
        %p421 = scmp.lt.s32.totalorder %s19, 1
        %s422 = scalar_select %p421, %s19, 1
        %s423 = scalar_lea.vmem %s4, %s422
      $region36: #{_lambda_.10} parent=19 // pred_fallthru
        _
      // Predicated region
      $region37: #{_lambda_.10} parent=19 // pred_check
        %p424 = pneg %p164
      $region38: #{_lambda_.10} parent=19 // pred_check_branch
        %426 = sbr.rel (%p424) target = $region40
      $region39: #{_lambda_.10} parent=19 // pred_region
        %p427 = scmp.lt.s32.totalorder %s19, 1
        %s428 = scalar_select %p427, %s19, 1
        %s429 = scalar_lea.vmem %s5, %s428
      $region40: #{_lambda_.10} parent=19 // pred_fallthru
        _
      // Predicated region
      $region41: #{_lambda_.10} parent=19 // pred_check
        %p430 = pneg %p190
      $region42: #{_lambda_.10} parent=19 // pred_check_branch
        %432 = sbr.rel (%p430) target = $region44
      $region43: #{_lambda_.10} parent=19 // pred_region
        %p433 = scmp.lt.s32.totalorder %s19, 1
        %s434 = scalar_select %p433, %s19, 1
        %s435 = scalar_lea.vmem %s6, %s434
      $region44: #{_lambda_.10} parent=19 // pred_fallthru
        _
      // Predicated region
      $region45: #{_lambda_.10} parent=19 // pred_check
        %p436 = pneg %p216
      $region46: #{_lambda_.10} parent=19 // pred_check_branch
        %438 = sbr.rel (%p436) target = $region48
      $region47: #{_lambda_.10} parent=19 // pred_region
        %p439 = scmp.lt.s32.totalorder %s19, 1
        %s440 = scalar_select %p439, %s19, 1
        %s441 = smul.addr %s440, 8
        %s442 = smul.addr %s441, 4
        %s443 = scalar_lea.vmem %s7, %s442
      $region48: #{_lambda_.10} parent=19 // pred_fallthru
        _
      // Predicated region
      $region49: #{_lambda_.10} parent=19 // pred_check
        %p444 = pneg %p242
      $region50: #{_lambda_.10} parent=19 // pred_check_branch
        %446 = sbr.rel (%p444) target = $region52
      $region51: #{_lambda_.10} parent=19 // pred_region
        %p447 = scmp.lt.s32.totalorder %s19, 1
        %s448 = scalar_select %p447, %s19, 1
        %s449 = scalar_lea.vmem %s8, %s448
      $region52: #{_lambda_.10} parent=19 // pred_fallthru
        _
      // Predicated region
      $region53: #{_lambda_.10} parent=19 // pred_check
        %p450 = pneg %p268
      $region54: #{_lambda_.10} parent=19 // pred_check_branch
        %452 = sbr.rel (%p450) target = $region56
      $region55: #{_lambda_.10} parent=19 // pred_region
        %p453 = scmp.lt.s32.totalorder %s19, 1
        %s454 = scalar_select %p453, %s19, 1
        %s455 = smul.addr %s454, 16
        %s456 = smul.addr %s455, 4
        %s457 = scalar_lea.vmem %s9, %s456
      $region56: #{_lambda_.10} parent=19 // pred_fallthru
        _
      // Predicated region
      $region57: #{_lambda_.10} parent=19 // pred_check
        %p458 = pneg %p294
      $region58: #{_lambda_.10} parent=19 // pred_check_branch
        %460 = sbr.rel (%p458) target = $region60
      $region59: #{_lambda_.10} parent=19 // pred_region
        %p461 = scmp.lt.s32.totalorder %s19, 1
        %s462 = scalar_select %p461, %s19, 1
        %s463 = scalar_lea.vmem %s10, %s462
      $region60: #{_lambda_.10} parent=19 // pred_fallthru
        _
      // Predicated region
      $region61: #{_lambda_.10} parent=19 // pred_check
        %p464 = pneg %p320
      $region62: #{_lambda_.10} parent=19 // pred_check_branch
        %466 = sbr.rel (%p464) target = $region64
      $region63: #{_lambda_.10} parent=19 // pred_region
        %p467 = scmp.lt.s32.totalorder %s19, 1
        %s468 = scalar_select %p467, %s19, 1
        %s469 = scalar_lea.vmem %s11, %s468
      $region64: #{_lambda_.10} parent=19 // pred_fallthru
        _
      // Predicated region
      $region65: #{_lambda_.10} parent=19 // pred_check
        %p470 = pneg %p346
      $region66: #{_lambda_.10} parent=19 // pred_check_branch
        %472 = sbr.rel (%p470) target = $region68
      $region67: #{_lambda_.10} parent=19 // pred_region
        %p473 = scmp.lt.s32.totalorder %s19, 1
        %s474 = scalar_select %p473, %s19, 1
        %s475 = scalar_lea.vmem %s12, %s474
      $region68: #{_lambda_.10} parent=19 // pred_fallthru
        _
    $region20: #{_lambda_.10} parent=5 // pred_fallthru
      _
    %p476 = scmp.le.s32.totalorder 1, %s19
    %p477 = scmp.lt.s32.totalorder %s19, 3
    %p478 = pnand %p476, %p477
    %p479 = pneg %p478
    // Predicated region
    $region69: #{_lambda_.10} parent=5 // pred_check
      _
    $region70: #{_lambda_.10} parent=5 // pred_check_branch
      %481 = sbr.rel (%p478) target = $region72
    $region71: #{_lambda_.10} parent=5 // pred_region
      %s482 = ssub.s32 %s19, 1
      %p483 = pneg %p40
      %p484 = pneg %p37
      %p485 = scmp.lt.s32.totalorder %s24, 1
      %s486 = scalar_select %p485, %s24, 1
      %s487 = smul.addr %s486, 16
      %s488 = smul.addr %s487, 4
      %s489 = scalar_lea.vmem %s1, %s488
      %p490 = pneg %p66
      %p491 = pneg %p63
      %p492 = scmp.lt.s32.totalorder %s24, 1
      %s493 = scalar_select %p492, %s24, 1
      %s494 = smul.addr %s493, 2
      %s495 = scalar_lea.vmem %s2, %s494
      %p496 = pneg %p92
      %p497 = pneg %p89
      %p498 = scmp.lt.s32.totalorder %s24, 1
      %s499 = scalar_select %p498, %s24, 1
      %s500 = smul.addr %s499, 8
      %s501 = smul.addr %s500, 4
      %s502 = scalar_lea.vmem %s3, %s501
      %p503 = pneg %p118
      %p504 = pneg %p115
      %p505 = scmp.lt.s32.totalorder %s24, 1
      %s506 = scalar_select %p505, %s24, 1
      %s507 = scalar_lea.vmem %s4, %s506
      %p508 = pneg %p144
      %p509 = pneg %p141
      %p510 = scmp.lt.s32.totalorder %s24, 1
      %s511 = scalar_select %p510, %s24, 1
      %s512 = scalar_lea.vmem %s5, %s511
      %p513 = pneg %p170
      %p514 = pneg %p167
      %p515 = scmp.lt.s32.totalorder %s24, 1
      %s516 = scalar_select %p515, %s24, 1
      %s517 = scalar_lea.vmem %s6, %s516
      %p518 = pneg %p196
      %p519 = pneg %p193
      %p520 = scmp.lt.s32.totalorder %s24, 1
      %s521 = scalar_select %p520, %s24, 1
      %s522 = smul.addr %s521, 8
      %s523 = smul.addr %s522, 4
      %s524 = scalar_lea.vmem %s7, %s523
      %p525 = pneg %p222
      %p526 = pneg %p219
      %p527 = scmp.lt.s32.totalorder %s24, 1
      %s528 = scalar_select %p527, %s24, 1
      %s529 = scalar_lea.vmem %s8, %s528
      %p530 = pneg %p248
      %p531 = pneg %p245
      %p532 = scmp.lt.s32.totalorder %s24, 1
      %s533 = scalar_select %p532, %s24, 1
      %s534 = smul.addr %s533, 16
      %s535 = smul.addr %s534, 4
      %s536 = scalar_lea.vmem %s9, %s535
      %p537 = pneg %p274
      %p538 = pneg %p271
      %p539 = scmp.lt.s32.totalorder %s24, 1
      %s540 = scalar_select %p539, %s24, 1
      %s541 = scalar_lea.vmem %s10, %s540
      %p542 = pneg %p300
      %p543 = pneg %p297
      %p544 = scmp.lt.s32.totalorder %s24, 1
      %s545 = scalar_select %p544, %s24, 1
      %s546 = scalar_lea.vmem %s11, %s545
      %p547 = pneg %p326
      %p548 = pneg %p323
      %p549 = scmp.lt.s32.totalorder %s24, 1
      %s550 = scalar_select %p549, %s24, 1
      %s551 = scalar_lea.vmem %s12, %s550
      %p552 = pneg %p352
      %p553 = pneg %p349
      %p554 = pneg %p373
      %p555 = pneg %p370
      %p556 = scmp.lt.s32.totalorder %s24, 1
      %s557 = scalar_select %p556, %s24, 1
      %s558 = smul.addr %s557, 16
      %s559 = smul.addr %s558, 4
      %s560 = scalar_lea.vmem %s1, %s559
      %p561 = scmp.lt.s32.totalorder %s24, 1
      %s562 = scalar_select %p561, %s24, 1
      %s563 = smul.addr %s562, 2
      %s564 = scalar_lea.vmem %s2, %s563
      %p565 = scmp.lt.s32.totalorder %s24, 1
      %s566 = scalar_select %p565, %s24, 1
      %s567 = smul.addr %s566, 8
      %s568 = smul.addr %s567, 4
      %s569 = scalar_lea.vmem %s3, %s568
      %p570 = scmp.lt.s32.totalorder %s24, 1
      %s571 = scalar_select %p570, %s24, 1
      %s572 = scalar_lea.vmem %s4, %s571
      %p573 = scmp.lt.s32.totalorder %s24, 1
      %s574 = scalar_select %p573, %s24, 1
      %s575 = scalar_lea.vmem %s5, %s574
      %p576 = scmp.lt.s32.totalorder %s24, 1
      %s577 = scalar_select %p576, %s24, 1
      %s578 = scalar_lea.vmem %s6, %s577
      %p579 = scmp.lt.s32.totalorder %s24, 1
      %s580 = scalar_select %p579, %s24, 1
      %s581 = smul.addr %s580, 8
      %s582 = smul.addr %s581, 4
      %s583 = scalar_lea.vmem %s7, %s582
      %p584 = scmp.lt.s32.totalorder %s24, 1
      %s585 = scalar_select %p584, %s24, 1
      %s586 = scalar_lea.vmem %s8, %s585
      %p587 = scmp.lt.s32.totalorder %s24, 1
      %s588 = scalar_select %p587, %s24, 1
      %s589 = smul.addr %s588, 16
      %s590 = smul.addr %s589, 4
      %s591 = scalar_lea.vmem %s9, %s590
      %p592 = scmp.lt.s32.totalorder %s24, 1
      %s593 = scalar_select %p592, %s24, 1
      %s594 = scalar_lea.vmem %s10, %s593
      %p595 = scmp.lt.s32.totalorder %s24, 1
      %s596 = scalar_select %p595, %s24, 1
      %s597 = scalar_lea.vmem %s11, %s596
      %p598 = scmp.lt.s32.totalorder %s24, 1
      %s599 = scalar_select %p598, %s24, 1
      %s600 = scalar_lea.vmem %s12, %s599
      %p602 = scmp.eq.s32.totalorder %s24, 0
      // Predicated region
      $region73: #{_lambda_.10} parent=71 // pred_check
        %p603 = pneg %p602
      $region74: #{_lambda_.10} parent=71 // pred_check_branch
        %605 = sbr.rel (%p603) target = $region76
      $region75: #{_lambda_.10} parent=71 // pred_region
        %v606 = vld [vmem:[%s0] sm:$0xff]
        %v607 = vld [vmem:[%s0 + $0x8] sm:$0xff]
        %v608 = vld [vmem:[%s0 + $0x10] sm:$0xff]
        %v609 = vld [vmem:[%s0 + $0x18] sm:$0xff]
        %v610 = vld [vmem:[%s0 + $0x20] sm:$0xff]
        %v611 = vld [vmem:[%s0 + $0x28] sm:$0xff]
        %v612 = vld [vmem:[%s0 + $0x30] sm:$0xff]
        %v613 = vld [vmem:[%s0 + $0x38] sm:$0xff]
        %vm614 = vcmask 523264
        %615 = vst.msk [vmem:[%s13] sm:$0xff] %vm614, %v606
        %616 = vst.msk [vmem:[%s13 + $0x8] sm:$0xff] %vm614, %v607
        %617 = vst.msk [vmem:[%s13 + $0x10] sm:$0xff] %vm614, %v608
        %618 = vst.msk [vmem:[%s13 + $0x18] sm:$0xff] %vm614, %v609
        %619 = vst.msk [vmem:[%s13 + $0x20] sm:$0xff] %vm614, %v610
        %620 = vst.msk [vmem:[%s13 + $0x28] sm:$0xff] %vm614, %v611
        %621 = vst.msk [vmem:[%s13 + $0x30] sm:$0xff] %vm614, %v612
        %622 = vst.msk [vmem:[%s13 + $0x38] sm:$0xff] %vm614, %v613
      $region76: #{_lambda_.10} parent=71 // pred_fallthru
        _
      %v623 = vld [vmem:[%s13] sm:$0xff]
      %v624 = vld [vmem:[%s13 + $0x8] sm:$0xff]
      %v625 = vld [vmem:[%s13 + $0x10] sm:$0xff]
      %v626 = vld [vmem:[%s13 + $0x18] sm:$0xff]
      %v627 = vld [vmem:[%s13 + $0x20] sm:$0xff]
      %v628 = vld [vmem:[%s13 + $0x28] sm:$0xff]
      %v629 = vld [vmem:[%s13 + $0x30] sm:$0xff]
      %v630 = vld [vmem:[%s13 + $0x38] sm:$0xff]
      %v631 = vld [vmem:[%s560] sm:$0xff]
      %v632 = vld [vmem:[%s560 + $0x8] sm:$0xff]
      %v633 = vld [vmem:[%s560 + $0x10] sm:$0xff]
      %v634 = vld [vmem:[%s560 + $0x18] sm:$0xff]
      %v635 = vld [vmem:[%s560 + $0x20] sm:$0xff]
      %v636 = vld [vmem:[%s560 + $0x28] sm:$0xff]
      %v637 = vld [vmem:[%s560 + $0x30] sm:$0xff]
      %v638 = vld [vmem:[%s560 + $0x38] sm:$0xff]
      %v639 = vpack.c.bf16 %v624, %v623
      %v640 = vpack.c.bf16 %v626, %v625
      %v641 = vpack.c.bf16 %v628, %v627
      %v642 = vpack.c.bf16 %v630, %v629
      %v643 = vld [vmem:[%s564] sm:$0x3]
      %v645 = vlaneseq
      %v646 = vshrl.u32 %v645, 7
      %v647 = vsub.s32 0, %v646
      %v648 = vrot.slane %v643, %v647
      %v649 = vlaneseq
      %v650 = vshrl.u32 %v649, 7
      %v651 = vsub.s32 1, %v650
      %v652 = vrot.slane %v643, %v651
      %v663 = vunpack.c.l.b16 %v631
      %v664 = vunpack.c.h.b16 %v631
      %v665 = vunpack.c.l.b16 %v632
      %v666 = vunpack.c.h.b16 %v632
      %v667 = vunpack.c.l.b16 %v633
      %v668 = vunpack.c.h.b16 %v633
      %v669 = vunpack.c.l.b16 %v634
      %v670 = vunpack.c.h.b16 %v634
      %v671 = vunpack.c.l.b16 %v635
      %v672 = vunpack.c.h.b16 %v635
      %v673 = vunpack.c.l.b16 %v636
      %v674 = vunpack.c.h.b16 %v636
      %v675 = vunpack.c.l.b16 %v637
      %v676 = vunpack.c.h.b16 %v637
      %v677 = vunpack.c.l.b16 %v638
      %v678 = vunpack.c.h.b16 %v638
      %v679 = vpack.c.b16 %v665, %v663
      %v680 = vpack.c.b16 %v666, %v664
      %v681 = vpack.c.b16 %v669, %v667
      %v682 = vpack.c.b16 %v670, %v668
      %v683 = vpack.c.b16 %v673, %v671
      %v684 = vpack.c.b16 %v674, %v672
      %v685 = vpack.c.b16 %v677, %v675
      %v686 = vpack.c.b16 %v678, %v676
      %vm695 = vcmask 523264
      %v697 = vsel %vm695, %v639, 0
      %v700 = vsel %vm695, %v640, 0
      %v703 = vsel %vm695, %v641, 0
      %v706 = vsel %vm695, %v642, 0
      %708 = vmatprep.subr.bf16.mxu0 %v680
      %709 = vmatpush1.bf16.msra.mxu0 %v679
      %710 = vmatprep.subr.bf16.mxu0 %v682
      %711 = vmatpush1.bf16.msra.mxu0 %v681
      %712 = vmatprep.subr.bf16.mxu0 %v684
      %713 = vmatpush1.bf16.msra.mxu0 %v683
      %714 = vmatprep.subr.bf16.mxu0 %v686
      %715 = vmatpush1.bf16.msra.mxu0 %v685
      %716 = vmatprep.subr.bf16.mxu0 0
      %717 = vmatpush1.bf16.msra.mxu0 0
      %718 = vmatprep.subr.bf16.mxu0 0
      %719 = vmatpush1.bf16.msra.mxu0 0
      %720 = vmatprep.subr.bf16.mxu0 0
      %721 = vmatpush1.bf16.msra.mxu0 0
      %722 = vmatprep.subr.bf16.mxu0 0
      %723 = vmatpush1.bf16.msra.mxu0 0
      %724 = vmatprep.subr.bf16.mxu0 0
      %725 = vmatpush1.bf16.msra.mxu0 0
      %726 = vmatprep.subr.bf16.mxu0 0
      %727 = vmatpush1.bf16.msra.mxu0 0
      %728 = vmatprep.subr.bf16.mxu0 0
      %729 = vmatpush1.bf16.msra.mxu0 0
      %730 = vmatprep.subr.bf16.mxu0 0
      %731 = vmatpush1.bf16.msra.mxu0 0
      %732 = vmatprep.subr.bf16.mxu0 0
      %733 = vmatpush1.bf16.msra.mxu0 0
      %734 = vmatprep.subr.bf16.mxu0 0
      %735 = vmatpush1.bf16.msra.mxu0 0
      %736 = vmatprep.subr.bf16.mxu0 0
      %737 = vmatpush1.bf16.msra.mxu0 0
      %738 = vmatprep.subr.bf16.mxu0 0
      %739 = vmatpush1.bf16.msra.mxu0 0
      %740 = vmatprep.mubr.bf16.mxu0 0
      %741 = vmatmul.mubr.bf16.gmra.mrb[0].mxu0 %v697
      %v742 = vpop.f32.mrb[0].mxu0
      %v743 = vadd.f32 %v648, %v742
      %v744 = vpop.f32.mrb[0].mxu0
      %v745 = vadd.f32 %v652, %v744
      %v746 = vpop.f32.mrb[0].mxu0
      %v747 = vadd.f32 %v648, %v746
      %v748 = vpop.f32.mrb[0].mxu0
      %v749 = vadd.f32 %v652, %v748
      %750 = vmatprep.mubr.bf16.mxu0 0
      %751 = vmatmul.mubr.bf16.gmra.mrb[0].mxu0 %v700
      %v752 = vpop.f32.mrb[0].mxu0
      %v753 = vadd.f32 %v648, %v752
      %v754 = vpop.f32.mrb[0].mxu0
      %v755 = vadd.f32 %v652, %v754
      %v756 = vpop.f32.mrb[0].mxu0
      %v757 = vadd.f32 %v648, %v756
      %v758 = vpop.f32.mrb[0].mxu0
      %v759 = vadd.f32 %v652, %v758
      %760 = vmatprep.mubr.bf16.mxu0 0
      %761 = vmatmul.mubr.bf16.gmra.mrb[0].mxu0 %v703
      %v762 = vpop.f32.mrb[0].mxu0
      %v763 = vadd.f32 %v648, %v762
      %v764 = vpop.f32.mrb[0].mxu0
      %v765 = vadd.f32 %v652, %v764
      %v766 = vpop.f32.mrb[0].mxu0
      %v767 = vadd.f32 %v648, %v766
      %v768 = vpop.f32.mrb[0].mxu0
      %v769 = vadd.f32 %v652, %v768
      %770 = vmatprep.mubr.bf16.mxu0 0
      %771 = vmatmul.mubr.bf16.gmra.mrb[0].mxu0 %v706
      %v772 = vpop.f32.mrb[0].mxu0
      %v773 = vadd.f32 %v648, %v772
      %v774 = vpop.f32.mrb[0].mxu0
      %v775 = vadd.f32 %v652, %v774
      %v776 = vpop.f32.mrb[0].mxu0
      %v777 = vadd.f32 %v648, %v776
      %v778 = vpop.f32.mrb[0].mxu0
      %v779 = vadd.f32 %v652, %v778
      %780 = vdwg.mxu0
      %v781 = vpack.c.bf16 %v747, %v743
      %v782 = vpack.c.bf16 %v757, %v753
      %v783 = vpack.c.bf16 %v767, %v763
      %v784 = vpack.c.bf16 %v777, %v773
      %787 = vrot.lane.b32.xlu0 %v781, 64
      %v788 = vpop.permute.xlu0 %787
      %789 = vrot.lane.b32.xlu0 %v782, 64
      %v790 = vpop.permute.xlu0 %789
      %vm791 = vcmask 130048
      %v793 = vsel %vm791, %v781, 0
      %v796 = vsel %vm791, %v782, 0
      %v799 = vsel %vm791, %v788, 0
      %v802 = vsel %vm791, %v790, 0
      %804 = vmatprep.subr.bf16.mxu0 0
      %805 = vmatpush1.bf16.xpose.msra.mxu0 %v799
      %806 = vmatprep.subr.bf16.mxu0 0
      %807 = vmatpush1.bf16.xpose.msra.mxu0 %v802
      %808 = vmatprep.subr.bf16.mxu0 0
      %809 = vmatpush1.bf16.xpose.msra.mxu0 0
      %810 = vmatprep.subr.bf16.mxu0 0
      %811 = vmatpush1.bf16.xpose.msra.mxu0 0
      %812 = vmatprep.subr.bf16.mxu0 0
      %813 = vmatpush1.bf16.xpose.msra.mxu0 0
      %814 = vmatprep.subr.bf16.mxu0 0
      %815 = vmatpush1.bf16.xpose.msra.mxu0 0
      %816 = vmatprep.subr.bf16.mxu0 0
      %817 = vmatpush1.bf16.xpose.msra.mxu0 0
      %818 = vmatprep.subr.bf16.mxu0 0
      %819 = vmatpush1.bf16.xpose.msra.mxu0 0
      %820 = vmatprep.subr.bf16.mxu0 0
      %821 = vmatpush1.bf16.xpose.msra.mxu0 0
      %822 = vmatprep.subr.bf16.mxu0 0
      %823 = vmatpush1.bf16.xpose.msra.mxu0 0
      %824 = vmatprep.subr.bf16.mxu0 0
      %825 = vmatpush1.bf16.xpose.msra.mxu0 0
      %826 = vmatprep.subr.bf16.mxu0 0
      %827 = vmatpush1.bf16.xpose.msra.mxu0 0
      %828 = vmatprep.subr.bf16.mxu0 0
      %829 = vmatpush1.bf16.xpose.msra.mxu0 0
      %830 = vmatprep.subr.bf16.mxu0 0
      %831 = vmatpush1.bf16.xpose.msra.mxu0 0
      %832 = vmatprep.subr.bf16.mxu0 0
      %833 = vmatpush1.bf16.xpose.msra.mxu0 0
      %834 = vmatprep.subr.bf16.mxu0 0
      %835 = vmatpush1.bf16.xpose.msra.mxu0 0
      %836 = vmatprep.mubr.bf16.mxu0 0
      %837 = vmatmul.mubr.bf16.gmra.mrb[0].mxu0 %v793
      %v838 = vpop.f32.mrb[0].mxu0
      %v839 = vadd.f32 0.0, %v838
      %v840 = vpop.f32.mrb[0].mxu0
      %v841 = vpop.f32.mrb[0].mxu0
      %v842 = vadd.f32 0.0, %v841
      %v843 = vpop.f32.mrb[0].mxu0
      %844 = vmatprep.mubr.bf16.mxu0 0
      %845 = vmatmul.mubr.bf16.gmra.mrb[0].mxu0 %v796
      %v846 = vpop.f32.mrb[0].mxu0
      %v847 = vadd.f32 0.0, %v846
      %v848 = vpop.f32.mrb[0].mxu0
      %v849 = vpop.f32.mrb[0].mxu0
      %v850 = vadd.f32 0.0, %v849
      %v851 = vpop.f32.mrb[0].mxu0
      %852 = vdwg.mxu0
      %855 = vrot.lane.b32.xlu0 %v783, 64
      %v856 = vpop.permute.xlu0 %855
      %857 = vrot.lane.b32.xlu0 %v784, 64
      %v858 = vpop.permute.xlu0 %857
      %v860 = vsel %vm791, %v783, 0
      %v863 = vsel %vm791, %v784, 0
      %v866 = vsel %vm791, %v856, 0
      %v869 = vsel %vm791, %v858, 0
      %871 = vmatprep.subr.bf16.mxu0 0
      %872 = vmatpush1.bf16.xpose.msra.mxu0 %v866
      %873 = vmatprep.subr.bf16.mxu0 0
      %874 = vmatpush1.bf16.xpose.msra.mxu0 %v869
      %875 = vmatprep.subr.bf16.mxu0 0
      %876 = vmatpush1.bf16.xpose.msra.mxu0 0
      %877 = vmatprep.subr.bf16.mxu0 0
      %878 = vmatpush1.bf16.xpose.msra.mxu0 0
      %879 = vmatprep.subr.bf16.mxu0 0
      %880 = vmatpush1.bf16.xpose.msra.mxu0 0
      %881 = vmatprep.subr.bf16.mxu0 0
      %882 = vmatpush1.bf16.xpose.msra.mxu0 0
      %883 = vmatprep.subr.bf16.mxu0 0
      %884 = vmatpush1.bf16.xpose.msra.mxu0 0
      %885 = vmatprep.subr.bf16.mxu0 0
      %886 = vmatpush1.bf16.xpose.msra.mxu0 0
      %887 = vmatprep.subr.bf16.mxu0 0
      %888 = vmatpush1.bf16.xpose.msra.mxu0 0
      %889 = vmatprep.subr.bf16.mxu0 0
      %890 = vmatpush1.bf16.xpose.msra.mxu0 0
      %891 = vmatprep.subr.bf16.mxu0 0
      %892 = vmatpush1.bf16.xpose.msra.mxu0 0
      %893 = vmatprep.subr.bf16.mxu0 0
      %894 = vmatpush1.bf16.xpose.msra.mxu0 0
      %895 = vmatprep.subr.bf16.mxu0 0
      %896 = vmatpush1.bf16.xpose.msra.mxu0 0
      %897 = vmatprep.subr.bf16.mxu0 0
      %898 = vmatpush1.bf16.xpose.msra.mxu0 0
      %899 = vmatprep.subr.bf16.mxu0 0
      %900 = vmatpush1.bf16.xpose.msra.mxu0 0
      %901 = vmatprep.subr.bf16.mxu0 0
      %902 = vmatpush1.bf16.xpose.msra.mxu0 0
      %903 = vmatprep.mubr.bf16.mxu0 0
      %904 = vmatmul.mubr.bf16.gmra.mrb[0].mxu0 %v860
      %v905 = vpop.f32.mrb[0].mxu0
      %v906 = vadd.f32 0.0, %v905
      %v907 = vpop.f32.mrb[0].mxu0
      %v908 = vpop.f32.mrb[0].mxu0
      %v909 = vadd.f32 0.0, %v908
      %v910 = vpop.f32.mrb[0].mxu0
      %911 = vmatprep.mubr.bf16.mxu0 0
      %912 = vmatmul.mubr.bf16.gmra.mrb[0].mxu0 %v863
      %v913 = vpop.f32.mrb[0].mxu0
      %v914 = vadd.f32 0.0, %v913
      %v915 = vpop.f32.mrb[0].mxu0
      %v916 = vpop.f32.mrb[0].mxu0
      %v917 = vadd.f32 0.0, %v916
      %v918 = vpop.f32.mrb[0].mxu0
      %919 = vdwg.mxu0
      %v920 = vmul.f32 %v839, 0.25
      %v921 = vmul.f32 %v842, 0.25
      %v922 = vmul.f32 %v847, 0.25
      %v923 = vmul.f32 %v850, 0.25
      %v924 = vmul.f32 %v906, 0.25
      %v925 = vmul.f32 %v909, 0.25
      %v926 = vmul.f32 %v914, 0.25
      %v927 = vmul.f32 %v917, 0.25
      %vm928 = vcmask 261120
      %v929 = vsel %vm928, %v920, -inf
      %930 = vmax.xlane.f32.xlu0 %v929
      %v931 = vpop.xlane.xlu0 %930
      %v932 = vsel %vm928, %v921, -inf
      %933 = vmax.xlane.f32.xlu0 %v932
      %v934 = vpop.xlane.xlu0 %933
      %v935 = vsel %vm928, %v922, -inf
      %936 = vmax.xlane.f32.xlu0 %v935
      %v937 = vpop.xlane.xlu0 %936
      %v938 = vsel %vm928, %v923, -inf
      %939 = vmax.xlane.f32.xlu0 %v938
      %v940 = vpop.xlane.xlu0 %939
      %v941 = vsel %vm928, %v924, -inf
      %942 = vmax.xlane.f32.xlu0 %v941
      %v943 = vpop.xlane.xlu0 %942
      %v944 = vsel %vm928, %v925, -inf
      %945 = vmax.xlane.f32.xlu0 %v944
      %v946 = vpop.xlane.xlu0 %945
      %v947 = vsel %vm928, %v926, -inf
      %948 = vmax.xlane.f32.xlu0 %v947
      %v949 = vpop.xlane.xlu0 %948
      %v950 = vsel %vm928, %v927, -inf
      %951 = vmax.xlane.f32.xlu0 %v950
      %v952 = vpop.xlane.xlu0 %951
      %v953 = vsub.f32 %v920, %v931
      %v954 = vsub.f32 %v921, %v934
      %v955 = vsub.f32 %v922, %v937
      %v956 = vsub.f32 %v923, %v940
      %v957 = vsub.f32 %v924, %v943
      %v958 = vsub.f32 %v925, %v946
      %v959 = vsub.f32 %v926, %v949
      %v960 = vsub.f32 %v927, %v952
      %v961 = vmul.f32 %v953, 1.442695
      %v962 = vpow.pop %v961
      %v963 = vmul.f32 %v954, 1.442695
      %v964 = vpow.pop %v963
      %v965 = vmul.f32 %v955, 1.442695
      %v966 = vpow.pop %v965
      %v967 = vmul.f32 %v956, 1.442695
      %v968 = vpow.pop %v967
      %v969 = vmul.f32 %v957, 1.442695
      %v970 = vpow.pop %v969
      %v971 = vmul.f32 %v958, 1.442695
      %v972 = vpow.pop %v971
      %v973 = vmul.f32 %v959, 1.442695
      %v974 = vpow.pop %v973
      %v975 = vmul.f32 %v960, 1.442695
      %v976 = vpow.pop %v975
      %v977 = vsel %vm928, %v962, 0.0
      %978 = vadd.xlane.f32.xlu0 %v977
      %v979 = vpop.xlane.xlu0 %978
      %v980 = vsel %vm928, %v964, 0.0
      %981 = vadd.xlane.f32.xlu0 %v980
      %v982 = vpop.xlane.xlu0 %981
      %v983 = vsel %vm928, %v966, 0.0
      %984 = vadd.xlane.f32.xlu0 %v983
      %v985 = vpop.xlane.xlu0 %984
      %v986 = vsel %vm928, %v968, 0.0
      %987 = vadd.xlane.f32.xlu0 %v986
      %v988 = vpop.xlane.xlu0 %987
      %v989 = vsel %vm928, %v970, 0.0
      %990 = vadd.xlane.f32.xlu0 %v989
      %v991 = vpop.xlane.xlu0 %990
      %v992 = vsel %vm928, %v972, 0.0
      %993 = vadd.xlane.f32.xlu0 %v992
      %v994 = vpop.xlane.xlu0 %993
      %v995 = vsel %vm928, %v974, 0.0
      %996 = vadd.xlane.f32.xlu0 %v995
      %v997 = vpop.xlane.xlu0 %996
      %v998 = vsel %vm928, %v976, 0.0
      %999 = vadd.xlane.f32.xlu0 %v998
      %v1000 = vpop.xlane.xlu0 %999
      %v1001 = vrcp.pop %v979
      %v1002 = vrcp.pop %v982
      %v1003 = vrcp.pop %v985
      %v1004 = vrcp.pop %v988
      %v1005 = vrcp.pop %v991
      %v1006 = vrcp.pop %v994
      %v1007 = vrcp.pop %v997
      %v1008 = vrcp.pop %v1000
      %v1009 = vmul.f32 %v962, %v1001
      %v1010 = vmul.f32 %v964, %v1002
      %v1011 = vmul.f32 %v966, %v1003
      %v1012 = vmul.f32 %v968, %v1004
      %v1013 = vmul.f32 %v970, %v1005
      %v1014 = vmul.f32 %v972, %v1006
      %v1015 = vmul.f32 %v974, %v1007
      %v1016 = vmul.f32 %v976, %v1008
      %v1017 = vpack.c.bf16 %v1010, %v1009
      %v1018 = vpack.c.bf16 %v1012, %v1011
      %v1019 = vpack.c.bf16 %v1014, %v1013
      %v1020 = vpack.c.bf16 %v1016, %v1015
      %v1021 = vpack.c.bf16 %v749, %v745
      %v1022 = vpack.c.bf16 %v759, %v755
      %v1023 = vpack.c.bf16 %v769, %v765
      %v1024 = vpack.c.bf16 %v779, %v775
      %v1026 = vsel %vm928, %v1017, 0
      %v1029 = vsel %vm928, %v1018, 0
      %1031 = vmatprep.subr.bf16.mxu0 0
      %1032 = vmatpush1.bf16.msra.mxu0 %v1021
      %1033 = vmatprep.subr.bf16.mxu0 0
      %1034 = vmatpush1.bf16.msra.mxu0 %v1022
      %1035 = vmatprep.subr.bf16.mxu0 0
      %1036 = vmatpush1.bf16.msra.mxu0 0
      %1037 = vmatprep.subr.bf16.mxu0 0
      %1038 = vmatpush1.bf16.msra.mxu0 0
      %1039 = vmatprep.subr.bf16.mxu0 0
      %1040 = vmatpush1.bf16.msra.mxu0 0
      %1041 = vmatprep.subr.bf16.mxu0 0
      %1042 = vmatpush1.bf16.msra.mxu0 0
      %1043 = vmatprep.subr.bf16.mxu0 0
      %1044 = vmatpush1.bf16.msra.mxu0 0
      %1045 = vmatprep.subr.bf16.mxu0 0
      %1046 = vmatpush1.bf16.msra.mxu0 0
      %1047 = vmatprep.subr.bf16.mxu0 0
      %1048 = vmatpush1.bf16.msra.mxu0 0
      %1049 = vmatprep.subr.bf16.mxu0 0
      %1050 = vmatpush1.bf16.msra.mxu0 0
      %1051 = vmatprep.subr.bf16.mxu0 0
      %1052 = vmatpush1.bf16.msra.mxu0 0
      %1053 = vmatprep.subr.bf16.mxu0 0
      %1054 = vmatpush1.bf16.msra.mxu0 0
      %1055 = vmatprep.subr.bf16.mxu0 0
      %1056 = vmatpush1.bf16.msra.mxu0 0
      %1057 = vmatprep.subr.bf16.mxu0 0
      %1058 = vmatpush1.bf16.msra.mxu0 0
      %1059 = vmatprep.subr.bf16.mxu0 0
      %1060 = vmatpush1.bf16.msra.mxu0 0
      %1061 = vmatprep.subr.bf16.mxu0 0
      %1062 = vmatpush1.bf16.msra.mxu0 0
      %1063 = vmatprep.mubr.bf16.mxu0 0
      %1064 = vmatmul.mubr.bf16.gmra.mrb[0].mxu0 %v1026
      %v1065 = vpop.f32.mrb[0].mxu0
      %v1066 = vadd.f32 0.0, %v1065
      %v1067 = vpop.f32.mrb[0].mxu0
      %v1068 = vpop.f32.mrb[0].mxu0
      %v1069 = vadd.f32 0.0, %v1068
      %v1070 = vpop.f32.mrb[0].mxu0
      %1071 = vmatprep.mubr.bf16.mxu0 0
      %1072 = vmatmul.mubr.bf16.gmra.mrb[0].mxu0 %v1029
      %v1073 = vpop.f32.mrb[0].mxu0
      %v1074 = vadd.f32 0.0, %v1073
      %v1075 = vpop.f32.mrb[0].mxu0
      %v1076 = vpop.f32.mrb[0].mxu0
      %v1077 = vadd.f32 0.0, %v1076
      %v1078 = vpop.f32.mrb[0].mxu0
      %1079 = vdwg.mxu0
      %v1081 = vsel %vm928, %v1019, 0
      %v1084 = vsel %vm928, %v1020, 0
      %1086 = vmatprep.subr.bf16.mxu0 0
      %1087 = vmatpush1.bf16.msra.mxu0 %v1023
      %1088 = vmatprep.subr.bf16.mxu0 0
      %1089 = vmatpush1.bf16.msra.mxu0 %v1024
      %1090 = vmatprep.subr.bf16.mxu0 0
      %1091 = vmatpush1.bf16.msra.mxu0 0
      %1092 = vmatprep.subr.bf16.mxu0 0
      %1093 = vmatpush1.bf16.msra.mxu0 0
      %1094 = vmatprep.subr.bf16.mxu0 0
      %1095 = vmatpush1.bf16.msra.mxu0 0
      %1096 = vmatprep.subr.bf16.mxu0 0
      %1097 = vmatpush1.bf16.msra.mxu0 0
      %1098 = vmatprep.subr.bf16.mxu0 0
      %1099 = vmatpush1.bf16.msra.mxu0 0
      %1100 = vmatprep.subr.bf16.mxu0 0
      %1101 = vmatpush1.bf16.msra.mxu0 0
      %1102 = vmatprep.subr.bf16.mxu0 0
      %1103 = vmatpush1.bf16.msra.mxu0 0
      %1104 = vmatprep.subr.bf16.mxu0 0
      %1105 = vmatpush1.bf16.msra.mxu0 0
      %1106 = vmatprep.subr.bf16.mxu0 0
      %1107 = vmatpush1.bf16.msra.mxu0 0
      %1108 = vmatprep.subr.bf16.mxu0 0
      %1109 = vmatpush1.bf16.msra.mxu0 0
      %1110 = vmatprep.subr.bf16.mxu0 0
      %1111 = vmatpush1.bf16.msra.mxu0 0
      %1112 = vmatprep.subr.bf16.mxu0 0
      %1113 = vmatpush1.bf16.msra.mxu0 0
      %1114 = vmatprep.subr.bf16.mxu0 0
      %1115 = vmatpush1.bf16.msra.mxu0 0
      %1116 = vmatprep.subr.bf16.mxu0 0
      %1117 = vmatpush1.bf16.msra.mxu0 0
      %1118 = vmatprep.mubr.bf16.mxu0 0
      %1119 = vmatmul.mubr.bf16.gmra.mrb[0].mxu0 %v1081
      %v1120 = vpop.f32.mrb[0].mxu0
      %v1121 = vadd.f32 0.0, %v1120
      %v1122 = vpop.f32.mrb[0].mxu0
      %v1123 = vpop.f32.mrb[0].mxu0
      %v1124 = vadd.f32 0.0, %v1123
      %v1125 = vpop.f32.mrb[0].mxu0
      %1126 = vmatprep.mubr.bf16.mxu0 0
      %1127 = vmatmul.mubr.bf16.gmra.mrb[0].mxu0 %v1084
      %v1128 = vpop.f32.mrb[0].mxu0
      %v1129 = vadd.f32 0.0, %v1128
      %v1130 = vpop.f32.mrb[0].mxu0
      %v1131 = vpop.f32.mrb[0].mxu0
      %v1132 = vadd.f32 0.0, %v1131
      %v1133 = vpop.f32.mrb[0].mxu0
      %1134 = vdwg.mxu0
      %1135 = vrot.lane.b32.xlu0 %v781, 112
      %v1136 = vpop.permute.xlu0 %1135
      %1137 = vrot.lane.b32.xlu0 %v782, 112
      %v1138 = vpop.permute.xlu0 %1137
      %1139 = vrot.lane.b32.xlu0 %v781, 48
      %v1140 = vpop.permute.xlu0 %1139
      %1141 = vrot.lane.b32.xlu0 %v782, 48
      %v1142 = vpop.permute.xlu0 %1141
      %v1144 = vsel %vm791, %v1136, 0
      %v1147 = vsel %vm791, %v1138, 0
      %v1150 = vsel %vm791, %v1140, 0
      %v1153 = vsel %vm791, %v1142, 0
      %1155 = vmatprep.subr.bf16.mxu0 0
      %1156 = vmatpush1.bf16.xpose.msra.mxu0 %v1150
      %1157 = vmatprep.subr.bf16.mxu0 0
      %1158 = vmatpush1.bf16.xpose.msra.mxu0 %v1153
      %1159 = vmatprep.subr.bf16.mxu0 0
      %1160 = vmatpush1.bf16.xpose.msra.mxu0 0
      %1161 = vmatprep.subr.bf16.mxu0 0
      %1162 = vmatpush1.bf16.xpose.msra.mxu0 0
      %1163 = vmatprep.subr.bf16.mxu0 0
      %1164 = vmatpush1.bf16.xpose.msra.mxu0 0
      %1165 = vmatprep.subr.bf16.mxu0 0
      %1166 = vmatpush1.bf16.xpose.msra.mxu0 0
      %1167 = vmatprep.subr.bf16.mxu0 0
      %1168 = vmatpush1.bf16.xpose.msra.mxu0 0
      %1169 = vmatprep.subr.bf16.mxu0 0
      %1170 = vmatpush1.bf16.xpose.msra.mxu0 0
      %1171 = vmatprep.subr.bf16.mxu0 0
      %1172 = vmatpush1.bf16.xpose.msra.mxu0 0
      %1173 = vmatprep.subr.bf16.mxu0 0
      %1174 = vmatpush1.bf16.xpose.msra.mxu0 0
      %1175 = vmatprep.subr.bf16.mxu0 0
      %1176 = vmatpush1.bf16.xpose.msra.mxu0 0
      %1177 = vmatprep.subr.bf16.mxu0 0
      %1178 = vmatpush1.bf16.xpose.msra.mxu0 0
      %1179 = vmatprep.subr.bf16.mxu0 0
      %1180 = vmatpush1.bf16.xpose.msra.mxu0 0
      %1181 = vmatprep.subr.bf16.mxu0 0
      %1182 = vmatpush1.bf16.xpose.msra.mxu0 0
      %1183 = vmatprep.subr.bf16.mxu0 0
      %1184 = vmatpush1.bf16.xpose.msra.mxu0 0
      %1185 = vmatprep.subr.bf16.mxu0 0
      %1186 = vmatpush1.bf16.xpose.msra.mxu0 0
      %1187 = vmatprep.mubr.bf16.mxu0 0
      %1188 = vmatmul.mubr.bf16.gmra.mrb[0].mxu0 %v1144
      %v1189 = vpop.f32.mrb[0].mxu0
      %v1190 = vadd.f32 0.0, %v1189
      %v1191 = vpop.f32.mrb[0].mxu0
      %v1192 = vpop.f32.mrb[0].mxu0
      %v1193 = vadd.f32 0.0, %v1192
      %v1194 = vpop.f32.mrb[0].mxu0
      %1195 = vmatprep.mubr.bf16.mxu0 0
      %1196 = vmatmul.mubr.bf16.gmra.mrb[0].mxu0 %v1147
      %v1197 = vpop.f32.mrb[0].mxu0
      %v1198 = vadd.f32 0.0, %v1197
      %v1199 = vpop.f32.mrb[0].mxu0
      %v1200 = vpop.f32.mrb[0].mxu0
      %v1201 = vadd.f32 0.0, %v1200
      %v1202 = vpop.f32.mrb[0].mxu0
      %1203 = vdwg.mxu0
      %1204 = vrot.lane.b32.xlu0 %v783, 112
      %v1205 = vpop.permute.xlu0 %1204
      %1206 = vrot.lane.b32.xlu0 %v784, 112
      %v1207 = vpop.permute.xlu0 %1206
      %1208 = vrot.lane.b32.xlu0 %v783, 48
      %v1209 = vpop.permute.xlu0 %1208
      %1210 = vrot.lane.b32.xlu0 %v784, 48
      %v1211 = vpop.permute.xlu0 %1210
      %v1213 = vsel %vm791, %v1205, 0
      %v1216 = vsel %vm791, %v1207, 0
      %v1219 = vsel %vm791, %v1209, 0
      %v1222 = vsel %vm791, %v1211, 0
      %1224 = vmatprep.subr.bf16.mxu0 0
      %1225 = vmatpush1.bf16.xpose.msra.mxu0 %v1219
      %1226 = vmatprep.subr.bf16.mxu0 0
      %1227 = vmatpush1.bf16.xpose.msra.mxu0 %v1222
      %1228 = vmatprep.subr.bf16.mxu0 0
      %1229 = vmatpush1.bf16.xpose.msra.mxu0 0
      %1230 = vmatprep.subr.bf16.mxu0 0
      %1231 = vmatpush1.bf16.xpose.msra.mxu0 0
      %1232 = vmatprep.subr.bf16.mxu0 0
      %1233 = vmatpush1.bf16.xpose.msra.mxu0 0
      %1234 = vmatprep.subr.bf16.mxu0 0
      %1235 = vmatpush1.bf16.xpose.msra.mxu0 0
      %1236 = vmatprep.subr.bf16.mxu0 0
      %1237 = vmatpush1.bf16.xpose.msra.mxu0 0
      %1238 = vmatprep.subr.bf16.mxu0 0
      %1239 = vmatpush1.bf16.xpose.msra.mxu0 0
      %1240 = vmatprep.subr.bf16.mxu0 0
      %1241 = vmatpush1.bf16.xpose.msra.mxu0 0
      %1242 = vmatprep.subr.bf16.mxu0 0
      %1243 = vmatpush1.bf16.xpose.msra.mxu0 0
      %1244 = vmatprep.subr.bf16.mxu0 0
      %1245 = vmatpush1.bf16.xpose.msra.mxu0 0
      %1246 = vmatprep.subr.bf16.mxu0 0
      %1247 = vmatpush1.bf16.xpose.msra.mxu0 0
      %1248 = vmatprep.subr.bf16.mxu0 0
      %1249 = vmatpush1.bf16.xpose.msra.mxu0 0
      %1250 = vmatprep.subr.bf16.mxu0 0
      %1251 = vmatpush1.bf16.xpose.msra.mxu0 0
      %1252 = vmatprep.subr.bf16.mxu0 0
      %1253 = vmatpush1.bf16.xpose.msra.mxu0 0
      %1254 = vmatprep.subr.bf16.mxu0 0
      %1255 = vmatpush1.bf16.xpose.msra.mxu0 0
      %1256 = vmatprep.mubr.bf16.mxu0 0
      %1257 = vmatmul.mubr.bf16.gmra.mrb[0].mxu0 %v1213
      %v1258 = vpop.f32.mrb[0].mxu0
      %v1259 = vadd.f32 0.0, %v1258
      %v1260 = vpop.f32.mrb[0].mxu0
      %v1261 = vpop.f32.mrb[0].mxu0
      %v1262 = vadd.f32 0.0, %v1261
      %v1263 = vpop.f32.mrb[0].mxu0
      %1264 = vmatprep.mubr.bf16.mxu0 0
      %1265 = vmatmul.mubr.bf16.gmra.mrb[0].mxu0 %v1216
      %v1266 = vpop.f32.mrb[0].mxu0
      %v1267 = vadd.f32 0.0, %v1266
      %v1268 = vpop.f32.mrb[0].mxu0
      %v1269 = vpop.f32.mrb[0].mxu0
      %v1270 = vadd.f32 0.0, %v1269
      %v1271 = vpop.f32.mrb[0].mxu0
      %1272 = vdwg.mxu0
      %v1273 = vmul.f32 %v1190, 0.25
      %v1274 = vmul.f32 %v1193, 0.25
      %v1275 = vmul.f32 %v1198, 0.25
      %v1276 = vmul.f32 %v1201, 0.25
      %v1277 = vmul.f32 %v1259, 0.25
      %v1278 = vmul.f32 %v1262, 0.25
      %v1279 = vmul.f32 %v1267, 0.25
      %v1280 = vmul.f32 %v1270, 0.25
      %v1281 = vsel %vm928, %v1273, -inf
      %1282 = vmax.xlane.f32.xlu0 %v1281
      %v1283 = vpop.xlane.xlu0 %1282
      %v1284 = vsel %vm928, %v1274, -inf
      %1285 = vmax.xlane.f32.xlu0 %v1284
      %v1286 = vpop.xlane.xlu0 %1285
      %v1287 = vsel %vm928, %v1275, -inf
      %1288 = vmax.xlane.f32.xlu0 %v1287
      %v1289 = vpop.xlane.xlu0 %1288
      %v1290 = vsel %vm928, %v1276, -inf
      %1291 = vmax.xlane.f32.xlu0 %v1290
      %v1292 = vpop.xlane.xlu0 %1291
      %v1293 = vsel %vm928, %v1277, -inf
      %1294 = vmax.xlane.f32.xlu0 %v1293
      %v1295 = vpop.xlane.xlu0 %1294
      %v1296 = vsel %vm928, %v1278, -inf
      %1297 = vmax.xlane.f32.xlu0 %v1296
      %v1298 = vpop.xlane.xlu0 %1297
      %v1299 = vsel %vm928, %v1279, -inf
      %1300 = vmax.xlane.f32.xlu0 %v1299
      %v1301 = vpop.xlane.xlu0 %1300
      %v1302 = vsel %vm928, %v1280, -inf
      %1303 = vmax.xlane.f32.xlu0 %v1302
      %v1304 = vpop.xlane.xlu0 %1303
      %v1305 = vsub.f32 %v1273, %v1283
      %v1306 = vsub.f32 %v1274, %v1286
      %v1307 = vsub.f32 %v1275, %v1289
      %v1308 = vsub.f32 %v1276, %v1292
      %v1309 = vsub.f32 %v1277, %v1295
      %v1310 = vsub.f32 %v1278, %v1298
      %v1311 = vsub.f32 %v1279, %v1301
      %v1312 = vsub.f32 %v1280, %v1304
      %v1313 = vmul.f32 %v1305, 1.442695
      %v1314 = vpow.pop %v1313
      %v1315 = vmul.f32 %v1306, 1.442695
      %v1316 = vpow.pop %v1315
      %v1317 = vmul.f32 %v1307, 1.442695
      %v1318 = vpow.pop %v1317
      %v1319 = vmul.f32 %v1308, 1.442695
      %v1320 = vpow.pop %v1319
      %v1321 = vmul.f32 %v1309, 1.442695
      %v1322 = vpow.pop %v1321
      %v1323 = vmul.f32 %v1310, 1.442695
      %v1324 = vpow.pop %v1323
      %v1325 = vmul.f32 %v1311, 1.442695
      %v1326 = vpow.pop %v1325
      %v1327 = vmul.f32 %v1312, 1.442695
      %v1328 = vpow.pop %v1327
      %v1329 = vsel %vm928, %v1314, 0.0
      %1330 = vadd.xlane.f32.xlu0 %v1329
      %v1331 = vpop.xlane.xlu0 %1330
      %v1332 = vsel %vm928, %v1316, 0.0
      %1333 = vadd.xlane.f32.xlu0 %v1332
      %v1334 = vpop.xlane.xlu0 %1333
      %v1335 = vsel %vm928, %v1318, 0.0
      %1336 = vadd.xlane.f32.xlu0 %v1335
      %v1337 = vpop.xlane.xlu0 %1336
      %v1338 = vsel %vm928, %v1320, 0.0
      %1339 = vadd.xlane.f32.xlu0 %v1338
      %v1340 = vpop.xlane.xlu0 %1339
      %v1341 = vsel %vm928, %v1322, 0.0
      %1342 = vadd.xlane.f32.xlu0 %v1341
      %v1343 = vpop.xlane.xlu0 %1342
      %v1344 = vsel %vm928, %v1324, 0.0
      %1345 = vadd.xlane.f32.xlu0 %v1344
      %v1346 = vpop.xlane.xlu0 %1345
      %v1347 = vsel %vm928, %v1326, 0.0
      %1348 = vadd.xlane.f32.xlu0 %v1347
      %v1349 = vpop.xlane.xlu0 %1348
      %v1350 = vsel %vm928, %v1328, 0.0
      %1351 = vadd.xlane.f32.xlu0 %v1350
      %v1352 = vpop.xlane.xlu0 %1351
      %v1353 = vrcp.pop %v1331
      %v1354 = vrcp.pop %v1334
      %v1355 = vrcp.pop %v1337
      %v1356 = vrcp.pop %v1340
      %v1357 = vrcp.pop %v1343
      %v1358 = vrcp.pop %v1346
      %v1359 = vrcp.pop %v1349
      %v1360 = vrcp.pop %v1352
      %v1361 = vmul.f32 %v1314, %v1353
      %v1362 = vmul.f32 %v1316, %v1354
      %v1363 = vmul.f32 %v1318, %v1355
      %v1364 = vmul.f32 %v1320, %v1356
      %v1365 = vmul.f32 %v1322, %v1357
      %v1366 = vmul.f32 %v1324, %v1358
      %v1367 = vmul.f32 %v1326, %v1359
      %v1368 = vmul.f32 %v1328, %v1360
      %v1369 = vpack.c.bf16 %v1362, %v1361
      %v1370 = vpack.c.bf16 %v1364, %v1363
      %v1371 = vpack.c.bf16 %v1366, %v1365
      %v1372 = vpack.c.bf16 %v1368, %v1367
      %1375 = vrot.lane.b32.xlu0 %v1021, 112
      %v1376 = vpop.permute.xlu0 %1375
      %1377 = vrot.lane.b32.xlu0 %v1022, 112
      %v1378 = vpop.permute.xlu0 %1377
      %v1382 = vsel %vm928, %v1369, 0
      %v1385 = vsel %vm928, %v1370, 0
      %1387 = vmatprep.subr.bf16.mxu0 0
      %1388 = vmatpush1.bf16.msra.mxu0 %v1376
      %1389 = vmatprep.subr.bf16.mxu0 0
      %1390 = vmatpush1.bf16.msra.mxu0 %v1378
      %1391 = vmatprep.subr.bf16.mxu0 0
      %1392 = vmatpush1.bf16.msra.mxu0 0
      %1393 = vmatprep.subr.bf16.mxu0 0
      %1394 = vmatpush1.bf16.msra.mxu0 0
      %1395 = vmatprep.subr.bf16.mxu0 0
      %1396 = vmatpush1.bf16.msra.mxu0 0
      %1397 = vmatprep.subr.bf16.mxu0 0
      %1398 = vmatpush1.bf16.msra.mxu0 0
      %1399 = vmatprep.subr.bf16.mxu0 0
      %1400 = vmatpush1.bf16.msra.mxu0 0
      %1401 = vmatprep.subr.bf16.mxu0 0
      %1402 = vmatpush1.bf16.msra.mxu0 0
      %1403 = vmatprep.subr.bf16.mxu0 0
      %1404 = vmatpush1.bf16.msra.mxu0 0
      %1405 = vmatprep.subr.bf16.mxu0 0
      %1406 = vmatpush1.bf16.msra.mxu0 0
      %1407 = vmatprep.subr.bf16.mxu0 0
      %1408 = vmatpush1.bf16.msra.mxu0 0
      %1409 = vmatprep.subr.bf16.mxu0 0
      %1410 = vmatpush1.bf16.msra.mxu0 0
      %1411 = vmatprep.subr.bf16.mxu0 0
      %1412 = vmatpush1.bf16.msra.mxu0 0
      %1413 = vmatprep.subr.bf16.mxu0 0
      %1414 = vmatpush1.bf16.msra.mxu0 0
      %1415 = vmatprep.subr.bf16.mxu0 0
      %1416 = vmatpush1.bf16.msra.mxu0 0
      %1417 = vmatprep.subr.bf16.mxu0 0
      %1418 = vmatpush1.bf16.msra.mxu0 0
      %1419 = vmatprep.mubr.bf16.mxu0 0
      %1420 = vmatmul.mubr.bf16.gmra.mrb[0].mxu0 %v1382
      %v1421 = vpop.f32.mrb[0].mxu0
      %v1422 = vadd.f32 0.0, %v1421
      %v1423 = vpop.f32.mrb[0].mxu0
      %v1424 = vpop.f32.mrb[0].mxu0
      %v1425 = vadd.f32 0.0, %v1424
      %v1426 = vpop.f32.mrb[0].mxu0
      %1427 = vmatprep.mubr.bf16.mxu0 0
      %1428 = vmatmul.mubr.bf16.gmra.mrb[0].mxu0 %v1385
      %v1429 = vpop.f32.mrb[0].mxu0
      %v1430 = vadd.f32 0.0, %v1429
      %v1431 = vpop.f32.mrb[0].mxu0
      %v1432 = vpop.f32.mrb[0].mxu0
      %v1433 = vadd.f32 0.0, %v1432
      %v1434 = vpop.f32.mrb[0].mxu0
      %1435 = vdwg.mxu0
      %1438 = vrot.lane.b32.xlu0 %v1023, 112
      %v1439 = vpop.permute.xlu0 %1438
      %1440 = vrot.lane.b32.xlu0 %v1024, 112
      %v1441 = vpop.permute.xlu0 %1440
      %v1445 = vsel %vm928, %v1371, 0
      %v1448 = vsel %vm928, %v1372, 0
      %1450 = vmatprep.subr.bf16.mxu0 0
      %1451 = vmatpush1.bf16.msra.mxu0 %v1439
      %1452 = vmatprep.subr.bf16.mxu0 0
      %1453 = vmatpush1.bf16.msra.mxu0 %v1441
      %1454 = vmatprep.subr.bf16.mxu0 0
      %1455 = vmatpush1.bf16.msra.mxu0 0
      %1456 = vmatprep.subr.bf16.mxu0 0
      %1457 = vmatpush1.bf16.msra.mxu0 0
      %1458 = vmatprep.subr.bf16.mxu0 0
      %1459 = vmatpush1.bf16.msra.mxu0 0
      %1460 = vmatprep.subr.bf16.mxu0 0
      %1461 = vmatpush1.bf16.msra.mxu0 0
      %1462 = vmatprep.subr.bf16.mxu0 0
      %1463 = vmatpush1.bf16.msra.mxu0 0
      %1464 = vmatprep.subr.bf16.mxu0 0
      %1465 = vmatpush1.bf16.msra.mxu0 0
      %1466 = vmatprep.subr.bf16.mxu0 0
      %1467 = vmatpush1.bf16.msra.mxu0 0
      %1468 = vmatprep.subr.bf16.mxu0 0
      %1469 = vmatpush1.bf16.msra.mxu0 0
      %1470 = vmatprep.subr.bf16.mxu0 0
      %1471 = vmatpush1.bf16.msra.mxu0 0
      %1472 = vmatprep.subr.bf16.mxu0 0
      %1473 = vmatpush1.bf16.msra.mxu0 0
      %1474 = vmatprep.subr.bf16.mxu0 0
      %1475 = vmatpush1.bf16.msra.mxu0 0
      %1476 = vmatprep.subr.bf16.mxu0 0
      %1477 = vmatpush1.bf16.msra.mxu0 0
      %1478 = vmatprep.subr.bf16.mxu0 0
      %1479 = vmatpush1.bf16.msra.mxu0 0
      %1480 = vmatprep.subr.bf16.mxu0 0
      %1481 = vmatpush1.bf16.msra.mxu0 0
      %1482 = vmatprep.mubr.bf16.mxu0 0
      %1483 = vmatmul.mubr.bf16.gmra.mrb[0].mxu0 %v1445
      %v1484 = vpop.f32.mrb[0].mxu0
      %v1485 = vadd.f32 0.0, %v1484
      %v1486 = vpop.f32.mrb[0].mxu0
      %v1487 = vpop.f32.mrb[0].mxu0
      %v1488 = vadd.f32 0.0, %v1487
      %v1489 = vpop.f32.mrb[0].mxu0
      %1490 = vmatprep.mubr.bf16.mxu0 0
      %1491 = vmatmul.mubr.bf16.gmra.mrb[0].mxu0 %v1448
      %v1492 = vpop.f32.mrb[0].mxu0
      %v1493 = vadd.f32 0.0, %v1492
      %v1494 = vpop.f32.mrb[0].mxu0
      %v1495 = vpop.f32.mrb[0].mxu0
      %v1496 = vadd.f32 0.0, %v1495
      %v1497 = vpop.f32.mrb[0].mxu0
      %1498 = vdwg.mxu0
      %1499 = vrot.lane.b32.xlu0 %v781, 96
      %v1500 = vpop.permute.xlu0 %1499
      %1501 = vrot.lane.b32.xlu0 %v782, 96
      %v1502 = vpop.permute.xlu0 %1501
      %1503 = vrot.lane.b32.xlu0 %v781, 32
      %v1504 = vpop.permute.xlu0 %1503
      %1505 = vrot.lane.b32.xlu0 %v782, 32
      %v1506 = vpop.permute.xlu0 %1505
      %v1508 = vsel %vm791, %v1500, 0
      %v1511 = vsel %vm791, %v1502, 0
      %v1514 = vsel %vm791, %v1504, 0
      %v1517 = vsel %vm791, %v1506, 0
      %1519 = vmatprep.subr.bf16.mxu0 0
      %1520 = vmatpush1.bf16.xpose.msra.mxu0 %v1514
      %1521 = vmatprep.subr.bf16.mxu0 0
      %1522 = vmatpush1.bf16.xpose.msra.mxu0 %v1517
      %1523 = vmatprep.subr.bf16.mxu0 0
      %1524 = vmatpush1.bf16.xpose.msra.mxu0 0
      %1525 = vmatprep.subr.bf16.mxu0 0
      %1526 = vmatpush1.bf16.xpose.msra.mxu0 0
      %1527 = vmatprep.subr.bf16.mxu0 0
      %1528 = vmatpush1.bf16.xpose.msra.mxu0 0
      %1529 = vmatprep.subr.bf16.mxu0 0
      %1530 = vmatpush1.bf16.xpose.msra.mxu0 0
      %1531 = vmatprep.subr.bf16.mxu0 0
      %1532 = vmatpush1.bf16.xpose.msra.mxu0 0
      %1533 = vmatprep.subr.bf16.mxu0 0
      %1534 = vmatpush1.bf16.xpose.msra.mxu0 0
      %1535 = vmatprep.subr.bf16.mxu0 0
      %1536 = vmatpush1.bf16.xpose.msra.mxu0 0
      %1537 = vmatprep.subr.bf16.mxu0 0
      %1538 = vmatpush1.bf16.xpose.msra.mxu0 0
      %1539 = vmatprep.subr.bf16.mxu0 0
      %1540 = vmatpush1.bf16.xpose.msra.mxu0 0
      %1541 = vmatprep.subr.bf16.mxu0 0
      %1542 = vmatpush1.bf16.xpose.msra.mxu0 0
      %1543 = vmatprep.subr.bf16.mxu0 0
      %1544 = vmatpush1.bf16.xpose.msra.mxu0 0
      %1545 = vmatprep.subr.bf16.mxu0 0
      %1546 = vmatpush1.bf16.xpose.msra.mxu0 0
      %1547 = vmatprep.subr.bf16.mxu0 0
      %1548 = vmatpush1.bf16.xpose.msra.mxu0 0
      %1549 = vmatprep.subr.bf16.mxu0 0
      %1550 = vmatpush1.bf16.xpose.msra.mxu0 0
      %1551 = vmatprep.mubr.bf16.mxu0 0
      %1552 = vmatmul.mubr.bf16.gmra.mrb[0].mxu0 %v1508
      %v1553 = vpop.f32.mrb[0].mxu0
      %v1554 = vadd.f32 0.0, %v1553
      %v1555 = vpop.f32.mrb[0].mxu0
      %v1556 = vpop.f32.mrb[0].mxu0
      %v1557 = vadd.f32 0.0, %v1556
      %v1558 = vpop.f32.mrb[0].mxu0
      %1559 = vmatprep.mubr.bf16.mxu0 0
      %1560 = vmatmul.mubr.bf16.gmra.mrb[0].mxu0 %v1511
      %v1561 = vpop.f32.mrb[0].mxu0
      %v1562 = vadd.f32 0.0, %v1561
      %v1563 = vpop.f32.mrb[0].mxu0
      %v1564 = vpop.f32.mrb[0].mxu0
      %v1565 = vadd.f32 0.0, %v1564
      %v1566 = vpop.f32.mrb[0].mxu0
      %1567 = vdwg.mxu0
      %1568 = vrot.lane.b32.xlu0 %v783, 96
      %v1569 = vpop.permute.xlu0 %1568
      %1570 = vrot.lane.b32.xlu0 %v784, 96
      %v1571 = vpop.permute.xlu0 %1570
      %1572 = vrot.lane.b32.xlu0 %v783, 32
      %v1573 = vpop.permute.xlu0 %1572
      %1574 = vrot.lane.b32.xlu0 %v784, 32
      %v1575 = vpop.permute.xlu0 %1574
      %v1577 = vsel %vm791, %v1569, 0
      %v1580 = vsel %vm791, %v1571, 0
      %v1583 = vsel %vm791, %v1573, 0
      %v1586 = vsel %vm791, %v1575, 0
      %1588 = vmatprep.subr.bf16.mxu0 0
      %1589 = vmatpush1.bf16.xpose.msra.mxu0 %v1583
      %1590 = vmatprep.subr.bf16.mxu0 0
      %1591 = vmatpush1.bf16.xpose.msra.mxu0 %v1586
      %1592 = vmatprep.subr.bf16.mxu0 0
      %1593 = vmatpush1.bf16.xpose.msra.mxu0 0
      %1594 = vmatprep.subr.bf16.mxu0 0
      %1595 = vmatpush1.bf16.xpose.msra.mxu0 0
      %1596 = vmatprep.subr.bf16.mxu0 0
      %1597 = vmatpush1.bf16.xpose.msra.mxu0 0
      %1598 = vmatprep.subr.bf16.mxu0 0
      %1599 = vmatpush1.bf16.xpose.msra.mxu0 0
      %1600 = vmatprep.subr.bf16.mxu0 0
      %1601 = vmatpush1.bf16.xpose.msra.mxu0 0
      %1602 = vmatprep.subr.bf16.mxu0 0
      %1603 = vmatpush1.bf16.xpose.msra.mxu0 0
      %1604 = vmatprep.subr.bf16.mxu0 0
      %1605 = vmatpush1.bf16.xpose.msra.mxu0 0
      %1606 = vmatprep.subr.bf16.mxu0 0
      %1607 = vmatpush1.bf16.xpose.msra.mxu0 0
      %1608 = vmatprep.subr.bf16.mxu0 0
      %1609 = vmatpush1.bf16.xpose.msra.mxu0 0
      %1610 = vmatprep.subr.bf16.mxu0 0
      %1611 = vmatpush1.bf16.xpose.msra.mxu0 0
      %1612 = vmatprep.subr.bf16.mxu0 0
      %1613 = vmatpush1.bf16.xpose.msra.mxu0 0
      %1614 = vmatprep.subr.bf16.mxu0 0
      %1615 = vmatpush1.bf16.xpose.msra.mxu0 0
      %1616 = vmatprep.subr.bf16.mxu0 0
      %1617 = vmatpush1.bf16.xpose.msra.mxu0 0
      %1618 = vmatprep.subr.bf16.mxu0 0
      %1619 = vmatpush1.bf16.xpose.msra.mxu0 0
      %1620 = vmatprep.mubr.bf16.mxu0 0
      %1621 = vmatmul.mubr.bf16.gmra.mrb[0].mxu0 %v1577
      %v1622 = vpop.f32.mrb[0].mxu0
      %v1623 = vadd.f32 0.0, %v1622
      %v1624 = vpop.f32.mrb[0].mxu0
      %v1625 = vpop.f32.mrb[0].mxu0
      %v1626 = vadd.f32 0.0, %v1625
      %v1627 = vpop.f32.mrb[0].mxu0
      %1628 = vmatprep.mubr.bf16.mxu0 0
      %1629 = vmatmul.mubr.bf16.gmra.mrb[0].mxu0 %v1580
      %v1630 = vpop.f32.mrb[0].mxu0
      %v1631 = vadd.f32 0.0, %v1630
      %v1632 = vpop.f32.mrb[0].mxu0
      %v1633 = vpop.f32.mrb[0].mxu0
      %v1634 = vadd.f32 0.0, %v1633
      %v1635 = vpop.f32.mrb[0].mxu0
      %1636 = vdwg.mxu0
      %v1637 = vmul.f32 %v1554, 0.25
      %v1638 = vmul.f32 %v1557, 0.25
      %v1639 = vmul.f32 %v1562, 0.25
      %v1640 = vmul.f32 %v1565, 0.25
      %v1641 = vmul.f32 %v1623, 0.25
      %v1642 = vmul.f32 %v1626, 0.25
      %v1643 = vmul.f32 %v1631, 0.25
      %v1644 = vmul.f32 %v1634, 0.25
      %v1645 = vsel %vm928, %v1637, -inf
      %1646 = vmax.xlane.f32.xlu0 %v1645
      %v1647 = vpop.xlane.xlu0 %1646
      %v1648 = vsel %vm928, %v1638, -inf
      %1649 = vmax.xlane.f32.xlu0 %v1648
      %v1650 = vpop.xlane.xlu0 %1649
      %v1651 = vsel %vm928, %v1639, -inf
      %1652 = vmax.xlane.f32.xlu0 %v1651
      %v1653 = vpop.xlane.xlu0 %1652
      %v1654 = vsel %vm928, %v1640, -inf
      %1655 = vmax.xlane.f32.xlu0 %v1654
      %v1656 = vpop.xlane.xlu0 %1655
      %v1657 = vsel %vm928, %v1641, -inf
      %1658 = vmax.xlane.f32.xlu0 %v1657
      %v1659 = vpop.xlane.xlu0 %1658
      %v1660 = vsel %vm928, %v1642, -inf
      %1661 = vmax.xlane.f32.xlu0 %v1660
      %v1662 = vpop.xlane.xlu0 %1661
      %v1663 = vsel %vm928, %v1643, -inf
      %1664 = vmax.xlane.f32.xlu0 %v1663
      %v1665 = vpop.xlane.xlu0 %1664
      %v1666 = vsel %vm928, %v1644, -inf
      %1667 = vmax.xlane.f32.xlu0 %v1666
      %v1668 = vpop.xlane.xlu0 %1667
      %v1669 = vsub.f32 %v1637, %v1647
      %v1670 = vsub.f32 %v1638, %v1650
      %v1671 = vsub.f32 %v1639, %v1653
      %v1672 = vsub.f32 %v1640, %v1656
      %v1673 = vsub.f32 %v1641, %v1659
      %v1674 = vsub.f32 %v1642, %v1662
      %v1675 = vsub.f32 %v1643, %v1665
      %v1676 = vsub.f32 %v1644, %v1668
      %v1677 = vmul.f32 %v1669, 1.442695
      %v1678 = vpow.pop %v1677
      %v1679 = vmul.f32 %v1670, 1.442695
      %v1680 = vpow.pop %v1679
      %v1681 = vmul.f32 %v1671, 1.442695
      %v1682 = vpow.pop %v1681
      %v1683 = vmul.f32 %v1672, 1.442695
      %v1684 = vpow.pop %v1683
      %v1685 = vmul.f32 %v1673, 1.442695
      %v1686 = vpow.pop %v1685
      %v1687 = vmul.f32 %v1674, 1.442695
      %v1688 = vpow.pop %v1687
      %v1689 = vmul.f32 %v1675, 1.442695
      %v1690 = vpow.pop %v1689
      %v1691 = vmul.f32 %v1676, 1.442695
      %v1692 = vpow.pop %v1691
      %v1693 = vsel %vm928, %v1678, 0.0
      %1694 = vadd.xlane.f32.xlu0 %v1693
      %v1695 = vpop.xlane.xlu0 %1694
      %v1696 = vsel %vm928, %v1680, 0.0
      %1697 = vadd.xlane.f32.xlu0 %v1696
      %v1698 = vpop.xlane.xlu0 %1697
      %v1699 = vsel %vm928, %v1682, 0.0
      %1700 = vadd.xlane.f32.xlu0 %v1699
      %v1701 = vpop.xlane.xlu0 %1700
      %v1702 = vsel %vm928, %v1684, 0.0
      %1703 = vadd.xlane.f32.xlu0 %v1702
      %v1704 = vpop.xlane.xlu0 %1703
      %v1705 = vsel %vm928, %v1686, 0.0
      %1706 = vadd.xlane.f32.xlu0 %v1705
      %v1707 = vpop.xlane.xlu0 %1706
      %v1708 = vsel %vm928, %v1688, 0.0
      %1709 = vadd.xlane.f32.xlu0 %v1708
      %v1710 = vpop.xlane.xlu0 %1709
      %v1711 = vsel %vm928, %v1690, 0.0
      %1712 = vadd.xlane.f32.xlu0 %v1711
      %v1713 = vpop.xlane.xlu0 %1712
      %v1714 = vsel %vm928, %v1692, 0.0
      %1715 = vadd.xlane.f32.xlu0 %v1714
      %v1716 = vpop.xlane.xlu0 %1715
      %v1717 = vrcp.pop %v1695
      %v1718 = vrcp.pop %v1698
      %v1719 = vrcp.pop %v1701
      %v1720 = vrcp.pop %v1704
      %v1721 = vrcp.pop %v1707
      %v1722 = vrcp.pop %v1710
      %v1723 = vrcp.pop %v1713
      %v1724 = vrcp.pop %v1716
      %v1725 = vmul.f32 %v1678, %v1717
      %v1726 = vmul.f32 %v1680, %v1718
      %v1727 = vmul.f32 %v1682, %v1719
      %v1728 = vmul.f32 %v1684, %v1720
      %v1729 = vmul.f32 %v1686, %v1721
      %v1730 = vmul.f32 %v1688, %v1722
      %v1731 = vmul.f32 %v1690, %v1723
      %v1732 = vmul.f32 %v1692, %v1724
      %v1733 = vpack.c.bf16 %v1726, %v1725
      %v1734 = vpack.c.bf16 %v1728, %v1727
      %v1735 = vpack.c.bf16 %v1730, %v1729
      %v1736 = vpack.c.bf16 %v1732, %v1731
      %1737 = vrot.lane.b32.xlu0 %v1021, 96
      %v1738 = vpop.permute.xlu0 %1737
      %1739 = vrot.lane.b32.xlu0 %v1022, 96
      %v1740 = vpop.permute.xlu0 %1739
      %v1744 = vsel %vm928, %v1733, 0
      %v1747 = vsel %vm928, %v1734, 0
      %1749 = vmatprep.subr.bf16.mxu0 0
      %1750 = vmatpush1.bf16.msra.mxu0 %v1738
      %1751 = vmatprep.subr.bf16.mxu0 0
      %1752 = vmatpush1.bf16.msra.mxu0 %v1740
      %1753 = vmatprep.subr.bf16.mxu0 0
      %1754 = vmatpush1.bf16.msra.mxu0 0
      %1755 = vmatprep.subr.bf16.mxu0 0
      %1756 = vmatpush1.bf16.msra.mxu0 0
      %1757 = vmatprep.subr.bf16.mxu0 0
      %1758 = vmatpush1.bf16.msra.mxu0 0
      %1759 = vmatprep.subr.bf16.mxu0 0
      %1760 = vmatpush1.bf16.msra.mxu0 0
      %1761 = vmatprep.subr.bf16.mxu0 0
      %1762 = vmatpush1.bf16.msra.mxu0 0
      %1763 = vmatprep.subr.bf16.mxu0 0
      %1764 = vmatpush1.bf16.msra.mxu0 0
      %1765 = vmatprep.subr.bf16.mxu0 0
      %1766 = vmatpush1.bf16.msra.mxu0 0
      %1767 = vmatprep.subr.bf16.mxu0 0
      %1768 = vmatpush1.bf16.msra.mxu0 0
      %1769 = vmatprep.subr.bf16.mxu0 0
      %1770 = vmatpush1.bf16.msra.mxu0 0
      %1771 = vmatprep.subr.bf16.mxu0 0
      %1772 = vmatpush1.bf16.msra.mxu0 0
      %1773 = vmatprep.subr.bf16.mxu0 0
      %1774 = vmatpush1.bf16.msra.mxu0 0
      %1775 = vmatprep.subr.bf16.mxu0 0
      %1776 = vmatpush1.bf16.msra.mxu0 0
      %1777 = vmatprep.subr.bf16.mxu0 0
      %1778 = vmatpush1.bf16.msra.mxu0 0
      %1779 = vmatprep.subr.bf16.mxu0 0
      %1780 = vmatpush1.bf16.msra.mxu0 0
      %1781 = vmatprep.mubr.bf16.mxu0 0
      %1782 = vmatmul.mubr.bf16.gmra.mrb[0].mxu0 %v1744
      %v1783 = vpop.f32.mrb[0].mxu0
      %v1784 = vadd.f32 0.0, %v1783
      %v1785 = vpop.f32.mrb[0].mxu0
      %v1786 = vpop.f32.mrb[0].mxu0
      %v1787 = vadd.f32 0.0, %v1786
      %v1788 = vpop.f32.mrb[0].mxu0
      %1789 = vmatprep.mubr.bf16.mxu0 0
      %1790 = vmatmul.mubr.bf16.gmra.mrb[0].mxu0 %v1747
      %v1791 = vpop.f32.mrb[0].mxu0
      %v1792 = vadd.f32 0.0, %v1791
      %v1793 = vpop.f32.mrb[0].mxu0
      %v1794 = vpop.f32.mrb[0].mxu0
      %v1795 = vadd.f32 0.0, %v1794
      %v1796 = vpop.f32.mrb[0].mxu0
      %1797 = vdwg.mxu0
      %1798 = vrot.lane.b32.xlu0 %v1023, 96
      %v1799 = vpop.permute.xlu0 %1798
      %1800 = vrot.lane.b32.xlu0 %v1024, 96
      %v1801 = vpop.permute.xlu0 %1800
      %v1805 = vsel %vm928, %v1735, 0
      %v1808 = vsel %vm928, %v1736, 0
      %1810 = vmatprep.subr.bf16.mxu0 0
      %1811 = vmatpush1.bf16.msra.mxu0 %v1799
      %1812 = vmatprep.subr.bf16.mxu0 0
      %1813 = vmatpush1.bf16.msra.mxu0 %v1801
      %1814 = vmatprep.subr.bf16.mxu0 0
      %1815 = vmatpush1.bf16.msra.mxu0 0
      %1816 = vmatprep.subr.bf16.mxu0 0
      %1817 = vmatpush1.bf16.msra.mxu0 0
      %1818 = vmatprep.subr.bf16.mxu0 0
      %1819 = vmatpush1.bf16.msra.mxu0 0
      %1820 = vmatprep.subr.bf16.mxu0 0
      %1821 = vmatpush1.bf16.msra.mxu0 0
      %1822 = vmatprep.subr.bf16.mxu0 0
      %1823 = vmatpush1.bf16.msra.mxu0 0
      %1824 = vmatprep.subr.bf16.mxu0 0
      %1825 = vmatpush1.bf16.msra.mxu0 0
      %1826 = vmatprep.subr.bf16.mxu0 0
      %1827 = vmatpush1.bf16.msra.mxu0 0
      %1828 = vmatprep.subr.bf16.mxu0 0
      %1829 = vmatpush1.bf16.msra.mxu0 0
      %1830 = vmatprep.subr.bf16.mxu0 0
      %1831 = vmatpush1.bf16.msra.mxu0 0
      %1832 = vmatprep.subr.bf16.mxu0 0
      %1833 = vmatpush1.bf16.msra.mxu0 0
      %1834 = vmatprep.subr.bf16.mxu0 0
      %1835 = vmatpush1.bf16.msra.mxu0 0
      %1836 = vmatprep.subr.bf16.mxu0 0
      %1837 = vmatpush1.bf16.msra.mxu0 0
      %1838 = vmatprep.subr.bf16.mxu0 0
      %1839 = vmatpush1.bf16.msra.mxu0 0
      %1840 = vmatprep.subr.bf16.mxu0 0
      %1841 = vmatpush1.bf16.msra.mxu0 0
      %1842 = vmatprep.mubr.bf16.mxu0 0
      %1843 = vmatmul.mubr.bf16.gmra.mrb[0].mxu0 %v1805
      %v1844 = vpop.f32.mrb[0].mxu0
      %v1845 = vadd.f32 0.0, %v1844
      %v1846 = vpop.f32.mrb[0].mxu0
      %v1847 = vpop.f32.mrb[0].mxu0
      %v1848 = vadd.f32 0.0, %v1847
      %v1849 = vpop.f32.mrb[0].mxu0
      %1850 = vmatprep.mubr.bf16.mxu0 0
      %1851 = vmatmul.mubr.bf16.gmra.mrb[0].mxu0 %v1808
      %v1852 = vpop.f32.mrb[0].mxu0
      %v1853 = vadd.f32 0.0, %v1852
      %v1854 = vpop.f32.mrb[0].mxu0
      %v1855 = vpop.f32.mrb[0].mxu0
      %v1856 = vadd.f32 0.0, %v1855
      %v1857 = vpop.f32.mrb[0].mxu0
      %1858 = vdwg.mxu0
      %1859 = vrot.lane.b32.xlu0 %v781, 80
      %v1860 = vpop.permute.xlu0 %1859
      %1861 = vrot.lane.b32.xlu0 %v782, 80
      %v1862 = vpop.permute.xlu0 %1861
      %1863 = vrot.lane.b32.xlu0 %v781, 16
      %v1864 = vpop.permute.xlu0 %1863
      %1865 = vrot.lane.b32.xlu0 %v782, 16
      %v1866 = vpop.permute.xlu0 %1865
      %v1868 = vsel %vm791, %v1860, 0
      %v1871 = vsel %vm791, %v1862, 0
      %v1874 = vsel %vm791, %v1864, 0
      %v1877 = vsel %vm791, %v1866, 0
      %1879 = vmatprep.subr.bf16.mxu0 0
      %1880 = vmatpush1.bf16.xpose.msra.mxu0 %v1874
      %1881 = vmatprep.subr.bf16.mxu0 0
      %1882 = vmatpush1.bf16.xpose.msra.mxu0 %v1877
      %1883 = vmatprep.subr.bf16.mxu0 0
      %1884 = vmatpush1.bf16.xpose.msra.mxu0 0
      %1885 = vmatprep.subr.bf16.mxu0 0
      %1886 = vmatpush1.bf16.xpose.msra.mxu0 0
      %1887 = vmatprep.subr.bf16.mxu0 0
      %1888 = vmatpush1.bf16.xpose.msra.mxu0 0
      %1889 = vmatprep.subr.bf16.mxu0 0
      %1890 = vmatpush1.bf16.xpose.msra.mxu0 0
      %1891 = vmatprep.subr.bf16.mxu0 0
      %1892 = vmatpush1.bf16.xpose.msra.mxu0 0
      %1893 = vmatprep.subr.bf16.mxu0 0
      %1894 = vmatpush1.bf16.xpose.msra.mxu0 0
      %1895 = vmatprep.subr.bf16.mxu0 0
      %1896 = vmatpush1.bf16.xpose.msra.mxu0 0
      %1897 = vmatprep.subr.bf16.mxu0 0
      %1898 = vmatpush1.bf16.xpose.msra.mxu0 0
      %1899 = vmatprep.subr.bf16.mxu0 0
      %1900 = vmatpush1.bf16.xpose.msra.mxu0 0
      %1901 = vmatprep.subr.bf16.mxu0 0
      %1902 = vmatpush1.bf16.xpose.msra.mxu0 0
      %1903 = vmatprep.subr.bf16.mxu0 0
      %1904 = vmatpush1.bf16.xpose.msra.mxu0 0
      %1905 = vmatprep.subr.bf16.mxu0 0
      %1906 = vmatpush1.bf16.xpose.msra.mxu0 0
      %1907 = vmatprep.subr.bf16.mxu0 0
      %1908 = vmatpush1.bf16.xpose.msra.mxu0 0
      %1909 = vmatprep.subr.bf16.mxu0 0
      %1910 = vmatpush1.bf16.xpose.msra.mxu0 0
      %1911 = vmatprep.mubr.bf16.mxu0 0
      %1912 = vmatmul.mubr.bf16.gmra.mrb[0].mxu0 %v1868
      %v1913 = vpop.f32.mrb[0].mxu0
      %v1914 = vadd.f32 0.0, %v1913
      %v1915 = vpop.f32.mrb[0].mxu0
      %v1916 = vpop.f32.mrb[0].mxu0
      %v1917 = vadd.f32 0.0, %v1916
      %v1918 = vpop.f32.mrb[0].mxu0
      %1919 = vmatprep.mubr.bf16.mxu0 0
      %1920 = vmatmul.mubr.bf16.gmra.mrb[0].mxu0 %v1871
      %v1921 = vpop.f32.mrb[0].mxu0
      %v1922 = vadd.f32 0.0, %v1921
      %v1923 = vpop.f32.mrb[0].mxu0
      %v1924 = vpop.f32.mrb[0].mxu0
      %v1925 = vadd.f32 0.0, %v1924
      %v1926 = vpop.f32.mrb[0].mxu0
      %1927 = vdwg.mxu0
      %1928 = vrot.lane.b32.xlu0 %v783, 80
      %v1929 = vpop.permute.xlu0 %1928
      %1930 = vrot.lane.b32.xlu0 %v784, 80
      %v1931 = vpop.permute.xlu0 %1930
      %1932 = vrot.lane.b32.xlu0 %v783, 16
      %v1933 = vpop.permute.xlu0 %1932
      %1934 = vrot.lane.b32.xlu0 %v784, 16
      %v1935 = vpop.permute.xlu0 %1934
      %v1937 = vsel %vm791, %v1929, 0
      %v1940 = vsel %vm791, %v1931, 0
      %v1943 = vsel %vm791, %v1933, 0
      %v1946 = vsel %vm791, %v1935, 0
      %1948 = vmatprep.subr.bf16.mxu0 0
      %1949 = vmatpush1.bf16.xpose.msra.mxu0 %v1943
      %1950 = vmatprep.subr.bf16.mxu0 0
      %1951 = vmatpush1.bf16.xpose.msra.mxu0 %v1946
      %1952 = vmatprep.subr.bf16.mxu0 0
      %1953 = vmatpush1.bf16.xpose.msra.mxu0 0
      %1954 = vmatprep.subr.bf16.mxu0 0
      %1955 = vmatpush1.bf16.xpose.msra.mxu0 0
      %1956 = vmatprep.subr.bf16.mxu0 0
      %1957 = vmatpush1.bf16.xpose.msra.mxu0 0
      %1958 = vmatprep.subr.bf16.mxu0 0
      %1959 = vmatpush1.bf16.xpose.msra.mxu0 0
      %1960 = vmatprep.subr.bf16.mxu0 0
      %1961 = vmatpush1.bf16.xpose.msra.mxu0 0
      %1962 = vmatprep.subr.bf16.mxu0 0
      %1963 = vmatpush1.bf16.xpose.msra.mxu0 0
      %1964 = vmatprep.subr.bf16.mxu0 0
      %1965 = vmatpush1.bf16.xpose.msra.mxu0 0
      %1966 = vmatprep.subr.bf16.mxu0 0
      %1967 = vmatpush1.bf16.xpose.msra.mxu0 0
      %1968 = vmatprep.subr.bf16.mxu0 0
      %1969 = vmatpush1.bf16.xpose.msra.mxu0 0
      %1970 = vmatprep.subr.bf16.mxu0 0
      %1971 = vmatpush1.bf16.xpose.msra.mxu0 0
      %1972 = vmatprep.subr.bf16.mxu0 0
      %1973 = vmatpush1.bf16.xpose.msra.mxu0 0
      %1974 = vmatprep.subr.bf16.mxu0 0
      %1975 = vmatpush1.bf16.xpose.msra.mxu0 0
      %1976 = vmatprep.subr.bf16.mxu0 0
      %1977 = vmatpush1.bf16.xpose.msra.mxu0 0
      %1978 = vmatprep.subr.bf16.mxu0 0
      %1979 = vmatpush1.bf16.xpose.msra.mxu0 0
      %1980 = vmatprep.mubr.bf16.mxu0 0
      %1981 = vmatmul.mubr.bf16.gmra.mrb[0].mxu0 %v1937
      %v1982 = vpop.f32.mrb[0].mxu0
      %v1983 = vadd.f32 0.0, %v1982
      %v1984 = vpop.f32.mrb[0].mxu0
      %v1985 = vpop.f32.mrb[0].mxu0
      %v1986 = vadd.f32 0.0, %v1985
      %v1987 = vpop.f32.mrb[0].mxu0
      %1988 = vmatprep.mubr.bf16.mxu0 0
      %1989 = vmatmul.mubr.bf16.gmra.mrb[0].mxu0 %v1940
      %v1990 = vpop.f32.mrb[0].mxu0
      %v1991 = vadd.f32 0.0, %v1990
      %v1992 = vpop.f32.mrb[0].mxu0
      %v1993 = vpop.f32.mrb[0].mxu0
      %v1994 = vadd.f32 0.0, %v1993
      %v1995 = vpop.f32.mrb[0].mxu0
      %1996 = vdwg.mxu0
      %v1997 = vmul.f32 %v1914, 0.25
      %v1998 = vmul.f32 %v1917, 0.25
      %v1999 = vmul.f32 %v1922, 0.25
      %v2000 = vmul.f32 %v1925, 0.25
      %v2001 = vmul.f32 %v1983, 0.25
      %v2002 = vmul.f32 %v1986, 0.25
      %v2003 = vmul.f32 %v1991, 0.25
      %v2004 = vmul.f32 %v1994, 0.25
      %v2005 = vsel %vm928, %v1997, -inf
      %2006 = vmax.xlane.f32.xlu0 %v2005
      %v2007 = vpop.xlane.xlu0 %2006
      %v2008 = vsel %vm928, %v1998, -inf
      %2009 = vmax.xlane.f32.xlu0 %v2008
      %v2010 = vpop.xlane.xlu0 %2009
      %v2011 = vsel %vm928, %v1999, -inf
      %2012 = vmax.xlane.f32.xlu0 %v2011
      %v2013 = vpop.xlane.xlu0 %2012
      %v2014 = vsel %vm928, %v2000, -inf
      %2015 = vmax.xlane.f32.xlu0 %v2014
      %v2016 = vpop.xlane.xlu0 %2015
      %v2017 = vsel %vm928, %v2001, -inf
      %2018 = vmax.xlane.f32.xlu0 %v2017
      %v2019 = vpop.xlane.xlu0 %2018
      %v2020 = vsel %vm928, %v2002, -inf
      %2021 = vmax.xlane.f32.xlu0 %v2020
      %v2022 = vpop.xlane.xlu0 %2021
      %v2023 = vsel %vm928, %v2003, -inf
      %2024 = vmax.xlane.f32.xlu0 %v2023
      %v2025 = vpop.xlane.xlu0 %2024
      %v2026 = vsel %vm928, %v2004, -inf
      %2027 = vmax.xlane.f32.xlu0 %v2026
      %v2028 = vpop.xlane.xlu0 %2027
      %v2029 = vsub.f32 %v1997, %v2007
      %v2030 = vsub.f32 %v1998, %v2010
      %v2031 = vsub.f32 %v1999, %v2013
      %v2032 = vsub.f32 %v2000, %v2016
      %v2033 = vsub.f32 %v2001, %v2019
      %v2034 = vsub.f32 %v2002, %v2022
      %v2035 = vsub.f32 %v2003, %v2025
      %v2036 = vsub.f32 %v2004, %v2028
      %v2037 = vmul.f32 %v2029, 1.442695
      %v2038 = vpow.pop %v2037
      %v2039 = vmul.f32 %v2030, 1.442695
      %v2040 = vpow.pop %v2039
      %v2041 = vmul.f32 %v2031, 1.442695
      %v2042 = vpow.pop %v2041
      %v2043 = vmul.f32 %v2032, 1.442695
      %v2044 = vpow.pop %v2043
      %v2045 = vmul.f32 %v2033, 1.442695
      %v2046 = vpow.pop %v2045
      %v2047 = vmul.f32 %v2034, 1.442695
      %v2048 = vpow.pop %v2047
      %v2049 = vmul.f32 %v2035, 1.442695
      %v2050 = vpow.pop %v2049
      %v2051 = vmul.f32 %v2036, 1.442695
      %v2052 = vpow.pop %v2051
      %v2053 = vsel %vm928, %v2038, 0.0
      %2054 = vadd.xlane.f32.xlu0 %v2053
      %v2055 = vpop.xlane.xlu0 %2054
      %v2056 = vsel %vm928, %v2040, 0.0
      %2057 = vadd.xlane.f32.xlu0 %v2056
      %v2058 = vpop.xlane.xlu0 %2057
      %v2059 = vsel %vm928, %v2042, 0.0
      %2060 = vadd.xlane.f32.xlu0 %v2059
      %v2061 = vpop.xlane.xlu0 %2060
      %v2062 = vsel %vm928, %v2044, 0.0
      %2063 = vadd.xlane.f32.xlu0 %v2062
      %v2064 = vpop.xlane.xlu0 %2063
      %v2065 = vsel %vm928, %v2046, 0.0
      %2066 = vadd.xlane.f32.xlu0 %v2065
      %v2067 = vpop.xlane.xlu0 %2066
      %v2068 = vsel %vm928, %v2048, 0.0
      %2069 = vadd.xlane.f32.xlu0 %v2068
      %v2070 = vpop.xlane.xlu0 %2069
      %v2071 = vsel %vm928, %v2050, 0.0
      %2072 = vadd.xlane.f32.xlu0 %v2071
      %v2073 = vpop.xlane.xlu0 %2072
      %v2074 = vsel %vm928, %v2052, 0.0
      %2075 = vadd.xlane.f32.xlu0 %v2074
      %v2076 = vpop.xlane.xlu0 %2075
      %v2077 = vrcp.pop %v2055
      %v2078 = vrcp.pop %v2058
      %v2079 = vrcp.pop %v2061
      %v2080 = vrcp.pop %v2064
      %v2081 = vrcp.pop %v2067
      %v2082 = vrcp.pop %v2070
      %v2083 = vrcp.pop %v2073
      %v2084 = vrcp.pop %v2076
      %v2085 = vmul.f32 %v2038, %v2077
      %v2086 = vmul.f32 %v2040, %v2078
      %v2087 = vmul.f32 %v2042, %v2079
      %v2088 = vmul.f32 %v2044, %v2080
      %v2089 = vmul.f32 %v2046, %v2081
      %v2090 = vmul.f32 %v2048, %v2082
      %v2091 = vmul.f32 %v2050, %v2083
      %v2092 = vmul.f32 %v2052, %v2084
      %v2093 = vpack.c.bf16 %v2086, %v2085
      %v2094 = vpack.c.bf16 %v2088, %v2087
      %v2095 = vpack.c.bf16 %v2090, %v2089
      %v2096 = vpack.c.bf16 %v2092, %v2091
      %2097 = vrot.lane.b32.xlu0 %v1021, 80
      %v2098 = vpop.permute.xlu0 %2097
      %2099 = vrot.lane.b32.xlu0 %v1022, 80
      %v2100 = vpop.permute.xlu0 %2099
      %v2104 = vsel %vm928, %v2093, 0
      %v2107 = vsel %vm928, %v2094, 0
      %2109 = vmatprep.subr.bf16.mxu0 0
      %2110 = vmatpush1.bf16.msra.mxu0 %v2098
      %2111 = vmatprep.subr.bf16.mxu0 0
      %2112 = vmatpush1.bf16.msra.mxu0 %v2100
      %2113 = vmatprep.subr.bf16.mxu0 0
      %2114 = vmatpush1.bf16.msra.mxu0 0
      %2115 = vmatprep.subr.bf16.mxu0 0
      %2116 = vmatpush1.bf16.msra.mxu0 0
      %2117 = vmatprep.subr.bf16.mxu0 0
      %2118 = vmatpush1.bf16.msra.mxu0 0
      %2119 = vmatprep.subr.bf16.mxu0 0
      %2120 = vmatpush1.bf16.msra.mxu0 0
      %2121 = vmatprep.subr.bf16.mxu0 0
      %2122 = vmatpush1.bf16.msra.mxu0 0
      %2123 = vmatprep.subr.bf16.mxu0 0
      %2124 = vmatpush1.bf16.msra.mxu0 0
      %2125 = vmatprep.subr.bf16.mxu0 0
      %2126 = vmatpush1.bf16.msra.mxu0 0
      %2127 = vmatprep.subr.bf16.mxu0 0
      %2128 = vmatpush1.bf16.msra.mxu0 0
      %2129 = vmatprep.subr.bf16.mxu0 0
      %2130 = vmatpush1.bf16.msra.mxu0 0
      %2131 = vmatprep.subr.bf16.mxu0 0
      %2132 = vmatpush1.bf16.msra.mxu0 0
      %2133 = vmatprep.subr.bf16.mxu0 0
      %2134 = vmatpush1.bf16.msra.mxu0 0
      %2135 = vmatprep.subr.bf16.mxu0 0
      %2136 = vmatpush1.bf16.msra.mxu0 0
      %2137 = vmatprep.subr.bf16.mxu0 0
      %2138 = vmatpush1.bf16.msra.mxu0 0
      %2139 = vmatprep.subr.bf16.mxu0 0
      %2140 = vmatpush1.bf16.msra.mxu0 0
      %2141 = vmatprep.mubr.bf16.mxu0 0
      %2142 = vmatmul.mubr.bf16.gmra.mrb[0].mxu0 %v2104
      %v2143 = vpop.f32.mrb[0].mxu0
      %v2144 = vadd.f32 0.0, %v2143
      %v2145 = vpop.f32.mrb[0].mxu0
      %v2146 = vpop.f32.mrb[0].mxu0
      %v2147 = vadd.f32 0.0, %v2146
      %v2148 = vpop.f32.mrb[0].mxu0
      %2149 = vmatprep.mubr.bf16.mxu0 0
      %2150 = vmatmul.mubr.bf16.gmra.mrb[0].mxu0 %v2107
      %v2151 = vpop.f32.mrb[0].mxu0
      %v2152 = vadd.f32 0.0, %v2151
      %v2153 = vpop.f32.mrb[0].mxu0
      %v2154 = vpop.f32.mrb[0].mxu0
      %v2155 = vadd.f32 0.0, %v2154
      %v2156 = vpop.f32.mrb[0].mxu0
      %2157 = vdwg.mxu0
      %2158 = vrot.lane.b32.xlu0 %v1023, 80
      %v2159 = vpop.permute.xlu0 %2158
      %2160 = vrot.lane.b32.xlu0 %v1024, 80
      %v2161 = vpop.permute.xlu0 %2160
      %v2165 = vsel %vm928, %v2095, 0
      %v2168 = vsel %vm928, %v2096, 0
      %2170 = vmatprep.subr.bf16.mxu0 0
      %2171 = vmatpush1.bf16.msra.mxu0 %v2159
      %2172 = vmatprep.subr.bf16.mxu0 0
      %2173 = vmatpush1.bf16.msra.mxu0 %v2161
      %2174 = vmatprep.subr.bf16.mxu0 0
      %2175 = vmatpush1.bf16.msra.mxu0 0
      %2176 = vmatprep.subr.bf16.mxu0 0
      %2177 = vmatpush1.bf16.msra.mxu0 0
      %2178 = vmatprep.subr.bf16.mxu0 0
      %2179 = vmatpush1.bf16.msra.mxu0 0
      %2180 = vmatprep.subr.bf16.mxu0 0
      %2181 = vmatpush1.bf16.msra.mxu0 0
      %2182 = vmatprep.subr.bf16.mxu0 0
      %2183 = vmatpush1.bf16.msra.mxu0 0
      %2184 = vmatprep.subr.bf16.mxu0 0
      %2185 = vmatpush1.bf16.msra.mxu0 0
      %2186 = vmatprep.subr.bf16.mxu0 0
      %2187 = vmatpush1.bf16.msra.mxu0 0
      %2188 = vmatprep.subr.bf16.mxu0 0
      %2189 = vmatpush1.bf16.msra.mxu0 0
      %2190 = vmatprep.subr.bf16.mxu0 0
      %2191 = vmatpush1.bf16.msra.mxu0 0
      %2192 = vmatprep.subr.bf16.mxu0 0
      %2193 = vmatpush1.bf16.msra.mxu0 0
      %2194 = vmatprep.subr.bf16.mxu0 0
      %2195 = vmatpush1.bf16.msra.mxu0 0
      %2196 = vmatprep.subr.bf16.mxu0 0
      %2197 = vmatpush1.bf16.msra.mxu0 0
      %2198 = vmatprep.subr.bf16.mxu0 0
      %2199 = vmatpush1.bf16.msra.mxu0 0
      %2200 = vmatprep.subr.bf16.mxu0 0
      %2201 = vmatpush1.bf16.msra.mxu0 0
      %2202 = vmatprep.mubr.bf16.mxu0 0
      %2203 = vmatmul.mubr.bf16.gmra.mrb[0].mxu0 %v2165
      %v2204 = vpop.f32.mrb[0].mxu0
      %v2205 = vadd.f32 0.0, %v2204
      %v2206 = vpop.f32.mrb[0].mxu0
      %v2207 = vpop.f32.mrb[0].mxu0
      %v2208 = vadd.f32 0.0, %v2207
      %v2209 = vpop.f32.mrb[0].mxu0
      %2210 = vmatprep.mubr.bf16.mxu0 0
      %2211 = vmatmul.mubr.bf16.gmra.mrb[0].mxu0 %v2168
      %v2212 = vpop.f32.mrb[0].mxu0
      %v2213 = vadd.f32 0.0, %v2212
      %v2214 = vpop.f32.mrb[0].mxu0
      %v2215 = vpop.f32.mrb[0].mxu0
      %v2216 = vadd.f32 0.0, %v2215
      %v2217 = vpop.f32.mrb[0].mxu0
      %2218 = vdwg.mxu0
      %2227 = vrot.lane.b32.xlu0 %v1422, 16
      %v2228 = vpop.permute.xlu0 %2227
      %2229 = vrot.lane.b32.xlu0 %v1425, 16
      %v2230 = vpop.permute.xlu0 %2229
      %2231 = vrot.lane.b32.xlu0 %v1430, 16
      %v2232 = vpop.permute.xlu0 %2231
      %2233 = vrot.lane.b32.xlu0 %v1433, 16
      %v2234 = vpop.permute.xlu0 %2233
      %2235 = vrot.lane.b32.xlu0 %v1485, 16
      %v2236 = vpop.permute.xlu0 %2235
      %2237 = vrot.lane.b32.xlu0 %v1488, 16
      %v2238 = vpop.permute.xlu0 %2237
      %2239 = vrot.lane.b32.xlu0 %v1493, 16
      %v2240 = vpop.permute.xlu0 %2239
      %2241 = vrot.lane.b32.xlu0 %v1496, 16
      %v2242 = vpop.permute.xlu0 %2241
      %2259 = vrot.lane.b32.xlu0 %v1784, 32
      %v2260 = vpop.permute.xlu0 %2259
      %2261 = vrot.lane.b32.xlu0 %v1787, 32
      %v2262 = vpop.permute.xlu0 %2261
      %2263 = vrot.lane.b32.xlu0 %v1792, 32
      %v2264 = vpop.permute.xlu0 %2263
      %2265 = vrot.lane.b32.xlu0 %v1795, 32
      %v2266 = vpop.permute.xlu0 %2265
      %2267 = vrot.lane.b32.xlu0 %v1845, 32
      %v2268 = vpop.permute.xlu0 %2267
      %2269 = vrot.lane.b32.xlu0 %v1848, 32
      %v2270 = vpop.permute.xlu0 %2269
      %2271 = vrot.lane.b32.xlu0 %v1853, 32
      %v2272 = vpop.permute.xlu0 %2271
      %2273 = vrot.lane.b32.xlu0 %v1856, 32
      %v2274 = vpop.permute.xlu0 %2273
      %2291 = vrot.lane.b32.xlu0 %v2144, 48
      %v2292 = vpop.permute.xlu0 %2291
      %2293 = vrot.lane.b32.xlu0 %v2147, 48
      %v2294 = vpop.permute.xlu0 %2293
      %2295 = vrot.lane.b32.xlu0 %v2152, 48
      %v2296 = vpop.permute.xlu0 %2295
      %2297 = vrot.lane.b32.xlu0 %v2155, 48
      %v2298 = vpop.permute.xlu0 %2297
      %2299 = vrot.lane.b32.xlu0 %v2205, 48
      %v2300 = vpop.permute.xlu0 %2299
      %2301 = vrot.lane.b32.xlu0 %v2208, 48
      %v2302 = vpop.permute.xlu0 %2301
      %2303 = vrot.lane.b32.xlu0 %v2213, 48
      %v2304 = vpop.permute.xlu0 %2303
      %2305 = vrot.lane.b32.xlu0 %v2216, 48
      %v2306 = vpop.permute.xlu0 %2305
      %v2315 = vsel %vm791, %v1066, %v2228
      %v2316 = vsel %vm791, %v1069, %v2230
      %v2317 = vsel %vm791, %v1074, %v2232
      %v2318 = vsel %vm791, %v1077, %v2234
      %v2319 = vsel %vm791, %v1121, %v2236
      %v2320 = vsel %vm791, %v1124, %v2238
      %v2321 = vsel %vm791, %v1129, %v2240
      %v2322 = vsel %vm791, %v1132, %v2242
      %v2323 = vsel %vm928, %v2315, %v2260
      %v2324 = vsel %vm928, %v2316, %v2262
      %v2325 = vsel %vm928, %v2317, %v2264
      %v2326 = vsel %vm928, %v2318, %v2266
      %v2327 = vsel %vm928, %v2319, %v2268
      %v2328 = vsel %vm928, %v2320, %v2270
      %v2329 = vsel %vm928, %v2321, %v2272
      %v2330 = vsel %vm928, %v2322, %v2274
      %vm2331 = vcmask 392192
      %v2332 = vsel %vm2331, %v2323, %v2292
      %v2333 = vsel %vm2331, %v2324, %v2294
      %v2334 = vsel %vm2331, %v2325, %v2296
      %v2335 = vsel %vm2331, %v2326, %v2298
      %v2336 = vsel %vm2331, %v2327, %v2300
      %v2337 = vsel %vm2331, %v2328, %v2302
      %v2338 = vsel %vm2331, %v2329, %v2304
      %v2339 = vsel %vm2331, %v2330, %v2306
      %v2340 = vld [vmem:[%s569] sm:$0xf]
      %v2341 = vld [vmem:[%s569 + $0x4] sm:$0xf]
      %v2342 = vld [vmem:[%s569 + $0x8] sm:$0xf]
      %v2343 = vld [vmem:[%s569 + $0xc] sm:$0xf]
      %v2344 = vld [vmem:[%s569 + $0x10] sm:$0xf]
      %v2345 = vld [vmem:[%s569 + $0x14] sm:$0xf]
      %v2346 = vld [vmem:[%s569 + $0x18] sm:$0xf]
      %v2347 = vld [vmem:[%s569 + $0x1c] sm:$0xf]
      %v2348 = vpack.c.bf16 %v2333, %v2332
      %v2349 = vpack.c.bf16 %v2335, %v2334
      %v2350 = vpack.c.bf16 %v2337, %v2336
      %v2351 = vpack.c.bf16 %v2339, %v2338
      %v2352 = vld [vmem:[%s572] sm:$0x1]
      %v2354 = vlaneseq
      %v2355 = vshrl.u32 %v2354, 7
      %v2356 = vsub.s32 0, %v2355
      %v2357 = vrot.slane %v2352, %v2356
      %v2367 = vunpack.c.l.b16 %v2340
      %v2368 = vunpack.c.l.b16 %v2341
      %v2369 = vunpack.c.l.b16 %v2342
      %v2370 = vunpack.c.l.b16 %v2343
      %v2371 = vunpack.c.l.b16 %v2344
      %v2372 = vunpack.c.l.b16 %v2345
      %v2373 = vunpack.c.l.b16 %v2346
      %v2374 = vunpack.c.l.b16 %v2347
      %v2375 = vpack.c.b16 %v2368, %v2367
      %v2376 = vpack.c.b16 %v2370, %v2369
      %v2377 = vpack.c.b16 %v2372, %v2371
      %v2378 = vpack.c.b16 %v2374, %v2373
      %v2384 = vsel %vm695, %v2348, 0
      %v2387 = vsel %vm695, %v2349, 0
      %v2390 = vsel %vm695, %v2350, 0
      %v2393 = vsel %vm695, %v2351, 0
      %2395 = vmatprep.subr.bf16.mxu0 0
      %2396 = vmatpush1.bf16.msra.mxu0 %v2375
      %2397 = vmatprep.subr.bf16.mxu0 0
      %2398 = vmatpush1.bf16.msra.mxu0 %v2376
      %2399 = vmatprep.subr.bf16.mxu0 0
      %2400 = vmatpush1.bf16.msra.mxu0 %v2377
      %2401 = vmatprep.subr.bf16.mxu0 0
      %2402 = vmatpush1.bf16.msra.mxu0 %v2378
      %2403 = vmatprep.subr.bf16.mxu0 0
      %2404 = vmatpush1.bf16.msra.mxu0 0
      %2405 = vmatprep.subr.bf16.mxu0 0
      %2406 = vmatpush1.bf16.msra.mxu0 0
      %2407 = vmatprep.subr.bf16.mxu0 0
      %2408 = vmatpush1.bf16.msra.mxu0 0
      %2409 = vmatprep.subr.bf16.mxu0 0
      %2410 = vmatpush1.bf16.msra.mxu0 0
      %2411 = vmatprep.subr.bf16.mxu0 0
      %2412 = vmatpush1.bf16.msra.mxu0 0
      %2413 = vmatprep.subr.bf16.mxu0 0
      %2414 = vmatpush1.bf16.msra.mxu0 0
      %2415 = vmatprep.subr.bf16.mxu0 0
      %2416 = vmatpush1.bf16.msra.mxu0 0
      %2417 = vmatprep.subr.bf16.mxu0 0
      %2418 = vmatpush1.bf16.msra.mxu0 0
      %2419 = vmatprep.subr.bf16.mxu0 0
      %2420 = vmatpush1.bf16.msra.mxu0 0
      %2421 = vmatprep.subr.bf16.mxu0 0
      %2422 = vmatpush1.bf16.msra.mxu0 0
      %2423 = vmatprep.subr.bf16.mxu0 0
      %2424 = vmatpush1.bf16.msra.mxu0 0
      %2425 = vmatprep.subr.bf16.mxu0 0
      %2426 = vmatpush1.bf16.msra.mxu0 0
      %2427 = vmatprep.mubr.bf16.mxu0 0
      %2428 = vmatmul.mubr.bf16.gmra.mrb[0].mxu0 %v2384
      %v2429 = vpop.f32.mrb[0].mxu0
      %v2430 = vadd.f32 %v2357, %v2429
      %v2431 = vpop.f32.mrb[0].mxu0
      %v2432 = vpop.f32.mrb[0].mxu0
      %v2433 = vadd.f32 %v2357, %v2432
      %v2434 = vpop.f32.mrb[0].mxu0
      %2435 = vmatprep.mubr.bf16.mxu0 0
      %2436 = vmatmul.mubr.bf16.gmra.mrb[0].mxu0 %v2387
      %v2437 = vpop.f32.mrb[0].mxu0
      %v2438 = vadd.f32 %v2357, %v2437
      %v2439 = vpop.f32.mrb[0].mxu0
      %v2440 = vpop.f32.mrb[0].mxu0
      %v2441 = vadd.f32 %v2357, %v2440
      %v2442 = vpop.f32.mrb[0].mxu0
      %2443 = vmatprep.mubr.bf16.mxu0 0
      %2444 = vmatmul.mubr.bf16.gmra.mrb[0].mxu0 %v2390
      %v2445 = vpop.f32.mrb[0].mxu0
      %v2446 = vadd.f32 %v2357, %v2445
      %v2447 = vpop.f32.mrb[0].mxu0
      %v2448 = vpop.f32.mrb[0].mxu0
      %v2449 = vadd.f32 %v2357, %v2448
      %v2450 = vpop.f32.mrb[0].mxu0
      %2451 = vmatprep.mubr.bf16.mxu0 0
      %2452 = vmatmul.mubr.bf16.gmra.mrb[0].mxu0 %v2393
      %v2453 = vpop.f32.mrb[0].mxu0
      %v2454 = vadd.f32 %v2357, %v2453
      %v2455 = vpop.f32.mrb[0].mxu0
      %v2456 = vpop.f32.mrb[0].mxu0
      %v2457 = vadd.f32 %v2357, %v2456
      %v2458 = vpop.f32.mrb[0].mxu0
      %2459 = vdwg.mxu0
      %v2460 = vadd.f32 %v623, %v2430
      %v2461 = vadd.f32 %v624, %v2433
      %v2462 = vadd.f32 %v625, %v2438
      %v2463 = vadd.f32 %v626, %v2441
      %v2464 = vadd.f32 %v627, %v2446
      %v2465 = vadd.f32 %v628, %v2449
      %v2466 = vadd.f32 %v629, %v2454
      %v2467 = vadd.f32 %v630, %v2457
      %v2468 = vld [vmem:[%s575] sm:$0x1]
      %v2469 = vld [vmem:[%s578] sm:$0x1]
      %v2470 = vsel %vm695, %v2460, 0.0
      %2471 = vadd.xlane.f32.xlu0 %v2470
      %v2472 = vpop.xlane.xlu0 %2471
      %v2473 = vsel %vm695, %v2461, 0.0
      %2474 = vadd.xlane.f32.xlu0 %v2473
      %v2475 = vpop.xlane.xlu0 %2474
      %v2476 = vsel %vm695, %v2462, 0.0
      %2477 = vadd.xlane.f32.xlu0 %v2476
      %v2478 = vpop.xlane.xlu0 %2477
      %v2479 = vsel %vm695, %v2463, 0.0
      %2480 = vadd.xlane.f32.xlu0 %v2479
      %v2481 = vpop.xlane.xlu0 %2480
      %v2482 = vsel %vm695, %v2464, 0.0
      %2483 = vadd.xlane.f32.xlu0 %v2482
      %v2484 = vpop.xlane.xlu0 %2483
      %v2485 = vsel %vm695, %v2465, 0.0
      %2486 = vadd.xlane.f32.xlu0 %v2485
      %v2487 = vpop.xlane.xlu0 %2486
      %v2488 = vsel %vm695, %v2466, 0.0
      %2489 = vadd.xlane.f32.xlu0 %v2488
      %v2490 = vpop.xlane.xlu0 %2489
      %v2491 = vsel %vm695, %v2467, 0.0
      %2492 = vadd.xlane.f32.xlu0 %v2491
      %v2493 = vpop.xlane.xlu0 %2492
      %v2494 = vrcp.pop 64.0
      %v2495 = vmul.f32 %v2472, %v2494
      %v2496 = vmul.f32 %v2475, %v2494
      %v2497 = vmul.f32 %v2478, %v2494
      %v2498 = vmul.f32 %v2481, %v2494
      %v2499 = vmul.f32 %v2484, %v2494
      %v2500 = vmul.f32 %v2487, %v2494
      %v2501 = vmul.f32 %v2490, %v2494
      %v2502 = vmul.f32 %v2493, %v2494
      %v2503 = vsub.f32 %v2460, %v2495
      %v2504 = vsub.f32 %v2461, %v2496
      %v2505 = vsub.f32 %v2462, %v2497
      %v2506 = vsub.f32 %v2463, %v2498
      %v2507 = vsub.f32 %v2464, %v2499
      %v2508 = vsub.f32 %v2465, %v2500
      %v2509 = vsub.f32 %v2466, %v2501
      %v2510 = vsub.f32 %v2467, %v2502
      %v2511 = vmul.f32 %v2503, %v2503
      %v2512 = vmul.f32 %v2504, %v2504
      %v2513 = vmul.f32 %v2505, %v2505
      %v2514 = vmul.f32 %v2506, %v2506
      %v2515 = vmul.f32 %v2507, %v2507
      %v2516 = vmul.f32 %v2508, %v2508
      %v2517 = vmul.f32 %v2509, %v2509
      %v2518 = vmul.f32 %v2510, %v2510
      %v2519 = vsel %vm695, %v2511, 0.0
      %2520 = vadd.xlane.f32.xlu0 %v2519
      %v2521 = vpop.xlane.xlu0 %2520
      %v2522 = vsel %vm695, %v2512, 0.0
      %2523 = vadd.xlane.f32.xlu0 %v2522
      %v2524 = vpop.xlane.xlu0 %2523
      %v2525 = vsel %vm695, %v2513, 0.0
      %2526 = vadd.xlane.f32.xlu0 %v2525
      %v2527 = vpop.xlane.xlu0 %2526
      %v2528 = vsel %vm695, %v2514, 0.0
      %2529 = vadd.xlane.f32.xlu0 %v2528
      %v2530 = vpop.xlane.xlu0 %2529
      %v2531 = vsel %vm695, %v2515, 0.0
      %2532 = vadd.xlane.f32.xlu0 %v2531
      %v2533 = vpop.xlane.xlu0 %2532
      %v2534 = vsel %vm695, %v2516, 0.0
      %2535 = vadd.xlane.f32.xlu0 %v2534
      %v2536 = vpop.xlane.xlu0 %2535
      %v2537 = vsel %vm695, %v2517, 0.0
      %2538 = vadd.xlane.f32.xlu0 %v2537
      %v2539 = vpop.xlane.xlu0 %2538
      %v2540 = vsel %vm695, %v2518, 0.0
      %2541 = vadd.xlane.f32.xlu0 %v2540
      %v2542 = vpop.xlane.xlu0 %2541
      %v2543 = vmul.f32 %v2521, %v2494
      %v2544 = vmul.f32 %v2524, %v2494
      %v2545 = vmul.f32 %v2527, %v2494
      %v2546 = vmul.f32 %v2530, %v2494
      %v2547 = vmul.f32 %v2533, %v2494
      %v2548 = vmul.f32 %v2536, %v2494
      %v2549 = vmul.f32 %v2539, %v2494
      %v2550 = vmul.f32 %v2542, %v2494
      %v2551 = vadd.f32 %v2543, 1e-05
      %v2552 = vadd.f32 %v2544, 1e-05
      %v2553 = vadd.f32 %v2545, 1e-05
      %v2554 = vadd.f32 %v2546, 1e-05
      %v2555 = vadd.f32 %v2547, 1e-05
      %v2556 = vadd.f32 %v2548, 1e-05
      %v2557 = vadd.f32 %v2549, 1e-05
      %v2558 = vadd.f32 %v2550, 1e-05
      %v2559 = vrsqrt.pop %v2551
      %v2560 = vrsqrt.pop %v2552
      %v2561 = vrsqrt.pop %v2553
      %v2562 = vrsqrt.pop %v2554
      %v2563 = vrsqrt.pop %v2555
      %v2564 = vrsqrt.pop %v2556
      %v2565 = vrsqrt.pop %v2557
      %v2566 = vrsqrt.pop %v2558
      %v2567 = vmul.f32 %v2503, %v2559
      %v2568 = vmul.f32 %v2504, %v2560
      %v2569 = vmul.f32 %v2505, %v2561
      %v2570 = vmul.f32 %v2506, %v2562
      %v2571 = vmul.f32 %v2507, %v2563
      %v2572 = vmul.f32 %v2508, %v2564
      %v2573 = vmul.f32 %v2509, %v2565
      %v2574 = vmul.f32 %v2510, %v2566
      %v2576 = vlaneseq
      %v2577 = vshrl.u32 %v2576, 7
      %v2578 = vsub.s32 0, %v2577
      %v2579 = vrot.slane %v2468, %v2578
      %v2581 = vmul.f32 %v2567, %v2579
      %v2582 = vmul.f32 %v2568, %v2579
      %v2583 = vmul.f32 %v2569, %v2579
      %v2584 = vmul.f32 %v2570, %v2579
      %v2585 = vmul.f32 %v2571, %v2579
      %v2586 = vmul.f32 %v2572, %v2579
      %v2587 = vmul.f32 %v2573, %v2579
      %v2588 = vmul.f32 %v2574, %v2579
      %v2590 = vlaneseq
      %v2591 = vshrl.u32 %v2590, 7
      %v2592 = vsub.s32 0, %v2591
      %v2593 = vrot.slane %v2469, %v2592
      %v2595 = vadd.f32 %v2581, %v2593
      %v2596 = vadd.f32 %v2582, %v2593
      %v2597 = vadd.f32 %v2583, %v2593
      %v2598 = vadd.f32 %v2584, %v2593
      %v2599 = vadd.f32 %v2585, %v2593
      %v2600 = vadd.f32 %v2586, %v2593
      %v2601 = vadd.f32 %v2587, %v2593
      %v2602 = vadd.f32 %v2588, %v2593
      %v2603 = vld [vmem:[%s583] sm:$0xf]
      %v2604 = vld [vmem:[%s583 + $0x4] sm:$0xf]
      %v2605 = vld [vmem:[%s583 + $0x8] sm:$0xf]
      %v2606 = vld [vmem:[%s583 + $0xc] sm:$0xf]
      %v2607 = vld [vmem:[%s583 + $0x10] sm:$0xf]
      %v2608 = vld [vmem:[%s583 + $0x14] sm:$0xf]
      %v2609 = vld [vmem:[%s583 + $0x18] sm:$0xf]
      %v2610 = vld [vmem:[%s583 + $0x1c] sm:$0xf]
      %v2611 = vpack.c.bf16 %v2596, %v2595
      %v2612 = vpack.c.bf16 %v2598, %v2597
      %v2613 = vpack.c.bf16 %v2600, %v2599
      %v2614 = vpack.c.bf16 %v2602, %v2601
      %v2615 = vld [vmem:[%s586] sm:$0x1]
      %v2617 = vlaneseq
      %v2618 = vshrl.u32 %v2617, 7
      %v2619 = vsub.s32 0, %v2618
      %v2620 = vrot.slane %v2615, %v2619
      %v2630 = vunpack.c.l.b16 %v2603
      %v2631 = vunpack.c.l.b16 %v2604
      %v2632 = vunpack.c.l.b16 %v2605
      %v2633 = vunpack.c.l.b16 %v2606
      %v2634 = vunpack.c.l.b16 %v2607
      %v2635 = vunpack.c.l.b16 %v2608
      %v2636 = vunpack.c.l.b16 %v2609
      %v2637 = vunpack.c.l.b16 %v2610
      %v2638 = vpack.c.b16 %v2631, %v2630
      %v2639 = vpack.c.b16 %v2633, %v2632
      %v2640 = vpack.c.b16 %v2635, %v2634
      %v2641 = vpack.c.b16 %v2637, %v2636
      %v2647 = vsel %vm695, %v2611, 0
      %v2650 = vsel %vm695, %v2612, 0
      %v2653 = vsel %vm695, %v2613, 0
      %v2656 = vsel %vm695, %v2614, 0
      %2658 = vmatprep.subr.bf16.mxu0 0
      %2659 = vmatpush1.bf16.msra.mxu0 %v2638
      %2660 = vmatprep.subr.bf16.mxu0 0
      %2661 = vmatpush1.bf16.msra.mxu0 %v2639
      %2662 = vmatprep.subr.bf16.mxu0 0
      %2663 = vmatpush1.bf16.msra.mxu0 %v2640
      %2664 = vmatprep.subr.bf16.mxu0 0
      %2665 = vmatpush1.bf16.msra.mxu0 %v2641
      %2666 = vmatprep.subr.bf16.mxu0 0
      %2667 = vmatpush1.bf16.msra.mxu0 0
      %2668 = vmatprep.subr.bf16.mxu0 0
      %2669 = vmatpush1.bf16.msra.mxu0 0
      %2670 = vmatprep.subr.bf16.mxu0 0
      %2671 = vmatpush1.bf16.msra.mxu0 0
      %2672 = vmatprep.subr.bf16.mxu0 0
      %2673 = vmatpush1.bf16.msra.mxu0 0
      %2674 = vmatprep.subr.bf16.mxu0 0
      %2675 = vmatpush1.bf16.msra.mxu0 0
      %2676 = vmatprep.subr.bf16.mxu0 0
      %2677 = vmatpush1.bf16.msra.mxu0 0
      %2678 = vmatprep.subr.bf16.mxu0 0
      %2679 = vmatpush1.bf16.msra.mxu0 0
      %2680 = vmatprep.subr.bf16.mxu0 0
      %2681 = vmatpush1.bf16.msra.mxu0 0
      %2682 = vmatprep.subr.bf16.mxu0 0
      %2683 = vmatpush1.bf16.msra.mxu0 0
      %2684 = vmatprep.subr.bf16.mxu0 0
      %2685 = vmatpush1.bf16.msra.mxu0 0
      %2686 = vmatprep.subr.bf16.mxu0 0
      %2687 = vmatpush1.bf16.msra.mxu0 0
      %2688 = vmatprep.subr.bf16.mxu0 0
      %2689 = vmatpush1.bf16.msra.mxu0 0
      %2690 = vmatprep.mubr.bf16.mxu0 0
      %2691 = vmatmul.mubr.bf16.gmra.mrb[0].mxu0 %v2647
      %v2692 = vpop.f32.mrb[0].mxu0
      %v2693 = vadd.f32 %v2620, %v2692
      %v2694 = vpop.f32.mrb[0].mxu0
      %v2695 = vpop.f32.mrb[0].mxu0
      %v2696 = vadd.f32 %v2620, %v2695
      %v2697 = vpop.f32.mrb[0].mxu0
      %2698 = vmatprep.mubr.bf16.mxu0 0
      %2699 = vmatmul.mubr.bf16.gmra.mrb[0].mxu0 %v2650
      %v2700 = vpop.f32.mrb[0].mxu0
      %v2701 = vadd.f32 %v2620, %v2700
      %v2702 = vpop.f32.mrb[0].mxu0
      %v2703 = vpop.f32.mrb[0].mxu0
      %v2704 = vadd.f32 %v2620, %v2703
      %v2705 = vpop.f32.mrb[0].mxu0
      %2706 = vmatprep.mubr.bf16.mxu0 0
      %2707 = vmatmul.mubr.bf16.gmra.mrb[0].mxu0 %v2653
      %v2708 = vpop.f32.mrb[0].mxu0
      %v2709 = vadd.f32 %v2620, %v2708
      %v2710 = vpop.f32.mrb[0].mxu0
      %v2711 = vpop.f32.mrb[0].mxu0
      %v2712 = vadd.f32 %v2620, %v2711
      %v2713 = vpop.f32.mrb[0].mxu0
      %2714 = vmatprep.mubr.bf16.mxu0 0
      %2715 = vmatmul.mubr.bf16.gmra.mrb[0].mxu0 %v2656
      %v2716 = vpop.f32.mrb[0].mxu0
      %v2717 = vadd.f32 %v2620, %v2716
      %v2718 = vpop.f32.mrb[0].mxu0
      %v2719 = vpop.f32.mrb[0].mxu0
      %v2720 = vadd.f32 %v2620, %v2719
      %v2721 = vpop.f32.mrb[0].mxu0
      %2722 = vdwg.mxu0
      %v2723 = vmul.f32 %v2693, 0.5
      %v2724 = vmul.f32 %v2696, 0.5
      %v2725 = vmul.f32 %v2701, 0.5
      %v2726 = vmul.f32 %v2704, 0.5
      %v2727 = vmul.f32 %v2709, 0.5
      %v2728 = vmul.f32 %v2712, 0.5
      %v2729 = vmul.f32 %v2717, 0.5
      %v2730 = vmul.f32 %v2720, 0.5
      %v2731 = vmul.f32 %v2693, 0.044715
      %v2732 = vmul.f32 %v2696, 0.044715
      %v2733 = vmul.f32 %v2701, 0.044715
      %v2734 = vmul.f32 %v2704, 0.044715
      %v2735 = vmul.f32 %v2709, 0.044715
      %v2736 = vmul.f32 %v2712, 0.044715
      %v2737 = vmul.f32 %v2717, 0.044715
      %v2738 = vmul.f32 %v2720, 0.044715
      %v2739 = vmul.f32 %v2731, %v2693
      %v2740 = vmul.f32 %v2732, %v2696
      %v2741 = vmul.f32 %v2733, %v2701
      %v2742 = vmul.f32 %v2734, %v2704
      %v2743 = vmul.f32 %v2735, %v2709
      %v2744 = vmul.f32 %v2736, %v2712
      %v2745 = vmul.f32 %v2737, %v2717
      %v2746 = vmul.f32 %v2738, %v2720
      %v2747 = vmul.f32 %v2739, %v2693
      %v2748 = vmul.f32 %v2740, %v2696
      %v2749 = vmul.f32 %v2741, %v2701
      %v2750 = vmul.f32 %v2742, %v2704
      %v2751 = vmul.f32 %v2743, %v2709
      %v2752 = vmul.f32 %v2744, %v2712
      %v2753 = vmul.f32 %v2745, %v2717
      %v2754 = vmul.f32 %v2746, %v2720
      %v2755 = vadd.f32 %v2693, %v2747
      %v2756 = vadd.f32 %v2696, %v2748
      %v2757 = vadd.f32 %v2701, %v2749
      %v2758 = vadd.f32 %v2704, %v2750
      %v2759 = vadd.f32 %v2709, %v2751
      %v2760 = vadd.f32 %v2712, %v2752
      %v2761 = vadd.f32 %v2717, %v2753
      %v2762 = vadd.f32 %v2720, %v2754
      %v2763 = vmul.f32 %v2755, 0.7978846
      %v2764 = vmul.f32 %v2756, 0.7978846
      %v2765 = vmul.f32 %v2757, 0.7978846
      %v2766 = vmul.f32 %v2758, 0.7978846
      %v2767 = vmul.f32 %v2759, 0.7978846
      %v2768 = vmul.f32 %v2760, 0.7978846
      %v2769 = vmul.f32 %v2761, 0.7978846
      %v2770 = vmul.f32 %v2762, 0.7978846
      %v2771 = vtanh.pop %v2763
      %v2772 = vtanh.pop %v2764
      %v2773 = vtanh.pop %v2765
      %v2774 = vtanh.pop %v2766
      %v2775 = vtanh.pop %v2767
      %v2776 = vtanh.pop %v2768
      %v2777 = vtanh.pop %v2769
      %v2778 = vtanh.pop %v2770
      %v2779 = vadd.f32 %v2771, 1.0
      %v2780 = vadd.f32 %v2772, 1.0
      %v2781 = vadd.f32 %v2773, 1.0
      %v2782 = vadd.f32 %v2774, 1.0
      %v2783 = vadd.f32 %v2775, 1.0
      %v2784 = vadd.f32 %v2776, 1.0
      %v2785 = vadd.f32 %v2777, 1.0
      %v2786 = vadd.f32 %v2778, 1.0
      %v2787 = vmul.f32 %v2723, %v2779
      %v2788 = vmul.f32 %v2724, %v2780
      %v2789 = vmul.f32 %v2725, %v2781
      %v2790 = vmul.f32 %v2726, %v2782
      %v2791 = vmul.f32 %v2727, %v2783
      %v2792 = vmul.f32 %v2728, %v2784
      %v2793 = vmul.f32 %v2729, %v2785
      %v2794 = vmul.f32 %v2730, %v2786
      %v2795 = vld [vmem:[%s591] sm:$0xf]
      %v2796 = vld [vmem:[%s591 + $0x4] sm:$0xf]
      %v2797 = vld [vmem:[%s591 + $0x8] sm:$0xf]
      %v2798 = vld [vmem:[%s591 + $0xc] sm:$0xf]
      %v2799 = vld [vmem:[%s591 + $0x10] sm:$0xf]
      %v2800 = vld [vmem:[%s591 + $0x14] sm:$0xf]
      %v2801 = vld [vmem:[%s591 + $0x18] sm:$0xf]
      %v2802 = vld [vmem:[%s591 + $0x1c] sm:$0xf]
      %v2803 = vld [vmem:[%s591 + $0x20] sm:$0xf]
      %v2804 = vld [vmem:[%s591 + $0x24] sm:$0xf]
      %v2805 = vld [vmem:[%s591 + $0x28] sm:$0xf]
      %v2806 = vld [vmem:[%s591 + $0x2c] sm:$0xf]
      %v2807 = vld [vmem:[%s591 + $0x30] sm:$0xf]
      %v2808 = vld [vmem:[%s591 + $0x34] sm:$0xf]
      %v2809 = vld [vmem:[%s591 + $0x38] sm:$0xf]
      %v2810 = vld [vmem:[%s591 + $0x3c] sm:$0xf]
      %v2811 = vpack.c.bf16 %v2788, %v2787
      %v2812 = vpack.c.bf16 %v2790, %v2789
      %v2813 = vpack.c.bf16 %v2792, %v2791
      %v2814 = vpack.c.bf16 %v2794, %v2793
      %v2815 = vld [vmem:[%s594] sm:$0x1]
      %v2817 = vlaneseq
      %v2818 = vshrl.u32 %v2817, 7
      %v2819 = vsub.s32 0, %v2818
      %v2820 = vrot.slane %v2815, %v2819
      %v2838 = vunpack.c.l.b16 %v2795
      %v2839 = vunpack.c.l.b16 %v2796
      %v2840 = vunpack.c.l.b16 %v2797
      %v2841 = vunpack.c.l.b16 %v2798
      %v2842 = vunpack.c.l.b16 %v2799
      %v2843 = vunpack.c.l.b16 %v2800
      %v2844 = vunpack.c.l.b16 %v2801
      %v2845 = vunpack.c.l.b16 %v2802
      %v2846 = vunpack.c.l.b16 %v2803
      %v2847 = vunpack.c.l.b16 %v2804
      %v2848 = vunpack.c.l.b16 %v2805
      %v2849 = vunpack.c.l.b16 %v2806
      %v2850 = vunpack.c.l.b16 %v2807
      %v2851 = vunpack.c.l.b16 %v2808
      %v2852 = vunpack.c.l.b16 %v2809
      %v2853 = vunpack.c.l.b16 %v2810
      %v2854 = vpack.c.b16 %v2839, %v2838
      %v2855 = vpack.c.b16 %v2841, %v2840
      %v2856 = vpack.c.b16 %v2843, %v2842
      %v2857 = vpack.c.b16 %v2845, %v2844
      %v2858 = vpack.c.b16 %v2847, %v2846
      %v2859 = vpack.c.b16 %v2849, %v2848
      %v2860 = vpack.c.b16 %v2851, %v2850
      %v2861 = vpack.c.b16 %v2853, %v2852
      %2870 = vmatprep.subr.bf16.mxu0 0
      %2871 = vmatpush1.bf16.msra.mxu0 %v2854
      %2872 = vmatprep.subr.bf16.mxu0 0
      %2873 = vmatpush1.bf16.msra.mxu0 %v2855
      %2874 = vmatprep.subr.bf16.mxu0 0
      %2875 = vmatpush1.bf16.msra.mxu0 %v2856
      %2876 = vmatprep.subr.bf16.mxu0 0
      %2877 = vmatpush1.bf16.msra.mxu0 %v2857
      %2878 = vmatprep.subr.bf16.mxu0 0
      %2879 = vmatpush1.bf16.msra.mxu0 %v2858
      %2880 = vmatprep.subr.bf16.mxu0 0
      %2881 = vmatpush1.bf16.msra.mxu0 %v2859
      %2882 = vmatprep.subr.bf16.mxu0 0
      %2883 = vmatpush1.bf16.msra.mxu0 %v2860
      %2884 = vmatprep.subr.bf16.mxu0 0
      %2885 = vmatpush1.bf16.msra.mxu0 %v2861
      %2886 = vmatprep.subr.bf16.mxu0 0
      %2887 = vmatpush1.bf16.msra.mxu0 0
      %2888 = vmatprep.subr.bf16.mxu0 0
      %2889 = vmatpush1.bf16.msra.mxu0 0
      %2890 = vmatprep.subr.bf16.mxu0 0
      %2891 = vmatpush1.bf16.msra.mxu0 0
      %2892 = vmatprep.subr.bf16.mxu0 0
      %2893 = vmatpush1.bf16.msra.mxu0 0
      %2894 = vmatprep.subr.bf16.mxu0 0
      %2895 = vmatpush1.bf16.msra.mxu0 0
      %2896 = vmatprep.subr.bf16.mxu0 0
      %2897 = vmatpush1.bf16.msra.mxu0 0
      %2898 = vmatprep.subr.bf16.mxu0 0
      %2899 = vmatpush1.bf16.msra.mxu0 0
      %2900 = vmatprep.subr.bf16.mxu0 0
      %2901 = vmatpush1.bf16.msra.mxu0 0
      %2902 = vmatprep.mubr.bf16.mxu0 0
      %2903 = vmatmul.mubr.bf16.gmra.mrb[0].mxu0 %v2811
      %v2904 = vpop.f32.mrb[0].mxu0
      %v2905 = vadd.f32 %v2820, %v2904
      %v2906 = vpop.f32.mrb[0].mxu0
      %v2907 = vpop.f32.mrb[0].mxu0
      %v2908 = vadd.f32 %v2820, %v2907
      %v2909 = vpop.f32.mrb[0].mxu0
      %2910 = vmatprep.mubr.bf16.mxu0 0
      %2911 = vmatmul.mubr.bf16.gmra.mrb[0].mxu0 %v2812
      %v2912 = vpop.f32.mrb[0].mxu0
      %v2913 = vadd.f32 %v2820, %v2912
      %v2914 = vpop.f32.mrb[0].mxu0
      %v2915 = vpop.f32.mrb[0].mxu0
      %v2916 = vadd.f32 %v2820, %v2915
      %v2917 = vpop.f32.mrb[0].mxu0
      %2918 = vmatprep.mubr.bf16.mxu0 0
      %2919 = vmatmul.mubr.bf16.gmra.mrb[0].mxu0 %v2813
      %v2920 = vpop.f32.mrb[0].mxu0
      %v2921 = vadd.f32 %v2820, %v2920
      %v2922 = vpop.f32.mrb[0].mxu0
      %v2923 = vpop.f32.mrb[0].mxu0
      %v2924 = vadd.f32 %v2820, %v2923
      %v2925 = vpop.f32.mrb[0].mxu0
      %2926 = vmatprep.mubr.bf16.mxu0 0
      %2927 = vmatmul.mubr.bf16.gmra.mrb[0].mxu0 %v2814
      %v2928 = vpop.f32.mrb[0].mxu0
      %v2929 = vadd.f32 %v2820, %v2928
      %v2930 = vpop.f32.mrb[0].mxu0
      %v2931 = vpop.f32.mrb[0].mxu0
      %v2932 = vadd.f32 %v2820, %v2931
      %v2933 = vpop.f32.mrb[0].mxu0
      %2934 = vdwg.mxu0
      %v2935 = vadd.f32 %v2595, %v2905
      %v2936 = vadd.f32 %v2596, %v2908
      %v2937 = vadd.f32 %v2597, %v2913
      %v2938 = vadd.f32 %v2598, %v2916
      %v2939 = vadd.f32 %v2599, %v2921
      %v2940 = vadd.f32 %v2600, %v2924
      %v2941 = vadd.f32 %v2601, %v2929
      %v2942 = vadd.f32 %v2602, %v2932
      %v2943 = vld [vmem:[%s597] sm:$0x1]
      %v2944 = vld [vmem:[%s600] sm:$0x1]
      %v2945 = vsel %vm695, %v2935, 0.0
      %2946 = vadd.xlane.f32.xlu0 %v2945
      %v2947 = vpop.xlane.xlu0 %2946
      %v2948 = vsel %vm695, %v2936, 0.0
      %2949 = vadd.xlane.f32.xlu0 %v2948
      %v2950 = vpop.xlane.xlu0 %2949
      %v2951 = vsel %vm695, %v2937, 0.0
      %2952 = vadd.xlane.f32.xlu0 %v2951
      %v2953 = vpop.xlane.xlu0 %2952
      %v2954 = vsel %vm695, %v2938, 0.0
      %2955 = vadd.xlane.f32.xlu0 %v2954
      %v2956 = vpop.xlane.xlu0 %2955
      %v2957 = vsel %vm695, %v2939, 0.0
      %2958 = vadd.xlane.f32.xlu0 %v2957
      %v2959 = vpop.xlane.xlu0 %2958
      %v2960 = vsel %vm695, %v2940, 0.0
      %2961 = vadd.xlane.f32.xlu0 %v2960
      %v2962 = vpop.xlane.xlu0 %2961
      %v2963 = vsel %vm695, %v2941, 0.0
      %2964 = vadd.xlane.f32.xlu0 %v2963
      %v2965 = vpop.xlane.xlu0 %2964
      %v2966 = vsel %vm695, %v2942, 0.0
      %2967 = vadd.xlane.f32.xlu0 %v2966
      %v2968 = vpop.xlane.xlu0 %2967
      %v2969 = vmul.f32 %v2947, %v2494
      %v2970 = vmul.f32 %v2950, %v2494
      %v2971 = vmul.f32 %v2953, %v2494
      %v2972 = vmul.f32 %v2956, %v2494
      %v2973 = vmul.f32 %v2959, %v2494
      %v2974 = vmul.f32 %v2962, %v2494
      %v2975 = vmul.f32 %v2965, %v2494
      %v2976 = vmul.f32 %v2968, %v2494
      %v2977 = vsub.f32 %v2935, %v2969
      %v2978 = vsub.f32 %v2936, %v2970
      %v2979 = vsub.f32 %v2937, %v2971
      %v2980 = vsub.f32 %v2938, %v2972
      %v2981 = vsub.f32 %v2939, %v2973
      %v2982 = vsub.f32 %v2940, %v2974
      %v2983 = vsub.f32 %v2941, %v2975
      %v2984 = vsub.f32 %v2942, %v2976
      %v2985 = vmul.f32 %v2977, %v2977
      %v2986 = vmul.f32 %v2978, %v2978
      %v2987 = vmul.f32 %v2979, %v2979
      %v2988 = vmul.f32 %v2980, %v2980
      %v2989 = vmul.f32 %v2981, %v2981
      %v2990 = vmul.f32 %v2982, %v2982
      %v2991 = vmul.f32 %v2983, %v2983
      %v2992 = vmul.f32 %v2984, %v2984
      %v2993 = vsel %vm695, %v2985, 0.0
      %2994 = vadd.xlane.f32.xlu0 %v2993
      %v2995 = vpop.xlane.xlu0 %2994
      %v2996 = vsel %vm695, %v2986, 0.0
      %2997 = vadd.xlane.f32.xlu0 %v2996
      %v2998 = vpop.xlane.xlu0 %2997
      %v2999 = vsel %vm695, %v2987, 0.0
      %3000 = vadd.xlane.f32.xlu0 %v2999
      %v3001 = vpop.xlane.xlu0 %3000
      %v3002 = vsel %vm695, %v2988, 0.0
      %3003 = vadd.xlane.f32.xlu0 %v3002
      %v3004 = vpop.xlane.xlu0 %3003
      %v3005 = vsel %vm695, %v2989, 0.0
      %3006 = vadd.xlane.f32.xlu0 %v3005
      %v3007 = vpop.xlane.xlu0 %3006
      %v3008 = vsel %vm695, %v2990, 0.0
      %3009 = vadd.xlane.f32.xlu0 %v3008
      %v3010 = vpop.xlane.xlu0 %3009
      %v3011 = vsel %vm695, %v2991, 0.0
      %3012 = vadd.xlane.f32.xlu0 %v3011
      %v3013 = vpop.xlane.xlu0 %3012
      %v3014 = vsel %vm695, %v2992, 0.0
      %3015 = vadd.xlane.f32.xlu0 %v3014
      %v3016 = vpop.xlane.xlu0 %3015
      %v3017 = vmul.f32 %v2995, %v2494
      %v3018 = vmul.f32 %v2998, %v2494
      %v3019 = vmul.f32 %v3001, %v2494
      %v3020 = vmul.f32 %v3004, %v2494
      %v3021 = vmul.f32 %v3007, %v2494
      %v3022 = vmul.f32 %v3010, %v2494
      %v3023 = vmul.f32 %v3013, %v2494
      %v3024 = vmul.f32 %v3016, %v2494
      %v3025 = vadd.f32 %v3017, 1e-05
      %v3026 = vadd.f32 %v3018, 1e-05
      %v3027 = vadd.f32 %v3019, 1e-05
      %v3028 = vadd.f32 %v3020, 1e-05
      %v3029 = vadd.f32 %v3021, 1e-05
      %v3030 = vadd.f32 %v3022, 1e-05
      %v3031 = vadd.f32 %v3023, 1e-05
      %v3032 = vadd.f32 %v3024, 1e-05
      %v3033 = vrsqrt.pop %v3025
      %v3034 = vrsqrt.pop %v3026
      %v3035 = vrsqrt.pop %v3027
      %v3036 = vrsqrt.pop %v3028
      %v3037 = vrsqrt.pop %v3029
      %v3038 = vrsqrt.pop %v3030
      %v3039 = vrsqrt.pop %v3031
      %v3040 = vrsqrt.pop %v3032
      %v3041 = vmul.f32 %v2977, %v3033
      %v3042 = vmul.f32 %v2978, %v3034
      %v3043 = vmul.f32 %v2979, %v3035
      %v3044 = vmul.f32 %v2980, %v3036
      %v3045 = vmul.f32 %v2981, %v3037
      %v3046 = vmul.f32 %v2982, %v3038
      %v3047 = vmul.f32 %v2983, %v3039
      %v3048 = vmul.f32 %v2984, %v3040
      %v3050 = vlaneseq
      %v3051 = vshrl.u32 %v3050, 7
      %v3052 = vsub.s32 0, %v3051
      %v3053 = vrot.slane %v2943, %v3052
      %v3055 = vmul.f32 %v3041, %v3053
      %v3056 = vmul.f32 %v3042, %v3053
      %v3057 = vmul.f32 %v3043, %v3053
      %v3058 = vmul.f32 %v3044, %v3053
      %v3059 = vmul.f32 %v3045, %v3053
      %v3060 = vmul.f32 %v3046, %v3053
      %v3061 = vmul.f32 %v3047, %v3053
      %v3062 = vmul.f32 %v3048, %v3053
      %v3064 = vlaneseq
      %v3065 = vshrl.u32 %v3064, 7
      %v3066 = vsub.s32 0, %v3065
      %v3067 = vrot.slane %v2944, %v3066
      %v3069 = vadd.f32 %v3055, %v3067
      %v3070 = vadd.f32 %v3056, %v3067
      %v3071 = vadd.f32 %v3057, %v3067
      %v3072 = vadd.f32 %v3058, %v3067
      %v3073 = vadd.f32 %v3059, %v3067
      %v3074 = vadd.f32 %v3060, %v3067
      %v3075 = vadd.f32 %v3061, %v3067
      %v3076 = vadd.f32 %v3062, %v3067
      %3077 = vst.msk [vmem:[%s13] sm:$0xff] %vm695, %v3069
      %3078 = vst.msk [vmem:[%s13 + $0x8] sm:$0xff] %vm695, %v3070
      %3079 = vst.msk [vmem:[%s13 + $0x10] sm:$0xff] %vm695, %v3071
      %3080 = vst.msk [vmem:[%s13 + $0x18] sm:$0xff] %vm695, %v3072
      %3081 = vst.msk [vmem:[%s13 + $0x20] sm:$0xff] %vm695, %v3073
      %3082 = vst.msk [vmem:[%s13 + $0x28] sm:$0xff] %vm695, %v3074
      %3083 = vst.msk [vmem:[%s13 + $0x30] sm:$0xff] %vm695, %v3075
      %3084 = vst.msk [vmem:[%s13 + $0x38] sm:$0xff] %vm695, %v3076
      // Predicated region
      $region77: #{_lambda_.10} parent=71 // pred_check
        %p3085 = pneg %p370
      $region78: #{_lambda_.10} parent=71 // pred_check_branch
        %3087 = sbr.rel (%p3085) target = $region80
      $region79: #{_lambda_.10} parent=71 // pred_region
        _
      $region80: #{_lambda_.10} parent=71 // pred_fallthru
        _
      // Predicated region
      $region81: #{_lambda_.10} parent=71 // pred_check
        %p3088 = pneg %p370
      $region82: #{_lambda_.10} parent=71 // pred_check_branch
        %3090 = sbr.rel (%p3088) target = $region84
      $region83: #{_lambda_.10} parent=71 // pred_region
        _
      $region84: #{_lambda_.10} parent=71 // pred_fallthru
        _
    $region72: #{_lambda_.10} parent=5 // pred_fallthru
      _
    %p3091 = scmp.le.s32.totalorder 2, %s19
    // Predicated region
    $region85: #{_lambda_.10} parent=5 // pred_check
      %p3092 = pneg %p3091
    $region86: #{_lambda_.10} parent=5 // pred_check_branch
      %3094 = sbr.rel (%p3092) target = $region88
    $region87: #{_lambda_.10} parent=5 // pred_region
      %s3095 = ssub.s32 %s19, 2
    $region88: #{_lambda_.10} parent=5 // pred_fallthru
      _
  $region6: #{_lambda_.10} parent=0 // loop_footer
    %s23 = sadd.s32 1, %s19
  $region7: #{_lambda_.10} parent=0 // loop_footer_branch
    %18 = sbr.rel target = $region3
  $region8: #{_lambda_.10} parent=0 // loop_exit
    _

</llo_original>
